<compile_context>
chip_gen: v7x
topology: tpu7x:2x2x1
jax: 0.10.0
libtpu: 0.0.40
codegen_flags: <defaults>
</compile_context>

<pallas_src>
import jax
import jax.numpy as jnp
from jax.experimental import pallas as pl
from jax.experimental.pallas import tpu as pltpu

EPS = 1e-5  # nn.BatchNorm2d default eps


# ---------------------------------------------------------------------------
# In-kernel 3x3 conv core: 9 shifted-accumulate MXU dots
# ---------------------------------------------------------------------------
def _conv3x3_taps(h, w_ref, m_ref, acc_ref):
    """3x3 / stride-1 / pad-1 conv of one batch block.

    h      : (bb, H, W, Cin)  bf16 activation (bn+ReLU already applied for conv2)
    w_ref  : (9, Cin, Cout)   VMEM weights, tap-major (ky*3 + kx)
    m_ref  : (4, M, 1)        f32 border masks [row>0, row<H-1, col>0, col<W-1]
    acc_ref: (M, Cout)        f32 VMEM accumulator scratch, M = bb*H*W

    Each tap is ONE (M, Cin) x (Cin, Cout) MXU dot; the (ky, kx) spatial shift
    is an XLU roll of the f32 partial along the flattened pixel axis, and
    out-of-image taps are zeroed by the masks -- exactly Conv2d(padding=1)
    applied to the (post-ReLU) activation.
    """
    bb, H, W, Cin = h.shape
    M, Cout = acc_ref.shape
    rows = h.reshape(M, Cin)
    row_up, row_dn, col_lt, col_rt = m_ref[0], m_ref[1], m_ref[2], m_ref[3]

    for ky in range(3):
        part = None
        for kx in range(3):
            z = jnp.dot(rows, w_ref[3 * ky + kx],
                        preferred_element_type=jnp.float32)
            # destination pixel m reads source pixel m - shift
            shift = (1 - ky) * W + (1 - kx)
            if shift % M:
                z = pltpu.roll(z, shift % M, axis=0)
            if ky == 0:
                z = z * row_up
            elif ky == 2:
                z = z * row_dn
            if kx == 0:
                z = z * col_lt
            elif kx == 2:
                z = z * col_rt
            part = z if part is None else part + z
        if ky == 0:
            acc_ref[...] = part
        else:
            acc_ref[...] += part
    return acc_ref[...].reshape(bb, H, W, Cout)


def _store_out_and_stats(y, y_ref, st_ref):
    """bf16 conv output + per-step f32 [sum, sum-of-squares] channel moments."""
    bb, H, W, C = y.shape
    y_ref[...] = y.astype(y_ref.dtype)
    yf = y.reshape(bb * H * W, C)
    s = jnp.sum(yf, axis=0, keepdims=True)
    ss = jnp.sum(yf * yf, axis=0, keepdims=True)
    st_ref[...] = jnp.concatenate([s, ss], axis=0)


def _conv1_kernel(x_ref, w_ref, m_ref, y_ref, st_ref, acc_ref):
    y = _conv3x3_taps(x_ref[...], w_ref, m_ref, acc_ref)
    _store_out_and_stats(y, y_ref, st_ref)


def _conv2_kernel(x_ref, w_ref, s_ref, b_ref, m_ref, y_ref, st_ref, acc_ref):
    # bn1 + ReLU fused here (scale/bias precomputed from conv1's moments).
    # The zero border of Conv2d(padding=1) is reproduced by the tap masks,
    # i.e. padding is applied AFTER bn+relu, exactly as in the module.
    h = jnp.maximum(x_ref[...].astype(jnp.float32) * s_ref[...] + b_ref[...],
                    0.0).astype(x_ref.dtype)
    y = _conv3x3_taps(h, w_ref, m_ref, acc_ref)
    _store_out_and_stats(y, y_ref, st_ref)


def _bn_add_relu_kernel(y_ref, r_ref, s_ref, b_ref, o_ref):
    o = (y_ref[...].astype(jnp.float32) * s_ref[...] + b_ref[...]
         + r_ref[...].astype(jnp.float32))
    o_ref[...] = jnp.maximum(o, 0.0).astype(o_ref.dtype)


# ---------------------------------------------------------------------------
# Wrappers
# ---------------------------------------------------------------------------
def _border_masks(bb, H, W):
    """(4, bb*H*W, 1) f32 multiplicative masks for the 8 off-centre conv taps."""
    hidx = jnp.tile(jnp.repeat(jnp.arange(H), W), bb)
    xidx = jnp.tile(jnp.arange(W), bb * H)
    m = jnp.stack([hidx > 0, hidx < H - 1, xidx > 0, xidx < W - 1])
    return m.astype(jnp.float32)[:, :, None]            # (4, M, 1)


def _pick_batch_block(B, H, W, C):
    """Largest batch block that (a) keeps >= 2 grid steps when B >= 2 so both
    v7x TensorCores get work, and (b) keeps per-step VMEM use small (well under
    the 64 MiB physical VMEM of v7x)."""
    per_img = 24 * H * W * C          # rough per-image VMEM bytes (tiles+acc+vregs)
    cap = 8 * 1024 * 1024
    bb = 1
    for cand in range(1, B + 1):
        if B % cand:
            continue
        if cand * per_img > cap:
            break
        if B // cand >= 2 or B == 1:
            bb = cand
    return bb


def _conv3x3_pass(x, w_taps, scale, bias, *, bb):
    """Pipelined 3x3/stride-1/pad-1 conv over NHWC `x`, grid over batch blocks.

    If scale/bias are given, y = conv(relu(x*scale + bias)) (bn1+ReLU fused).
    Returns (bf16 conv output, per-step f32 [sum, sumsq] channel moments).
    """
    B, H, W, C = x.shape
    Cout = w_taps.shape[-1]
    nb = B // bb
    M = bb * H * W
    fused = scale is not None
    masks = _border_masks(bb, H, W)

    in_specs = [pl.BlockSpec((bb, H, W, C), lambda i: (i, 0, 0, 0)),
                # constant index maps -> DMA'd once, VMEM-resident across steps
                pl.BlockSpec((9, C, Cout), lambda i: (0, 0, 0))]
    args = [x, w_taps]
    if fused:
        in_specs += [pl.BlockSpec((1, C), lambda i: (0, 0)),
                     pl.BlockSpec((1, C), lambda i: (0, 0))]
        args += [scale, bias]
    in_specs += [pl.BlockSpec((4, M, 1), lambda i: (0, 0, 0))]
    args += [masks]

    itm = x.dtype.itemsize
    need = (2 * bb * H * W * (C + Cout) * itm   # double-buffered in/out tiles
            + 2 * 9 * C * Cout * itm            # weights
            + 4 * M * 4 + 8 * C * 4             # masks + bn params
            + M * Cout * 4                      # f32 accumulator scratch
            + M * (2 * C + 8 * Cout))           # live-value headroom
    vlim = int(min(max(2 * need, 16 * 1024 * 1024), 48 * 1024 * 1024))

    return pl.pallas_call(
        _conv2_kernel if fused else _conv1_kernel,
        grid=(nb,),
        in_specs=in_specs,
        out_specs=[pl.BlockSpec((bb, H, W, Cout), lambda i: (i, 0, 0, 0)),
                   pl.BlockSpec((None, 2, Cout), lambda i: (i, 0, 0))],
        out_shape=[jax.ShapeDtypeStruct((B, H, W, Cout), jnp.bfloat16),
                   jax.ShapeDtypeStruct((nb, 2, Cout), jnp.float32)],
        scratch_shapes=[pltpu.VMEM((M, Cout), jnp.float32)],
        compiler_params=pltpu.CompilerParams(
            dimension_semantics=("parallel",),   # >=2 steps when B>=2 (megacore)
            vmem_limit_bytes=vlim),
        cost_estimate=pl.CostEstimate(
            flops=2 * B * H * W * 9 * C * Cout,
            transcendentals=0,
            bytes_accessed=(B * H * W * (C + Cout) * itm
                            + 9 * C * Cout * itm + nb * 2 * Cout * 4)),
    )(*args)


def _bn_add_relu_pass(y2, resid, scale, bias, *, bb, out_dtype):
    B, H, W, C = y2.shape
    nb = B // bb
    return pl.pallas_call(
        _bn_add_relu_kernel,
        grid=(nb,),
        in_specs=[pl.BlockSpec((bb, H, W, C), lambda i: (i, 0, 0, 0)),
                  pl.BlockSpec((bb, H, W, C), lambda i: (i, 0, 0, 0)),
                  pl.BlockSpec((1, C), lambda i: (0, 0)),
                  pl.BlockSpec((1, C), lambda i: (0, 0))],
        out_specs=pl.BlockSpec((bb, H, W, C), lambda i: (i, 0, 0, 0)),
        out_shape=jax.ShapeDtypeStruct((B, H, W, C), out_dtype),
        compiler_params=pltpu.CompilerParams(
            dimension_semantics=("parallel",)),
    )(y2, resid, scale, bias)


def basic_block(x_nchw, w1, w2, g1, b1, g2, b2, *, batch_block=None,
                mxu_dtype=jnp.bfloat16):
    """BasicBlock forward (stride=1, downsample=None, training-mode BatchNorm):
        relu(bn2(conv2(relu(bn1(conv1(x))))) + x)
    x_nchw: (B, C, H, W); w1/w2: (C, C, 3, 3); g*/b*: (C,).
    """
    B, Cin, H, W = x_nchw.shape
    C = w1.shape[0]
    assert Cin == C and w1.shape == (C, C, 3, 3) and w2.shape == (C, C, 3, 3), \
        "stride=1 / downsample=None requires inplanes == planes"

    bb = _pick_batch_block(B, H, W, C) if batch_block is None else batch_block
    assert B % bb == 0

    # Single layout-prep pass: NHWC + bf16.  This one array is both the conv1
    # input AND the residual of the final add (no separate residual copy, no
    # spatially padded copy in HBM, no channel padding).
    x = jnp.transpose(x_nchw, (0, 2, 3, 1)).astype(mxu_dtype)      # (B,H,W,C)

    def prep_w(w):                       # (O,I,3,3) -> (9, I, O), tap-major
        return jnp.transpose(w, (2, 3, 1, 0)).reshape(9, C, C).astype(mxu_dtype)

    n = B * H * W

    def finalize_bn(st, g, b):
        # accumulate-then-finalize: tiny per-channel reduce of the per-step
        # [sum, sumsq] moments emitted by the conv kernels (f32 throughout).
        # TODO(synk): E[x^2]-E[x]^2 in f32 can cancel when |mean| >> std;
        # center per-step sums if this block sits deep in a real network.
        s = jnp.sum(st, axis=0)
        m = s[0] / n
        v = jnp.maximum(s[1] / n - m * m, 0.0)
        scale = g * jax.lax.rsqrt(v + EPS)
        return scale.reshape(1, C), (b - m * scale).reshape(1, C)

    # ---- conv1 (+ per-step BN moments) -------------------------------------
    y1, st1 = _conv3x3_pass(x, prep_w(w1), None, None, bb=bb)
    scale1, bias1 = finalize_bn(st1, g1, b1)

    # ---- conv2 with bn1 + ReLU fused into the kernel ------------------------
    y2, st2 = _conv3x3_pass(y1, prep_w(w2), scale1, bias1, bb=bb)
    scale2, bias2 = finalize_bn(st2, g2, b2)

    # ---- bn2 + residual add + ReLU (lane-dense elementwise kernel) ----------
    out = _bn_add_relu_pass(y2, x, scale2, bias2, bb=bb, out_dtype=x_nchw.dtype)

    # TODO(synk): drop this transpose (and the one above) if the surrounding
    # network runs channels-last; they are the only remaining XLA passes.
    # TODO(synk): eval-mode BN (running stats) would let bn1/bn2 fold into the
    # conv kernels and remove the moment outputs entirely.
    return jnp.transpose(out, (0, 3, 1, 2))


# ---------------------------------------------------------------------------
# Pure-JAX reference (mirrors the PyTorch forward; bf16 MXU conv inputs)
# ---------------------------------------------------------------------------
def basic_block_reference(x, w1, w2, g1, b1, g2, b2, mxu_dtype=jnp.bfloat16):
    def conv(x, w):
        return jax.lax.conv_general_dilated(
            x.astype(mxu_dtype), w.astype(mxu_dtype),
            window_strides=(1, 1), padding=((1, 1), (1, 1)),
            dimension_numbers=("NCHW", "OIHW", "NCHW"),
            preferred_element_type=jnp.float32)

    def bn(y, g, b):
        m = jnp.mean(y, axis=(0, 2, 3), keepdims=True)
        v = jnp.mean((y - m) ** 2, axis=(0, 2, 3), keepdims=True)
        return ((y - m) * jax.lax.rsqrt(v + EPS)
                * g.reshape(1, -1, 1, 1) + b.reshape(1, -1, 1, 1))

    h = jnp.maximum(bn(conv(x, w1), g1, b1), 0.0)
    o = bn(conv(h, w2), g2, b2) + x
    return jnp.maximum(o, 0.0)


if __name__ == "__main__":
    B, C, H, W = 2, 64, 16, 16   # inplanes == planes, stride=1, downsample=None
    key = jax.random.PRNGKey(0)
    kx_, kw1, kw2, kg1, kb1, kg2, kb2 = jax.random.split(key, 7)

    x = jax.random.normal(kx_, (B, C, H, W), jnp.float32)
    w1 = jax.random.normal(kw1, (C, C, 3, 3), jnp.float32) * 0.1
    w2 = jax.random.normal(kw2, (C, C, 3, 3), jnp.float32) * 0.1
    g1 = 1.0 + 0.1 * jax.random.normal(kg1, (C,), jnp.float32)
    b1 = 0.1 * jax.random.normal(kb1, (C,), jnp.float32)
    g2 = 1.0 + 0.1 * jax.random.normal(kg2, (C,), jnp.float32)
    b2 = 0.1 * jax.random.normal(kb2, (C,), jnp.float32)

    fwd = jax.jit(basic_block)
    out = jax.block_until_ready(fwd(x, w1, w2, g1, b1, g2, b2))
    ref = jax.block_until_ready(
        basic_block_reference(x, w1, w2, g1, b1, g2, b2))

    assert out.shape == (B, C, H, W)
    err = float(jnp.max(jnp.abs(out - ref)))
    # tolerance covers bf16 storage of the inter-pass activations (y1, y2) and
    # of the residual, on top of the bf16 MXU conv inputs used by both sides.
    assert jnp.allclose(out, ref, rtol=2.5e-2, atol=2.5e-2), f"max abs err {err}"
    print("KERNEL_OK")
</pallas_src>

<mosaic_0001>
module attributes {stable_mosaic.version = 11 : i64} {
  func.func @_conv2_kernel(%arg0: i32, %arg1: memref<1x16x16x64xbf16, #tpu.memory_space<vmem>>, %arg2: memref<9x64x64xbf16, #tpu.memory_space<vmem>>, %arg3: memref<1x64xf32, #tpu.memory_space<vmem>>, %arg4: memref<1x64xf32, #tpu.memory_space<vmem>>, %arg5: memref<4x256x1xf32, #tpu.memory_space<vmem>>, %arg6: memref<1x16x16x64xbf16, #tpu.memory_space<vmem>>, %arg7: memref<1x2x64xf32, #tpu.memory_space<vmem>>, %arg8: memref<256x64xf32, #tpu.memory_space<vmem>>) attributes {dimension_semantics = [#tpu.dimension_semantics<parallel>], iteration_bounds = array<i64: 2>, scalar_prefetch = 0 : i64, scratch_operands = 1 : i64, tpu.core_type = #tpu.core_type<tc>, window_params = [{transform_indices = @transform_0, window_bounds = array<i64: 1, 16, 16, 64>}, {pipeline_mode = #tpu.pipeline_mode<synchronous>, transform_indices = @transform_1, window_bounds = array<i64: 9, 64, 64>}, {pipeline_mode = #tpu.pipeline_mode<synchronous>, transform_indices = @transform_2, window_bounds = array<i64: 1, 64>}, {pipeline_mode = #tpu.pipeline_mode<synchronous>, transform_indices = @transform_3, window_bounds = array<i64: 1, 64>}, {pipeline_mode = #tpu.pipeline_mode<synchronous>, transform_indices = @transform_4, window_bounds = array<i64: 4, 256, 1>}, {transform_indices = @transform_5, window_bounds = array<i64: 1, 16, 16, 64>}, {transform_indices = @transform_6, window_bounds = array<i64: 1, 2, 64>}]} {
    %c0 = arith.constant 0 : index
    %c0_0 = arith.constant 0 : index
    %c0_1 = arith.constant 0 : index
    %c0_2 = arith.constant 0 : index
    %0 = vector.load %arg1[%c0, %c0_0, %c0_1, %c0_2] : memref<1x16x16x64xbf16, #tpu.memory_space<vmem>>, vector<1x16x16x64xbf16>
    %1 = arith.extf %0 : vector<1x16x16x64xbf16> to vector<1x16x16x64xf32>
    %c0_3 = arith.constant 0 : index
    %c0_4 = arith.constant 0 : index
    %2 = vector.load %arg3[%c0_3, %c0_4] : memref<1x64xf32, #tpu.memory_space<vmem>>, vector<1x64xf32>
    %3 = vector.shape_cast %2 : vector<1x64xf32> to vector<1x1x1x64xf32>
    %4 = vector.broadcast %3 : vector<1x1x1x64xf32> to vector<1x16x16x64xf32>
    %5 = arith.mulf %1, %4 : vector<1x16x16x64xf32>
    %c0_5 = arith.constant 0 : index
    %c0_6 = arith.constant 0 : index
    %6 = vector.load %arg4[%c0_5, %c0_6] : memref<1x64xf32, #tpu.memory_space<vmem>>, vector<1x64xf32>
    %7 = vector.shape_cast %6 : vector<1x64xf32> to vector<1x1x1x64xf32>
    %8 = vector.broadcast %7 : vector<1x1x1x64xf32> to vector<1x16x16x64xf32>
    %9 = arith.addf %5, %8 : vector<1x16x16x64xf32>
    %cst = arith.constant 0.000000e+00 : f32
    %10 = vector.broadcast %cst : f32 to vector<1x16x16x64xf32>
    %11 = arith.maximumf %9, %10 : vector<1x16x16x64xf32>
    %12 = arith.truncf %11 : vector<1x16x16x64xf32> to vector<1x16x16x64xbf16>
    %13 = vector.shape_cast %12 : vector<1x16x16x64xbf16> to vector<256x64xbf16>
    %c0_7 = arith.constant 0 : index
    %c0_8 = arith.constant 0 : index
    %c0_9 = arith.constant 0 : index
    %14 = vector.load %arg5[%c0_7, %c0_8, %c0_9] : memref<4x256x1xf32, #tpu.memory_space<vmem>>, vector<1x256x1xf32>
    %15 = vector.shape_cast %14 : vector<1x256x1xf32> to vector<256x1xf32>
    %c1 = arith.constant 1 : index
    %c0_10 = arith.constant 0 : index
    %c0_11 = arith.constant 0 : index
    %16 = vector.load %arg5[%c1, %c0_10, %c0_11] : memref<4x256x1xf32, #tpu.memory_space<vmem>>, vector<1x256x1xf32>
    %17 = vector.shape_cast %16 : vector<1x256x1xf32> to vector<256x1xf32>
    %c2 = arith.constant 2 : index
    %c0_12 = arith.constant 0 : index
    %c0_13 = arith.constant 0 : index
    %18 = vector.load %arg5[%c2, %c0_12, %c0_13] : memref<4x256x1xf32, #tpu.memory_space<vmem>>, vector<1x256x1xf32>
    %19 = vector.shape_cast %18 : vector<1x256x1xf32> to vector<256x1xf32>
    %c3 = arith.constant 3 : index
    %c0_14 = arith.constant 0 : index
    %c0_15 = arith.constant 0 : index
    %20 = vector.load %arg5[%c3, %c0_14, %c0_15] : memref<4x256x1xf32, #tpu.memory_space<vmem>>, vector<1x256x1xf32>
    %21 = vector.shape_cast %20 : vector<1x256x1xf32> to vector<256x1xf32>
    %c0_16 = arith.constant 0 : index
    %c0_17 = arith.constant 0 : index
    %c0_18 = arith.constant 0 : index
    %22 = vector.load %arg2[%c0_16, %c0_17, %c0_18] : memref<9x64x64xbf16, #tpu.memory_space<vmem>>, vector<1x64x64xbf16>
    %23 = vector.shape_cast %22 : vector<1x64x64xbf16> to vector<64x64xbf16>
    %cst_19 = arith.constant dense<0.000000e+00> : vector<256x64xf32>
    %24 = tpu.matmul %13, %23, %cst_19 {dimension_numbers = #tpu.dot_dimension_numbers<[1], [0], [0], [1], [0, 0, 1, 1], [], []>} : vector<256x64xbf16>, vector<64x64xbf16>, vector<256x64xf32> -> vector<256x64xf32>
    %c17_i32 = arith.constant 17 : i32
    %25 = tpu.dynamic_rotate %24 by %c17_i32 dim 0 : vector<256x64xf32>, i32 -> vector<256x64xf32>
    %26 = vector.broadcast %15 : vector<256x1xf32> to vector<256x64xf32>
    %27 = arith.mulf %25, %26 : vector<256x64xf32>
    %28 = vector.broadcast %19 : vector<256x1xf32> to vector<256x64xf32>
    %29 = arith.mulf %27, %28 : vector<256x64xf32>
    %c1_20 = arith.constant 1 : index
    %c0_21 = arith.constant 0 : index
    %c0_22 = arith.constant 0 : index
    %30 = vector.load %arg2[%c1_20, %c0_21, %c0_22] : memref<9x64x64xbf16, #tpu.memory_space<vmem>>, vector<1x64x64xbf16>
    %31 = vector.shape_cast %30 : vector<1x64x64xbf16> to vector<64x64xbf16>
    %cst_23 = arith.constant dense<0.000000e+00> : vector<256x64xf32>
    %32 = tpu.matmul %13, %31, %cst_23 {dimension_numbers = #tpu.dot_dimension_numbers<[1], [0], [0], [1], [0, 0, 1, 1], [], []>} : vector<256x64xbf16>, vector<64x64xbf16>, vector<256x64xf32> -> vector<256x64xf32>
    %c16_i32 = arith.constant 16 : i32
    %33 = tpu.dynamic_rotate %32 by %c16_i32 dim 0 : vector<256x64xf32>, i32 -> vector<256x64xf32>
    %34 = vector.broadcast %15 : vector<256x1xf32> to vector<256x64xf32>
    %35 = arith.mulf %33, %34 : vector<256x64xf32>
    %36 = arith.addf %29, %35 : vector<256x64xf32>
    %c2_24 = arith.constant 2 : index
    %c0_25 = arith.constant 0 : index
    %c0_26 = arith.constant 0 : index
    %37 = vector.load %arg2[%c2_24, %c0_25, %c0_26] : memref<9x64x64xbf16, #tpu.memory_space<vmem>>, vector<1x64x64xbf16>
    %38 = vector.shape_cast %37 : vector<1x64x64xbf16> to vector<64x64xbf16>
    %cst_27 = arith.constant dense<0.000000e+00> : vector<256x64xf32>
    %39 = tpu.matmul %13, %38, %cst_27 {dimension_numbers = #tpu.dot_dimension_numbers<[1], [0], [0], [1], [0, 0, 1, 1], [], []>} : vector<256x64xbf16>, vector<64x64xbf16>, vector<256x64xf32> -> vector<256x64xf32>
    %c15_i32 = arith.constant 15 : i32
    %40 = tpu.dynamic_rotate %39 by %c15_i32 dim 0 : vector<256x64xf32>, i32 -> vector<256x64xf32>
    %41 = vector.broadcast %15 : vector<256x1xf32> to vector<256x64xf32>
    %42 = arith.mulf %40, %41 : vector<256x64xf32>
    %43 = vector.broadcast %21 : vector<256x1xf32> to vector<256x64xf32>
    %44 = arith.mulf %42, %43 : vector<256x64xf32>
    %45 = arith.addf %36, %44 : vector<256x64xf32>
    %c0_28 = arith.constant 0 : index
    %c0_29 = arith.constant 0 : index
    %46 = vector.load %arg8[%c0_28, %c0_29] : memref<256x64xf32, #tpu.memory_space<vmem>>, vector<256x64xf32>
    tpu.vector_store %arg8[%c0_28, %c0_29], %45 {strides = array<i32>} : memref<256x64xf32, #tpu.memory_space<vmem>>, vector<256x64xf32>,
    %c3_30 = arith.constant 3 : index
    %c0_31 = arith.constant 0 : index
    %c0_32 = arith.constant 0 : index
    %47 = vector.load %arg2[%c3_30, %c0_31, %c0_32] : memref<9x64x64xbf16, #tpu.memory_space<vmem>>, vector<1x64x64xbf16>
    %48 = vector.shape_cast %47 : vector<1x64x64xbf16> to vector<64x64xbf16>
    %cst_33 = arith.constant dense<0.000000e+00> : vector<256x64xf32>
    %49 = tpu.matmul %13, %48, %cst_33 {dimension_numbers = #tpu.dot_dimension_numbers<[1], [0], [0], [1], [0, 0, 1, 1], [], []>} : vector<256x64xbf16>, vector<64x64xbf16>, vector<256x64xf32> -> vector<256x64xf32>
    %c1_i32 = arith.constant 1 : i32
    %50 = tpu.dynamic_rotate %49 by %c1_i32 dim 0 : vector<256x64xf32>, i32 -> vector<256x64xf32>
    %51 = vector.broadcast %19 : vector<256x1xf32> to vector<256x64xf32>
    %52 = arith.mulf %50, %51 : vector<256x64xf32>
    %c4 = arith.constant 4 : index
    %c0_34 = arith.constant 0 : index
    %c0_35 = arith.constant 0 : index
    %53 = vector.load %arg2[%c4, %c0_34, %c0_35] : memref<9x64x64xbf16, #tpu.memory_space<vmem>>, vector<1x64x64xbf16>
    %54 = vector.shape_cast %53 : vector<1x64x64xbf16> to vector<64x64xbf16>
    %cst_36 = arith.constant dense<0.000000e+00> : vector<256x64xf32>
    %55 = tpu.matmul %13, %54, %cst_36 {dimension_numbers = #tpu.dot_dimension_numbers<[1], [0], [0], [1], [0, 0, 1, 1], [], []>} : vector<256x64xbf16>, vector<64x64xbf16>, vector<256x64xf32> -> vector<256x64xf32>
    %56 = arith.addf %52, %55 : vector<256x64xf32>
    %c5 = arith.constant 5 : index
    %c0_37 = arith.constant 0 : index
    %c0_38 = arith.constant 0 : index
    %57 = vector.load %arg2[%c5, %c0_37, %c0_38] : memref<9x64x64xbf16, #tpu.memory_space<vmem>>, vector<1x64x64xbf16>
    %58 = vector.shape_cast %57 : vector<1x64x64xbf16> to vector<64x64xbf16>
    %cst_39 = arith.constant dense<0.000000e+00> : vector<256x64xf32>
    %59 = tpu.matmul %13, %58, %cst_39 {dimension_numbers = #tpu.dot_dimension_numbers<[1], [0], [0], [1], [0, 0, 1, 1], [], []>} : vector<256x64xbf16>, vector<64x64xbf16>, vector<256x64xf32> -> vector<256x64xf32>
    %c255_i32 = arith.constant 255 : i32
    %60 = tpu.dynamic_rotate %59 by %c255_i32 dim 0 : vector<256x64xf32>, i32 -> vector<256x64xf32>
    %61 = vector.broadcast %21 : vector<256x1xf32> to vector<256x64xf32>
    %62 = arith.mulf %60, %61 : vector<256x64xf32>
    %63 = arith.addf %56, %62 : vector<256x64xf32>
    %c0_40 = arith.constant 0 : index
    %c0_41 = arith.constant 0 : index
    %64 = vector.load %arg8[%c0_40, %c0_41] : memref<256x64xf32, #tpu.memory_space<vmem>>, vector<256x64xf32>
    %65 = arith.addf %64, %63 : vector<256x64xf32>
    %c0_42 = arith.constant 0 : index
    %c0_43 = arith.constant 0 : index
    %66 = vector.load %arg8[%c0_42, %c0_43] : memref<256x64xf32, #tpu.memory_space<vmem>>, vector<256x64xf32>
    tpu.vector_store %arg8[%c0_42, %c0_43], %65 {strides = array<i32>} : memref<256x64xf32, #tpu.memory_space<vmem>>, vector<256x64xf32>,
    %c6 = arith.constant 6 : index
    %c0_44 = arith.constant 0 : index
    %c0_45 = arith.constant 0 : index
    %67 = vector.load %arg2[%c6, %c0_44, %c0_45] : memref<9x64x64xbf16, #tpu.memory_space<vmem>>, vector<1x64x64xbf16>
    %68 = vector.shape_cast %67 : vector<1x64x64xbf16> to vector<64x64xbf16>
    %cst_46 = arith.constant dense<0.000000e+00> : vector<256x64xf32>
    %69 = tpu.matmul %13, %68, %cst_46 {dimension_numbers = #tpu.dot_dimension_numbers<[1], [0], [0], [1], [0, 0, 1, 1], [], []>} : vector<256x64xbf16>, vector<64x64xbf16>, vector<256x64xf32> -> vector<256x64xf32>
    %c241_i32 = arith.constant 241 : i32
    %70 = tpu.dynamic_rotate %69 by %c241_i32 dim 0 : vector<256x64xf32>, i32 -> vector<256x64xf32>
    %71 = vector.broadcast %17 : vector<256x1xf32> to vector<256x64xf32>
    %72 = arith.mulf %70, %71 : vector<256x64xf32>
    %73 = vector.broadcast %19 : vector<256x1xf32> to vector<256x64xf32>
    %74 = arith.mulf %72, %73 : vector<256x64xf32>
    %c7 = arith.constant 7 : index
    %c0_47 = arith.constant 0 : index
    %c0_48 = arith.constant 0 : index
    %75 = vector.load %arg2[%c7, %c0_47, %c0_48] : memref<9x64x64xbf16, #tpu.memory_space<vmem>>, vector<1x64x64xbf16>
    %76 = vector.shape_cast %75 : vector<1x64x64xbf16> to vector<64x64xbf16>
    %cst_49 = arith.constant dense<0.000000e+00> : vector<256x64xf32>
    %77 = tpu.matmul %13, %76, %cst_49 {dimension_numbers = #tpu.dot_dimension_numbers<[1], [0], [0], [1], [0, 0, 1, 1], [], []>} : vector<256x64xbf16>, vector<64x64xbf16>, vector<256x64xf32> -> vector<256x64xf32>
    %c240_i32 = arith.constant 240 : i32
    %78 = tpu.dynamic_rotate %77 by %c240_i32 dim 0 : vector<256x64xf32>, i32 -> vector<256x64xf32>
    %79 = vector.broadcast %17 : vector<256x1xf32> to vector<256x64xf32>
    %80 = arith.mulf %78, %79 : vector<256x64xf32>
    %81 = arith.addf %74, %80 : vector<256x64xf32>
    %c8 = arith.constant 8 : index
    %c0_50 = arith.constant 0 : index
    %c0_51 = arith.constant 0 : index
    %82 = vector.load %arg2[%c8, %c0_50, %c0_51] : memref<9x64x64xbf16, #tpu.memory_space<vmem>>, vector<1x64x64xbf16>
    %83 = vector.shape_cast %82 : vector<1x64x64xbf16> to vector<64x64xbf16>
    %cst_52 = arith.constant dense<0.000000e+00> : vector<256x64xf32>
    %84 = tpu.matmul %13, %83, %cst_52 {dimension_numbers = #tpu.dot_dimension_numbers<[1], [0], [0], [1], [0, 0, 1, 1], [], []>} : vector<256x64xbf16>, vector<64x64xbf16>, vector<256x64xf32> -> vector<256x64xf32>
    %c239_i32 = arith.constant 239 : i32
    %85 = tpu.dynamic_rotate %84 by %c239_i32 dim 0 : vector<256x64xf32>, i32 -> vector<256x64xf32>
    %86 = vector.broadcast %17 : vector<256x1xf32> to vector<256x64xf32>
    %87 = arith.mulf %85, %86 : vector<256x64xf32>
    %88 = vector.broadcast %21 : vector<256x1xf32> to vector<256x64xf32>
    %89 = arith.mulf %87, %88 : vector<256x64xf32>
    %90 = arith.addf %81, %89 : vector<256x64xf32>
    %c0_53 = arith.constant 0 : index
    %c0_54 = arith.constant 0 : index
    %91 = vector.load %arg8[%c0_53, %c0_54] : memref<256x64xf32, #tpu.memory_space<vmem>>, vector<256x64xf32>
    %92 = arith.addf %91, %90 : vector<256x64xf32>
    %c0_55 = arith.constant 0 : index
    %c0_56 = arith.constant 0 : index
    %93 = vector.load %arg8[%c0_55, %c0_56] : memref<256x64xf32, #tpu.memory_space<vmem>>, vector<256x64xf32>
    tpu.vector_store %arg8[%c0_55, %c0_56], %92 {strides = array<i32>} : memref<256x64xf32, #tpu.memory_space<vmem>>, vector<256x64xf32>,
    %c0_57 = arith.constant 0 : index
    %c0_58 = arith.constant 0 : index
    %94 = vector.load %arg8[%c0_57, %c0_58] : memref<256x64xf32, #tpu.memory_space<vmem>>, vector<256x64xf32>
    %95 = vector.shape_cast %94 : vector<256x64xf32> to vector<1x16x16x64xf32>
    %96 = arith.truncf %95 : vector<1x16x16x64xf32> to vector<1x16x16x64xbf16>
    %c0_59 = arith.constant 0 : index
    %c0_60 = arith.constant 0 : index
    %c0_61 = arith.constant 0 : index
    %c0_62 = arith.constant 0 : index
    %97 = vector.load %arg6[%c0_59, %c0_60, %c0_61, %c0_62] : memref<1x16x16x64xbf16, #tpu.memory_space<vmem>>, vector<1x16x16x64xbf16>
    tpu.vector_store %arg6[%c0_59, %c0_60, %c0_61, %c0_62], %96 {strides = array<i32>} : memref<1x16x16x64xbf16, #tpu.memory_space<vmem>>, vector<1x16x16x64xbf16>,
    %98 = vector.shape_cast %95 : vector<1x16x16x64xf32> to vector<256x64xf32>
    %cst_63 = arith.constant dense<0.000000e+00> : vector<64xf32>
    %99 = vector.multi_reduction <add>, %98, %cst_63 [0] : vector<256x64xf32> to vector<64xf32>
    %100 = vector.shape_cast %99 : vector<64xf32> to vector<1x64xf32>
    %101 = arith.mulf %98, %98 : vector<256x64xf32>
    %cst_64 = arith.constant dense<0.000000e+00> : vector<64xf32>
    %102 = vector.multi_reduction <add>, %101, %cst_64 [0] : vector<256x64xf32> to vector<64xf32>
    %103 = vector.shape_cast %102 : vector<64xf32> to vector<1x64xf32>
    %104 = tpu.concatenate %100, %103 in 0 : vector<1x64xf32>, vector<1x64xf32> -> vector<2x64xf32>
    %c0_65 = arith.constant 0 : index
    %c0_66 = arith.constant 0 : index
    %c0_67 = arith.constant 0 : index
    %105 = vector.load %arg7[%c0_65, %c0_66, %c0_67] : memref<1x2x64xf32, #tpu.memory_space<vmem>>, vector<1x2x64xf32>
    %106 = vector.shape_cast %105 : vector<1x2x64xf32> to vector<2x64xf32>
    %107 = vector.shape_cast %104 : vector<2x64xf32> to vector<1x2x64xf32>
    tpu.vector_store %arg7[%c0_65, %c0_66, %c0_67], %107 {strides = array<i32>} : memref<1x2x64xf32, #tpu.memory_space<vmem>>, vector<1x2x64xf32>,
    return
  }
  func.func @transform_0(%arg0: i32) -> (i32, i32, i32, i32) {
    %c0_i32 = arith.constant 0 : i32
    %c0_i32_0 = arith.constant 0 : i32
    %c0_i32_1 = arith.constant 0 : i32
    %c0_i32_2 = arith.constant 0 : i32
    return %arg0, %c0_i32, %c0_i32_0, %c0_i32_1 : i32, i32, i32, i32
  }
  func.func @transform_1(%arg0: i32) -> (i32, i32, i32) {
    %c0_i32 = arith.constant 0 : i32
    %c0_i32_0 = arith.constant 0 : i32
    %c0_i32_1 = arith.constant 0 : i32
    %c0_i32_2 = arith.constant 0 : i32
    return %c0_i32, %c0_i32_0, %c0_i32_1 : i32, i32, i32
  }
  func.func @transform_2(%arg0: i32) -> (i32, i32) {
    %c0_i32 = arith.constant 0 : i32
    %c0_i32_0 = arith.constant 0 : i32
    %c0_i32_1 = arith.constant 0 : i32
    return %c0_i32, %c0_i32_0 : i32, i32
  }
  func.func @transform_3(%arg0: i32) -> (i32, i32) {
    %c0_i32 = arith.constant 0 : i32
    %c0_i32_0 = arith.constant 0 : i32
    %c0_i32_1 = arith.constant 0 : i32
    return %c0_i32, %c0_i32_0 : i32, i32
  }
  func.func @transform_4(%arg0: i32) -> (i32, i32, i32) {
    %c0_i32 = arith.constant 0 : i32
    %c0_i32_0 = arith.constant 0 : i32
    %c0_i32_1 = arith.constant 0 : i32
    %c0_i32_2 = arith.constant 0 : i32
    return %c0_i32, %c0_i32_0, %c0_i32_1 : i32, i32, i32
  }
  func.func @transform_5(%arg0: i32) -> (i32, i32, i32, i32) {
    %c0_i32 = arith.constant 0 : i32
    %c0_i32_0 = arith.constant 0 : i32
    %c0_i32_1 = arith.constant 0 : i32
    %c0_i32_2 = arith.constant 0 : i32
    return %arg0, %c0_i32, %c0_i32_0, %c0_i32_1 : i32, i32, i32, i32
  }
  func.func @transform_6(%arg0: i32) -> (i32, i32, i32) {
    %c0_i32 = arith.constant 0 : i32
    %c0_i32_0 = arith.constant 0 : i32
    %c0_i32_1 = arith.constant 0 : i32
    return %arg0, %c0_i32, %c0_i32_0 : i32, i32, i32
  }
}

module attributes {stable_mosaic.version = 11 : i64} {
  func.func @_conv1_kernel(%arg0: i32, %arg1: memref<1x16x16x64xbf16, #tpu.memory_space<vmem>>, %arg2: memref<9x64x64xbf16, #tpu.memory_space<vmem>>, %arg3: memref<4x256x1xf32, #tpu.memory_space<vmem>>, %arg4: memref<1x16x16x64xbf16, #tpu.memory_space<vmem>>, %arg5: memref<1x2x64xf32, #tpu.memory_space<vmem>>, %arg6: memref<256x64xf32, #tpu.memory_space<vmem>>) attributes {dimension_semantics = [#tpu.dimension_semantics<parallel>], iteration_bounds = array<i64: 2>, scalar_prefetch = 0 : i64, scratch_operands = 1 : i64, tpu.core_type = #tpu.core_type<tc>, window_params = [{transform_indices = @transform_0, window_bounds = array<i64: 1, 16, 16, 64>}, {pipeline_mode = #tpu.pipeline_mode<synchronous>, transform_indices = @transform_1, window_bounds = array<i64: 9, 64, 64>}, {pipeline_mode = #tpu.pipeline_mode<synchronous>, transform_indices = @transform_2, window_bounds = array<i64: 4, 256, 1>}, {transform_indices = @transform_3, window_bounds = array<i64: 1, 16, 16, 64>}, {transform_indices = @transform_4, window_bounds = array<i64: 1, 2, 64>}]} {
    %c0 = arith.constant 0 : index
    %c0_0 = arith.constant 0 : index
    %c0_1 = arith.constant 0 : index
    %c0_2 = arith.constant 0 : index
    %0 = vector.load %arg1[%c0, %c0_0, %c0_1, %c0_2] : memref<1x16x16x64xbf16, #tpu.memory_space<vmem>>, vector<1x16x16x64xbf16>
    %1 = vector.shape_cast %0 : vector<1x16x16x64xbf16> to vector<256x64xbf16>
    %c0_3 = arith.constant 0 : index
    %c0_4 = arith.constant 0 : index
    %c0_5 = arith.constant 0 : index
    %2 = vector.load %arg3[%c0_3, %c0_4, %c0_5] : memref<4x256x1xf32, #tpu.memory_space<vmem>>, vector<1x256x1xf32>
    %3 = vector.shape_cast %2 : vector<1x256x1xf32> to vector<256x1xf32>
    %c1 = arith.constant 1 : index
    %c0_6 = arith.constant 0 : index
    %c0_7 = arith.constant 0 : index
    %4 = vector.load %arg3[%c1, %c0_6, %c0_7] : memref<4x256x1xf32, #tpu.memory_space<vmem>>, vector<1x256x1xf32>
    %5 = vector.shape_cast %4 : vector<1x256x1xf32> to vector<256x1xf32>
    %c2 = arith.constant 2 : index
    %c0_8 = arith.constant 0 : index
    %c0_9 = arith.constant 0 : index
    %6 = vector.load %arg3[%c2, %c0_8, %c0_9] : memref<4x256x1xf32, #tpu.memory_space<vmem>>, vector<1x256x1xf32>
    %7 = vector.shape_cast %6 : vector<1x256x1xf32> to vector<256x1xf32>
    %c3 = arith.constant 3 : index
    %c0_10 = arith.constant 0 : index
    %c0_11 = arith.constant 0 : index
    %8 = vector.load %arg3[%c3, %c0_10, %c0_11] : memref<4x256x1xf32, #tpu.memory_space<vmem>>, vector<1x256x1xf32>
    %9 = vector.shape_cast %8 : vector<1x256x1xf32> to vector<256x1xf32>
    %c0_12 = arith.constant 0 : index
    %c0_13 = arith.constant 0 : index
    %c0_14 = arith.constant 0 : index
    %10 = vector.load %arg2[%c0_12, %c0_13, %c0_14] : memref<9x64x64xbf16, #tpu.memory_space<vmem>>, vector<1x64x64xbf16>
    %11 = vector.shape_cast %10 : vector<1x64x64xbf16> to vector<64x64xbf16>
    %cst = arith.constant dense<0.000000e+00> : vector<256x64xf32>
    %12 = tpu.matmul %1, %11, %cst {dimension_numbers = #tpu.dot_dimension_numbers<[1], [0], [0], [1], [0, 0, 1, 1], [], []>} : vector<256x64xbf16>, vector<64x64xbf16>, vector<256x64xf32> -> vector<256x64xf32>
    %c17_i32 = arith.constant 17 : i32
    %13 = tpu.dynamic_rotate %12 by %c17_i32 dim 0 : vector<256x64xf32>, i32 -> vector<256x64xf32>
    %14 = vector.broadcast %3 : vector<256x1xf32> to vector<256x64xf32>
    %15 = arith.mulf %13, %14 : vector<256x64xf32>
    %16 = vector.broadcast %7 : vector<256x1xf32> to vector<256x64xf32>
    %17 = arith.mulf %15, %16 : vector<256x64xf32>
    %c1_15 = arith.constant 1 : index
    %c0_16 = arith.constant 0 : index
    %c0_17 = arith.constant 0 : index
    %18 = vector.load %arg2[%c1_15, %c0_16, %c0_17] : memref<9x64x64xbf16, #tpu.memory_space<vmem>>, vector<1x64x64xbf16>
    %19 = vector.shape_cast %18 : vector<1x64x64xbf16> to vector<64x64xbf16>
    %cst_18 = arith.constant dense<0.000000e+00> : vector<256x64xf32>
    %20 = tpu.matmul %1, %19, %cst_18 {dimension_numbers = #tpu.dot_dimension_numbers<[1], [0], [0], [1], [0, 0, 1, 1], [], []>} : vector<256x64xbf16>, vector<64x64xbf16>, vector<256x64xf32> -> vector<256x64xf32>
    %c16_i32 = arith.constant 16 : i32
    %21 = tpu.dynamic_rotate %20 by %c16_i32 dim 0 : vector<256x64xf32>, i32 -> vector<256x64xf32>
    %22 = vector.broadcast %3 : vector<256x1xf32> to vector<256x64xf32>
    %23 = arith.mulf %21, %22 : vector<256x64xf32>
    %24 = arith.addf %17, %23 : vector<256x64xf32>
    %c2_19 = arith.constant 2 : index
    %c0_20 = arith.constant 0 : index
    %c0_21 = arith.constant 0 : index
    %25 = vector.load %arg2[%c2_19, %c0_20, %c0_21] : memref<9x64x64xbf16, #tpu.memory_space<vmem>>, vector<1x64x64xbf16>
    %26 = vector.shape_cast %25 : vector<1x64x64xbf16> to vector<64x64xbf16>
    %cst_22 = arith.constant dense<0.000000e+00> : vector<256x64xf32>
    %27 = tpu.matmul %1, %26, %cst_22 {dimension_numbers = #tpu.dot_dimension_numbers<[1], [0], [0], [1], [0, 0, 1, 1], [], []>} : vector<256x64xbf16>, vector<64x64xbf16>, vector<256x64xf32> -> vector<256x64xf32>
    %c15_i32 = arith.constant 15 : i32
    %28 = tpu.dynamic_rotate %27 by %c15_i32 dim 0 : vector<256x64xf32>, i32 -> vector<256x64xf32>
    %29 = vector.broadcast %3 : vector<256x1xf32> to vector<256x64xf32>
    %30 = arith.mulf %28, %29 : vector<256x64xf32>
    %31 = vector.broadcast %9 : vector<256x1xf32> to vector<256x64xf32>
    %32 = arith.mulf %30, %31 : vector<256x64xf32>
    %33 = arith.addf %24, %32 : vector<256x64xf32>
    %c0_23 = arith.constant 0 : index
    %c0_24 = arith.constant 0 : index
    %34 = vector.load %arg6[%c0_23, %c0_24] : memref<256x64xf32, #tpu.memory_space<vmem>>, vector<256x64xf32>
    tpu.vector_store %arg6[%c0_23, %c0_24], %33 {strides = array<i32>} : memref<256x64xf32, #tpu.memory_space<vmem>>, vector<256x64xf32>,
    %c3_25 = arith.constant 3 : index
    %c0_26 = arith.constant 0 : index
    %c0_27 = arith.constant 0 : index
    %35 = vector.load %arg2[%c3_25, %c0_26, %c0_27] : memref<9x64x64xbf16, #tpu.memory_space<vmem>>, vector<1x64x64xbf16>
    %36 = vector.shape_cast %35 : vector<1x64x64xbf16> to vector<64x64xbf16>
    %cst_28 = arith.constant dense<0.000000e+00> : vector<256x64xf32>
    %37 = tpu.matmul %1, %36, %cst_28 {dimension_numbers = #tpu.dot_dimension_numbers<[1], [0], [0], [1], [0, 0, 1, 1], [], []>} : vector<256x64xbf16>, vector<64x64xbf16>, vector<256x64xf32> -> vector<256x64xf32>
    %c1_i32 = arith.constant 1 : i32
    %38 = tpu.dynamic_rotate %37 by %c1_i32 dim 0 : vector<256x64xf32>, i32 -> vector<256x64xf32>
    %39 = vector.broadcast %7 : vector<256x1xf32> to vector<256x64xf32>
    %40 = arith.mulf %38, %39 : vector<256x64xf32>
    %c4 = arith.constant 4 : index
    %c0_29 = arith.constant 0 : index
    %c0_30 = arith.constant 0 : index
    %41 = vector.load %arg2[%c4, %c0_29, %c0_30] : memref<9x64x64xbf16, #tpu.memory_space<vmem>>, vector<1x64x64xbf16>
    %42 = vector.shape_cast %41 : vector<1x64x64xbf16> to vector<64x64xbf16>
    %cst_31 = arith.constant dense<0.000000e+00> : vector<256x64xf32>
    %43 = tpu.matmul %1, %42, %cst_31 {dimension_numbers = #tpu.dot_dimension_numbers<[1], [0], [0], [1], [0, 0, 1, 1], [], []>} : vector<256x64xbf16>, vector<64x64xbf16>, vector<256x64xf32> -> vector<256x64xf32>
    %44 = arith.addf %40, %43 : vector<256x64xf32>
    %c5 = arith.constant 5 : index
    %c0_32 = arith.constant 0 : index
    %c0_33 = arith.constant 0 : index
    %45 = vector.load %arg2[%c5, %c0_32, %c0_33] : memref<9x64x64xbf16, #tpu.memory_space<vmem>>, vector<1x64x64xbf16>
    %46 = vector.shape_cast %45 : vector<1x64x64xbf16> to vector<64x64xbf16>
    %cst_34 = arith.constant dense<0.000000e+00> : vector<256x64xf32>
    %47 = tpu.matmul %1, %46, %cst_34 {dimension_numbers = #tpu.dot_dimension_numbers<[1], [0], [0], [1], [0, 0, 1, 1], [], []>} : vector<256x64xbf16>, vector<64x64xbf16>, vector<256x64xf32> -> vector<256x64xf32>
    %c255_i32 = arith.constant 255 : i32
    %48 = tpu.dynamic_rotate %47 by %c255_i32 dim 0 : vector<256x64xf32>, i32 -> vector<256x64xf32>
    %49 = vector.broadcast %9 : vector<256x1xf32> to vector<256x64xf32>
    %50 = arith.mulf %48, %49 : vector<256x64xf32>
    %51 = arith.addf %44, %50 : vector<256x64xf32>
    %c0_35 = arith.constant 0 : index
    %c0_36 = arith.constant 0 : index
    %52 = vector.load %arg6[%c0_35, %c0_36] : memref<256x64xf32, #tpu.memory_space<vmem>>, vector<256x64xf32>
    %53 = arith.addf %52, %51 : vector<256x64xf32>
    %c0_37 = arith.constant 0 : index
    %c0_38 = arith.constant 0 : index
    %54 = vector.load %arg6[%c0_37, %c0_38] : memref<256x64xf32, #tpu.memory_space<vmem>>, vector<256x64xf32>
    tpu.vector_store %arg6[%c0_37, %c0_38], %53 {strides = array<i32>} : memref<256x64xf32, #tpu.memory_space<vmem>>, vector<256x64xf32>,
    %c6 = arith.constant 6 : index
    %c0_39 = arith.constant 0 : index
    %c0_40 = arith.constant 0 : index
    %55 = vector.load %arg2[%c6, %c0_39, %c0_40] : memref<9x64x64xbf16, #tpu.memory_space<vmem>>, vector<1x64x64xbf16>
    %56 = vector.shape_cast %55 : vector<1x64x64xbf16> to vector<64x64xbf16>
    %cst_41 = arith.constant dense<0.000000e+00> : vector<256x64xf32>
    %57 = tpu.matmul %1, %56, %cst_41 {dimension_numbers = #tpu.dot_dimension_numbers<[1], [0], [0], [1], [0, 0, 1, 1], [], []>} : vector<256x64xbf16>, vector<64x64xbf16>, vector<256x64xf32> -> vector<256x64xf32>
    %c241_i32 = arith.constant 241 : i32
    %58 = tpu.dynamic_rotate %57 by %c241_i32 dim 0 : vector<256x64xf32>, i32 -> vector<256x64xf32>
    %59 = vector.broadcast %5 : vector<256x1xf32> to vector<256x64xf32>
    %60 = arith.mulf %58, %59 : vector<256x64xf32>
    %61 = vector.broadcast %7 : vector<256x1xf32> to vector<256x64xf32>
    %62 = arith.mulf %60, %61 : vector<256x64xf32>
    %c7 = arith.constant 7 : index
    %c0_42 = arith.constant 0 : index
    %c0_43 = arith.constant 0 : index
    %63 = vector.load %arg2[%c7, %c0_42, %c0_43] : memref<9x64x64xbf16, #tpu.memory_space<vmem>>, vector<1x64x64xbf16>
    %64 = vector.shape_cast %63 : vector<1x64x64xbf16> to vector<64x64xbf16>
    %cst_44 = arith.constant dense<0.000000e+00> : vector<256x64xf32>
    %65 = tpu.matmul %1, %64, %cst_44 {dimension_numbers = #tpu.dot_dimension_numbers<[1], [0], [0], [1], [0, 0, 1, 1], [], []>} : vector<256x64xbf16>, vector<64x64xbf16>, vector<256x64xf32> -> vector<256x64xf32>
    %c240_i32 = arith.constant 240 : i32
    %66 = tpu.dynamic_rotate %65 by %c240_i32 dim 0 : vector<256x64xf32>, i32 -> vector<256x64xf32>
    %67 = vector.broadcast %5 : vector<256x1xf32> to vector<256x64xf32>
    %68 = arith.mulf %66, %67 : vector<256x64xf32>
    %69 = arith.addf %62, %68 : vector<256x64xf32>
    %c8 = arith.constant 8 : index
    %c0_45 = arith.constant 0 : index
    %c0_46 = arith.constant 0 : index
    %70 = vector.load %arg2[%c8, %c0_45, %c0_46] : memref<9x64x64xbf16, #tpu.memory_space<vmem>>, vector<1x64x64xbf16>
    %71 = vector.shape_cast %70 : vector<1x64x64xbf16> to vector<64x64xbf16>
    %cst_47 = arith.constant dense<0.000000e+00> : vector<256x64xf32>
    %72 = tpu.matmul %1, %71, %cst_47 {dimension_numbers = #tpu.dot_dimension_numbers<[1], [0], [0], [1], [0, 0, 1, 1], [], []>} : vector<256x64xbf16>, vector<64x64xbf16>, vector<256x64xf32> -> vector<256x64xf32>
    %c239_i32 = arith.constant 239 : i32
    %73 = tpu.dynamic_rotate %72 by %c239_i32 dim 0 : vector<256x64xf32>, i32 -> vector<256x64xf32>
    %74 = vector.broadcast %5 : vector<256x1xf32> to vector<256x64xf32>
    %75 = arith.mulf %73, %74 : vector<256x64xf32>
    %76 = vector.broadcast %9 : vector<256x1xf32> to vector<256x64xf32>
    %77 = arith.mulf %75, %76 : vector<256x64xf32>
    %78 = arith.addf %69, %77 : vector<256x64xf32>
    %c0_48 = arith.constant 0 : index
    %c0_49 = arith.constant 0 : index
    %79 = vector.load %arg6[%c0_48, %c0_49] : memref<256x64xf32, #tpu.memory_space<vmem>>, vector<256x64xf32>
    %80 = arith.addf %79, %78 : vector<256x64xf32>
    %c0_50 = arith.constant 0 : index
    %c0_51 = arith.constant 0 : index
    %81 = vector.load %arg6[%c0_50, %c0_51] : memref<256x64xf32, #tpu.memory_space<vmem>>, vector<256x64xf32>
    tpu.vector_store %arg6[%c0_50, %c0_51], %80 {strides = array<i32>} : memref<256x64xf32, #tpu.memory_space<vmem>>, vector<256x64xf32>,
    %c0_52 = arith.constant 0 : index
    %c0_53 = arith.constant 0 : index
    %82 = vector.load %arg6[%c0_52, %c0_53] : memref<256x64xf32, #tpu.memory_space<vmem>>, vector<256x64xf32>
    %83 = vector.shape_cast %82 : vector<256x64xf32> to vector<1x16x16x64xf32>
    %84 = arith.truncf %83 : vector<1x16x16x64xf32> to vector<1x16x16x64xbf16>
    %c0_54 = arith.constant 0 : index
    %c0_55 = arith.constant 0 : index
    %c0_56 = arith.constant 0 : index
    %c0_57 = arith.constant 0 : index
    %85 = vector.load %arg4[%c0_54, %c0_55, %c0_56, %c0_57] : memref<1x16x16x64xbf16, #tpu.memory_space<vmem>>, vector<1x16x16x64xbf16>
    tpu.vector_store %arg4[%c0_54, %c0_55, %c0_56, %c0_57], %84 {strides = array<i32>} : memref<1x16x16x64xbf16, #tpu.memory_space<vmem>>, vector<1x16x16x64xbf16>,
    %86 = vector.shape_cast %83 : vector<1x16x16x64xf32> to vector<256x64xf32>
    %cst_58 = arith.constant dense<0.000000e+00> : vector<64xf32>
    %87 = vector.multi_reduction <add>, %86, %cst_58 [0] : vector<256x64xf32> to vector<64xf32>
    %88 = vector.shape_cast %87 : vector<64xf32> to vector<1x64xf32>
    %89 = arith.mulf %86, %86 : vector<256x64xf32>
    %cst_59 = arith.constant dense<0.000000e+00> : vector<64xf32>
    %90 = vector.multi_reduction <add>, %89, %cst_59 [0] : vector<256x64xf32> to vector<64xf32>
    %91 = vector.shape_cast %90 : vector<64xf32> to vector<1x64xf32>
    %92 = tpu.concatenate %88, %91 in 0 : vector<1x64xf32>, vector<1x64xf32> -> vector<2x64xf32>
    %c0_60 = arith.constant 0 : index
    %c0_61 = arith.constant 0 : index
    %c0_62 = arith.constant 0 : index
    %93 = vector.load %arg5[%c0_60, %c0_61, %c0_62] : memref<1x2x64xf32, #tpu.memory_space<vmem>>, vector<1x2x64xf32>
    %94 = vector.shape_cast %93 : vector<1x2x64xf32> to vector<2x64xf32>
    %95 = vector.shape_cast %92 : vector<2x64xf32> to vector<1x2x64xf32>
    tpu.vector_store %arg5[%c0_60, %c0_61, %c0_62], %95 {strides = array<i32>} : memref<1x2x64xf32, #tpu.memory_space<vmem>>, vector<1x2x64xf32>,
    return
  }
  func.func @transform_0(%arg0: i32) -> (i32, i32, i32, i32) {
    %c0_i32 = arith.constant 0 : i32
    %c0_i32_0 = arith.constant 0 : i32
    %c0_i32_1 = arith.constant 0 : i32
    %c0_i32_2 = arith.constant 0 : i32
    return %arg0, %c0_i32, %c0_i32_0, %c0_i32_1 : i32, i32, i32, i32
  }
  func.func @transform_1(%arg0: i32) -> (i32, i32, i32) {
    %c0_i32 = arith.constant 0 : i32
    %c0_i32_0 = arith.constant 0 : i32
    %c0_i32_1 = arith.constant 0 : i32
    %c0_i32_2 = arith.constant 0 : i32
    return %c0_i32, %c0_i32_0, %c0_i32_1 : i32, i32, i32
  }
  func.func @transform_2(%arg0: i32) -> (i32, i32, i32) {
    %c0_i32 = arith.constant 0 : i32
    %c0_i32_0 = arith.constant 0 : i32
    %c0_i32_1 = arith.constant 0 : i32
    %c0_i32_2 = arith.constant 0 : i32
    return %c0_i32, %c0_i32_0, %c0_i32_1 : i32, i32, i32
  }
  func.func @transform_3(%arg0: i32) -> (i32, i32, i32, i32) {
    %c0_i32 = arith.constant 0 : i32
    %c0_i32_0 = arith.constant 0 : i32
    %c0_i32_1 = arith.constant 0 : i32
    %c0_i32_2 = arith.constant 0 : i32
    return %arg0, %c0_i32, %c0_i32_0, %c0_i32_1 : i32, i32, i32, i32
  }
  func.func @transform_4(%arg0: i32) -> (i32, i32, i32) {
    %c0_i32 = arith.constant 0 : i32
    %c0_i32_0 = arith.constant 0 : i32
    %c0_i32_1 = arith.constant 0 : i32
    return %arg0, %c0_i32, %c0_i32_0 : i32, i32, i32
  }
}

module attributes {stable_mosaic.version = 11 : i64} {
  func.func @_bn_add_relu_kernel(%arg0: i32, %arg1: memref<1x16x16x64xbf16, #tpu.memory_space<vmem>>, %arg2: memref<1x16x16x64xbf16, #tpu.memory_space<vmem>>, %arg3: memref<1x64xf32, #tpu.memory_space<vmem>>, %arg4: memref<1x64xf32, #tpu.memory_space<vmem>>, %arg5: memref<1x16x16x64xf32, #tpu.memory_space<vmem>>) attributes {dimension_semantics = [#tpu.dimension_semantics<parallel>], iteration_bounds = array<i64: 2>, scalar_prefetch = 0 : i64, scratch_operands = 0 : i64, tpu.core_type = #tpu.core_type<tc>, window_params = [{transform_indices = @transform_0, window_bounds = array<i64: 1, 16, 16, 64>}, {transform_indices = @transform_1, window_bounds = array<i64: 1, 16, 16, 64>}, {pipeline_mode = #tpu.pipeline_mode<synchronous>, transform_indices = @transform_2, window_bounds = array<i64: 1, 64>}, {pipeline_mode = #tpu.pipeline_mode<synchronous>, transform_indices = @transform_3, window_bounds = array<i64: 1, 64>}, {transform_indices = @transform_4, window_bounds = array<i64: 1, 16, 16, 64>}]} {
    %c0 = arith.constant 0 : index
    %c0_0 = arith.constant 0 : index
    %c0_1 = arith.constant 0 : index
    %c0_2 = arith.constant 0 : index
    %0 = vector.load %arg1[%c0, %c0_0, %c0_1, %c0_2] : memref<1x16x16x64xbf16, #tpu.memory_space<vmem>>, vector<1x16x16x64xbf16>
    %1 = arith.extf %0 : vector<1x16x16x64xbf16> to vector<1x16x16x64xf32>
    %c0_3 = arith.constant 0 : index
    %c0_4 = arith.constant 0 : index
    %2 = vector.load %arg3[%c0_3, %c0_4] : memref<1x64xf32, #tpu.memory_space<vmem>>, vector<1x64xf32>
    %3 = vector.shape_cast %2 : vector<1x64xf32> to vector<1x1x1x64xf32>
    %4 = vector.broadcast %3 : vector<1x1x1x64xf32> to vector<1x16x16x64xf32>
    %5 = arith.mulf %1, %4 : vector<1x16x16x64xf32>
    %c0_5 = arith.constant 0 : index
    %c0_6 = arith.constant 0 : index
    %6 = vector.load %arg4[%c0_5, %c0_6] : memref<1x64xf32, #tpu.memory_space<vmem>>, vector<1x64xf32>
    %7 = vector.shape_cast %6 : vector<1x64xf32> to vector<1x1x1x64xf32>
    %8 = vector.broadcast %7 : vector<1x1x1x64xf32> to vector<1x16x16x64xf32>
    %9 = arith.addf %5, %8 : vector<1x16x16x64xf32>
    %c0_7 = arith.constant 0 : index
    %c0_8 = arith.constant 0 : index
    %c0_9 = arith.constant 0 : index
    %c0_10 = arith.constant 0 : index
    %10 = vector.load %arg2[%c0_7, %c0_8, %c0_9, %c0_10] : memref<1x16x16x64xbf16, #tpu.memory_space<vmem>>, vector<1x16x16x64xbf16>
    %11 = arith.extf %10 : vector<1x16x16x64xbf16> to vector<1x16x16x64xf32>
    %12 = arith.addf %9, %11 : vector<1x16x16x64xf32>
    %cst = arith.constant 0.000000e+00 : f32
    %13 = vector.broadcast %cst : f32 to vector<1x16x16x64xf32>
    %14 = arith.maximumf %12, %13 : vector<1x16x16x64xf32>
    %c0_11 = arith.constant 0 : index
    %c0_12 = arith.constant 0 : index
    %c0_13 = arith.constant 0 : index
    %c0_14 = arith.constant 0 : index
    %15 = vector.load %arg5[%c0_11, %c0_12, %c0_13, %c0_14] : memref<1x16x16x64xf32, #tpu.memory_space<vmem>>, vector<1x16x16x64xf32>
    tpu.vector_store %arg5[%c0_11, %c0_12, %c0_13, %c0_14], %14 {strides = array<i32>} : memref<1x16x16x64xf32, #tpu.memory_space<vmem>>, vector<1x16x16x64xf32>,
    return
  }
  func.func @transform_0(%arg0: i32) -> (i32, i32, i32, i32) {
    %c0_i32 = arith.constant 0 : i32
    %c0_i32_0 = arith.constant 0 : i32
    %c0_i32_1 = arith.constant 0 : i32
    %c0_i32_2 = arith.constant 0 : i32
    return %arg0, %c0_i32, %c0_i32_0, %c0_i32_1 : i32, i32, i32, i32
  }
  func.func @transform_1(%arg0: i32) -> (i32, i32, i32, i32) {
    %c0_i32 = arith.constant 0 : i32
    %c0_i32_0 = arith.constant 0 : i32
    %c0_i32_1 = arith.constant 0 : i32
    %c0_i32_2 = arith.constant 0 : i32
    return %arg0, %c0_i32, %c0_i32_0, %c0_i32_1 : i32, i32, i32, i32
  }
  func.func @transform_2(%arg0: i32) -> (i32, i32) {
    %c0_i32 = arith.constant 0 : i32
    %c0_i32_0 = arith.constant 0 : i32
    %c0_i32_1 = arith.constant 0 : i32
    return %c0_i32, %c0_i32_0 : i32, i32
  }
  func.func @transform_3(%arg0: i32) -> (i32, i32) {
    %c0_i32 = arith.constant 0 : i32
    %c0_i32_0 = arith.constant 0 : i32
    %c0_i32_1 = arith.constant 0 : i32
    return %c0_i32, %c0_i32_0 : i32, i32
  }
  func.func @transform_4(%arg0: i32) -> (i32, i32, i32, i32) {
    %c0_i32 = arith.constant 0 : i32
    %c0_i32_0 = arith.constant 0 : i32
    %c0_i32_1 = arith.constant 0 : i32
    %c0_i32_2 = arith.constant 0 : i32
    return %arg0, %c0_i32, %c0_i32_0, %c0_i32_1 : i32, i32, i32, i32
  }
}

</mosaic_0001>

<llo_original>
// kernel: basic_block.5
$region0: #{basic_block.5}
  #allocation0 [shape = 'u32[]', space=smem, size = 0x4, offset = 0x4, fixed_abs, tag = 'smem constant byte address 0x4 - core index']
  #allocation1 [shape = 'u32[144,128]{1,0:T(1,128)}', space=vmem, size = 0x12000, scoped, tag = 'internal scratch']
  %s0 = inlined_call_operand.vmem [shape: bf16[2,16,16,64], index: 0, kind: input, shape index: {}]
  %s1 = inlined_call_operand.vmem [shape: bf16[2,16,16,64], index: 1, kind: input, shape index: {}]
  %s2 = inlined_call_operand.vmem [shape: f32[1,64], index: 2, kind: input, shape index: {}]
  %s3 = inlined_call_operand.vmem [shape: f32[1,64], index: 3, kind: input, shape index: {}]
  %s4 = inlined_call_operand.hbm [shape: f32[2,16,16,64], index: 4, kind: output, shape index: {}]
  %s5 = sld [smem:[#allocation0]]
  $region49: #{basic_block.5} parent=0
    _
  %s7 = ssub.s32 1, %s5
  %s8 = scalar_select 0, %s7, %s5
  $region1: #{basic_block.5} parent=0
    #allocation2 [shape = 'u8[262144]{0}', space=vmem, size = 0x40000, scoped, tag = 'output window, operand 0']
    #allocation3 [shape = 's32[2]{0}', space=sflag, size = 0x8, scoped, tag = 'scoped memory for basic_block.5']
    %9 = vsyncpa [#allocation3], 0
    %s10 = scalar_lea.sflag [#allocation3], 1
    %11 = vsyncpa %s10, 0
    loop: start=0, step=1, limit=4
    $region2: #{basic_block.5} parent=1 // loop_pre_header
      _
    $region3: #{basic_block.5} parent=1 // loop_header
      %s13 = sphi 0, %s17
      %p14 = scmp.ge.s32.totalorder %s13, 4
      %s23 = sphi 0, %s25
      %s26 = sphi 0, %s23
      %s27 = sphi 0, %s26
      %s43 = sphi 0, %s27
      %s49 = sphi 0, %s51
      %s52 = sphi 0, %s49
      %s53 = sphi 0, %s52
      %s69 = sphi 0, %s53
      %s73 = sphi 0, %s73
      %s75 = sphi 0, %s73
      %s76 = sphi 0, %s75
      %s90 = sphi 0, %s76
      %s94 = sphi 0, %s94
      %s96 = sphi 0, %s94
      %s97 = sphi 0, %s96
      %s111 = sphi 0, %s97
      %s117 = sphi 0, %s119
      %s120 = sphi 0, %s117
      %s121 = sphi 0, %s120
      %s137 = sphi 0, %s121
    $region4: #{basic_block.5} parent=1 // loop_header_branch
      %16 = sbr.rel (%p14) target = $region8
    $region5: #{basic_block.5} parent=1 // loop_body
      %s18 = ssub.s32 %s13, 1
      %s19 = ssub.s32 %s13, 2
      %s20 = sadd.s32 %s13, 1
      %s21 = ssub.s32 %s13, %s20
      %p22 = scmp.eq.s32.totalorder %s21, 0
      %s24 = sadd.s32 %s23, 1
      %s25 = scalar_select %p22, %s23, %s24
      %p28 = pneg %p22
      %p29 = scmp.eq.s32.totalorder %s13, 1
      %p30 = por %p28, %p29
      %p31 = scmp.ne.s32.totalorder %s23, %s26
      %p32 = scmp.eq.s32.totalorder %s13, 0
      %p33 = por %p31, %p32
      %p34 = scmp.ne.s32.totalorder %s23, %s26
      %p35 = scmp.eq.s32.totalorder %s18, 1
      %p36 = por %p34, %p35
      %p37 = scmp.ne.s32.totalorder %s26, %s27
      %p38 = scmp.eq.s32.totalorder %s18, 0
      %p39 = por %p37, %p38
      %p40 = scmp.ne.s32.totalorder %s26, %s27
      %p41 = scmp.eq.s32.totalorder %s19, 1
      %p42 = por %p40, %p41
      %p44 = scmp.ne.s32.totalorder %s27, %s43
      %p45 = scmp.eq.s32.totalorder %s19, 0
      %p46 = por %p44, %p45
      %s47 = ssub.s32 %s13, %s20
      %p48 = scmp.eq.s32.totalorder %s47, 0
      %s50 = sadd.s32 %s49, 1
      %s51 = scalar_select %p48, %s49, %s50
      %p54 = pneg %p48
      %p55 = scmp.eq.s32.totalorder %s13, 1
      %p56 = por %p54, %p55
      %p57 = scmp.ne.s32.totalorder %s49, %s52
      %p58 = scmp.eq.s32.totalorder %s13, 0
      %p59 = por %p57, %p58
      %p60 = scmp.ne.s32.totalorder %s49, %s52
      %p61 = scmp.eq.s32.totalorder %s18, 1
      %p62 = por %p60, %p61
      %p63 = scmp.ne.s32.totalorder %s52, %s53
      %p64 = scmp.eq.s32.totalorder %s18, 0
      %p65 = por %p63, %p64
      %p66 = scmp.ne.s32.totalorder %s52, %s53
      %p67 = scmp.eq.s32.totalorder %s19, 1
      %p68 = por %p66, %p67
      %p70 = scmp.ne.s32.totalorder %s53, %s69
      %p71 = scmp.eq.s32.totalorder %s19, 0
      %p72 = por %p70, %p71
      %s74 = sadd.s32 %s73, 1
      %p77 = scmp.eq.s32.totalorder %s13, 1
      %p78 = scmp.ne.s32.totalorder %s73, %s75
      %p79 = scmp.eq.s32.totalorder %s13, 0
      %p80 = por %p78, %p79
      %p81 = scmp.ne.s32.totalorder %s73, %s75
      %p82 = scmp.eq.s32.totalorder %s18, 1
      %p83 = por %p81, %p82
      %p84 = scmp.ne.s32.totalorder %s75, %s76
      %p85 = scmp.eq.s32.totalorder %s18, 0
      %p86 = por %p84, %p85
      %p87 = scmp.ne.s32.totalorder %s75, %s76
      %p88 = scmp.eq.s32.totalorder %s19, 1
      %p89 = por %p87, %p88
      %p91 = scmp.ne.s32.totalorder %s76, %s90
      %p92 = scmp.eq.s32.totalorder %s19, 0
      %p93 = por %p91, %p92
      %s95 = sadd.s32 %s94, 1
      %p98 = scmp.eq.s32.totalorder %s13, 1
      %p99 = scmp.ne.s32.totalorder %s94, %s96
      %p100 = scmp.eq.s32.totalorder %s13, 0
      %p101 = por %p99, %p100
      %p102 = scmp.ne.s32.totalorder %s94, %s96
      %p103 = scmp.eq.s32.totalorder %s18, 1
      %p104 = por %p102, %p103
      %p105 = scmp.ne.s32.totalorder %s96, %s97
      %p106 = scmp.eq.s32.totalorder %s18, 0
      %p107 = por %p105, %p106
      %p108 = scmp.ne.s32.totalorder %s96, %s97
      %p109 = scmp.eq.s32.totalorder %s19, 1
      %p110 = por %p108, %p109
      %p112 = scmp.ne.s32.totalorder %s97, %s111
      %p113 = scmp.eq.s32.totalorder %s19, 0
      %p114 = por %p112, %p113
      %s115 = ssub.s32 %s13, %s20
      %p116 = scmp.eq.s32.totalorder %s115, 0
      %s118 = sadd.s32 %s117, 1
      %s119 = scalar_select %p116, %s117, %s118
      %p122 = pneg %p116
      %p123 = scmp.eq.s32.totalorder %s13, 1
      %p124 = por %p122, %p123
      %p125 = scmp.ne.s32.totalorder %s117, %s120
      %p126 = scmp.eq.s32.totalorder %s13, 0
      %p127 = por %p125, %p126
      %p128 = scmp.ne.s32.totalorder %s117, %s120
      %p129 = scmp.eq.s32.totalorder %s18, 1
      %p130 = por %p128, %p129
      %p131 = scmp.ne.s32.totalorder %s120, %s121
      %p132 = scmp.eq.s32.totalorder %s18, 0
      %p133 = por %p131, %p132
      %p134 = scmp.ne.s32.totalorder %s120, %s121
      %p135 = scmp.eq.s32.totalorder %s19, 1
      %p136 = por %p134, %p135
      %p138 = scmp.ne.s32.totalorder %s121, %s137
      %p139 = scmp.eq.s32.totalorder %s19, 0
      %p140 = por %p138, %p139
      %p141 = scmp.le.s32.totalorder 1, %s13
      %p142 = scmp.lt.s32.totalorder %s13, 3
      %p143 = pnand %p141, %p142
      %p144 = pneg %p143
      // Predicated region
      $region9: #{basic_block.5} parent=5 // pred_check
        _
      $region10: #{basic_block.5} parent=5 // pred_check_branch
        %146 = sbr.rel (%p143) target = $region12
      $region11: #{basic_block.5} parent=5 // pred_region
        %s147 = ssub.s32 %s13, 1
        // Predicated region
        $region13: #{basic_block.5} parent=11 // pred_check
          %p148 = pneg %p86
        $region14: #{basic_block.5} parent=11 // pred_check_branch
          %150 = sbr.rel (%p148) target = $region16
        $region15: #{basic_block.5} parent=11 // pred_region
          _
        $region16: #{basic_block.5} parent=11 // pred_fallthru
          _
        // Predicated region
        $region17: #{basic_block.5} parent=11 // pred_check
          %p151 = pneg %p107
        $region18: #{basic_block.5} parent=11 // pred_check_branch
          %153 = sbr.rel (%p151) target = $region20
        $region19: #{basic_block.5} parent=11 // pred_region
          _
        $region20: #{basic_block.5} parent=11 // pred_fallthru
          _
      $region12: #{basic_block.5} parent=5 // pred_fallthru
        _
      %p154 = scmp.lt.s32.totalorder %s13, 2
      // Predicated region
      $region21: #{basic_block.5} parent=5 // pred_check
        %p155 = pneg %p154
      $region22: #{basic_block.5} parent=5 // pred_check_branch
        %157 = sbr.rel (%p155) target = $region24
      $region23: #{basic_block.5} parent=5 // pred_region
        // Predicated region
        $region25: #{basic_block.5} parent=23 // pred_check
          %p158 = pneg %p33
        $region26: #{basic_block.5} parent=23 // pred_check_branch
          %160 = sbr.rel (%p158) target = $region28
        $region27: #{basic_block.5} parent=23 // pred_region
          %p161 = scmp.lt.s32.totalorder %s13, 1
          %s162 = scalar_select %p161, %s13, 1
          %s163 = smul.addr %s162, 32
          %s164 = smul.addr %s163, 4
          %s165 = scalar_lea.vmem %s0, %s164
        $region28: #{basic_block.5} parent=23 // pred_fallthru
          _
        // Predicated region
        $region29: #{basic_block.5} parent=23 // pred_check
          %p166 = pneg %p59
        $region30: #{basic_block.5} parent=23 // pred_check_branch
          %168 = sbr.rel (%p166) target = $region32
        $region31: #{basic_block.5} parent=23 // pred_region
          %p169 = scmp.lt.s32.totalorder %s13, 1
          %s170 = scalar_select %p169, %s13, 1
          %s171 = smul.addr %s170, 32
          %s172 = smul.addr %s171, 4
          %s173 = scalar_lea.vmem %s1, %s172
        $region32: #{basic_block.5} parent=23 // pred_fallthru
          _
      $region24: #{basic_block.5} parent=5 // pred_fallthru
        _
      %p174 = scmp.le.s32.totalorder 1, %s13
      %p175 = scmp.lt.s32.totalorder %s13, 3
      %p176 = pnand %p174, %p175
      %p177 = pneg %p176
      // Predicated region
      $region33: #{basic_block.5} parent=5 // pred_check
        _
      $region34: #{basic_block.5} parent=5 // pred_check_branch
        %179 = sbr.rel (%p176) target = $region36
      $region35: #{basic_block.5} parent=5 // pred_region
        %s180 = ssub.s32 %s13, 1
        %p181 = scmp.lt.s32.totalorder %s18, 1
        %s182 = scalar_select %p181, %s18, 1
        %s183 = smul.addr %s182, 32
        %s184 = smul.addr %s183, 4
        %s185 = scalar_lea.vmem %s0, %s184
        %p186 = pneg %p39
        %p187 = pneg %p36
        %p188 = scmp.lt.s32.totalorder %s18, 1
        %s189 = scalar_select %p188, %s18, 1
        %s190 = smul.addr %s189, 32
        %s191 = smul.addr %s190, 4
        %s192 = scalar_lea.vmem %s1, %s191
        %p193 = pneg %p65
        %p194 = pneg %p62
        %p195 = pneg %p86
        %p196 = pneg %p83
        %p197 = pneg %p107
        %p198 = pneg %p104
        %p199 = pneg %p133
        %p200 = pneg %p130
        %s201 = sand.u32 %s120, 1
        %s202 = scalar_lea.sflag [#allocation3], %s201
        %s203 = sand.u32 %s120, 1
        %s204 = smul.addr %s203, 256
        %s205 = scalar_lea.vmem [#allocation2], %s204
        %p206 = scmp.lt.s32.totalorder %s18, 1
        %s207 = scalar_select %p206, %s18, 1
        %s208 = smul.addr %s207, 32
        %s209 = smul.addr %s208, 4
        %s210 = scalar_lea.vmem %s0, %s209
        %p211 = scmp.lt.s32.totalorder %s18, 1
        %s212 = scalar_select %p211, %s18, 1
        %s213 = smul.addr %s212, 32
        %s214 = smul.addr %s213, 4
        %s215 = scalar_lea.vmem %s1, %s214
        %v216 = vld [vmem:[%s210] sm:$0xf]
        %v217 = vld [vmem:[%s210 + $0x4] sm:$0xf]
        %v218 = vld [vmem:[%s210 + $0x8] sm:$0xf]
        %v219 = vld [vmem:[%s210 + $0xc] sm:$0xf]
        %v220 = vld [vmem:[%s210 + $0x10] sm:$0xf]
        %v221 = vld [vmem:[%s210 + $0x14] sm:$0xf]
        %v222 = vld [vmem:[%s210 + $0x18] sm:$0xf]
        %v223 = vld [vmem:[%s210 + $0x1c] sm:$0xf]
        %v224 = vld [vmem:[%s210 + $0x20] sm:$0xf]
        %v225 = vld [vmem:[%s210 + $0x24] sm:$0xf]
        %v226 = vld [vmem:[%s210 + $0x28] sm:$0xf]
        %v227 = vld [vmem:[%s210 + $0x2c] sm:$0xf]
        %v228 = vld [vmem:[%s210 + $0x30] sm:$0xf]
        %v229 = vld [vmem:[%s210 + $0x34] sm:$0xf]
        %v230 = vld [vmem:[%s210 + $0x38] sm:$0xf]
        %v231 = vld [vmem:[%s210 + $0x3c] sm:$0xf]
        %v232 = vld [vmem:[%s210 + $0x40] sm:$0xf]
        %v233 = vld [vmem:[%s210 + $0x44] sm:$0xf]
        %v234 = vld [vmem:[%s210 + $0x48] sm:$0xf]
        %v235 = vld [vmem:[%s210 + $0x4c] sm:$0xf]
        %v236 = vld [vmem:[%s210 + $0x50] sm:$0xf]
        %v237 = vld [vmem:[%s210 + $0x54] sm:$0xf]
        %v238 = vld [vmem:[%s210 + $0x58] sm:$0xf]
        %v239 = vld [vmem:[%s210 + $0x5c] sm:$0xf]
        %v240 = vld [vmem:[%s210 + $0x60] sm:$0xf]
        %v241 = vld [vmem:[%s210 + $0x64] sm:$0xf]
        %v242 = vld [vmem:[%s210 + $0x68] sm:$0xf]
        %v243 = vld [vmem:[%s210 + $0x6c] sm:$0xf]
        %v244 = vld [vmem:[%s210 + $0x70] sm:$0xf]
        %v245 = vld [vmem:[%s210 + $0x74] sm:$0xf]
        %v246 = vld [vmem:[%s210 + $0x78] sm:$0xf]
        %v247 = vld [vmem:[%s210 + $0x7c] sm:$0xf]
        %v248 = vunpack.c.l.bf16 %v216
        %v249 = vunpack.c.l.bf16 %v217
        %v250 = vunpack.c.l.bf16 %v218
        %v251 = vunpack.c.l.bf16 %v219
        %v252 = vunpack.c.l.bf16 %v220
        %v253 = vunpack.c.l.bf16 %v221
        %v254 = vunpack.c.l.bf16 %v222
        %v255 = vunpack.c.l.bf16 %v223
        %v256 = vunpack.c.l.bf16 %v224
        %v257 = vunpack.c.l.bf16 %v225
        %v258 = vunpack.c.l.bf16 %v226
        %v259 = vunpack.c.l.bf16 %v227
        %v260 = vunpack.c.l.bf16 %v228
        %v261 = vunpack.c.l.bf16 %v229
        %v262 = vunpack.c.l.bf16 %v230
        %v263 = vunpack.c.l.bf16 %v231
        %v264 = vunpack.c.l.bf16 %v232
        %v265 = vunpack.c.l.bf16 %v233
        %v266 = vunpack.c.l.bf16 %v234
        %v267 = vunpack.c.l.bf16 %v235
        %v268 = vunpack.c.l.bf16 %v236
        %v269 = vunpack.c.l.bf16 %v237
        %v270 = vunpack.c.l.bf16 %v238
        %v271 = vunpack.c.l.bf16 %v239
        %v272 = vunpack.c.l.bf16 %v240
        %v273 = vunpack.c.l.bf16 %v241
        %v274 = vunpack.c.l.bf16 %v242
        %v275 = vunpack.c.l.bf16 %v243
        %v276 = vunpack.c.l.bf16 %v244
        %v277 = vunpack.c.l.bf16 %v245
        %v278 = vunpack.c.l.bf16 %v246
        %v279 = vunpack.c.l.bf16 %v247
        %v280 = vld [vmem:[%s2] sm:$0x1]
        %v282 = vlaneseq
        %v283 = vshrl.u32 %v282, 7
        %v284 = vsub.s32 0, %v283
        %v285 = vrot.slane %v280, %v284
        %v287 = vmul.f32 %v248, %v285
        %v288 = vmul.f32 %v249, %v285
        %v289 = vmul.f32 %v250, %v285
        %v290 = vmul.f32 %v251, %v285
        %v291 = vmul.f32 %v252, %v285
        %v292 = vmul.f32 %v253, %v285
        %v293 = vmul.f32 %v254, %v285
        %v294 = vmul.f32 %v255, %v285
        %v295 = vmul.f32 %v256, %v285
        %v296 = vmul.f32 %v257, %v285
        %v297 = vmul.f32 %v258, %v285
        %v298 = vmul.f32 %v259, %v285
        %v299 = vmul.f32 %v260, %v285
        %v300 = vmul.f32 %v261, %v285
        %v301 = vmul.f32 %v262, %v285
        %v302 = vmul.f32 %v263, %v285
        %v303 = vmul.f32 %v264, %v285
        %v304 = vmul.f32 %v265, %v285
        %v305 = vmul.f32 %v266, %v285
        %v306 = vmul.f32 %v267, %v285
        %v307 = vmul.f32 %v268, %v285
        %v308 = vmul.f32 %v269, %v285
        %v309 = vmul.f32 %v270, %v285
        %v310 = vmul.f32 %v271, %v285
        %v311 = vmul.f32 %v272, %v285
        %v312 = vmul.f32 %v273, %v285
        %v313 = vmul.f32 %v274, %v285
        %v314 = vmul.f32 %v275, %v285
        %v315 = vmul.f32 %v276, %v285
        %v316 = vmul.f32 %v277, %v285
        %v317 = vmul.f32 %v278, %v285
        %v318 = vmul.f32 %v279, %v285
        %v319 = vld [vmem:[%s3] sm:$0x1]
        %v321 = vlaneseq
        %v322 = vshrl.u32 %v321, 7
        %v323 = vsub.s32 0, %v322
        %v324 = vrot.slane %v319, %v323
        %v326 = vadd.f32 %v287, %v324
        %v327 = vadd.f32 %v288, %v324
        %v328 = vadd.f32 %v289, %v324
        %v329 = vadd.f32 %v290, %v324
        %v330 = vadd.f32 %v291, %v324
        %v331 = vadd.f32 %v292, %v324
        %v332 = vadd.f32 %v293, %v324
        %v333 = vadd.f32 %v294, %v324
        %v334 = vadd.f32 %v295, %v324
        %v335 = vadd.f32 %v296, %v324
        %v336 = vadd.f32 %v297, %v324
        %v337 = vadd.f32 %v298, %v324
        %v338 = vadd.f32 %v299, %v324
        %v339 = vadd.f32 %v300, %v324
        %v340 = vadd.f32 %v301, %v324
        %v341 = vadd.f32 %v302, %v324
        %v342 = vadd.f32 %v303, %v324
        %v343 = vadd.f32 %v304, %v324
        %v344 = vadd.f32 %v305, %v324
        %v345 = vadd.f32 %v306, %v324
        %v346 = vadd.f32 %v307, %v324
        %v347 = vadd.f32 %v308, %v324
        %v348 = vadd.f32 %v309, %v324
        %v349 = vadd.f32 %v310, %v324
        %v350 = vadd.f32 %v311, %v324
        %v351 = vadd.f32 %v312, %v324
        %v352 = vadd.f32 %v313, %v324
        %v353 = vadd.f32 %v314, %v324
        %v354 = vadd.f32 %v315, %v324
        %v355 = vadd.f32 %v316, %v324
        %v356 = vadd.f32 %v317, %v324
        %v357 = vadd.f32 %v318, %v324
        %v358 = vld [vmem:[%s215] sm:$0xf]
        %v359 = vld [vmem:[%s215 + $0x4] sm:$0xf]
        %v360 = vld [vmem:[%s215 + $0x8] sm:$0xf]
        %v361 = vld [vmem:[%s215 + $0xc] sm:$0xf]
        %v362 = vld [vmem:[%s215 + $0x10] sm:$0xf]
        %v363 = vld [vmem:[%s215 + $0x14] sm:$0xf]
        %v364 = vld [vmem:[%s215 + $0x18] sm:$0xf]
        %v365 = vld [vmem:[%s215 + $0x1c] sm:$0xf]
        %v366 = vld [vmem:[%s215 + $0x20] sm:$0xf]
        %v367 = vld [vmem:[%s215 + $0x24] sm:$0xf]
        %v368 = vld [vmem:[%s215 + $0x28] sm:$0xf]
        %v369 = vld [vmem:[%s215 + $0x2c] sm:$0xf]
        %v370 = vld [vmem:[%s215 + $0x30] sm:$0xf]
        %v371 = vld [vmem:[%s215 + $0x34] sm:$0xf]
        %v372 = vld [vmem:[%s215 + $0x38] sm:$0xf]
        %v373 = vld [vmem:[%s215 + $0x3c] sm:$0xf]
        %v374 = vld [vmem:[%s215 + $0x40] sm:$0xf]
        %v375 = vld [vmem:[%s215 + $0x44] sm:$0xf]
        %v376 = vld [vmem:[%s215 + $0x48] sm:$0xf]
        %v377 = vld [vmem:[%s215 + $0x4c] sm:$0xf]
        %v378 = vld [vmem:[%s215 + $0x50] sm:$0xf]
        %v379 = vld [vmem:[%s215 + $0x54] sm:$0xf]
        %v380 = vld [vmem:[%s215 + $0x58] sm:$0xf]
        %v381 = vld [vmem:[%s215 + $0x5c] sm:$0xf]
        %v382 = vld [vmem:[%s215 + $0x60] sm:$0xf]
        %v383 = vld [vmem:[%s215 + $0x64] sm:$0xf]
        %v384 = vld [vmem:[%s215 + $0x68] sm:$0xf]
        %v385 = vld [vmem:[%s215 + $0x6c] sm:$0xf]
        %v386 = vld [vmem:[%s215 + $0x70] sm:$0xf]
        %v387 = vld [vmem:[%s215 + $0x74] sm:$0xf]
        %v388 = vld [vmem:[%s215 + $0x78] sm:$0xf]
        %v389 = vld [vmem:[%s215 + $0x7c] sm:$0xf]
        %v390 = vunpack.c.l.bf16 %v358
        %v391 = vunpack.c.l.bf16 %v359
        %v392 = vunpack.c.l.bf16 %v360
        %v393 = vunpack.c.l.bf16 %v361
        %v394 = vunpack.c.l.bf16 %v362
        %v395 = vunpack.c.l.bf16 %v363
        %v396 = vunpack.c.l.bf16 %v364
        %v397 = vunpack.c.l.bf16 %v365
        %v398 = vunpack.c.l.bf16 %v366
        %v399 = vunpack.c.l.bf16 %v367
        %v400 = vunpack.c.l.bf16 %v368
        %v401 = vunpack.c.l.bf16 %v369
        %v402 = vunpack.c.l.bf16 %v370
        %v403 = vunpack.c.l.bf16 %v371
        %v404 = vunpack.c.l.bf16 %v372
        %v405 = vunpack.c.l.bf16 %v373
        %v406 = vunpack.c.l.bf16 %v374
        %v407 = vunpack.c.l.bf16 %v375
        %v408 = vunpack.c.l.bf16 %v376
        %v409 = vunpack.c.l.bf16 %v377
        %v410 = vunpack.c.l.bf16 %v378
        %v411 = vunpack.c.l.bf16 %v379
        %v412 = vunpack.c.l.bf16 %v380
        %v413 = vunpack.c.l.bf16 %v381
        %v414 = vunpack.c.l.bf16 %v382
        %v415 = vunpack.c.l.bf16 %v383
        %v416 = vunpack.c.l.bf16 %v384
        %v417 = vunpack.c.l.bf16 %v385
        %v418 = vunpack.c.l.bf16 %v386
        %v419 = vunpack.c.l.bf16 %v387
        %v420 = vunpack.c.l.bf16 %v388
        %v421 = vunpack.c.l.bf16 %v389
        %v422 = vadd.f32 %v326, %v390
        %v423 = vadd.f32 %v327, %v391
        %v424 = vadd.f32 %v328, %v392
        %v425 = vadd.f32 %v329, %v393
        %v426 = vadd.f32 %v330, %v394
        %v427 = vadd.f32 %v331, %v395
        %v428 = vadd.f32 %v332, %v396
        %v429 = vadd.f32 %v333, %v397
        %v430 = vadd.f32 %v334, %v398
        %v431 = vadd.f32 %v335, %v399
        %v432 = vadd.f32 %v336, %v400
        %v433 = vadd.f32 %v337, %v401
        %v434 = vadd.f32 %v338, %v402
        %v435 = vadd.f32 %v339, %v403
        %v436 = vadd.f32 %v340, %v404
        %v437 = vadd.f32 %v341, %v405
        %v438 = vadd.f32 %v342, %v406
        %v439 = vadd.f32 %v343, %v407
        %v440 = vadd.f32 %v344, %v408
        %v441 = vadd.f32 %v345, %v409
        %v442 = vadd.f32 %v346, %v410
        %v443 = vadd.f32 %v347, %v411
        %v444 = vadd.f32 %v348, %v412
        %v445 = vadd.f32 %v349, %v413
        %v446 = vadd.f32 %v350, %v414
        %v447 = vadd.f32 %v351, %v415
        %v448 = vadd.f32 %v352, %v416
        %v449 = vadd.f32 %v353, %v417
        %v450 = vadd.f32 %v354, %v418
        %v451 = vadd.f32 %v355, %v419
        %v452 = vadd.f32 %v356, %v420
        %v453 = vadd.f32 %v357, %v421
        %v454 = vmax.f32 %v422, 0.0
        %v455 = vmax.f32 %v423, 0.0
        %v456 = vmax.f32 %v424, 0.0
        %v457 = vmax.f32 %v425, 0.0
        %v458 = vmax.f32 %v426, 0.0
        %v459 = vmax.f32 %v427, 0.0
        %v460 = vmax.f32 %v428, 0.0
        %v461 = vmax.f32 %v429, 0.0
        %v462 = vmax.f32 %v430, 0.0
        %v463 = vmax.f32 %v431, 0.0
        %v464 = vmax.f32 %v432, 0.0
        %v465 = vmax.f32 %v433, 0.0
        %v466 = vmax.f32 %v434, 0.0
        %v467 = vmax.f32 %v435, 0.0
        %v468 = vmax.f32 %v436, 0.0
        %v469 = vmax.f32 %v437, 0.0
        %v470 = vmax.f32 %v438, 0.0
        %v471 = vmax.f32 %v439, 0.0
        %v472 = vmax.f32 %v440, 0.0
        %v473 = vmax.f32 %v441, 0.0
        %v474 = vmax.f32 %v442, 0.0
        %v475 = vmax.f32 %v443, 0.0
        %v476 = vmax.f32 %v444, 0.0
        %v477 = vmax.f32 %v445, 0.0
        %v478 = vmax.f32 %v446, 0.0
        %v479 = vmax.f32 %v447, 0.0
        %v480 = vmax.f32 %v448, 0.0
        %v481 = vmax.f32 %v449, 0.0
        %v482 = vmax.f32 %v450, 0.0
        %v483 = vmax.f32 %v451, 0.0
        %v484 = vmax.f32 %v452, 0.0
        %v485 = vmax.f32 %v453, 0.0
        %vm486 = vcmask 523264
        %487 = vst.msk [vmem:[%s205] sm:$0xff] %vm486, %v454
        %488 = vst.msk [vmem:[%s205 + $0x8] sm:$0xff] %vm486, %v455
        %489 = vst.msk [vmem:[%s205 + $0x10] sm:$0xff] %vm486, %v456
        %490 = vst.msk [vmem:[%s205 + $0x18] sm:$0xff] %vm486, %v457
        %491 = vst.msk [vmem:[%s205 + $0x20] sm:$0xff] %vm486, %v458
        %492 = vst.msk [vmem:[%s205 + $0x28] sm:$0xff] %vm486, %v459
        %493 = vst.msk [vmem:[%s205 + $0x30] sm:$0xff] %vm486, %v460
        %494 = vst.msk [vmem:[%s205 + $0x38] sm:$0xff] %vm486, %v461
        %495 = vst.msk [vmem:[%s205 + $0x40] sm:$0xff] %vm486, %v462
        %496 = vst.msk [vmem:[%s205 + $0x48] sm:$0xff] %vm486, %v463
        %497 = vst.msk [vmem:[%s205 + $0x50] sm:$0xff] %vm486, %v464
        %498 = vst.msk [vmem:[%s205 + $0x58] sm:$0xff] %vm486, %v465
        %499 = vst.msk [vmem:[%s205 + $0x60] sm:$0xff] %vm486, %v466
        %500 = vst.msk [vmem:[%s205 + $0x68] sm:$0xff] %vm486, %v467
        %501 = vst.msk [vmem:[%s205 + $0x70] sm:$0xff] %vm486, %v468
        %502 = vst.msk [vmem:[%s205 + $0x78] sm:$0xff] %vm486, %v469
        %503 = vst.msk [vmem:[%s205 + $0x80] sm:$0xff] %vm486, %v470
        %504 = vst.msk [vmem:[%s205 + $0x88] sm:$0xff] %vm486, %v471
        %505 = vst.msk [vmem:[%s205 + $0x90] sm:$0xff] %vm486, %v472
        %506 = vst.msk [vmem:[%s205 + $0x98] sm:$0xff] %vm486, %v473
        %507 = vst.msk [vmem:[%s205 + $0xa0] sm:$0xff] %vm486, %v474
        %508 = vst.msk [vmem:[%s205 + $0xa8] sm:$0xff] %vm486, %v475
        %509 = vst.msk [vmem:[%s205 + $0xb0] sm:$0xff] %vm486, %v476
        %510 = vst.msk [vmem:[%s205 + $0xb8] sm:$0xff] %vm486, %v477
        %511 = vst.msk [vmem:[%s205 + $0xc0] sm:$0xff] %vm486, %v478
        %512 = vst.msk [vmem:[%s205 + $0xc8] sm:$0xff] %vm486, %v479
        %513 = vst.msk [vmem:[%s205 + $0xd0] sm:$0xff] %vm486, %v480
        %514 = vst.msk [vmem:[%s205 + $0xd8] sm:$0xff] %vm486, %v481
        %515 = vst.msk [vmem:[%s205 + $0xe0] sm:$0xff] %vm486, %v482
        %516 = vst.msk [vmem:[%s205 + $0xe8] sm:$0xff] %vm486, %v483
        %517 = vst.msk [vmem:[%s205 + $0xf0] sm:$0xff] %vm486, %v484
        %518 = vst.msk [vmem:[%s205 + $0xf8] sm:$0xff] %vm486, %v485
        %s519 = sand.u32 %s120, 1
        %s520 = scalar_lea.sflag [#allocation3], %s519
        %s521 = sand.u32 %s120, 1
        %s522 = smul.addr %s521, 256
        %s523 = scalar_lea.vmem [#allocation2], %s522
        // Predicated region
        $region37: #{basic_block.5} parent=35 // pred_check
          %p524 = pneg %p130
        $region38: #{basic_block.5} parent=35 // pred_check_branch
          %526 = sbr.rel (%p524) target = $region40
        $region39: #{basic_block.5} parent=35 // pred_region
          %s528 = ssub.s32 4096, 4096
          %529 = vsyncadd %s520, %s528
          %s530 = smul.addr %s18, 32
          %s531 = smul.addr %s530, 128
          %s532 = scalar_lea.hbm %s4, %s531
          %s533 = sshll.u32 %s523, 4
          %s534 = int_to_ptr.vmem [resolvable:$true] %s533
          %539 = dma.vmem_to_hbm [thread:$0]  %s534, 4096, %s532, %s520, 128, 128, 8
        $region40: #{basic_block.5} parent=35 // pred_fallthru
          _
      $region36: #{basic_block.5} parent=5 // pred_fallthru
        _
      %p540 = scmp.le.s32.totalorder 2, %s13
      // Predicated region
      $region41: #{basic_block.5} parent=5 // pred_check
        %p541 = pneg %p540
      $region42: #{basic_block.5} parent=5 // pred_check_branch
        %543 = sbr.rel (%p541) target = $region44
      $region43: #{basic_block.5} parent=5 // pred_region
        %s544 = ssub.s32 %s13, 2
        // Predicated region
        $region45: #{basic_block.5} parent=43 // pred_check
          %p545 = pneg %p136
        $region46: #{basic_block.5} parent=43 // pred_check_branch
          %547 = sbr.rel (%p545) target = $region48
        $region47: #{basic_block.5} parent=43 // pred_region
          %s548 = sand.u32 %s121, 1
          %s549 = scalar_lea.sflag [#allocation3], %s548
          %s550 = sand.u32 %s121, 1
          %s551 = smul.addr %s550, 256
          %s552 = scalar_lea.vmem [#allocation2], %s551
          %553 = dma.done %s549, 4096
        $region48: #{basic_block.5} parent=43 // pred_fallthru
          _
      $region44: #{basic_block.5} parent=5 // pred_fallthru
        _
    $region6: #{basic_block.5} parent=1 // loop_footer
      %s17 = sadd.s32 1, %s13
    $region7: #{basic_block.5} parent=1 // loop_footer_branch
      %12 = sbr.rel target = $region3
    $region8: #{basic_block.5} parent=1 // loop_exit
      _
    %554 = vsyncpa [#allocation3], 1
    %s555 = scalar_lea.sflag [#allocation3], 1
    %556 = vsyncpa %s555, 1

// kernel: basic_block.4
$region0: #{basic_block.4}
  #allocation0 [shape = 'u32[]', space=smem, size = 0x4, offset = 0x4, fixed_abs, tag = 'smem constant byte address 0x4 - core index']
  #allocation1 [shape = 'u32[144,128]{1,0:T(1,128)}', space=vmem, size = 0x12000, scoped, tag = 'internal scratch']
  #allocation2 [shape = 'f32[256,64]{1,0:T(8,128)}', space=vmem, size = 0x20000, scoped, tag = 'scratch operand']
  %s0 = inlined_call_operand.vmem [shape: bf16[2,16,16,64], index: 0, kind: input, shape index: {}]
  %s1 = inlined_call_operand.vmem [shape: bf16[9,64,64], index: 1, kind: input, shape index: {}]
  %s2 = inlined_call_operand.vmem [shape: f32[1,64], index: 2, kind: input, shape index: {}]
  %s3 = inlined_call_operand.vmem [shape: f32[1,64], index: 3, kind: input, shape index: {}]
  %s4 = inlined_call_operand.vmem [shape: f32[4,256,1], index: 4, kind: input, shape index: {}]
  %s5 = inlined_call_operand.vmem [shape: bf16[2,16,16,64], index: 5, kind: output, shape index: {0}]
  %s6 = inlined_call_operand.vmem [shape: f32[2,2,64], index: 6, kind: output, shape index: {1}]
  %7 = xla_tuple %s5, %s6
  %s8 = sld [smem:[#allocation0]]
  $region61: #{basic_block.4} parent=0
    _
  %s10 = ssub.s32 1, %s8
  %s11 = scalar_select 0, %s10, %s8
  loop: start=0, step=1, limit=4
  $region2: #{basic_block.4} parent=0 // loop_pre_header
    _
  $region3: #{basic_block.4} parent=0 // loop_header
    %s13 = sphi 0, %s17
    %p14 = scmp.ge.s32.totalorder %s13, 4
    %s23 = sphi 0, %s25
    %s26 = sphi 0, %s23
    %s27 = sphi 0, %s26
    %s43 = sphi 0, %s27
    %s47 = sphi 0, %s47
    %s49 = sphi 0, %s47
    %s50 = sphi 0, %s49
    %s64 = sphi 0, %s50
    %s68 = sphi 0, %s68
    %s70 = sphi 0, %s68
    %s71 = sphi 0, %s70
    %s85 = sphi 0, %s71
    %s89 = sphi 0, %s89
    %s91 = sphi 0, %s89
    %s92 = sphi 0, %s91
    %s106 = sphi 0, %s92
    %s110 = sphi 0, %s110
    %s112 = sphi 0, %s110
    %s113 = sphi 0, %s112
    %s127 = sphi 0, %s113
    %s133 = sphi 0, %s135
    %s136 = sphi 0, %s133
    %s137 = sphi 0, %s136
    %s153 = sphi 0, %s137
    %s159 = sphi 0, %s161
    %s162 = sphi 0, %s159
    %s163 = sphi 0, %s162
    %s179 = sphi 0, %s163
  $region4: #{basic_block.4} parent=0 // loop_header_branch
    %16 = sbr.rel (%p14) target = $region8
  $region5: #{basic_block.4} parent=0 // loop_body
    %s18 = ssub.s32 %s13, 1
    %s19 = ssub.s32 %s13, 2
    %s20 = sadd.s32 %s13, 1
    %s21 = ssub.s32 %s13, %s20
    %p22 = scmp.eq.s32.totalorder %s21, 0
    %s24 = sadd.s32 %s23, 1
    %s25 = scalar_select %p22, %s23, %s24
    %p28 = pneg %p22
    %p29 = scmp.eq.s32.totalorder %s13, 1
    %p30 = por %p28, %p29
    %p31 = scmp.ne.s32.totalorder %s23, %s26
    %p32 = scmp.eq.s32.totalorder %s13, 0
    %p33 = por %p31, %p32
    %p34 = scmp.ne.s32.totalorder %s23, %s26
    %p35 = scmp.eq.s32.totalorder %s18, 1
    %p36 = por %p34, %p35
    %p37 = scmp.ne.s32.totalorder %s26, %s27
    %p38 = scmp.eq.s32.totalorder %s18, 0
    %p39 = por %p37, %p38
    %p40 = scmp.ne.s32.totalorder %s26, %s27
    %p41 = scmp.eq.s32.totalorder %s19, 1
    %p42 = por %p40, %p41
    %p44 = scmp.ne.s32.totalorder %s27, %s43
    %p45 = scmp.eq.s32.totalorder %s19, 0
    %p46 = por %p44, %p45
    %s48 = sadd.s32 %s47, 1
    %p51 = scmp.eq.s32.totalorder %s13, 1
    %p52 = scmp.ne.s32.totalorder %s47, %s49
    %p53 = scmp.eq.s32.totalorder %s13, 0
    %p54 = por %p52, %p53
    %p55 = scmp.ne.s32.totalorder %s47, %s49
    %p56 = scmp.eq.s32.totalorder %s18, 1
    %p57 = por %p55, %p56
    %p58 = scmp.ne.s32.totalorder %s49, %s50
    %p59 = scmp.eq.s32.totalorder %s18, 0
    %p60 = por %p58, %p59
    %p61 = scmp.ne.s32.totalorder %s49, %s50
    %p62 = scmp.eq.s32.totalorder %s19, 1
    %p63 = por %p61, %p62
    %p65 = scmp.ne.s32.totalorder %s50, %s64
    %p66 = scmp.eq.s32.totalorder %s19, 0
    %p67 = por %p65, %p66
    %s69 = sadd.s32 %s68, 1
    %p72 = scmp.eq.s32.totalorder %s13, 1
    %p73 = scmp.ne.s32.totalorder %s68, %s70
    %p74 = scmp.eq.s32.totalorder %s13, 0
    %p75 = por %p73, %p74
    %p76 = scmp.ne.s32.totalorder %s68, %s70
    %p77 = scmp.eq.s32.totalorder %s18, 1
    %p78 = por %p76, %p77
    %p79 = scmp.ne.s32.totalorder %s70, %s71
    %p80 = scmp.eq.s32.totalorder %s18, 0
    %p81 = por %p79, %p80
    %p82 = scmp.ne.s32.totalorder %s70, %s71
    %p83 = scmp.eq.s32.totalorder %s19, 1
    %p84 = por %p82, %p83
    %p86 = scmp.ne.s32.totalorder %s71, %s85
    %p87 = scmp.eq.s32.totalorder %s19, 0
    %p88 = por %p86, %p87
    %s90 = sadd.s32 %s89, 1
    %p93 = scmp.eq.s32.totalorder %s13, 1
    %p94 = scmp.ne.s32.totalorder %s89, %s91
    %p95 = scmp.eq.s32.totalorder %s13, 0
    %p96 = por %p94, %p95
    %p97 = scmp.ne.s32.totalorder %s89, %s91
    %p98 = scmp.eq.s32.totalorder %s18, 1
    %p99 = por %p97, %p98
    %p100 = scmp.ne.s32.totalorder %s91, %s92
    %p101 = scmp.eq.s32.totalorder %s18, 0
    %p102 = por %p100, %p101
    %p103 = scmp.ne.s32.totalorder %s91, %s92
    %p104 = scmp.eq.s32.totalorder %s19, 1
    %p105 = por %p103, %p104
    %p107 = scmp.ne.s32.totalorder %s92, %s106
    %p108 = scmp.eq.s32.totalorder %s19, 0
    %p109 = por %p107, %p108
    %s111 = sadd.s32 %s110, 1
    %p114 = scmp.eq.s32.totalorder %s13, 1
    %p115 = scmp.ne.s32.totalorder %s110, %s112
    %p116 = scmp.eq.s32.totalorder %s13, 0
    %p117 = por %p115, %p116
    %p118 = scmp.ne.s32.totalorder %s110, %s112
    %p119 = scmp.eq.s32.totalorder %s18, 1
    %p120 = por %p118, %p119
    %p121 = scmp.ne.s32.totalorder %s112, %s113
    %p122 = scmp.eq.s32.totalorder %s18, 0
    %p123 = por %p121, %p122
    %p124 = scmp.ne.s32.totalorder %s112, %s113
    %p125 = scmp.eq.s32.totalorder %s19, 1
    %p126 = por %p124, %p125
    %p128 = scmp.ne.s32.totalorder %s113, %s127
    %p129 = scmp.eq.s32.totalorder %s19, 0
    %p130 = por %p128, %p129
    %s131 = ssub.s32 %s13, %s20
    %p132 = scmp.eq.s32.totalorder %s131, 0
    %s134 = sadd.s32 %s133, 1
    %s135 = scalar_select %p132, %s133, %s134
    %p138 = pneg %p132
    %p139 = scmp.eq.s32.totalorder %s13, 1
    %p140 = por %p138, %p139
    %p141 = scmp.ne.s32.totalorder %s133, %s136
    %p142 = scmp.eq.s32.totalorder %s13, 0
    %p143 = por %p141, %p142
    %p144 = scmp.ne.s32.totalorder %s133, %s136
    %p145 = scmp.eq.s32.totalorder %s18, 1
    %p146 = por %p144, %p145
    %p147 = scmp.ne.s32.totalorder %s136, %s137
    %p148 = scmp.eq.s32.totalorder %s18, 0
    %p149 = por %p147, %p148
    %p150 = scmp.ne.s32.totalorder %s136, %s137
    %p151 = scmp.eq.s32.totalorder %s19, 1
    %p152 = por %p150, %p151
    %p154 = scmp.ne.s32.totalorder %s137, %s153
    %p155 = scmp.eq.s32.totalorder %s19, 0
    %p156 = por %p154, %p155
    %s157 = ssub.s32 %s13, %s20
    %p158 = scmp.eq.s32.totalorder %s157, 0
    %s160 = sadd.s32 %s159, 1
    %s161 = scalar_select %p158, %s159, %s160
    %p164 = pneg %p158
    %p165 = scmp.eq.s32.totalorder %s13, 1
    %p166 = por %p164, %p165
    %p167 = scmp.ne.s32.totalorder %s159, %s162
    %p168 = scmp.eq.s32.totalorder %s13, 0
    %p169 = por %p167, %p168
    %p170 = scmp.ne.s32.totalorder %s159, %s162
    %p171 = scmp.eq.s32.totalorder %s18, 1
    %p172 = por %p170, %p171
    %p173 = scmp.ne.s32.totalorder %s162, %s163
    %p174 = scmp.eq.s32.totalorder %s18, 0
    %p175 = por %p173, %p174
    %p176 = scmp.ne.s32.totalorder %s162, %s163
    %p177 = scmp.eq.s32.totalorder %s19, 1
    %p178 = por %p176, %p177
    %p180 = scmp.ne.s32.totalorder %s163, %s179
    %p181 = scmp.eq.s32.totalorder %s19, 0
    %p182 = por %p180, %p181
    %p183 = scmp.le.s32.totalorder 1, %s13
    %p184 = scmp.lt.s32.totalorder %s13, 3
    %p185 = pnand %p183, %p184
    %p186 = pneg %p185
    // Predicated region
    $region9: #{basic_block.4} parent=5 // pred_check
      _
    $region10: #{basic_block.4} parent=5 // pred_check_branch
      %188 = sbr.rel (%p185) target = $region12
    $region11: #{basic_block.4} parent=5 // pred_region
      %s189 = ssub.s32 %s13, 1
      // Predicated region
      $region13: #{basic_block.4} parent=11 // pred_check
        %p190 = pneg %p60
      $region14: #{basic_block.4} parent=11 // pred_check_branch
        %192 = sbr.rel (%p190) target = $region16
      $region15: #{basic_block.4} parent=11 // pred_region
        _
      $region16: #{basic_block.4} parent=11 // pred_fallthru
        _
      // Predicated region
      $region17: #{basic_block.4} parent=11 // pred_check
        %p193 = pneg %p81
      $region18: #{basic_block.4} parent=11 // pred_check_branch
        %195 = sbr.rel (%p193) target = $region20
      $region19: #{basic_block.4} parent=11 // pred_region
        _
      $region20: #{basic_block.4} parent=11 // pred_fallthru
        _
      // Predicated region
      $region21: #{basic_block.4} parent=11 // pred_check
        %p196 = pneg %p102
      $region22: #{basic_block.4} parent=11 // pred_check_branch
        %198 = sbr.rel (%p196) target = $region24
      $region23: #{basic_block.4} parent=11 // pred_region
        _
      $region24: #{basic_block.4} parent=11 // pred_fallthru
        _
      // Predicated region
      $region25: #{basic_block.4} parent=11 // pred_check
        %p199 = pneg %p123
      $region26: #{basic_block.4} parent=11 // pred_check_branch
        %201 = sbr.rel (%p199) target = $region28
      $region27: #{basic_block.4} parent=11 // pred_region
        _
      $region28: #{basic_block.4} parent=11 // pred_fallthru
        _
    $region12: #{basic_block.4} parent=5 // pred_fallthru
      _
    %p202 = scmp.lt.s32.totalorder %s13, 2
    // Predicated region
    $region29: #{basic_block.4} parent=5 // pred_check
      %p203 = pneg %p202
    $region30: #{basic_block.4} parent=5 // pred_check_branch
      %205 = sbr.rel (%p203) target = $region32
    $region31: #{basic_block.4} parent=5 // pred_region
      // Predicated region
      $region33: #{basic_block.4} parent=31 // pred_check
        %p206 = pneg %p33
      $region34: #{basic_block.4} parent=31 // pred_check_branch
        %208 = sbr.rel (%p206) target = $region36
      $region35: #{basic_block.4} parent=31 // pred_region
        %p209 = scmp.lt.s32.totalorder %s13, 1
        %s210 = scalar_select %p209, %s13, 1
        %s211 = smul.addr %s210, 32
        %s212 = smul.addr %s211, 4
        %s213 = scalar_lea.vmem %s0, %s212
      $region36: #{basic_block.4} parent=31 // pred_fallthru
        _
    $region32: #{basic_block.4} parent=5 // pred_fallthru
      _
    %p214 = scmp.le.s32.totalorder 1, %s13
    %p215 = scmp.lt.s32.totalorder %s13, 3
    %p216 = pnand %p214, %p215
    %p217 = pneg %p216
    // Predicated region
    $region37: #{basic_block.4} parent=5 // pred_check
      _
    $region38: #{basic_block.4} parent=5 // pred_check_branch
      %219 = sbr.rel (%p216) target = $region40
    $region39: #{basic_block.4} parent=5 // pred_region
      %s220 = ssub.s32 %s13, 1
      %p221 = scmp.lt.s32.totalorder %s18, 1
      %s222 = scalar_select %p221, %s18, 1
      %s223 = smul.addr %s222, 32
      %s224 = smul.addr %s223, 4
      %s225 = scalar_lea.vmem %s0, %s224
      %p226 = pneg %p39
      %p227 = pneg %p36
      %p228 = pneg %p60
      %p229 = pneg %p57
      %p230 = pneg %p81
      %p231 = pneg %p78
      %p232 = pneg %p102
      %p233 = pneg %p99
      %p234 = pneg %p123
      %p235 = pneg %p120
      %p236 = pneg %p149
      %p237 = pneg %p146
      %p238 = scmp.lt.s32.totalorder %s18, 1
      %s239 = scalar_select %p238, %s18, 1
      %s240 = smul.addr %s239, 32
      %s241 = smul.addr %s240, 4
      %s242 = scalar_lea.vmem %s5, %s241
      %p243 = pneg %p175
      %p244 = pneg %p172
      %p245 = scmp.lt.s32.totalorder %s18, 1
      %s246 = scalar_select %p245, %s18, 1
      %s247 = smul.addr %s246, 2
      %s248 = scalar_lea.vmem %s6, %s247
      %p249 = scmp.lt.s32.totalorder %s18, 1
      %s250 = scalar_select %p249, %s18, 1
      %s251 = smul.addr %s250, 32
      %s252 = smul.addr %s251, 4
      %s253 = scalar_lea.vmem %s0, %s252
      %p254 = scmp.lt.s32.totalorder %s18, 1
      %s255 = scalar_select %p254, %s18, 1
      %s256 = smul.addr %s255, 32
      %s257 = smul.addr %s256, 4
      %s258 = scalar_lea.vmem %s5, %s257
      %p259 = scmp.lt.s32.totalorder %s18, 1
      %s260 = scalar_select %p259, %s18, 1
      %s261 = smul.addr %s260, 2
      %s262 = scalar_lea.vmem %s6, %s261
      %v264 = vld [vmem:[%s253] sm:$0xf]
      %v265 = vld [vmem:[%s253 + $0x4] sm:$0xf]
      %v266 = vld [vmem:[%s253 + $0x8] sm:$0xf]
      %v267 = vld [vmem:[%s253 + $0xc] sm:$0xf]
      %v268 = vld [vmem:[%s253 + $0x10] sm:$0xf]
      %v269 = vld [vmem:[%s253 + $0x14] sm:$0xf]
      %v270 = vld [vmem:[%s253 + $0x18] sm:$0xf]
      %v271 = vld [vmem:[%s253 + $0x1c] sm:$0xf]
      %v272 = vld [vmem:[%s253 + $0x20] sm:$0xf]
      %v273 = vld [vmem:[%s253 + $0x24] sm:$0xf]
      %v274 = vld [vmem:[%s253 + $0x28] sm:$0xf]
      %v275 = vld [vmem:[%s253 + $0x2c] sm:$0xf]
      %v276 = vld [vmem:[%s253 + $0x30] sm:$0xf]
      %v277 = vld [vmem:[%s253 + $0x34] sm:$0xf]
      %v278 = vld [vmem:[%s253 + $0x38] sm:$0xf]
      %v279 = vld [vmem:[%s253 + $0x3c] sm:$0xf]
      %v280 = vld [vmem:[%s253 + $0x40] sm:$0xf]
      %v281 = vld [vmem:[%s253 + $0x44] sm:$0xf]
      %v282 = vld [vmem:[%s253 + $0x48] sm:$0xf]
      %v283 = vld [vmem:[%s253 + $0x4c] sm:$0xf]
      %v284 = vld [vmem:[%s253 + $0x50] sm:$0xf]
      %v285 = vld [vmem:[%s253 + $0x54] sm:$0xf]
      %v286 = vld [vmem:[%s253 + $0x58] sm:$0xf]
      %v287 = vld [vmem:[%s253 + $0x5c] sm:$0xf]
      %v288 = vld [vmem:[%s253 + $0x60] sm:$0xf]
      %v289 = vld [vmem:[%s253 + $0x64] sm:$0xf]
      %v290 = vld [vmem:[%s253 + $0x68] sm:$0xf]
      %v291 = vld [vmem:[%s253 + $0x6c] sm:$0xf]
      %v292 = vld [vmem:[%s253 + $0x70] sm:$0xf]
      %v293 = vld [vmem:[%s253 + $0x74] sm:$0xf]
      %v294 = vld [vmem:[%s253 + $0x78] sm:$0xf]
      %v295 = vld [vmem:[%s253 + $0x7c] sm:$0xf]
      %v296 = vunpack.c.l.bf16 %v264
      %v297 = vunpack.c.l.bf16 %v265
      %v298 = vunpack.c.l.bf16 %v266
      %v299 = vunpack.c.l.bf16 %v267
      %v300 = vunpack.c.l.bf16 %v268
      %v301 = vunpack.c.l.bf16 %v269
      %v302 = vunpack.c.l.bf16 %v270
      %v303 = vunpack.c.l.bf16 %v271
      %v304 = vunpack.c.l.bf16 %v272
      %v305 = vunpack.c.l.bf16 %v273
      %v306 = vunpack.c.l.bf16 %v274
      %v307 = vunpack.c.l.bf16 %v275
      %v308 = vunpack.c.l.bf16 %v276
      %v309 = vunpack.c.l.bf16 %v277
      %v310 = vunpack.c.l.bf16 %v278
      %v311 = vunpack.c.l.bf16 %v279
      %v312 = vunpack.c.l.bf16 %v280
      %v313 = vunpack.c.l.bf16 %v281
      %v314 = vunpack.c.l.bf16 %v282
      %v315 = vunpack.c.l.bf16 %v283
      %v316 = vunpack.c.l.bf16 %v284
      %v317 = vunpack.c.l.bf16 %v285
      %v318 = vunpack.c.l.bf16 %v286
      %v319 = vunpack.c.l.bf16 %v287
      %v320 = vunpack.c.l.bf16 %v288
      %v321 = vunpack.c.l.bf16 %v289
      %v322 = vunpack.c.l.bf16 %v290
      %v323 = vunpack.c.l.bf16 %v291
      %v324 = vunpack.c.l.bf16 %v292
      %v325 = vunpack.c.l.bf16 %v293
      %v326 = vunpack.c.l.bf16 %v294
      %v327 = vunpack.c.l.bf16 %v295
      %v328 = vld [vmem:[%s2] sm:$0x1]
      %v330 = vlaneseq
      %v331 = vshrl.u32 %v330, 7
      %v332 = vsub.s32 0, %v331
      %v333 = vrot.slane %v328, %v332
      %v335 = vmul.f32 %v296, %v333
      %v336 = vmul.f32 %v297, %v333
      %v337 = vmul.f32 %v298, %v333
      %v338 = vmul.f32 %v299, %v333
      %v339 = vmul.f32 %v300, %v333
      %v340 = vmul.f32 %v301, %v333
      %v341 = vmul.f32 %v302, %v333
      %v342 = vmul.f32 %v303, %v333
      %v343 = vmul.f32 %v304, %v333
      %v344 = vmul.f32 %v305, %v333
      %v345 = vmul.f32 %v306, %v333
      %v346 = vmul.f32 %v307, %v333
      %v347 = vmul.f32 %v308, %v333
      %v348 = vmul.f32 %v309, %v333
      %v349 = vmul.f32 %v310, %v333
      %v350 = vmul.f32 %v311, %v333
      %v351 = vmul.f32 %v312, %v333
      %v352 = vmul.f32 %v313, %v333
      %v353 = vmul.f32 %v314, %v333
      %v354 = vmul.f32 %v315, %v333
      %v355 = vmul.f32 %v316, %v333
      %v356 = vmul.f32 %v317, %v333
      %v357 = vmul.f32 %v318, %v333
      %v358 = vmul.f32 %v319, %v333
      %v359 = vmul.f32 %v320, %v333
      %v360 = vmul.f32 %v321, %v333
      %v361 = vmul.f32 %v322, %v333
      %v362 = vmul.f32 %v323, %v333
      %v363 = vmul.f32 %v324, %v333
      %v364 = vmul.f32 %v325, %v333
      %v365 = vmul.f32 %v326, %v333
      %v366 = vmul.f32 %v327, %v333
      %v367 = vld [vmem:[%s3] sm:$0x1]
      %v369 = vlaneseq
      %v370 = vshrl.u32 %v369, 7
      %v371 = vsub.s32 0, %v370
      %v372 = vrot.slane %v367, %v371
      %v374 = vadd.f32 %v335, %v372
      %v375 = vadd.f32 %v336, %v372
      %v376 = vadd.f32 %v337, %v372
      %v377 = vadd.f32 %v338, %v372
      %v378 = vadd.f32 %v339, %v372
      %v379 = vadd.f32 %v340, %v372
      %v380 = vadd.f32 %v341, %v372
      %v381 = vadd.f32 %v342, %v372
      %v382 = vadd.f32 %v343, %v372
      %v383 = vadd.f32 %v344, %v372
      %v384 = vadd.f32 %v345, %v372
      %v385 = vadd.f32 %v346, %v372
      %v386 = vadd.f32 %v347, %v372
      %v387 = vadd.f32 %v348, %v372
      %v388 = vadd.f32 %v349, %v372
      %v389 = vadd.f32 %v350, %v372
      %v390 = vadd.f32 %v351, %v372
      %v391 = vadd.f32 %v352, %v372
      %v392 = vadd.f32 %v353, %v372
      %v393 = vadd.f32 %v354, %v372
      %v394 = vadd.f32 %v355, %v372
      %v395 = vadd.f32 %v356, %v372
      %v396 = vadd.f32 %v357, %v372
      %v397 = vadd.f32 %v358, %v372
      %v398 = vadd.f32 %v359, %v372
      %v399 = vadd.f32 %v360, %v372
      %v400 = vadd.f32 %v361, %v372
      %v401 = vadd.f32 %v362, %v372
      %v402 = vadd.f32 %v363, %v372
      %v403 = vadd.f32 %v364, %v372
      %v404 = vadd.f32 %v365, %v372
      %v405 = vadd.f32 %v366, %v372
      %v406 = vmax.f32 %v374, 0.0
      %v407 = vmax.f32 %v375, 0.0
      %v408 = vmax.f32 %v376, 0.0
      %v409 = vmax.f32 %v377, 0.0
      %v410 = vmax.f32 %v378, 0.0
      %v411 = vmax.f32 %v379, 0.0
      %v412 = vmax.f32 %v380, 0.0
      %v413 = vmax.f32 %v381, 0.0
      %v414 = vmax.f32 %v382, 0.0
      %v415 = vmax.f32 %v383, 0.0
      %v416 = vmax.f32 %v384, 0.0
      %v417 = vmax.f32 %v385, 0.0
      %v418 = vmax.f32 %v386, 0.0
      %v419 = vmax.f32 %v387, 0.0
      %v420 = vmax.f32 %v388, 0.0
      %v421 = vmax.f32 %v389, 0.0
      %v422 = vmax.f32 %v390, 0.0
      %v423 = vmax.f32 %v391, 0.0
      %v424 = vmax.f32 %v392, 0.0
      %v425 = vmax.f32 %v393, 0.0
      %v426 = vmax.f32 %v394, 0.0
      %v427 = vmax.f32 %v395, 0.0
      %v428 = vmax.f32 %v396, 0.0
      %v429 = vmax.f32 %v397, 0.0
      %v430 = vmax.f32 %v398, 0.0
      %v431 = vmax.f32 %v399, 0.0
      %v432 = vmax.f32 %v400, 0.0
      %v433 = vmax.f32 %v401, 0.0
      %v434 = vmax.f32 %v402, 0.0
      %v435 = vmax.f32 %v403, 0.0
      %v436 = vmax.f32 %v404, 0.0
      %v437 = vmax.f32 %v405, 0.0
      %v438 = vpack.c.bf16 %v407, %v406
      %v439 = vpack.c.bf16 %v409, %v408
      %v440 = vpack.c.bf16 %v411, %v410
      %v441 = vpack.c.bf16 %v413, %v412
      %v442 = vpack.c.bf16 %v415, %v414
      %v443 = vpack.c.bf16 %v417, %v416
      %v444 = vpack.c.bf16 %v419, %v418
      %v445 = vpack.c.bf16 %v421, %v420
      %v446 = vpack.c.bf16 %v423, %v422
      %v447 = vpack.c.bf16 %v425, %v424
      %v448 = vpack.c.bf16 %v427, %v426
      %v449 = vpack.c.bf16 %v429, %v428
      %v450 = vpack.c.bf16 %v431, %v430
      %v451 = vpack.c.bf16 %v433, %v432
      %v452 = vpack.c.bf16 %v435, %v434
      %v453 = vpack.c.bf16 %v437, %v436
      %v454 = vld [vmem:[%s4] sm:$0xff]
      %v455 = vld [vmem:[%s4 + $0x8] sm:$0xff]
      %v456 = vld [vmem:[%s4 + $0x10] sm:$0xff]
      %v457 = vld [vmem:[%s4 + $0x18] sm:$0xff]
      %v458 = vld [vmem:[%s4 + $0x20] sm:$0xff]
      %v459 = vld [vmem:[%s4 + $0x28] sm:$0xff]
      %v460 = vld [vmem:[%s4 + $0x30] sm:$0xff]
      %v461 = vld [vmem:[%s4 + $0x38] sm:$0xff]
      %v462 = vld [vmem:[%s4 + $0x40] sm:$0xff]
      %v463 = vld [vmem:[%s4 + $0x48] sm:$0xff]
      %v464 = vld [vmem:[%s4 + $0x50] sm:$0xff]
      %v465 = vld [vmem:[%s4 + $0x58] sm:$0xff]
      %v466 = vld [vmem:[%s4 + $0x60] sm:$0xff]
      %v467 = vld [vmem:[%s4 + $0x68] sm:$0xff]
      %v468 = vld [vmem:[%s4 + $0x70] sm:$0xff]
      %v469 = vld [vmem:[%s4 + $0x78] sm:$0xff]
      %v470 = vld [vmem:[%s4 + $0x80] sm:$0xff]
      %v471 = vld [vmem:[%s4 + $0x88] sm:$0xff]
      %v472 = vld [vmem:[%s4 + $0x90] sm:$0xff]
      %v473 = vld [vmem:[%s4 + $0x98] sm:$0xff]
      %v474 = vld [vmem:[%s4 + $0xa0] sm:$0xff]
      %v475 = vld [vmem:[%s4 + $0xa8] sm:$0xff]
      %v476 = vld [vmem:[%s4 + $0xb0] sm:$0xff]
      %v477 = vld [vmem:[%s4 + $0xb8] sm:$0xff]
      %v478 = vld [vmem:[%s4 + $0xc0] sm:$0xff]
      %v479 = vld [vmem:[%s4 + $0xc8] sm:$0xff]
      %v480 = vld [vmem:[%s4 + $0xd0] sm:$0xff]
      %v481 = vld [vmem:[%s4 + $0xd8] sm:$0xff]
      %v482 = vld [vmem:[%s4 + $0xe0] sm:$0xff]
      %v483 = vld [vmem:[%s4 + $0xe8] sm:$0xff]
      %v484 = vld [vmem:[%s4 + $0xf0] sm:$0xff]
      %v485 = vld [vmem:[%s4 + $0xf8] sm:$0xff]
      %s486 = scalar_lea.vmem %s4, 256
      %v487 = vld [vmem:[%s486] sm:$0xff]
      %v488 = vld [vmem:[%s486 + $0x8] sm:$0xff]
      %v489 = vld [vmem:[%s486 + $0x10] sm:$0xff]
      %v490 = vld [vmem:[%s486 + $0x18] sm:$0xff]
      %v491 = vld [vmem:[%s486 + $0x20] sm:$0xff]
      %v492 = vld [vmem:[%s486 + $0x28] sm:$0xff]
      %v493 = vld [vmem:[%s486 + $0x30] sm:$0xff]
      %v494 = vld [vmem:[%s486 + $0x38] sm:$0xff]
      %v495 = vld [vmem:[%s486 + $0x40] sm:$0xff]
      %v496 = vld [vmem:[%s486 + $0x48] sm:$0xff]
      %v497 = vld [vmem:[%s486 + $0x50] sm:$0xff]
      %v498 = vld [vmem:[%s486 + $0x58] sm:$0xff]
      %v499 = vld [vmem:[%s486 + $0x60] sm:$0xff]
      %v500 = vld [vmem:[%s486 + $0x68] sm:$0xff]
      %v501 = vld [vmem:[%s486 + $0x70] sm:$0xff]
      %v502 = vld [vmem:[%s486 + $0x78] sm:$0xff]
      %v503 = vld [vmem:[%s486 + $0x80] sm:$0xff]
      %v504 = vld [vmem:[%s486 + $0x88] sm:$0xff]
      %v505 = vld [vmem:[%s486 + $0x90] sm:$0xff]
      %v506 = vld [vmem:[%s486 + $0x98] sm:$0xff]
      %v507 = vld [vmem:[%s486 + $0xa0] sm:$0xff]
      %v508 = vld [vmem:[%s486 + $0xa8] sm:$0xff]
      %v509 = vld [vmem:[%s486 + $0xb0] sm:$0xff]
      %v510 = vld [vmem:[%s486 + $0xb8] sm:$0xff]
      %v511 = vld [vmem:[%s486 + $0xc0] sm:$0xff]
      %v512 = vld [vmem:[%s486 + $0xc8] sm:$0xff]
      %v513 = vld [vmem:[%s486 + $0xd0] sm:$0xff]
      %v514 = vld [vmem:[%s486 + $0xd8] sm:$0xff]
      %v515 = vld [vmem:[%s486 + $0xe0] sm:$0xff]
      %v516 = vld [vmem:[%s486 + $0xe8] sm:$0xff]
      %v517 = vld [vmem:[%s486 + $0xf0] sm:$0xff]
      %v518 = vld [vmem:[%s486 + $0xf8] sm:$0xff]
      %s519 = scalar_lea.vmem %s4, 512
      %v520 = vld [vmem:[%s519] sm:$0xff]
      %v521 = vld [vmem:[%s519 + $0x8] sm:$0xff]
      %v522 = vld [vmem:[%s519 + $0x10] sm:$0xff]
      %v523 = vld [vmem:[%s519 + $0x18] sm:$0xff]
      %v524 = vld [vmem:[%s519 + $0x20] sm:$0xff]
      %v525 = vld [vmem:[%s519 + $0x28] sm:$0xff]
      %v526 = vld [vmem:[%s519 + $0x30] sm:$0xff]
      %v527 = vld [vmem:[%s519 + $0x38] sm:$0xff]
      %v528 = vld [vmem:[%s519 + $0x40] sm:$0xff]
      %v529 = vld [vmem:[%s519 + $0x48] sm:$0xff]
      %v530 = vld [vmem:[%s519 + $0x50] sm:$0xff]
      %v531 = vld [vmem:[%s519 + $0x58] sm:$0xff]
      %v532 = vld [vmem:[%s519 + $0x60] sm:$0xff]
      %v533 = vld [vmem:[%s519 + $0x68] sm:$0xff]
      %v534 = vld [vmem:[%s519 + $0x70] sm:$0xff]
      %v535 = vld [vmem:[%s519 + $0x78] sm:$0xff]
      %v536 = vld [vmem:[%s519 + $0x80] sm:$0xff]
      %v537 = vld [vmem:[%s519 + $0x88] sm:$0xff]
      %v538 = vld [vmem:[%s519 + $0x90] sm:$0xff]
      %v539 = vld [vmem:[%s519 + $0x98] sm:$0xff]
      %v540 = vld [vmem:[%s519 + $0xa0] sm:$0xff]
      %v541 = vld [vmem:[%s519 + $0xa8] sm:$0xff]
      %v542 = vld [vmem:[%s519 + $0xb0] sm:$0xff]
      %v543 = vld [vmem:[%s519 + $0xb8] sm:$0xff]
      %v544 = vld [vmem:[%s519 + $0xc0] sm:$0xff]
      %v545 = vld [vmem:[%s519 + $0xc8] sm:$0xff]
      %v546 = vld [vmem:[%s519 + $0xd0] sm:$0xff]
      %v547 = vld [vmem:[%s519 + $0xd8] sm:$0xff]
      %v548 = vld [vmem:[%s519 + $0xe0] sm:$0xff]
      %v549 = vld [vmem:[%s519 + $0xe8] sm:$0xff]
      %v550 = vld [vmem:[%s519 + $0xf0] sm:$0xff]
      %v551 = vld [vmem:[%s519 + $0xf8] sm:$0xff]
      %s552 = scalar_lea.vmem %s4, 768
      %v553 = vld [vmem:[%s552] sm:$0xff]
      %v554 = vld [vmem:[%s552 + $0x8] sm:$0xff]
      %v555 = vld [vmem:[%s552 + $0x10] sm:$0xff]
      %v556 = vld [vmem:[%s552 + $0x18] sm:$0xff]
      %v557 = vld [vmem:[%s552 + $0x20] sm:$0xff]
      %v558 = vld [vmem:[%s552 + $0x28] sm:$0xff]
      %v559 = vld [vmem:[%s552 + $0x30] sm:$0xff]
      %v560 = vld [vmem:[%s552 + $0x38] sm:$0xff]
      %v561 = vld [vmem:[%s552 + $0x40] sm:$0xff]
      %v562 = vld [vmem:[%s552 + $0x48] sm:$0xff]
      %v563 = vld [vmem:[%s552 + $0x50] sm:$0xff]
      %v564 = vld [vmem:[%s552 + $0x58] sm:$0xff]
      %v565 = vld [vmem:[%s552 + $0x60] sm:$0xff]
      %v566 = vld [vmem:[%s552 + $0x68] sm:$0xff]
      %v567 = vld [vmem:[%s552 + $0x70] sm:$0xff]
      %v568 = vld [vmem:[%s552 + $0x78] sm:$0xff]
      %v569 = vld [vmem:[%s552 + $0x80] sm:$0xff]
      %v570 = vld [vmem:[%s552 + $0x88] sm:$0xff]
      %v571 = vld [vmem:[%s552 + $0x90] sm:$0xff]
      %v572 = vld [vmem:[%s552 + $0x98] sm:$0xff]
      %v573 = vld [vmem:[%s552 + $0xa0] sm:$0xff]
      %v574 = vld [vmem:[%s552 + $0xa8] sm:$0xff]
      %v575 = vld [vmem:[%s552 + $0xb0] sm:$0xff]
      %v576 = vld [vmem:[%s552 + $0xb8] sm:$0xff]
      %v577 = vld [vmem:[%s552 + $0xc0] sm:$0xff]
      %v578 = vld [vmem:[%s552 + $0xc8] sm:$0xff]
      %v579 = vld [vmem:[%s552 + $0xd0] sm:$0xff]
      %v580 = vld [vmem:[%s552 + $0xd8] sm:$0xff]
      %v581 = vld [vmem:[%s552 + $0xe0] sm:$0xff]
      %v582 = vld [vmem:[%s552 + $0xe8] sm:$0xff]
      %v583 = vld [vmem:[%s552 + $0xf0] sm:$0xff]
      %v584 = vld [vmem:[%s552 + $0xf8] sm:$0xff]
      %v585 = vld [vmem:[%s1] sm:$0xf]
      %v586 = vld [vmem:[%s1 + $0x4] sm:$0xf]
      %v587 = vld [vmem:[%s1 + $0x8] sm:$0xf]
      %v588 = vld [vmem:[%s1 + $0xc] sm:$0xf]
      %v589 = vld [vmem:[%s1 + $0x10] sm:$0xf]
      %v590 = vld [vmem:[%s1 + $0x14] sm:$0xf]
      %v591 = vld [vmem:[%s1 + $0x18] sm:$0xf]
      %v592 = vld [vmem:[%s1 + $0x1c] sm:$0xf]
      %v601 = vunpack.c.l.b16 %v585
      %v602 = vunpack.c.l.b16 %v586
      %v603 = vunpack.c.l.b16 %v587
      %v604 = vunpack.c.l.b16 %v588
      %v605 = vunpack.c.l.b16 %v589
      %v606 = vunpack.c.l.b16 %v590
      %v607 = vunpack.c.l.b16 %v591
      %v608 = vunpack.c.l.b16 %v592
      %v609 = vpack.c.b16 %v602, %v601
      %v610 = vpack.c.b16 %v604, %v603
      %v611 = vpack.c.b16 %v606, %v605
      %v612 = vpack.c.b16 %v608, %v607
      %vm617 = vcmask 523264
      %v619 = vsel %vm617, %v438, 0
      %v622 = vsel %vm617, %v439, 0
      %v625 = vsel %vm617, %v440, 0
      %v628 = vsel %vm617, %v441, 0
      %v631 = vsel %vm617, %v442, 0
      %v634 = vsel %vm617, %v443, 0
      %v637 = vsel %vm617, %v444, 0
      %v640 = vsel %vm617, %v445, 0
      %v643 = vsel %vm617, %v446, 0
      %v646 = vsel %vm617, %v447, 0
      %v649 = vsel %vm617, %v448, 0
      %v652 = vsel %vm617, %v449, 0
      %v655 = vsel %vm617, %v450, 0
      %v658 = vsel %vm617, %v451, 0
      %v661 = vsel %vm617, %v452, 0
      %v664 = vsel %vm617, %v453, 0
      %666 = vmatprep.subr.bf16.mxu0 0
      %667 = vmatpush1.bf16.msra.mxu0 %v609
      %668 = vmatprep.subr.bf16.mxu0 0
      %669 = vmatpush1.bf16.msra.mxu0 %v610
      %670 = vmatprep.subr.bf16.mxu0 0
      %671 = vmatpush1.bf16.msra.mxu0 %v611
      %672 = vmatprep.subr.bf16.mxu0 0
      %673 = vmatpush1.bf16.msra.mxu0 %v612
      %674 = vmatprep.subr.bf16.mxu0 0
      %675 = vmatpush1.bf16.msra.mxu0 0
      %676 = vmatprep.subr.bf16.mxu0 0
      %677 = vmatpush1.bf16.msra.mxu0 0
      %678 = vmatprep.subr.bf16.mxu0 0
      %679 = vmatpush1.bf16.msra.mxu0 0
      %680 = vmatprep.subr.bf16.mxu0 0
      %681 = vmatpush1.bf16.msra.mxu0 0
      %682 = vmatprep.subr.bf16.mxu0 0
      %683 = vmatpush1.bf16.msra.mxu0 0
      %684 = vmatprep.subr.bf16.mxu0 0
      %685 = vmatpush1.bf16.msra.mxu0 0
      %686 = vmatprep.subr.bf16.mxu0 0
      %687 = vmatpush1.bf16.msra.mxu0 0
      %688 = vmatprep.subr.bf16.mxu0 0
      %689 = vmatpush1.bf16.msra.mxu0 0
      %690 = vmatprep.subr.bf16.mxu0 0
      %691 = vmatpush1.bf16.msra.mxu0 0
      %692 = vmatprep.subr.bf16.mxu0 0
      %693 = vmatpush1.bf16.msra.mxu0 0
      %694 = vmatprep.subr.bf16.mxu0 0
      %695 = vmatpush1.bf16.msra.mxu0 0
      %696 = vmatprep.subr.bf16.mxu0 0
      %697 = vmatpush1.bf16.msra.mxu0 0
      %698 = vmatprep.mubr.bf16.mxu0 0
      %699 = vmatmul.mubr.bf16.gmra.mrb[0].mxu0 %v619
      %v700 = vpop.f32.mrb[0].mxu0
      %v701 = vadd.f32 0.0, %v700
      %v702 = vpop.f32.mrb[0].mxu0
      %v703 = vpop.f32.mrb[0].mxu0
      %v704 = vadd.f32 0.0, %v703
      %v705 = vpop.f32.mrb[0].mxu0
      %706 = vmatprep.mubr.bf16.mxu0 0
      %707 = vmatmul.mubr.bf16.gmra.mrb[0].mxu0 %v622
      %v708 = vpop.f32.mrb[0].mxu0
      %v709 = vadd.f32 0.0, %v708
      %v710 = vpop.f32.mrb[0].mxu0
      %v711 = vpop.f32.mrb[0].mxu0
      %v712 = vadd.f32 0.0, %v711
      %v713 = vpop.f32.mrb[0].mxu0
      %714 = vmatprep.mubr.bf16.mxu0 0
      %715 = vmatmul.mubr.bf16.gmra.mrb[0].mxu0 %v625
      %v716 = vpop.f32.mrb[0].mxu0
      %v717 = vadd.f32 0.0, %v716
      %v718 = vpop.f32.mrb[0].mxu0
      %v719 = vpop.f32.mrb[0].mxu0
      %v720 = vadd.f32 0.0, %v719
      %v721 = vpop.f32.mrb[0].mxu0
      %722 = vmatprep.mubr.bf16.mxu0 0
      %723 = vmatmul.mubr.bf16.gmra.mrb[0].mxu0 %v628
      %v724 = vpop.f32.mrb[0].mxu0
      %v725 = vadd.f32 0.0, %v724
      %v726 = vpop.f32.mrb[0].mxu0
      %v727 = vpop.f32.mrb[0].mxu0
      %v728 = vadd.f32 0.0, %v727
      %v729 = vpop.f32.mrb[0].mxu0
      %730 = vmatprep.mubr.bf16.mxu0 0
      %731 = vmatmul.mubr.bf16.gmra.mrb[0].mxu0 %v631
      %v732 = vpop.f32.mrb[0].mxu0
      %v733 = vadd.f32 0.0, %v732
      %v734 = vpop.f32.mrb[0].mxu0
      %v735 = vpop.f32.mrb[0].mxu0
      %v736 = vadd.f32 0.0, %v735
      %v737 = vpop.f32.mrb[0].mxu0
      %738 = vmatprep.mubr.bf16.mxu0 0
      %739 = vmatmul.mubr.bf16.gmra.mrb[0].mxu0 %v634
      %v740 = vpop.f32.mrb[0].mxu0
      %v741 = vadd.f32 0.0, %v740
      %v742 = vpop.f32.mrb[0].mxu0
      %v743 = vpop.f32.mrb[0].mxu0
      %v744 = vadd.f32 0.0, %v743
      %v745 = vpop.f32.mrb[0].mxu0
      %746 = vmatprep.mubr.bf16.mxu0 0
      %747 = vmatmul.mubr.bf16.gmra.mrb[0].mxu0 %v637
      %v748 = vpop.f32.mrb[0].mxu0
      %v749 = vadd.f32 0.0, %v748
      %v750 = vpop.f32.mrb[0].mxu0
      %v751 = vpop.f32.mrb[0].mxu0
      %v752 = vadd.f32 0.0, %v751
      %v753 = vpop.f32.mrb[0].mxu0
      %754 = vmatprep.mubr.bf16.mxu0 0
      %755 = vmatmul.mubr.bf16.gmra.mrb[0].mxu0 %v640
      %v756 = vpop.f32.mrb[0].mxu0
      %v757 = vadd.f32 0.0, %v756
      %v758 = vpop.f32.mrb[0].mxu0
      %v759 = vpop.f32.mrb[0].mxu0
      %v760 = vadd.f32 0.0, %v759
      %v761 = vpop.f32.mrb[0].mxu0
      %762 = vmatprep.mubr.bf16.mxu0 0
      %763 = vmatmul.mubr.bf16.gmra.mrb[0].mxu0 %v643
      %v764 = vpop.f32.mrb[0].mxu0
      %v765 = vadd.f32 0.0, %v764
      %v766 = vpop.f32.mrb[0].mxu0
      %v767 = vpop.f32.mrb[0].mxu0
      %v768 = vadd.f32 0.0, %v767
      %v769 = vpop.f32.mrb[0].mxu0
      %770 = vmatprep.mubr.bf16.mxu0 0
      %771 = vmatmul.mubr.bf16.gmra.mrb[0].mxu0 %v646
      %v772 = vpop.f32.mrb[0].mxu0
      %v773 = vadd.f32 0.0, %v772
      %v774 = vpop.f32.mrb[0].mxu0
      %v775 = vpop.f32.mrb[0].mxu0
      %v776 = vadd.f32 0.0, %v775
      %v777 = vpop.f32.mrb[0].mxu0
      %778 = vmatprep.mubr.bf16.mxu0 0
      %779 = vmatmul.mubr.bf16.gmra.mrb[0].mxu0 %v649
      %v780 = vpop.f32.mrb[0].mxu0
      %v781 = vadd.f32 0.0, %v780
      %v782 = vpop.f32.mrb[0].mxu0
      %v783 = vpop.f32.mrb[0].mxu0
      %v784 = vadd.f32 0.0, %v783
      %v785 = vpop.f32.mrb[0].mxu0
      %786 = vmatprep.mubr.bf16.mxu0 0
      %787 = vmatmul.mubr.bf16.gmra.mrb[0].mxu0 %v652
      %v788 = vpop.f32.mrb[0].mxu0
      %v789 = vadd.f32 0.0, %v788
      %v790 = vpop.f32.mrb[0].mxu0
      %v791 = vpop.f32.mrb[0].mxu0
      %v792 = vadd.f32 0.0, %v791
      %v793 = vpop.f32.mrb[0].mxu0
      %794 = vmatprep.mubr.bf16.mxu0 0
      %795 = vmatmul.mubr.bf16.gmra.mrb[0].mxu0 %v655
      %v796 = vpop.f32.mrb[0].mxu0
      %v797 = vadd.f32 0.0, %v796
      %v798 = vpop.f32.mrb[0].mxu0
      %v799 = vpop.f32.mrb[0].mxu0
      %v800 = vadd.f32 0.0, %v799
      %v801 = vpop.f32.mrb[0].mxu0
      %802 = vmatprep.mubr.bf16.mxu0 0
      %803 = vmatmul.mubr.bf16.gmra.mrb[0].mxu0 %v658
      %v804 = vpop.f32.mrb[0].mxu0
      %v805 = vadd.f32 0.0, %v804
      %v806 = vpop.f32.mrb[0].mxu0
      %v807 = vpop.f32.mrb[0].mxu0
      %v808 = vadd.f32 0.0, %v807
      %v809 = vpop.f32.mrb[0].mxu0
      %810 = vmatprep.mubr.bf16.mxu0 0
      %811 = vmatmul.mubr.bf16.gmra.mrb[0].mxu0 %v661
      %v812 = vpop.f32.mrb[0].mxu0
      %v813 = vadd.f32 0.0, %v812
      %v814 = vpop.f32.mrb[0].mxu0
      %v815 = vpop.f32.mrb[0].mxu0
      %v816 = vadd.f32 0.0, %v815
      %v817 = vpop.f32.mrb[0].mxu0
      %818 = vmatprep.mubr.bf16.mxu0 0
      %819 = vmatmul.mubr.bf16.gmra.mrb[0].mxu0 %v664
      %v820 = vpop.f32.mrb[0].mxu0
      %v821 = vadd.f32 0.0, %v820
      %v822 = vpop.f32.mrb[0].mxu0
      %v823 = vpop.f32.mrb[0].mxu0
      %v824 = vadd.f32 0.0, %v823
      %v825 = vpop.f32.mrb[0].mxu0
      %826 = vdwg.mxu0
      %v827 = vrot.slane %v701, 7
      %v828 = vrot.slane %v704, 7
      %v829 = vrot.slane %v709, 7
      %v830 = vrot.slane %v712, 7
      %v831 = vrot.slane %v717, 7
      %v832 = vrot.slane %v720, 7
      %v833 = vrot.slane %v725, 7
      %v834 = vrot.slane %v728, 7
      %v835 = vrot.slane %v733, 7
      %v836 = vrot.slane %v736, 7
      %v837 = vrot.slane %v741, 7
      %v838 = vrot.slane %v744, 7
      %v839 = vrot.slane %v749, 7
      %v840 = vrot.slane %v752, 7
      %v841 = vrot.slane %v757, 7
      %v842 = vrot.slane %v760, 7
      %v843 = vrot.slane %v765, 7
      %v844 = vrot.slane %v768, 7
      %v845 = vrot.slane %v773, 7
      %v846 = vrot.slane %v776, 7
      %v847 = vrot.slane %v781, 7
      %v848 = vrot.slane %v784, 7
      %v849 = vrot.slane %v789, 7
      %v850 = vrot.slane %v792, 7
      %v851 = vrot.slane %v797, 7
      %v852 = vrot.slane %v800, 7
      %v853 = vrot.slane %v805, 7
      %v854 = vrot.slane %v808, 7
      %v855 = vrot.slane %v813, 7
      %v856 = vrot.slane %v816, 7
      %v857 = vrot.slane %v821, 7
      %v858 = vrot.slane %v824, 7
      %v859 = vlaneseq
      %v860 = vshrl.u32 %v859, 7
      %vm861 = vcmp.lt.s32.totalorder %v860, 1
      %v862 = vsel %vm861, %v857, %v858
      %v863 = vsel %vm861, %v856, %v857
      %v864 = vsel %vm861, %v855, %v856
      %v865 = vsel %vm861, %v854, %v855
      %v866 = vsel %vm861, %v853, %v854
      %v867 = vsel %vm861, %v852, %v853
      %v868 = vsel %vm861, %v851, %v852
      %v869 = vsel %vm861, %v850, %v851
      %v870 = vsel %vm861, %v849, %v850
      %v871 = vsel %vm861, %v848, %v849
      %v872 = vsel %vm861, %v847, %v848
      %v873 = vsel %vm861, %v846, %v847
      %v874 = vsel %vm861, %v845, %v846
      %v875 = vsel %vm861, %v844, %v845
      %v876 = vsel %vm861, %v843, %v844
      %v877 = vsel %vm861, %v842, %v843
      %v878 = vsel %vm861, %v841, %v842
      %v879 = vsel %vm861, %v840, %v841
      %v880 = vsel %vm861, %v839, %v840
      %v881 = vsel %vm861, %v838, %v839
      %v882 = vsel %vm861, %v837, %v838
      %v883 = vsel %vm861, %v836, %v837
      %v884 = vsel %vm861, %v835, %v836
      %v885 = vsel %vm861, %v834, %v835
      %v886 = vsel %vm861, %v833, %v834
      %v887 = vsel %vm861, %v832, %v833
      %v888 = vsel %vm861, %v831, %v832
      %v889 = vsel %vm861, %v830, %v831
      %v890 = vsel %vm861, %v829, %v830
      %v891 = vsel %vm861, %v828, %v829
      %v892 = vsel %vm861, %v827, %v828
      %v893 = vsel %vm861, %v858, %v827
      %895 = vset.pattern.permute.xlu0 0
      %896 = vperm.xlu0 %895, %v454
      %v897 = vpop.permute.xlu0 %896
      %900 = vset.pattern.permute.xlu0 0
      %901 = vperm.xlu0 %900, %v455
      %v902 = vpop.permute.xlu0 %901
      %905 = vset.pattern.permute.xlu0 0
      %906 = vperm.xlu0 %905, %v456
      %v907 = vpop.permute.xlu0 %906
      %910 = vset.pattern.permute.xlu0 0
      %911 = vperm.xlu0 %910, %v457
      %v912 = vpop.permute.xlu0 %911
      %915 = vset.pattern.permute.xlu0 0
      %916 = vperm.xlu0 %915, %v458
      %v917 = vpop.permute.xlu0 %916
      %920 = vset.pattern.permute.xlu0 0
      %921 = vperm.xlu0 %920, %v459
      %v922 = vpop.permute.xlu0 %921
      %925 = vset.pattern.permute.xlu0 0
      %926 = vperm.xlu0 %925, %v460
      %v927 = vpop.permute.xlu0 %926
      %930 = vset.pattern.permute.xlu0 0
      %931 = vperm.xlu0 %930, %v461
      %v932 = vpop.permute.xlu0 %931
      %935 = vset.pattern.permute.xlu0 0
      %936 = vperm.xlu0 %935, %v462
      %v937 = vpop.permute.xlu0 %936
      %940 = vset.pattern.permute.xlu0 0
      %941 = vperm.xlu0 %940, %v463
      %v942 = vpop.permute.xlu0 %941
      %945 = vset.pattern.permute.xlu0 0
      %946 = vperm.xlu0 %945, %v464
      %v947 = vpop.permute.xlu0 %946
      %950 = vset.pattern.permute.xlu0 0
      %951 = vperm.xlu0 %950, %v465
      %v952 = vpop.permute.xlu0 %951
      %955 = vset.pattern.permute.xlu0 0
      %956 = vperm.xlu0 %955, %v466
      %v957 = vpop.permute.xlu0 %956
      %960 = vset.pattern.permute.xlu0 0
      %961 = vperm.xlu0 %960, %v467
      %v962 = vpop.permute.xlu0 %961
      %965 = vset.pattern.permute.xlu0 0
      %966 = vperm.xlu0 %965, %v468
      %v967 = vpop.permute.xlu0 %966
      %970 = vset.pattern.permute.xlu0 0
      %971 = vperm.xlu0 %970, %v469
      %v972 = vpop.permute.xlu0 %971
      %975 = vset.pattern.permute.xlu0 0
      %976 = vperm.xlu0 %975, %v470
      %v977 = vpop.permute.xlu0 %976
      %980 = vset.pattern.permute.xlu0 0
      %981 = vperm.xlu0 %980, %v471
      %v982 = vpop.permute.xlu0 %981
      %985 = vset.pattern.permute.xlu0 0
      %986 = vperm.xlu0 %985, %v472
      %v987 = vpop.permute.xlu0 %986
      %990 = vset.pattern.permute.xlu0 0
      %991 = vperm.xlu0 %990, %v473
      %v992 = vpop.permute.xlu0 %991
      %995 = vset.pattern.permute.xlu0 0
      %996 = vperm.xlu0 %995, %v474
      %v997 = vpop.permute.xlu0 %996
      %1000 = vset.pattern.permute.xlu0 0
      %1001 = vperm.xlu0 %1000, %v475
      %v1002 = vpop.permute.xlu0 %1001
      %1005 = vset.pattern.permute.xlu0 0
      %1006 = vperm.xlu0 %1005, %v476
      %v1007 = vpop.permute.xlu0 %1006
      %1010 = vset.pattern.permute.xlu0 0
      %1011 = vperm.xlu0 %1010, %v477
      %v1012 = vpop.permute.xlu0 %1011
      %1015 = vset.pattern.permute.xlu0 0
      %1016 = vperm.xlu0 %1015, %v478
      %v1017 = vpop.permute.xlu0 %1016
      %1020 = vset.pattern.permute.xlu0 0
      %1021 = vperm.xlu0 %1020, %v479
      %v1022 = vpop.permute.xlu0 %1021
      %1025 = vset.pattern.permute.xlu0 0
      %1026 = vperm.xlu0 %1025, %v480
      %v1027 = vpop.permute.xlu0 %1026
      %1030 = vset.pattern.permute.xlu0 0
      %1031 = vperm.xlu0 %1030, %v481
      %v1032 = vpop.permute.xlu0 %1031
      %1035 = vset.pattern.permute.xlu0 0
      %1036 = vperm.xlu0 %1035, %v482
      %v1037 = vpop.permute.xlu0 %1036
      %1040 = vset.pattern.permute.xlu0 0
      %1041 = vperm.xlu0 %1040, %v483
      %v1042 = vpop.permute.xlu0 %1041
      %1045 = vset.pattern.permute.xlu0 0
      %1046 = vperm.xlu0 %1045, %v484
      %v1047 = vpop.permute.xlu0 %1046
      %1050 = vset.pattern.permute.xlu0 0
      %1051 = vperm.xlu0 %1050, %v485
      %v1052 = vpop.permute.xlu0 %1051
      %v1054 = vmul.f32 %v863, %v897
      %v1055 = vmul.f32 %v862, %v902
      %v1056 = vmul.f32 %v893, %v907
      %v1057 = vmul.f32 %v892, %v912
      %v1058 = vmul.f32 %v891, %v917
      %v1059 = vmul.f32 %v890, %v922
      %v1060 = vmul.f32 %v889, %v927
      %v1061 = vmul.f32 %v888, %v932
      %v1062 = vmul.f32 %v887, %v937
      %v1063 = vmul.f32 %v886, %v942
      %v1064 = vmul.f32 %v885, %v947
      %v1065 = vmul.f32 %v884, %v952
      %v1066 = vmul.f32 %v883, %v957
      %v1067 = vmul.f32 %v882, %v962
      %v1068 = vmul.f32 %v881, %v967
      %v1069 = vmul.f32 %v880, %v972
      %v1070 = vmul.f32 %v879, %v977
      %v1071 = vmul.f32 %v878, %v982
      %v1072 = vmul.f32 %v877, %v987
      %v1073 = vmul.f32 %v876, %v992
      %v1074 = vmul.f32 %v875, %v997
      %v1075 = vmul.f32 %v874, %v1002
      %v1076 = vmul.f32 %v873, %v1007
      %v1077 = vmul.f32 %v872, %v1012
      %v1078 = vmul.f32 %v871, %v1017
      %v1079 = vmul.f32 %v870, %v1022
      %v1080 = vmul.f32 %v869, %v1027
      %v1081 = vmul.f32 %v868, %v1032
      %v1082 = vmul.f32 %v867, %v1037
      %v1083 = vmul.f32 %v866, %v1042
      %v1084 = vmul.f32 %v865, %v1047
      %v1085 = vmul.f32 %v864, %v1052
      %1087 = vset.pattern.permute.xlu0 0
      %1088 = vperm.xlu0 %1087, %v520
      %v1089 = vpop.permute.xlu0 %1088
      %1092 = vset.pattern.permute.xlu0 0
      %1093 = vperm.xlu0 %1092, %v521
      %v1094 = vpop.permute.xlu0 %1093
      %1097 = vset.pattern.permute.xlu0 0
      %1098 = vperm.xlu0 %1097, %v522
      %v1099 = vpop.permute.xlu0 %1098
      %1102 = vset.pattern.permute.xlu0 0
      %1103 = vperm.xlu0 %1102, %v523
      %v1104 = vpop.permute.xlu0 %1103
      %1107 = vset.pattern.permute.xlu0 0
      %1108 = vperm.xlu0 %1107, %v524
      %v1109 = vpop.permute.xlu0 %1108
      %1112 = vset.pattern.permute.xlu0 0
      %1113 = vperm.xlu0 %1112, %v525
      %v1114 = vpop.permute.xlu0 %1113
      %1117 = vset.pattern.permute.xlu0 0
      %1118 = vperm.xlu0 %1117, %v526
      %v1119 = vpop.permute.xlu0 %1118
      %1122 = vset.pattern.permute.xlu0 0
      %1123 = vperm.xlu0 %1122, %v527
      %v1124 = vpop.permute.xlu0 %1123
      %1127 = vset.pattern.permute.xlu0 0
      %1128 = vperm.xlu0 %1127, %v528
      %v1129 = vpop.permute.xlu0 %1128
      %1132 = vset.pattern.permute.xlu0 0
      %1133 = vperm.xlu0 %1132, %v529
      %v1134 = vpop.permute.xlu0 %1133
      %1137 = vset.pattern.permute.xlu0 0
      %1138 = vperm.xlu0 %1137, %v530
      %v1139 = vpop.permute.xlu0 %1138
      %1142 = vset.pattern.permute.xlu0 0
      %1143 = vperm.xlu0 %1142, %v531
      %v1144 = vpop.permute.xlu0 %1143
      %1147 = vset.pattern.permute.xlu0 0
      %1148 = vperm.xlu0 %1147, %v532
      %v1149 = vpop.permute.xlu0 %1148
      %1152 = vset.pattern.permute.xlu0 0
      %1153 = vperm.xlu0 %1152, %v533
      %v1154 = vpop.permute.xlu0 %1153
      %1157 = vset.pattern.permute.xlu0 0
      %1158 = vperm.xlu0 %1157, %v534
      %v1159 = vpop.permute.xlu0 %1158
      %1162 = vset.pattern.permute.xlu0 0
      %1163 = vperm.xlu0 %1162, %v535
      %v1164 = vpop.permute.xlu0 %1163
      %1167 = vset.pattern.permute.xlu0 0
      %1168 = vperm.xlu0 %1167, %v536
      %v1169 = vpop.permute.xlu0 %1168
      %1172 = vset.pattern.permute.xlu0 0
      %1173 = vperm.xlu0 %1172, %v537
      %v1174 = vpop.permute.xlu0 %1173
      %1177 = vset.pattern.permute.xlu0 0
      %1178 = vperm.xlu0 %1177, %v538
      %v1179 = vpop.permute.xlu0 %1178
      %1182 = vset.pattern.permute.xlu0 0
      %1183 = vperm.xlu0 %1182, %v539
      %v1184 = vpop.permute.xlu0 %1183
      %1187 = vset.pattern.permute.xlu0 0
      %1188 = vperm.xlu0 %1187, %v540
      %v1189 = vpop.permute.xlu0 %1188
      %1192 = vset.pattern.permute.xlu0 0
      %1193 = vperm.xlu0 %1192, %v541
      %v1194 = vpop.permute.xlu0 %1193
      %1197 = vset.pattern.permute.xlu0 0
      %1198 = vperm.xlu0 %1197, %v542
      %v1199 = vpop.permute.xlu0 %1198
      %1202 = vset.pattern.permute.xlu0 0
      %1203 = vperm.xlu0 %1202, %v543
      %v1204 = vpop.permute.xlu0 %1203
      %1207 = vset.pattern.permute.xlu0 0
      %1208 = vperm.xlu0 %1207, %v544
      %v1209 = vpop.permute.xlu0 %1208
      %1212 = vset.pattern.permute.xlu0 0
      %1213 = vperm.xlu0 %1212, %v545
      %v1214 = vpop.permute.xlu0 %1213
      %1217 = vset.pattern.permute.xlu0 0
      %1218 = vperm.xlu0 %1217, %v546
      %v1219 = vpop.permute.xlu0 %1218
      %1222 = vset.pattern.permute.xlu0 0
      %1223 = vperm.xlu0 %1222, %v547
      %v1224 = vpop.permute.xlu0 %1223
      %1227 = vset.pattern.permute.xlu0 0
      %1228 = vperm.xlu0 %1227, %v548
      %v1229 = vpop.permute.xlu0 %1228
      %1232 = vset.pattern.permute.xlu0 0
      %1233 = vperm.xlu0 %1232, %v549
      %v1234 = vpop.permute.xlu0 %1233
      %1237 = vset.pattern.permute.xlu0 0
      %1238 = vperm.xlu0 %1237, %v550
      %v1239 = vpop.permute.xlu0 %1238
      %1242 = vset.pattern.permute.xlu0 0
      %1243 = vperm.xlu0 %1242, %v551
      %v1244 = vpop.permute.xlu0 %1243
      %v1246 = vmul.f32 %v1054, %v1089
      %v1247 = vmul.f32 %v1055, %v1094
      %v1248 = vmul.f32 %v1056, %v1099
      %v1249 = vmul.f32 %v1057, %v1104
      %v1250 = vmul.f32 %v1058, %v1109
      %v1251 = vmul.f32 %v1059, %v1114
      %v1252 = vmul.f32 %v1060, %v1119
      %v1253 = vmul.f32 %v1061, %v1124
      %v1254 = vmul.f32 %v1062, %v1129
      %v1255 = vmul.f32 %v1063, %v1134
      %v1256 = vmul.f32 %v1064, %v1139
      %v1257 = vmul.f32 %v1065, %v1144
      %v1258 = vmul.f32 %v1066, %v1149
      %v1259 = vmul.f32 %v1067, %v1154
      %v1260 = vmul.f32 %v1068, %v1159
      %v1261 = vmul.f32 %v1069, %v1164
      %v1262 = vmul.f32 %v1070, %v1169
      %v1263 = vmul.f32 %v1071, %v1174
      %v1264 = vmul.f32 %v1072, %v1179
      %v1265 = vmul.f32 %v1073, %v1184
      %v1266 = vmul.f32 %v1074, %v1189
      %v1267 = vmul.f32 %v1075, %v1194
      %v1268 = vmul.f32 %v1076, %v1199
      %v1269 = vmul.f32 %v1077, %v1204
      %v1270 = vmul.f32 %v1078, %v1209
      %v1271 = vmul.f32 %v1079, %v1214
      %v1272 = vmul.f32 %v1080, %v1219
      %v1273 = vmul.f32 %v1081, %v1224
      %v1274 = vmul.f32 %v1082, %v1229
      %v1275 = vmul.f32 %v1083, %v1234
      %v1276 = vmul.f32 %v1084, %v1239
      %v1277 = vmul.f32 %v1085, %v1244
      %s1278 = scalar_lea.vmem %s1, 32
      %v1279 = vld [vmem:[%s1278] sm:$0xf]
      %v1280 = vld [vmem:[%s1278 + $0x4] sm:$0xf]
      %v1281 = vld [vmem:[%s1278 + $0x8] sm:$0xf]
      %v1282 = vld [vmem:[%s1278 + $0xc] sm:$0xf]
      %v1283 = vld [vmem:[%s1278 + $0x10] sm:$0xf]
      %v1284 = vld [vmem:[%s1278 + $0x14] sm:$0xf]
      %v1285 = vld [vmem:[%s1278 + $0x18] sm:$0xf]
      %v1286 = vld [vmem:[%s1278 + $0x1c] sm:$0xf]
      %v1295 = vunpack.c.l.b16 %v1279
      %v1296 = vunpack.c.l.b16 %v1280
      %v1297 = vunpack.c.l.b16 %v1281
      %v1298 = vunpack.c.l.b16 %v1282
      %v1299 = vunpack.c.l.b16 %v1283
      %v1300 = vunpack.c.l.b16 %v1284
      %v1301 = vunpack.c.l.b16 %v1285
      %v1302 = vunpack.c.l.b16 %v1286
      %v1303 = vpack.c.b16 %v1296, %v1295
      %v1304 = vpack.c.b16 %v1298, %v1297
      %v1305 = vpack.c.b16 %v1300, %v1299
      %v1306 = vpack.c.b16 %v1302, %v1301
      %1311 = vmatprep.subr.bf16.mxu0 0
      %1312 = vmatpush1.bf16.msra.mxu0 %v1303
      %1313 = vmatprep.subr.bf16.mxu0 0
      %1314 = vmatpush1.bf16.msra.mxu0 %v1304
      %1315 = vmatprep.subr.bf16.mxu0 0
      %1316 = vmatpush1.bf16.msra.mxu0 %v1305
      %1317 = vmatprep.subr.bf16.mxu0 0
      %1318 = vmatpush1.bf16.msra.mxu0 %v1306
      %1319 = vmatprep.subr.bf16.mxu0 0
      %1320 = vmatpush1.bf16.msra.mxu0 0
      %1321 = vmatprep.subr.bf16.mxu0 0
      %1322 = vmatpush1.bf16.msra.mxu0 0
      %1323 = vmatprep.subr.bf16.mxu0 0
      %1324 = vmatpush1.bf16.msra.mxu0 0
      %1325 = vmatprep.subr.bf16.mxu0 0
      %1326 = vmatpush1.bf16.msra.mxu0 0
      %1327 = vmatprep.subr.bf16.mxu0 0
      %1328 = vmatpush1.bf16.msra.mxu0 0
      %1329 = vmatprep.subr.bf16.mxu0 0
      %1330 = vmatpush1.bf16.msra.mxu0 0
      %1331 = vmatprep.subr.bf16.mxu0 0
      %1332 = vmatpush1.bf16.msra.mxu0 0
      %1333 = vmatprep.subr.bf16.mxu0 0
      %1334 = vmatpush1.bf16.msra.mxu0 0
      %1335 = vmatprep.subr.bf16.mxu0 0
      %1336 = vmatpush1.bf16.msra.mxu0 0
      %1337 = vmatprep.subr.bf16.mxu0 0
      %1338 = vmatpush1.bf16.msra.mxu0 0
      %1339 = vmatprep.subr.bf16.mxu0 0
      %1340 = vmatpush1.bf16.msra.mxu0 0
      %1341 = vmatprep.subr.bf16.mxu0 0
      %1342 = vmatpush1.bf16.msra.mxu0 0
      %1343 = vmatprep.mubr.bf16.mxu0 0
      %1344 = vmatmul.mubr.bf16.gmra.mrb[0].mxu0 %v619
      %v1345 = vpop.f32.mrb[0].mxu0
      %v1346 = vadd.f32 0.0, %v1345
      %v1347 = vpop.f32.mrb[0].mxu0
      %v1348 = vpop.f32.mrb[0].mxu0
      %v1349 = vadd.f32 0.0, %v1348
      %v1350 = vpop.f32.mrb[0].mxu0
      %1351 = vmatprep.mubr.bf16.mxu0 0
      %1352 = vmatmul.mubr.bf16.gmra.mrb[0].mxu0 %v622
      %v1353 = vpop.f32.mrb[0].mxu0
      %v1354 = vadd.f32 0.0, %v1353
      %v1355 = vpop.f32.mrb[0].mxu0
      %v1356 = vpop.f32.mrb[0].mxu0
      %v1357 = vadd.f32 0.0, %v1356
      %v1358 = vpop.f32.mrb[0].mxu0
      %1359 = vmatprep.mubr.bf16.mxu0 0
      %1360 = vmatmul.mubr.bf16.gmra.mrb[0].mxu0 %v625
      %v1361 = vpop.f32.mrb[0].mxu0
      %v1362 = vadd.f32 0.0, %v1361
      %v1363 = vpop.f32.mrb[0].mxu0
      %v1364 = vpop.f32.mrb[0].mxu0
      %v1365 = vadd.f32 0.0, %v1364
      %v1366 = vpop.f32.mrb[0].mxu0
      %1367 = vmatprep.mubr.bf16.mxu0 0
      %1368 = vmatmul.mubr.bf16.gmra.mrb[0].mxu0 %v628
      %v1369 = vpop.f32.mrb[0].mxu0
      %v1370 = vadd.f32 0.0, %v1369
      %v1371 = vpop.f32.mrb[0].mxu0
      %v1372 = vpop.f32.mrb[0].mxu0
      %v1373 = vadd.f32 0.0, %v1372
      %v1374 = vpop.f32.mrb[0].mxu0
      %1375 = vmatprep.mubr.bf16.mxu0 0
      %1376 = vmatmul.mubr.bf16.gmra.mrb[0].mxu0 %v631
      %v1377 = vpop.f32.mrb[0].mxu0
      %v1378 = vadd.f32 0.0, %v1377
      %v1379 = vpop.f32.mrb[0].mxu0
      %v1380 = vpop.f32.mrb[0].mxu0
      %v1381 = vadd.f32 0.0, %v1380
      %v1382 = vpop.f32.mrb[0].mxu0
      %1383 = vmatprep.mubr.bf16.mxu0 0
      %1384 = vmatmul.mubr.bf16.gmra.mrb[0].mxu0 %v634
      %v1385 = vpop.f32.mrb[0].mxu0
      %v1386 = vadd.f32 0.0, %v1385
      %v1387 = vpop.f32.mrb[0].mxu0
      %v1388 = vpop.f32.mrb[0].mxu0
      %v1389 = vadd.f32 0.0, %v1388
      %v1390 = vpop.f32.mrb[0].mxu0
      %1391 = vmatprep.mubr.bf16.mxu0 0
      %1392 = vmatmul.mubr.bf16.gmra.mrb[0].mxu0 %v637
      %v1393 = vpop.f32.mrb[0].mxu0
      %v1394 = vadd.f32 0.0, %v1393
      %v1395 = vpop.f32.mrb[0].mxu0
      %v1396 = vpop.f32.mrb[0].mxu0
      %v1397 = vadd.f32 0.0, %v1396
      %v1398 = vpop.f32.mrb[0].mxu0
      %1399 = vmatprep.mubr.bf16.mxu0 0
      %1400 = vmatmul.mubr.bf16.gmra.mrb[0].mxu0 %v640
      %v1401 = vpop.f32.mrb[0].mxu0
      %v1402 = vadd.f32 0.0, %v1401
      %v1403 = vpop.f32.mrb[0].mxu0
      %v1404 = vpop.f32.mrb[0].mxu0
      %v1405 = vadd.f32 0.0, %v1404
      %v1406 = vpop.f32.mrb[0].mxu0
      %1407 = vmatprep.mubr.bf16.mxu0 0
      %1408 = vmatmul.mubr.bf16.gmra.mrb[0].mxu0 %v643
      %v1409 = vpop.f32.mrb[0].mxu0
      %v1410 = vadd.f32 0.0, %v1409
      %v1411 = vpop.f32.mrb[0].mxu0
      %v1412 = vpop.f32.mrb[0].mxu0
      %v1413 = vadd.f32 0.0, %v1412
      %v1414 = vpop.f32.mrb[0].mxu0
      %1415 = vmatprep.mubr.bf16.mxu0 0
      %1416 = vmatmul.mubr.bf16.gmra.mrb[0].mxu0 %v646
      %v1417 = vpop.f32.mrb[0].mxu0
      %v1418 = vadd.f32 0.0, %v1417
      %v1419 = vpop.f32.mrb[0].mxu0
      %v1420 = vpop.f32.mrb[0].mxu0
      %v1421 = vadd.f32 0.0, %v1420
      %v1422 = vpop.f32.mrb[0].mxu0
      %1423 = vmatprep.mubr.bf16.mxu0 0
      %1424 = vmatmul.mubr.bf16.gmra.mrb[0].mxu0 %v649
      %v1425 = vpop.f32.mrb[0].mxu0
      %v1426 = vadd.f32 0.0, %v1425
      %v1427 = vpop.f32.mrb[0].mxu0
      %v1428 = vpop.f32.mrb[0].mxu0
      %v1429 = vadd.f32 0.0, %v1428
      %v1430 = vpop.f32.mrb[0].mxu0
      %1431 = vmatprep.mubr.bf16.mxu0 0
      %1432 = vmatmul.mubr.bf16.gmra.mrb[0].mxu0 %v652
      %v1433 = vpop.f32.mrb[0].mxu0
      %v1434 = vadd.f32 0.0, %v1433
      %v1435 = vpop.f32.mrb[0].mxu0
      %v1436 = vpop.f32.mrb[0].mxu0
      %v1437 = vadd.f32 0.0, %v1436
      %v1438 = vpop.f32.mrb[0].mxu0
      %1439 = vmatprep.mubr.bf16.mxu0 0
      %1440 = vmatmul.mubr.bf16.gmra.mrb[0].mxu0 %v655
      %v1441 = vpop.f32.mrb[0].mxu0
      %v1442 = vadd.f32 0.0, %v1441
      %v1443 = vpop.f32.mrb[0].mxu0
      %v1444 = vpop.f32.mrb[0].mxu0
      %v1445 = vadd.f32 0.0, %v1444
      %v1446 = vpop.f32.mrb[0].mxu0
      %1447 = vmatprep.mubr.bf16.mxu0 0
      %1448 = vmatmul.mubr.bf16.gmra.mrb[0].mxu0 %v658
      %v1449 = vpop.f32.mrb[0].mxu0
      %v1450 = vadd.f32 0.0, %v1449
      %v1451 = vpop.f32.mrb[0].mxu0
      %v1452 = vpop.f32.mrb[0].mxu0
      %v1453 = vadd.f32 0.0, %v1452
      %v1454 = vpop.f32.mrb[0].mxu0
      %1455 = vmatprep.mubr.bf16.mxu0 0
      %1456 = vmatmul.mubr.bf16.gmra.mrb[0].mxu0 %v661
      %v1457 = vpop.f32.mrb[0].mxu0
      %v1458 = vadd.f32 0.0, %v1457
      %v1459 = vpop.f32.mrb[0].mxu0
      %v1460 = vpop.f32.mrb[0].mxu0
      %v1461 = vadd.f32 0.0, %v1460
      %v1462 = vpop.f32.mrb[0].mxu0
      %1463 = vmatprep.mubr.bf16.mxu0 0
      %1464 = vmatmul.mubr.bf16.gmra.mrb[0].mxu0 %v664
      %v1465 = vpop.f32.mrb[0].mxu0
      %v1466 = vadd.f32 0.0, %v1465
      %v1467 = vpop.f32.mrb[0].mxu0
      %v1468 = vpop.f32.mrb[0].mxu0
      %v1469 = vadd.f32 0.0, %v1468
      %v1470 = vpop.f32.mrb[0].mxu0
      %1471 = vdwg.mxu0
      %v1472 = vmul.f32 %v1466, %v897
      %v1473 = vmul.f32 %v1469, %v902
      %v1474 = vmul.f32 %v1346, %v907
      %v1475 = vmul.f32 %v1349, %v912
      %v1476 = vmul.f32 %v1354, %v917
      %v1477 = vmul.f32 %v1357, %v922
      %v1478 = vmul.f32 %v1362, %v927
      %v1479 = vmul.f32 %v1365, %v932
      %v1480 = vmul.f32 %v1370, %v937
      %v1481 = vmul.f32 %v1373, %v942
      %v1482 = vmul.f32 %v1378, %v947
      %v1483 = vmul.f32 %v1381, %v952
      %v1484 = vmul.f32 %v1386, %v957
      %v1485 = vmul.f32 %v1389, %v962
      %v1486 = vmul.f32 %v1394, %v967
      %v1487 = vmul.f32 %v1397, %v972
      %v1488 = vmul.f32 %v1402, %v977
      %v1489 = vmul.f32 %v1405, %v982
      %v1490 = vmul.f32 %v1410, %v987
      %v1491 = vmul.f32 %v1413, %v992
      %v1492 = vmul.f32 %v1418, %v997
      %v1493 = vmul.f32 %v1421, %v1002
      %v1494 = vmul.f32 %v1426, %v1007
      %v1495 = vmul.f32 %v1429, %v1012
      %v1496 = vmul.f32 %v1434, %v1017
      %v1497 = vmul.f32 %v1437, %v1022
      %v1498 = vmul.f32 %v1442, %v1027
      %v1499 = vmul.f32 %v1445, %v1032
      %v1500 = vmul.f32 %v1450, %v1037
      %v1501 = vmul.f32 %v1453, %v1042
      %v1502 = vmul.f32 %v1458, %v1047
      %v1503 = vmul.f32 %v1461, %v1052
      %v1504 = vadd.f32 %v1246, %v1472
      %v1505 = vadd.f32 %v1247, %v1473
      %v1506 = vadd.f32 %v1248, %v1474
      %v1507 = vadd.f32 %v1249, %v1475
      %v1508 = vadd.f32 %v1250, %v1476
      %v1509 = vadd.f32 %v1251, %v1477
      %v1510 = vadd.f32 %v1252, %v1478
      %v1511 = vadd.f32 %v1253, %v1479
      %v1512 = vadd.f32 %v1254, %v1480
      %v1513 = vadd.f32 %v1255, %v1481
      %v1514 = vadd.f32 %v1256, %v1482
      %v1515 = vadd.f32 %v1257, %v1483
      %v1516 = vadd.f32 %v1258, %v1484
      %v1517 = vadd.f32 %v1259, %v1485
      %v1518 = vadd.f32 %v1260, %v1486
      %v1519 = vadd.f32 %v1261, %v1487
      %v1520 = vadd.f32 %v1262, %v1488
      %v1521 = vadd.f32 %v1263, %v1489
      %v1522 = vadd.f32 %v1264, %v1490
      %v1523 = vadd.f32 %v1265, %v1491
      %v1524 = vadd.f32 %v1266, %v1492
      %v1525 = vadd.f32 %v1267, %v1493
      %v1526 = vadd.f32 %v1268, %v1494
      %v1527 = vadd.f32 %v1269, %v1495
      %v1528 = vadd.f32 %v1270, %v1496
      %v1529 = vadd.f32 %v1271, %v1497
      %v1530 = vadd.f32 %v1272, %v1498
      %v1531 = vadd.f32 %v1273, %v1499
      %v1532 = vadd.f32 %v1274, %v1500
      %v1533 = vadd.f32 %v1275, %v1501
      %v1534 = vadd.f32 %v1276, %v1502
      %v1535 = vadd.f32 %v1277, %v1503
      %s1536 = scalar_lea.vmem %s1, 64
      %v1537 = vld [vmem:[%s1536] sm:$0xf]
      %v1538 = vld [vmem:[%s1536 + $0x4] sm:$0xf]
      %v1539 = vld [vmem:[%s1536 + $0x8] sm:$0xf]
      %v1540 = vld [vmem:[%s1536 + $0xc] sm:$0xf]
      %v1541 = vld [vmem:[%s1536 + $0x10] sm:$0xf]
      %v1542 = vld [vmem:[%s1536 + $0x14] sm:$0xf]
      %v1543 = vld [vmem:[%s1536 + $0x18] sm:$0xf]
      %v1544 = vld [vmem:[%s1536 + $0x1c] sm:$0xf]
      %v1553 = vunpack.c.l.b16 %v1537
      %v1554 = vunpack.c.l.b16 %v1538
      %v1555 = vunpack.c.l.b16 %v1539
      %v1556 = vunpack.c.l.b16 %v1540
      %v1557 = vunpack.c.l.b16 %v1541
      %v1558 = vunpack.c.l.b16 %v1542
      %v1559 = vunpack.c.l.b16 %v1543
      %v1560 = vunpack.c.l.b16 %v1544
      %v1561 = vpack.c.b16 %v1554, %v1553
      %v1562 = vpack.c.b16 %v1556, %v1555
      %v1563 = vpack.c.b16 %v1558, %v1557
      %v1564 = vpack.c.b16 %v1560, %v1559
      %1569 = vmatprep.subr.bf16.mxu0 0
      %1570 = vmatpush1.bf16.msra.mxu0 %v1561
      %1571 = vmatprep.subr.bf16.mxu0 0
      %1572 = vmatpush1.bf16.msra.mxu0 %v1562
      %1573 = vmatprep.subr.bf16.mxu0 0
      %1574 = vmatpush1.bf16.msra.mxu0 %v1563
      %1575 = vmatprep.subr.bf16.mxu0 0
      %1576 = vmatpush1.bf16.msra.mxu0 %v1564
      %1577 = vmatprep.subr.bf16.mxu0 0
      %1578 = vmatpush1.bf16.msra.mxu0 0
      %1579 = vmatprep.subr.bf16.mxu0 0
      %1580 = vmatpush1.bf16.msra.mxu0 0
      %1581 = vmatprep.subr.bf16.mxu0 0
      %1582 = vmatpush1.bf16.msra.mxu0 0
      %1583 = vmatprep.subr.bf16.mxu0 0
      %1584 = vmatpush1.bf16.msra.mxu0 0
      %1585 = vmatprep.subr.bf16.mxu0 0
      %1586 = vmatpush1.bf16.msra.mxu0 0
      %1587 = vmatprep.subr.bf16.mxu0 0
      %1588 = vmatpush1.bf16.msra.mxu0 0
      %1589 = vmatprep.subr.bf16.mxu0 0
      %1590 = vmatpush1.bf16.msra.mxu0 0
      %1591 = vmatprep.subr.bf16.mxu0 0
      %1592 = vmatpush1.bf16.msra.mxu0 0
      %1593 = vmatprep.subr.bf16.mxu0 0
      %1594 = vmatpush1.bf16.msra.mxu0 0
      %1595 = vmatprep.subr.bf16.mxu0 0
      %1596 = vmatpush1.bf16.msra.mxu0 0
      %1597 = vmatprep.subr.bf16.mxu0 0
      %1598 = vmatpush1.bf16.msra.mxu0 0
      %1599 = vmatprep.subr.bf16.mxu0 0
      %1600 = vmatpush1.bf16.msra.mxu0 0
      %1601 = vmatprep.mubr.bf16.mxu0 0
      %1602 = vmatmul.mubr.bf16.gmra.mrb[0].mxu0 %v619
      %v1603 = vpop.f32.mrb[0].mxu0
      %v1604 = vadd.f32 0.0, %v1603
      %v1605 = vpop.f32.mrb[0].mxu0
      %v1606 = vpop.f32.mrb[0].mxu0
      %v1607 = vadd.f32 0.0, %v1606
      %v1608 = vpop.f32.mrb[0].mxu0
      %1609 = vmatprep.mubr.bf16.mxu0 0
      %1610 = vmatmul.mubr.bf16.gmra.mrb[0].mxu0 %v622
      %v1611 = vpop.f32.mrb[0].mxu0
      %v1612 = vadd.f32 0.0, %v1611
      %v1613 = vpop.f32.mrb[0].mxu0
      %v1614 = vpop.f32.mrb[0].mxu0
      %v1615 = vadd.f32 0.0, %v1614
      %v1616 = vpop.f32.mrb[0].mxu0
      %1617 = vmatprep.mubr.bf16.mxu0 0
      %1618 = vmatmul.mubr.bf16.gmra.mrb[0].mxu0 %v625
      %v1619 = vpop.f32.mrb[0].mxu0
      %v1620 = vadd.f32 0.0, %v1619
      %v1621 = vpop.f32.mrb[0].mxu0
      %v1622 = vpop.f32.mrb[0].mxu0
      %v1623 = vadd.f32 0.0, %v1622
      %v1624 = vpop.f32.mrb[0].mxu0
      %1625 = vmatprep.mubr.bf16.mxu0 0
      %1626 = vmatmul.mubr.bf16.gmra.mrb[0].mxu0 %v628
      %v1627 = vpop.f32.mrb[0].mxu0
      %v1628 = vadd.f32 0.0, %v1627
      %v1629 = vpop.f32.mrb[0].mxu0
      %v1630 = vpop.f32.mrb[0].mxu0
      %v1631 = vadd.f32 0.0, %v1630
      %v1632 = vpop.f32.mrb[0].mxu0
      %1633 = vmatprep.mubr.bf16.mxu0 0
      %1634 = vmatmul.mubr.bf16.gmra.mrb[0].mxu0 %v631
      %v1635 = vpop.f32.mrb[0].mxu0
      %v1636 = vadd.f32 0.0, %v1635
      %v1637 = vpop.f32.mrb[0].mxu0
      %v1638 = vpop.f32.mrb[0].mxu0
      %v1639 = vadd.f32 0.0, %v1638
      %v1640 = vpop.f32.mrb[0].mxu0
      %1641 = vmatprep.mubr.bf16.mxu0 0
      %1642 = vmatmul.mubr.bf16.gmra.mrb[0].mxu0 %v634
      %v1643 = vpop.f32.mrb[0].mxu0
      %v1644 = vadd.f32 0.0, %v1643
      %v1645 = vpop.f32.mrb[0].mxu0
      %v1646 = vpop.f32.mrb[0].mxu0
      %v1647 = vadd.f32 0.0, %v1646
      %v1648 = vpop.f32.mrb[0].mxu0
      %1649 = vmatprep.mubr.bf16.mxu0 0
      %1650 = vmatmul.mubr.bf16.gmra.mrb[0].mxu0 %v637
      %v1651 = vpop.f32.mrb[0].mxu0
      %v1652 = vadd.f32 0.0, %v1651
      %v1653 = vpop.f32.mrb[0].mxu0
      %v1654 = vpop.f32.mrb[0].mxu0
      %v1655 = vadd.f32 0.0, %v1654
      %v1656 = vpop.f32.mrb[0].mxu0
      %1657 = vmatprep.mubr.bf16.mxu0 0
      %1658 = vmatmul.mubr.bf16.gmra.mrb[0].mxu0 %v640
      %v1659 = vpop.f32.mrb[0].mxu0
      %v1660 = vadd.f32 0.0, %v1659
      %v1661 = vpop.f32.mrb[0].mxu0
      %v1662 = vpop.f32.mrb[0].mxu0
      %v1663 = vadd.f32 0.0, %v1662
      %v1664 = vpop.f32.mrb[0].mxu0
      %1665 = vmatprep.mubr.bf16.mxu0 0
      %1666 = vmatmul.mubr.bf16.gmra.mrb[0].mxu0 %v643
      %v1667 = vpop.f32.mrb[0].mxu0
      %v1668 = vadd.f32 0.0, %v1667
      %v1669 = vpop.f32.mrb[0].mxu0
      %v1670 = vpop.f32.mrb[0].mxu0
      %v1671 = vadd.f32 0.0, %v1670
      %v1672 = vpop.f32.mrb[0].mxu0
      %1673 = vmatprep.mubr.bf16.mxu0 0
      %1674 = vmatmul.mubr.bf16.gmra.mrb[0].mxu0 %v646
      %v1675 = vpop.f32.mrb[0].mxu0
      %v1676 = vadd.f32 0.0, %v1675
      %v1677 = vpop.f32.mrb[0].mxu0
      %v1678 = vpop.f32.mrb[0].mxu0
      %v1679 = vadd.f32 0.0, %v1678
      %v1680 = vpop.f32.mrb[0].mxu0
      %1681 = vmatprep.mubr.bf16.mxu0 0
      %1682 = vmatmul.mubr.bf16.gmra.mrb[0].mxu0 %v649
      %v1683 = vpop.f32.mrb[0].mxu0
      %v1684 = vadd.f32 0.0, %v1683
      %v1685 = vpop.f32.mrb[0].mxu0
      %v1686 = vpop.f32.mrb[0].mxu0
      %v1687 = vadd.f32 0.0, %v1686
      %v1688 = vpop.f32.mrb[0].mxu0
      %1689 = vmatprep.mubr.bf16.mxu0 0
      %1690 = vmatmul.mubr.bf16.gmra.mrb[0].mxu0 %v652
      %v1691 = vpop.f32.mrb[0].mxu0
      %v1692 = vadd.f32 0.0, %v1691
      %v1693 = vpop.f32.mrb[0].mxu0
      %v1694 = vpop.f32.mrb[0].mxu0
      %v1695 = vadd.f32 0.0, %v1694
      %v1696 = vpop.f32.mrb[0].mxu0
      %1697 = vmatprep.mubr.bf16.mxu0 0
      %1698 = vmatmul.mubr.bf16.gmra.mrb[0].mxu0 %v655
      %v1699 = vpop.f32.mrb[0].mxu0
      %v1700 = vadd.f32 0.0, %v1699
      %v1701 = vpop.f32.mrb[0].mxu0
      %v1702 = vpop.f32.mrb[0].mxu0
      %v1703 = vadd.f32 0.0, %v1702
      %v1704 = vpop.f32.mrb[0].mxu0
      %1705 = vmatprep.mubr.bf16.mxu0 0
      %1706 = vmatmul.mubr.bf16.gmra.mrb[0].mxu0 %v658
      %v1707 = vpop.f32.mrb[0].mxu0
      %v1708 = vadd.f32 0.0, %v1707
      %v1709 = vpop.f32.mrb[0].mxu0
      %v1710 = vpop.f32.mrb[0].mxu0
      %v1711 = vadd.f32 0.0, %v1710
      %v1712 = vpop.f32.mrb[0].mxu0
      %1713 = vmatprep.mubr.bf16.mxu0 0
      %1714 = vmatmul.mubr.bf16.gmra.mrb[0].mxu0 %v661
      %v1715 = vpop.f32.mrb[0].mxu0
      %v1716 = vadd.f32 0.0, %v1715
      %v1717 = vpop.f32.mrb[0].mxu0
      %v1718 = vpop.f32.mrb[0].mxu0
      %v1719 = vadd.f32 0.0, %v1718
      %v1720 = vpop.f32.mrb[0].mxu0
      %1721 = vmatprep.mubr.bf16.mxu0 0
      %1722 = vmatmul.mubr.bf16.gmra.mrb[0].mxu0 %v664
      %v1723 = vpop.f32.mrb[0].mxu0
      %v1724 = vadd.f32 0.0, %v1723
      %v1725 = vpop.f32.mrb[0].mxu0
      %v1726 = vpop.f32.mrb[0].mxu0
      %v1727 = vadd.f32 0.0, %v1726
      %v1728 = vpop.f32.mrb[0].mxu0
      %1729 = vdwg.mxu0
      %v1730 = vrot.slane %v1604, 1
      %v1731 = vrot.slane %v1607, 1
      %v1732 = vrot.slane %v1612, 1
      %v1733 = vrot.slane %v1615, 1
      %v1734 = vrot.slane %v1620, 1
      %v1735 = vrot.slane %v1623, 1
      %v1736 = vrot.slane %v1628, 1
      %v1737 = vrot.slane %v1631, 1
      %v1738 = vrot.slane %v1636, 1
      %v1739 = vrot.slane %v1639, 1
      %v1740 = vrot.slane %v1644, 1
      %v1741 = vrot.slane %v1647, 1
      %v1742 = vrot.slane %v1652, 1
      %v1743 = vrot.slane %v1655, 1
      %v1744 = vrot.slane %v1660, 1
      %v1745 = vrot.slane %v1663, 1
      %v1746 = vrot.slane %v1668, 1
      %v1747 = vrot.slane %v1671, 1
      %v1748 = vrot.slane %v1676, 1
      %v1749 = vrot.slane %v1679, 1
      %v1750 = vrot.slane %v1684, 1
      %v1751 = vrot.slane %v1687, 1
      %v1752 = vrot.slane %v1692, 1
      %v1753 = vrot.slane %v1695, 1
      %v1754 = vrot.slane %v1700, 1
      %v1755 = vrot.slane %v1703, 1
      %v1756 = vrot.slane %v1708, 1
      %v1757 = vrot.slane %v1711, 1
      %v1758 = vrot.slane %v1716, 1
      %v1759 = vrot.slane %v1719, 1
      %v1760 = vrot.slane %v1724, 1
      %v1761 = vrot.slane %v1727, 1
      %vm1762 = vcmp.lt.s32.totalorder %v860, 7
      %v1763 = vsel %vm1762, %v1760, %v1761
      %v1764 = vsel %vm1762, %v1759, %v1760
      %v1765 = vsel %vm1762, %v1758, %v1759
      %v1766 = vsel %vm1762, %v1757, %v1758
      %v1767 = vsel %vm1762, %v1756, %v1757
      %v1768 = vsel %vm1762, %v1755, %v1756
      %v1769 = vsel %vm1762, %v1754, %v1755
      %v1770 = vsel %vm1762, %v1753, %v1754
      %v1771 = vsel %vm1762, %v1752, %v1753
      %v1772 = vsel %vm1762, %v1751, %v1752
      %v1773 = vsel %vm1762, %v1750, %v1751
      %v1774 = vsel %vm1762, %v1749, %v1750
      %v1775 = vsel %vm1762, %v1748, %v1749
      %v1776 = vsel %vm1762, %v1747, %v1748
      %v1777 = vsel %vm1762, %v1746, %v1747
      %v1778 = vsel %vm1762, %v1745, %v1746
      %v1779 = vsel %vm1762, %v1744, %v1745
      %v1780 = vsel %vm1762, %v1743, %v1744
      %v1781 = vsel %vm1762, %v1742, %v1743
      %v1782 = vsel %vm1762, %v1741, %v1742
      %v1783 = vsel %vm1762, %v1740, %v1741
      %v1784 = vsel %vm1762, %v1739, %v1740
      %v1785 = vsel %vm1762, %v1738, %v1739
      %v1786 = vsel %vm1762, %v1737, %v1738
      %v1787 = vsel %vm1762, %v1736, %v1737
      %v1788 = vsel %vm1762, %v1735, %v1736
      %v1789 = vsel %vm1762, %v1734, %v1735
      %v1790 = vsel %vm1762, %v1733, %v1734
      %v1791 = vsel %vm1762, %v1732, %v1733
      %v1792 = vsel %vm1762, %v1731, %v1732
      %v1793 = vsel %vm1762, %v1730, %v1731
      %v1794 = vsel %vm1762, %v1761, %v1730
      %v1795 = vmul.f32 %v1763, %v897
      %v1796 = vmul.f32 %v1794, %v902
      %v1797 = vmul.f32 %v1793, %v907
      %v1798 = vmul.f32 %v1792, %v912
      %v1799 = vmul.f32 %v1791, %v917
      %v1800 = vmul.f32 %v1790, %v922
      %v1801 = vmul.f32 %v1789, %v927
      %v1802 = vmul.f32 %v1788, %v932
      %v1803 = vmul.f32 %v1787, %v937
      %v1804 = vmul.f32 %v1786, %v942
      %v1805 = vmul.f32 %v1785, %v947
      %v1806 = vmul.f32 %v1784, %v952
      %v1807 = vmul.f32 %v1783, %v957
      %v1808 = vmul.f32 %v1782, %v962
      %v1809 = vmul.f32 %v1781, %v967
      %v1810 = vmul.f32 %v1780, %v972
      %v1811 = vmul.f32 %v1779, %v977
      %v1812 = vmul.f32 %v1778, %v982
      %v1813 = vmul.f32 %v1777, %v987
      %v1814 = vmul.f32 %v1776, %v992
      %v1815 = vmul.f32 %v1775, %v997
      %v1816 = vmul.f32 %v1774, %v1002
      %v1817 = vmul.f32 %v1773, %v1007
      %v1818 = vmul.f32 %v1772, %v1012
      %v1819 = vmul.f32 %v1771, %v1017
      %v1820 = vmul.f32 %v1770, %v1022
      %v1821 = vmul.f32 %v1769, %v1027
      %v1822 = vmul.f32 %v1768, %v1032
      %v1823 = vmul.f32 %v1767, %v1037
      %v1824 = vmul.f32 %v1766, %v1042
      %v1825 = vmul.f32 %v1765, %v1047
      %v1826 = vmul.f32 %v1764, %v1052
      %1828 = vset.pattern.permute.xlu0 0
      %1829 = vperm.xlu0 %1828, %v553
      %v1830 = vpop.permute.xlu0 %1829
      %1833 = vset.pattern.permute.xlu0 0
      %1834 = vperm.xlu0 %1833, %v554
      %v1835 = vpop.permute.xlu0 %1834
      %1838 = vset.pattern.permute.xlu0 0
      %1839 = vperm.xlu0 %1838, %v555
      %v1840 = vpop.permute.xlu0 %1839
      %1843 = vset.pattern.permute.xlu0 0
      %1844 = vperm.xlu0 %1843, %v556
      %v1845 = vpop.permute.xlu0 %1844
      %1848 = vset.pattern.permute.xlu0 0
      %1849 = vperm.xlu0 %1848, %v557
      %v1850 = vpop.permute.xlu0 %1849
      %1853 = vset.pattern.permute.xlu0 0
      %1854 = vperm.xlu0 %1853, %v558
      %v1855 = vpop.permute.xlu0 %1854
      %1858 = vset.pattern.permute.xlu0 0
      %1859 = vperm.xlu0 %1858, %v559
      %v1860 = vpop.permute.xlu0 %1859
      %1863 = vset.pattern.permute.xlu0 0
      %1864 = vperm.xlu0 %1863, %v560
      %v1865 = vpop.permute.xlu0 %1864
      %1868 = vset.pattern.permute.xlu0 0
      %1869 = vperm.xlu0 %1868, %v561
      %v1870 = vpop.permute.xlu0 %1869
      %1873 = vset.pattern.permute.xlu0 0
      %1874 = vperm.xlu0 %1873, %v562
      %v1875 = vpop.permute.xlu0 %1874
      %1878 = vset.pattern.permute.xlu0 0
      %1879 = vperm.xlu0 %1878, %v563
      %v1880 = vpop.permute.xlu0 %1879
      %1883 = vset.pattern.permute.xlu0 0
      %1884 = vperm.xlu0 %1883, %v564
      %v1885 = vpop.permute.xlu0 %1884
      %1888 = vset.pattern.permute.xlu0 0
      %1889 = vperm.xlu0 %1888, %v565
      %v1890 = vpop.permute.xlu0 %1889
      %1893 = vset.pattern.permute.xlu0 0
      %1894 = vperm.xlu0 %1893, %v566
      %v1895 = vpop.permute.xlu0 %1894
      %1898 = vset.pattern.permute.xlu0 0
      %1899 = vperm.xlu0 %1898, %v567
      %v1900 = vpop.permute.xlu0 %1899
      %1903 = vset.pattern.permute.xlu0 0
      %1904 = vperm.xlu0 %1903, %v568
      %v1905 = vpop.permute.xlu0 %1904
      %1908 = vset.pattern.permute.xlu0 0
      %1909 = vperm.xlu0 %1908, %v569
      %v1910 = vpop.permute.xlu0 %1909
      %1913 = vset.pattern.permute.xlu0 0
      %1914 = vperm.xlu0 %1913, %v570
      %v1915 = vpop.permute.xlu0 %1914
      %1918 = vset.pattern.permute.xlu0 0
      %1919 = vperm.xlu0 %1918, %v571
      %v1920 = vpop.permute.xlu0 %1919
      %1923 = vset.pattern.permute.xlu0 0
      %1924 = vperm.xlu0 %1923, %v572
      %v1925 = vpop.permute.xlu0 %1924
      %1928 = vset.pattern.permute.xlu0 0
      %1929 = vperm.xlu0 %1928, %v573
      %v1930 = vpop.permute.xlu0 %1929
      %1933 = vset.pattern.permute.xlu0 0
      %1934 = vperm.xlu0 %1933, %v574
      %v1935 = vpop.permute.xlu0 %1934
      %1938 = vset.pattern.permute.xlu0 0
      %1939 = vperm.xlu0 %1938, %v575
      %v1940 = vpop.permute.xlu0 %1939
      %1943 = vset.pattern.permute.xlu0 0
      %1944 = vperm.xlu0 %1943, %v576
      %v1945 = vpop.permute.xlu0 %1944
      %1948 = vset.pattern.permute.xlu0 0
      %1949 = vperm.xlu0 %1948, %v577
      %v1950 = vpop.permute.xlu0 %1949
      %1953 = vset.pattern.permute.xlu0 0
      %1954 = vperm.xlu0 %1953, %v578
      %v1955 = vpop.permute.xlu0 %1954
      %1958 = vset.pattern.permute.xlu0 0
      %1959 = vperm.xlu0 %1958, %v579
      %v1960 = vpop.permute.xlu0 %1959
      %1963 = vset.pattern.permute.xlu0 0
      %1964 = vperm.xlu0 %1963, %v580
      %v1965 = vpop.permute.xlu0 %1964
      %1968 = vset.pattern.permute.xlu0 0
      %1969 = vperm.xlu0 %1968, %v581
      %v1970 = vpop.permute.xlu0 %1969
      %1973 = vset.pattern.permute.xlu0 0
      %1974 = vperm.xlu0 %1973, %v582
      %v1975 = vpop.permute.xlu0 %1974
      %1978 = vset.pattern.permute.xlu0 0
      %1979 = vperm.xlu0 %1978, %v583
      %v1980 = vpop.permute.xlu0 %1979
      %1983 = vset.pattern.permute.xlu0 0
      %1984 = vperm.xlu0 %1983, %v584
      %v1985 = vpop.permute.xlu0 %1984
      %v1987 = vmul.f32 %v1795, %v1830
      %v1988 = vmul.f32 %v1796, %v1835
      %v1989 = vmul.f32 %v1797, %v1840
      %v1990 = vmul.f32 %v1798, %v1845
      %v1991 = vmul.f32 %v1799, %v1850
      %v1992 = vmul.f32 %v1800, %v1855
      %v1993 = vmul.f32 %v1801, %v1860
      %v1994 = vmul.f32 %v1802, %v1865
      %v1995 = vmul.f32 %v1803, %v1870
      %v1996 = vmul.f32 %v1804, %v1875
      %v1997 = vmul.f32 %v1805, %v1880
      %v1998 = vmul.f32 %v1806, %v1885
      %v1999 = vmul.f32 %v1807, %v1890
      %v2000 = vmul.f32 %v1808, %v1895
      %v2001 = vmul.f32 %v1809, %v1900
      %v2002 = vmul.f32 %v1810, %v1905
      %v2003 = vmul.f32 %v1811, %v1910
      %v2004 = vmul.f32 %v1812, %v1915
      %v2005 = vmul.f32 %v1813, %v1920
      %v2006 = vmul.f32 %v1814, %v1925
      %v2007 = vmul.f32 %v1815, %v1930
      %v2008 = vmul.f32 %v1816, %v1935
      %v2009 = vmul.f32 %v1817, %v1940
      %v2010 = vmul.f32 %v1818, %v1945
      %v2011 = vmul.f32 %v1819, %v1950
      %v2012 = vmul.f32 %v1820, %v1955
      %v2013 = vmul.f32 %v1821, %v1960
      %v2014 = vmul.f32 %v1822, %v1965
      %v2015 = vmul.f32 %v1823, %v1970
      %v2016 = vmul.f32 %v1824, %v1975
      %v2017 = vmul.f32 %v1825, %v1980
      %v2018 = vmul.f32 %v1826, %v1985
      %v2019 = vadd.f32 %v1504, %v1987
      %v2020 = vadd.f32 %v1505, %v1988
      %v2021 = vadd.f32 %v1506, %v1989
      %v2022 = vadd.f32 %v1507, %v1990
      %v2023 = vadd.f32 %v1508, %v1991
      %v2024 = vadd.f32 %v1509, %v1992
      %v2025 = vadd.f32 %v1510, %v1993
      %v2026 = vadd.f32 %v1511, %v1994
      %v2027 = vadd.f32 %v1512, %v1995
      %v2028 = vadd.f32 %v1513, %v1996
      %v2029 = vadd.f32 %v1514, %v1997
      %v2030 = vadd.f32 %v1515, %v1998
      %v2031 = vadd.f32 %v1516, %v1999
      %v2032 = vadd.f32 %v1517, %v2000
      %v2033 = vadd.f32 %v1518, %v2001
      %v2034 = vadd.f32 %v1519, %v2002
      %v2035 = vadd.f32 %v1520, %v2003
      %v2036 = vadd.f32 %v1521, %v2004
      %v2037 = vadd.f32 %v1522, %v2005
      %v2038 = vadd.f32 %v1523, %v2006
      %v2039 = vadd.f32 %v1524, %v2007
      %v2040 = vadd.f32 %v1525, %v2008
      %v2041 = vadd.f32 %v1526, %v2009
      %v2042 = vadd.f32 %v1527, %v2010
      %v2043 = vadd.f32 %v1528, %v2011
      %v2044 = vadd.f32 %v1529, %v2012
      %v2045 = vadd.f32 %v1530, %v2013
      %v2046 = vadd.f32 %v1531, %v2014
      %v2047 = vadd.f32 %v1532, %v2015
      %v2048 = vadd.f32 %v1533, %v2016
      %v2049 = vadd.f32 %v1534, %v2017
      %v2050 = vadd.f32 %v1535, %v2018
      %2051 = vst.msk [vmem:[#allocation2] sm:$0xff] %vm617, %v2019
      %2052 = vst.msk [vmem:[#allocation2 + $0x8] sm:$0xff] %vm617, %v2020
      %2053 = vst.msk [vmem:[#allocation2 + $0x10] sm:$0xff] %vm617, %v2021
      %2054 = vst.msk [vmem:[#allocation2 + $0x18] sm:$0xff] %vm617, %v2022
      %2055 = vst.msk [vmem:[#allocation2 + $0x20] sm:$0xff] %vm617, %v2023
      %2056 = vst.msk [vmem:[#allocation2 + $0x28] sm:$0xff] %vm617, %v2024
      %2057 = vst.msk [vmem:[#allocation2 + $0x30] sm:$0xff] %vm617, %v2025
      %2058 = vst.msk [vmem:[#allocation2 + $0x38] sm:$0xff] %vm617, %v2026
      %2059 = vst.msk [vmem:[#allocation2 + $0x40] sm:$0xff] %vm617, %v2027
      %2060 = vst.msk [vmem:[#allocation2 + $0x48] sm:$0xff] %vm617, %v2028
      %2061 = vst.msk [vmem:[#allocation2 + $0x50] sm:$0xff] %vm617, %v2029
      %2062 = vst.msk [vmem:[#allocation2 + $0x58] sm:$0xff] %vm617, %v2030
      %2063 = vst.msk [vmem:[#allocation2 + $0x60] sm:$0xff] %vm617, %v2031
      %2064 = vst.msk [vmem:[#allocation2 + $0x68] sm:$0xff] %vm617, %v2032
      %2065 = vst.msk [vmem:[#allocation2 + $0x70] sm:$0xff] %vm617, %v2033
      %2066 = vst.msk [vmem:[#allocation2 + $0x78] sm:$0xff] %vm617, %v2034
      %2067 = vst.msk [vmem:[#allocation2 + $0x80] sm:$0xff] %vm617, %v2035
      %2068 = vst.msk [vmem:[#allocation2 + $0x88] sm:$0xff] %vm617, %v2036
      %2069 = vst.msk [vmem:[#allocation2 + $0x90] sm:$0xff] %vm617, %v2037
      %2070 = vst.msk [vmem:[#allocation2 + $0x98] sm:$0xff] %vm617, %v2038
      %2071 = vst.msk [vmem:[#allocation2 + $0xa0] sm:$0xff] %vm617, %v2039
      %2072 = vst.msk [vmem:[#allocation2 + $0xa8] sm:$0xff] %vm617, %v2040
      %2073 = vst.msk [vmem:[#allocation2 + $0xb0] sm:$0xff] %vm617, %v2041
      %2074 = vst.msk [vmem:[#allocation2 + $0xb8] sm:$0xff] %vm617, %v2042
      %2075 = vst.msk [vmem:[#allocation2 + $0xc0] sm:$0xff] %vm617, %v2043
      %2076 = vst.msk [vmem:[#allocation2 + $0xc8] sm:$0xff] %vm617, %v2044
      %2077 = vst.msk [vmem:[#allocation2 + $0xd0] sm:$0xff] %vm617, %v2045
      %2078 = vst.msk [vmem:[#allocation2 + $0xd8] sm:$0xff] %vm617, %v2046
      %2079 = vst.msk [vmem:[#allocation2 + $0xe0] sm:$0xff] %vm617, %v2047
      %2080 = vst.msk [vmem:[#allocation2 + $0xe8] sm:$0xff] %vm617, %v2048
      %2081 = vst.msk [vmem:[#allocation2 + $0xf0] sm:$0xff] %vm617, %v2049
      %2082 = vst.msk [vmem:[#allocation2 + $0xf8] sm:$0xff] %vm617, %v2050
      %s2083 = scalar_lea.vmem %s1, 96
      %v2084 = vld [vmem:[%s2083] sm:$0xf]
      %v2085 = vld [vmem:[%s2083 + $0x4] sm:$0xf]
      %v2086 = vld [vmem:[%s2083 + $0x8] sm:$0xf]
      %v2087 = vld [vmem:[%s2083 + $0xc] sm:$0xf]
      %v2088 = vld [vmem:[%s2083 + $0x10] sm:$0xf]
      %v2089 = vld [vmem:[%s2083 + $0x14] sm:$0xf]
      %v2090 = vld [vmem:[%s2083 + $0x18] sm:$0xf]
      %v2091 = vld [vmem:[%s2083 + $0x1c] sm:$0xf]
      %v2100 = vunpack.c.l.b16 %v2084
      %v2101 = vunpack.c.l.b16 %v2085
      %v2102 = vunpack.c.l.b16 %v2086
      %v2103 = vunpack.c.l.b16 %v2087
      %v2104 = vunpack.c.l.b16 %v2088
      %v2105 = vunpack.c.l.b16 %v2089
      %v2106 = vunpack.c.l.b16 %v2090
      %v2107 = vunpack.c.l.b16 %v2091
      %v2108 = vpack.c.b16 %v2101, %v2100
      %v2109 = vpack.c.b16 %v2103, %v2102
      %v2110 = vpack.c.b16 %v2105, %v2104
      %v2111 = vpack.c.b16 %v2107, %v2106
      %2116 = vmatprep.subr.bf16.mxu0 0
      %2117 = vmatpush1.bf16.msra.mxu0 %v2108
      %2118 = vmatprep.subr.bf16.mxu0 0
      %2119 = vmatpush1.bf16.msra.mxu0 %v2109
      %2120 = vmatprep.subr.bf16.mxu0 0
      %2121 = vmatpush1.bf16.msra.mxu0 %v2110
      %2122 = vmatprep.subr.bf16.mxu0 0
      %2123 = vmatpush1.bf16.msra.mxu0 %v2111
      %2124 = vmatprep.subr.bf16.mxu0 0
      %2125 = vmatpush1.bf16.msra.mxu0 0
      %2126 = vmatprep.subr.bf16.mxu0 0
      %2127 = vmatpush1.bf16.msra.mxu0 0
      %2128 = vmatprep.subr.bf16.mxu0 0
      %2129 = vmatpush1.bf16.msra.mxu0 0
      %2130 = vmatprep.subr.bf16.mxu0 0
      %2131 = vmatpush1.bf16.msra.mxu0 0
      %2132 = vmatprep.subr.bf16.mxu0 0
      %2133 = vmatpush1.bf16.msra.mxu0 0
      %2134 = vmatprep.subr.bf16.mxu0 0
      %2135 = vmatpush1.bf16.msra.mxu0 0
      %2136 = vmatprep.subr.bf16.mxu0 0
      %2137 = vmatpush1.bf16.msra.mxu0 0
      %2138 = vmatprep.subr.bf16.mxu0 0
      %2139 = vmatpush1.bf16.msra.mxu0 0
      %2140 = vmatprep.subr.bf16.mxu0 0
      %2141 = vmatpush1.bf16.msra.mxu0 0
      %2142 = vmatprep.subr.bf16.mxu0 0
      %2143 = vmatpush1.bf16.msra.mxu0 0
      %2144 = vmatprep.subr.bf16.mxu0 0
      %2145 = vmatpush1.bf16.msra.mxu0 0
      %2146 = vmatprep.subr.bf16.mxu0 0
      %2147 = vmatpush1.bf16.msra.mxu0 0
      %2148 = vmatprep.mubr.bf16.mxu0 0
      %2149 = vmatmul.mubr.bf16.gmra.mrb[0].mxu0 %v619
      %v2150 = vpop.f32.mrb[0].mxu0
      %v2151 = vadd.f32 0.0, %v2150
      %v2152 = vpop.f32.mrb[0].mxu0
      %v2153 = vpop.f32.mrb[0].mxu0
      %v2154 = vadd.f32 0.0, %v2153
      %v2155 = vpop.f32.mrb[0].mxu0
      %2156 = vmatprep.mubr.bf16.mxu0 0
      %2157 = vmatmul.mubr.bf16.gmra.mrb[0].mxu0 %v622
      %v2158 = vpop.f32.mrb[0].mxu0
      %v2159 = vadd.f32 0.0, %v2158
      %v2160 = vpop.f32.mrb[0].mxu0
      %v2161 = vpop.f32.mrb[0].mxu0
      %v2162 = vadd.f32 0.0, %v2161
      %v2163 = vpop.f32.mrb[0].mxu0
      %2164 = vmatprep.mubr.bf16.mxu0 0
      %2165 = vmatmul.mubr.bf16.gmra.mrb[0].mxu0 %v625
      %v2166 = vpop.f32.mrb[0].mxu0
      %v2167 = vadd.f32 0.0, %v2166
      %v2168 = vpop.f32.mrb[0].mxu0
      %v2169 = vpop.f32.mrb[0].mxu0
      %v2170 = vadd.f32 0.0, %v2169
      %v2171 = vpop.f32.mrb[0].mxu0
      %2172 = vmatprep.mubr.bf16.mxu0 0
      %2173 = vmatmul.mubr.bf16.gmra.mrb[0].mxu0 %v628
      %v2174 = vpop.f32.mrb[0].mxu0
      %v2175 = vadd.f32 0.0, %v2174
      %v2176 = vpop.f32.mrb[0].mxu0
      %v2177 = vpop.f32.mrb[0].mxu0
      %v2178 = vadd.f32 0.0, %v2177
      %v2179 = vpop.f32.mrb[0].mxu0
      %2180 = vmatprep.mubr.bf16.mxu0 0
      %2181 = vmatmul.mubr.bf16.gmra.mrb[0].mxu0 %v631
      %v2182 = vpop.f32.mrb[0].mxu0
      %v2183 = vadd.f32 0.0, %v2182
      %v2184 = vpop.f32.mrb[0].mxu0
      %v2185 = vpop.f32.mrb[0].mxu0
      %v2186 = vadd.f32 0.0, %v2185
      %v2187 = vpop.f32.mrb[0].mxu0
      %2188 = vmatprep.mubr.bf16.mxu0 0
      %2189 = vmatmul.mubr.bf16.gmra.mrb[0].mxu0 %v634
      %v2190 = vpop.f32.mrb[0].mxu0
      %v2191 = vadd.f32 0.0, %v2190
      %v2192 = vpop.f32.mrb[0].mxu0
      %v2193 = vpop.f32.mrb[0].mxu0
      %v2194 = vadd.f32 0.0, %v2193
      %v2195 = vpop.f32.mrb[0].mxu0
      %2196 = vmatprep.mubr.bf16.mxu0 0
      %2197 = vmatmul.mubr.bf16.gmra.mrb[0].mxu0 %v637
      %v2198 = vpop.f32.mrb[0].mxu0
      %v2199 = vadd.f32 0.0, %v2198
      %v2200 = vpop.f32.mrb[0].mxu0
      %v2201 = vpop.f32.mrb[0].mxu0
      %v2202 = vadd.f32 0.0, %v2201
      %v2203 = vpop.f32.mrb[0].mxu0
      %2204 = vmatprep.mubr.bf16.mxu0 0
      %2205 = vmatmul.mubr.bf16.gmra.mrb[0].mxu0 %v640
      %v2206 = vpop.f32.mrb[0].mxu0
      %v2207 = vadd.f32 0.0, %v2206
      %v2208 = vpop.f32.mrb[0].mxu0
      %v2209 = vpop.f32.mrb[0].mxu0
      %v2210 = vadd.f32 0.0, %v2209
      %v2211 = vpop.f32.mrb[0].mxu0
      %2212 = vmatprep.mubr.bf16.mxu0 0
      %2213 = vmatmul.mubr.bf16.gmra.mrb[0].mxu0 %v643
      %v2214 = vpop.f32.mrb[0].mxu0
      %v2215 = vadd.f32 0.0, %v2214
      %v2216 = vpop.f32.mrb[0].mxu0
      %v2217 = vpop.f32.mrb[0].mxu0
      %v2218 = vadd.f32 0.0, %v2217
      %v2219 = vpop.f32.mrb[0].mxu0
      %2220 = vmatprep.mubr.bf16.mxu0 0
      %2221 = vmatmul.mubr.bf16.gmra.mrb[0].mxu0 %v646
      %v2222 = vpop.f32.mrb[0].mxu0
      %v2223 = vadd.f32 0.0, %v2222
      %v2224 = vpop.f32.mrb[0].mxu0
      %v2225 = vpop.f32.mrb[0].mxu0
      %v2226 = vadd.f32 0.0, %v2225
      %v2227 = vpop.f32.mrb[0].mxu0
      %2228 = vmatprep.mubr.bf16.mxu0 0
      %2229 = vmatmul.mubr.bf16.gmra.mrb[0].mxu0 %v649
      %v2230 = vpop.f32.mrb[0].mxu0
      %v2231 = vadd.f32 0.0, %v2230
      %v2232 = vpop.f32.mrb[0].mxu0
      %v2233 = vpop.f32.mrb[0].mxu0
      %v2234 = vadd.f32 0.0, %v2233
      %v2235 = vpop.f32.mrb[0].mxu0
      %2236 = vmatprep.mubr.bf16.mxu0 0
      %2237 = vmatmul.mubr.bf16.gmra.mrb[0].mxu0 %v652
      %v2238 = vpop.f32.mrb[0].mxu0
      %v2239 = vadd.f32 0.0, %v2238
      %v2240 = vpop.f32.mrb[0].mxu0
      %v2241 = vpop.f32.mrb[0].mxu0
      %v2242 = vadd.f32 0.0, %v2241
      %v2243 = vpop.f32.mrb[0].mxu0
      %2244 = vmatprep.mubr.bf16.mxu0 0
      %2245 = vmatmul.mubr.bf16.gmra.mrb[0].mxu0 %v655
      %v2246 = vpop.f32.mrb[0].mxu0
      %v2247 = vadd.f32 0.0, %v2246
      %v2248 = vpop.f32.mrb[0].mxu0
      %v2249 = vpop.f32.mrb[0].mxu0
      %v2250 = vadd.f32 0.0, %v2249
      %v2251 = vpop.f32.mrb[0].mxu0
      %2252 = vmatprep.mubr.bf16.mxu0 0
      %2253 = vmatmul.mubr.bf16.gmra.mrb[0].mxu0 %v658
      %v2254 = vpop.f32.mrb[0].mxu0
      %v2255 = vadd.f32 0.0, %v2254
      %v2256 = vpop.f32.mrb[0].mxu0
      %v2257 = vpop.f32.mrb[0].mxu0
      %v2258 = vadd.f32 0.0, %v2257
      %v2259 = vpop.f32.mrb[0].mxu0
      %2260 = vmatprep.mubr.bf16.mxu0 0
      %2261 = vmatmul.mubr.bf16.gmra.mrb[0].mxu0 %v661
      %v2262 = vpop.f32.mrb[0].mxu0
      %v2263 = vadd.f32 0.0, %v2262
      %v2264 = vpop.f32.mrb[0].mxu0
      %v2265 = vpop.f32.mrb[0].mxu0
      %v2266 = vadd.f32 0.0, %v2265
      %v2267 = vpop.f32.mrb[0].mxu0
      %2268 = vmatprep.mubr.bf16.mxu0 0
      %2269 = vmatmul.mubr.bf16.gmra.mrb[0].mxu0 %v664
      %v2270 = vpop.f32.mrb[0].mxu0
      %v2271 = vadd.f32 0.0, %v2270
      %v2272 = vpop.f32.mrb[0].mxu0
      %v2273 = vpop.f32.mrb[0].mxu0
      %v2274 = vadd.f32 0.0, %v2273
      %v2275 = vpop.f32.mrb[0].mxu0
      %2276 = vdwg.mxu0
      %v2277 = vrot.slane %v2151, 7
      %v2278 = vrot.slane %v2154, 7
      %v2279 = vrot.slane %v2159, 7
      %v2280 = vrot.slane %v2162, 7
      %v2281 = vrot.slane %v2167, 7
      %v2282 = vrot.slane %v2170, 7
      %v2283 = vrot.slane %v2175, 7
      %v2284 = vrot.slane %v2178, 7
      %v2285 = vrot.slane %v2183, 7
      %v2286 = vrot.slane %v2186, 7
      %v2287 = vrot.slane %v2191, 7
      %v2288 = vrot.slane %v2194, 7
      %v2289 = vrot.slane %v2199, 7
      %v2290 = vrot.slane %v2202, 7
      %v2291 = vrot.slane %v2207, 7
      %v2292 = vrot.slane %v2210, 7
      %v2293 = vrot.slane %v2215, 7
      %v2294 = vrot.slane %v2218, 7
      %v2295 = vrot.slane %v2223, 7
      %v2296 = vrot.slane %v2226, 7
      %v2297 = vrot.slane %v2231, 7
      %v2298 = vrot.slane %v2234, 7
      %v2299 = vrot.slane %v2239, 7
      %v2300 = vrot.slane %v2242, 7
      %v2301 = vrot.slane %v2247, 7
      %v2302 = vrot.slane %v2250, 7
      %v2303 = vrot.slane %v2255, 7
      %v2304 = vrot.slane %v2258, 7
      %v2305 = vrot.slane %v2263, 7
      %v2306 = vrot.slane %v2266, 7
      %v2307 = vrot.slane %v2271, 7
      %v2308 = vrot.slane %v2274, 7
      %v2309 = vsel %vm861, %v2307, %v2308
      %v2310 = vsel %vm861, %v2306, %v2307
      %v2311 = vsel %vm861, %v2305, %v2306
      %v2312 = vsel %vm861, %v2304, %v2305
      %v2313 = vsel %vm861, %v2303, %v2304
      %v2314 = vsel %vm861, %v2302, %v2303
      %v2315 = vsel %vm861, %v2301, %v2302
      %v2316 = vsel %vm861, %v2300, %v2301
      %v2317 = vsel %vm861, %v2299, %v2300
      %v2318 = vsel %vm861, %v2298, %v2299
      %v2319 = vsel %vm861, %v2297, %v2298
      %v2320 = vsel %vm861, %v2296, %v2297
      %v2321 = vsel %vm861, %v2295, %v2296
      %v2322 = vsel %vm861, %v2294, %v2295
      %v2323 = vsel %vm861, %v2293, %v2294
      %v2324 = vsel %vm861, %v2292, %v2293
      %v2325 = vsel %vm861, %v2291, %v2292
      %v2326 = vsel %vm861, %v2290, %v2291
      %v2327 = vsel %vm861, %v2289, %v2290
      %v2328 = vsel %vm861, %v2288, %v2289
      %v2329 = vsel %vm861, %v2287, %v2288
      %v2330 = vsel %vm861, %v2286, %v2287
      %v2331 = vsel %vm861, %v2285, %v2286
      %v2332 = vsel %vm861, %v2284, %v2285
      %v2333 = vsel %vm861, %v2283, %v2284
      %v2334 = vsel %vm861, %v2282, %v2283
      %v2335 = vsel %vm861, %v2281, %v2282
      %v2336 = vsel %vm861, %v2280, %v2281
      %v2337 = vsel %vm861, %v2279, %v2280
      %v2338 = vsel %vm861, %v2278, %v2279
      %v2339 = vsel %vm861, %v2277, %v2278
      %v2340 = vsel %vm861, %v2308, %v2277
      %v2341 = vmul.f32 %v2340, %v1089
      %v2342 = vmul.f32 %v2339, %v1094
      %v2343 = vmul.f32 %v2338, %v1099
      %v2344 = vmul.f32 %v2337, %v1104
      %v2345 = vmul.f32 %v2336, %v1109
      %v2346 = vmul.f32 %v2335, %v1114
      %v2347 = vmul.f32 %v2334, %v1119
      %v2348 = vmul.f32 %v2333, %v1124
      %v2349 = vmul.f32 %v2332, %v1129
      %v2350 = vmul.f32 %v2331, %v1134
      %v2351 = vmul.f32 %v2330, %v1139
      %v2352 = vmul.f32 %v2329, %v1144
      %v2353 = vmul.f32 %v2328, %v1149
      %v2354 = vmul.f32 %v2327, %v1154
      %v2355 = vmul.f32 %v2326, %v1159
      %v2356 = vmul.f32 %v2325, %v1164
      %v2357 = vmul.f32 %v2324, %v1169
      %v2358 = vmul.f32 %v2323, %v1174
      %v2359 = vmul.f32 %v2322, %v1179
      %v2360 = vmul.f32 %v2321, %v1184
      %v2361 = vmul.f32 %v2320, %v1189
      %v2362 = vmul.f32 %v2319, %v1194
      %v2363 = vmul.f32 %v2318, %v1199
      %v2364 = vmul.f32 %v2317, %v1204
      %v2365 = vmul.f32 %v2316, %v1209
      %v2366 = vmul.f32 %v2315, %v1214
      %v2367 = vmul.f32 %v2314, %v1219
      %v2368 = vmul.f32 %v2313, %v1224
      %v2369 = vmul.f32 %v2312, %v1229
      %v2370 = vmul.f32 %v2311, %v1234
      %v2371 = vmul.f32 %v2310, %v1239
      %v2372 = vmul.f32 %v2309, %v1244
      %s2373 = scalar_lea.vmem %s1, 128
      %v2374 = vld [vmem:[%s2373] sm:$0xf]
      %v2375 = vld [vmem:[%s2373 + $0x4] sm:$0xf]
      %v2376 = vld [vmem:[%s2373 + $0x8] sm:$0xf]
      %v2377 = vld [vmem:[%s2373 + $0xc] sm:$0xf]
      %v2378 = vld [vmem:[%s2373 + $0x10] sm:$0xf]
      %v2379 = vld [vmem:[%s2373 + $0x14] sm:$0xf]
      %v2380 = vld [vmem:[%s2373 + $0x18] sm:$0xf]
      %v2381 = vld [vmem:[%s2373 + $0x1c] sm:$0xf]
      %v2390 = vunpack.c.l.b16 %v2374
      %v2391 = vunpack.c.l.b16 %v2375
      %v2392 = vunpack.c.l.b16 %v2376
      %v2393 = vunpack.c.l.b16 %v2377
      %v2394 = vunpack.c.l.b16 %v2378
      %v2395 = vunpack.c.l.b16 %v2379
      %v2396 = vunpack.c.l.b16 %v2380
      %v2397 = vunpack.c.l.b16 %v2381
      %v2398 = vpack.c.b16 %v2391, %v2390
      %v2399 = vpack.c.b16 %v2393, %v2392
      %v2400 = vpack.c.b16 %v2395, %v2394
      %v2401 = vpack.c.b16 %v2397, %v2396
      %2406 = vmatprep.subr.bf16.mxu0 0
      %2407 = vmatpush1.bf16.msra.mxu0 %v2398
      %2408 = vmatprep.subr.bf16.mxu0 0
      %2409 = vmatpush1.bf16.msra.mxu0 %v2399
      %2410 = vmatprep.subr.bf16.mxu0 0
      %2411 = vmatpush1.bf16.msra.mxu0 %v2400
      %2412 = vmatprep.subr.bf16.mxu0 0
      %2413 = vmatpush1.bf16.msra.mxu0 %v2401
      %2414 = vmatprep.subr.bf16.mxu0 0
      %2415 = vmatpush1.bf16.msra.mxu0 0
      %2416 = vmatprep.subr.bf16.mxu0 0
      %2417 = vmatpush1.bf16.msra.mxu0 0
      %2418 = vmatprep.subr.bf16.mxu0 0
      %2419 = vmatpush1.bf16.msra.mxu0 0
      %2420 = vmatprep.subr.bf16.mxu0 0
      %2421 = vmatpush1.bf16.msra.mxu0 0
      %2422 = vmatprep.subr.bf16.mxu0 0
      %2423 = vmatpush1.bf16.msra.mxu0 0
      %2424 = vmatprep.subr.bf16.mxu0 0
      %2425 = vmatpush1.bf16.msra.mxu0 0
      %2426 = vmatprep.subr.bf16.mxu0 0
      %2427 = vmatpush1.bf16.msra.mxu0 0
      %2428 = vmatprep.subr.bf16.mxu0 0
      %2429 = vmatpush1.bf16.msra.mxu0 0
      %2430 = vmatprep.subr.bf16.mxu0 0
      %2431 = vmatpush1.bf16.msra.mxu0 0
      %2432 = vmatprep.subr.bf16.mxu0 0
      %2433 = vmatpush1.bf16.msra.mxu0 0
      %2434 = vmatprep.subr.bf16.mxu0 0
      %2435 = vmatpush1.bf16.msra.mxu0 0
      %2436 = vmatprep.subr.bf16.mxu0 0
      %2437 = vmatpush1.bf16.msra.mxu0 0
      %2438 = vmatprep.mubr.bf16.mxu0 0
      %2439 = vmatmul.mubr.bf16.gmra.mrb[0].mxu0 %v619
      %v2440 = vpop.f32.mrb[0].mxu0
      %v2441 = vadd.f32 0.0, %v2440
      %v2442 = vpop.f32.mrb[0].mxu0
      %v2443 = vpop.f32.mrb[0].mxu0
      %v2444 = vadd.f32 0.0, %v2443
      %v2445 = vpop.f32.mrb[0].mxu0
      %2446 = vmatprep.mubr.bf16.mxu0 0
      %2447 = vmatmul.mubr.bf16.gmra.mrb[0].mxu0 %v622
      %v2448 = vpop.f32.mrb[0].mxu0
      %v2449 = vadd.f32 0.0, %v2448
      %v2450 = vpop.f32.mrb[0].mxu0
      %v2451 = vpop.f32.mrb[0].mxu0
      %v2452 = vadd.f32 0.0, %v2451
      %v2453 = vpop.f32.mrb[0].mxu0
      %2454 = vmatprep.mubr.bf16.mxu0 0
      %2455 = vmatmul.mubr.bf16.gmra.mrb[0].mxu0 %v625
      %v2456 = vpop.f32.mrb[0].mxu0
      %v2457 = vadd.f32 0.0, %v2456
      %v2458 = vpop.f32.mrb[0].mxu0
      %v2459 = vpop.f32.mrb[0].mxu0
      %v2460 = vadd.f32 0.0, %v2459
      %v2461 = vpop.f32.mrb[0].mxu0
      %2462 = vmatprep.mubr.bf16.mxu0 0
      %2463 = vmatmul.mubr.bf16.gmra.mrb[0].mxu0 %v628
      %v2464 = vpop.f32.mrb[0].mxu0
      %v2465 = vadd.f32 0.0, %v2464
      %v2466 = vpop.f32.mrb[0].mxu0
      %v2467 = vpop.f32.mrb[0].mxu0
      %v2468 = vadd.f32 0.0, %v2467
      %v2469 = vpop.f32.mrb[0].mxu0
      %2470 = vmatprep.mubr.bf16.mxu0 0
      %2471 = vmatmul.mubr.bf16.gmra.mrb[0].mxu0 %v631
      %v2472 = vpop.f32.mrb[0].mxu0
      %v2473 = vadd.f32 0.0, %v2472
      %v2474 = vpop.f32.mrb[0].mxu0
      %v2475 = vpop.f32.mrb[0].mxu0
      %v2476 = vadd.f32 0.0, %v2475
      %v2477 = vpop.f32.mrb[0].mxu0
      %2478 = vmatprep.mubr.bf16.mxu0 0
      %2479 = vmatmul.mubr.bf16.gmra.mrb[0].mxu0 %v634
      %v2480 = vpop.f32.mrb[0].mxu0
      %v2481 = vadd.f32 0.0, %v2480
      %v2482 = vpop.f32.mrb[0].mxu0
      %v2483 = vpop.f32.mrb[0].mxu0
      %v2484 = vadd.f32 0.0, %v2483
      %v2485 = vpop.f32.mrb[0].mxu0
      %2486 = vmatprep.mubr.bf16.mxu0 0
      %2487 = vmatmul.mubr.bf16.gmra.mrb[0].mxu0 %v637
      %v2488 = vpop.f32.mrb[0].mxu0
      %v2489 = vadd.f32 0.0, %v2488
      %v2490 = vpop.f32.mrb[0].mxu0
      %v2491 = vpop.f32.mrb[0].mxu0
      %v2492 = vadd.f32 0.0, %v2491
      %v2493 = vpop.f32.mrb[0].mxu0
      %2494 = vmatprep.mubr.bf16.mxu0 0
      %2495 = vmatmul.mubr.bf16.gmra.mrb[0].mxu0 %v640
      %v2496 = vpop.f32.mrb[0].mxu0
      %v2497 = vadd.f32 0.0, %v2496
      %v2498 = vpop.f32.mrb[0].mxu0
      %v2499 = vpop.f32.mrb[0].mxu0
      %v2500 = vadd.f32 0.0, %v2499
      %v2501 = vpop.f32.mrb[0].mxu0
      %2502 = vmatprep.mubr.bf16.mxu0 0
      %2503 = vmatmul.mubr.bf16.gmra.mrb[0].mxu0 %v643
      %v2504 = vpop.f32.mrb[0].mxu0
      %v2505 = vadd.f32 0.0, %v2504
      %v2506 = vpop.f32.mrb[0].mxu0
      %v2507 = vpop.f32.mrb[0].mxu0
      %v2508 = vadd.f32 0.0, %v2507
      %v2509 = vpop.f32.mrb[0].mxu0
      %2510 = vmatprep.mubr.bf16.mxu0 0
      %2511 = vmatmul.mubr.bf16.gmra.mrb[0].mxu0 %v646
      %v2512 = vpop.f32.mrb[0].mxu0
      %v2513 = vadd.f32 0.0, %v2512
      %v2514 = vpop.f32.mrb[0].mxu0
      %v2515 = vpop.f32.mrb[0].mxu0
      %v2516 = vadd.f32 0.0, %v2515
      %v2517 = vpop.f32.mrb[0].mxu0
      %2518 = vmatprep.mubr.bf16.mxu0 0
      %2519 = vmatmul.mubr.bf16.gmra.mrb[0].mxu0 %v649
      %v2520 = vpop.f32.mrb[0].mxu0
      %v2521 = vadd.f32 0.0, %v2520
      %v2522 = vpop.f32.mrb[0].mxu0
      %v2523 = vpop.f32.mrb[0].mxu0
      %v2524 = vadd.f32 0.0, %v2523
      %v2525 = vpop.f32.mrb[0].mxu0
      %2526 = vmatprep.mubr.bf16.mxu0 0
      %2527 = vmatmul.mubr.bf16.gmra.mrb[0].mxu0 %v652
      %v2528 = vpop.f32.mrb[0].mxu0
      %v2529 = vadd.f32 0.0, %v2528
      %v2530 = vpop.f32.mrb[0].mxu0
      %v2531 = vpop.f32.mrb[0].mxu0
      %v2532 = vadd.f32 0.0, %v2531
      %v2533 = vpop.f32.mrb[0].mxu0
      %2534 = vmatprep.mubr.bf16.mxu0 0
      %2535 = vmatmul.mubr.bf16.gmra.mrb[0].mxu0 %v655
      %v2536 = vpop.f32.mrb[0].mxu0
      %v2537 = vadd.f32 0.0, %v2536
      %v2538 = vpop.f32.mrb[0].mxu0
      %v2539 = vpop.f32.mrb[0].mxu0
      %v2540 = vadd.f32 0.0, %v2539
      %v2541 = vpop.f32.mrb[0].mxu0
      %2542 = vmatprep.mubr.bf16.mxu0 0
      %2543 = vmatmul.mubr.bf16.gmra.mrb[0].mxu0 %v658
      %v2544 = vpop.f32.mrb[0].mxu0
      %v2545 = vadd.f32 0.0, %v2544
      %v2546 = vpop.f32.mrb[0].mxu0
      %v2547 = vpop.f32.mrb[0].mxu0
      %v2548 = vadd.f32 0.0, %v2547
      %v2549 = vpop.f32.mrb[0].mxu0
      %2550 = vmatprep.mubr.bf16.mxu0 0
      %2551 = vmatmul.mubr.bf16.gmra.mrb[0].mxu0 %v661
      %v2552 = vpop.f32.mrb[0].mxu0
      %v2553 = vadd.f32 0.0, %v2552
      %v2554 = vpop.f32.mrb[0].mxu0
      %v2555 = vpop.f32.mrb[0].mxu0
      %v2556 = vadd.f32 0.0, %v2555
      %v2557 = vpop.f32.mrb[0].mxu0
      %2558 = vmatprep.mubr.bf16.mxu0 0
      %2559 = vmatmul.mubr.bf16.gmra.mrb[0].mxu0 %v664
      %v2560 = vpop.f32.mrb[0].mxu0
      %v2561 = vadd.f32 0.0, %v2560
      %v2562 = vpop.f32.mrb[0].mxu0
      %v2563 = vpop.f32.mrb[0].mxu0
      %v2564 = vadd.f32 0.0, %v2563
      %v2565 = vpop.f32.mrb[0].mxu0
      %2566 = vdwg.mxu0
      %v2567 = vadd.f32 %v2341, %v2441
      %v2568 = vadd.f32 %v2342, %v2444
      %v2569 = vadd.f32 %v2343, %v2449
      %v2570 = vadd.f32 %v2344, %v2452
      %v2571 = vadd.f32 %v2345, %v2457
      %v2572 = vadd.f32 %v2346, %v2460
      %v2573 = vadd.f32 %v2347, %v2465
      %v2574 = vadd.f32 %v2348, %v2468
      %v2575 = vadd.f32 %v2349, %v2473
      %v2576 = vadd.f32 %v2350, %v2476
      %v2577 = vadd.f32 %v2351, %v2481
      %v2578 = vadd.f32 %v2352, %v2484
      %v2579 = vadd.f32 %v2353, %v2489
      %v2580 = vadd.f32 %v2354, %v2492
      %v2581 = vadd.f32 %v2355, %v2497
      %v2582 = vadd.f32 %v2356, %v2500
      %v2583 = vadd.f32 %v2357, %v2505
      %v2584 = vadd.f32 %v2358, %v2508
      %v2585 = vadd.f32 %v2359, %v2513
      %v2586 = vadd.f32 %v2360, %v2516
      %v2587 = vadd.f32 %v2361, %v2521
      %v2588 = vadd.f32 %v2362, %v2524
      %v2589 = vadd.f32 %v2363, %v2529
      %v2590 = vadd.f32 %v2364, %v2532
      %v2591 = vadd.f32 %v2365, %v2537
      %v2592 = vadd.f32 %v2366, %v2540
      %v2593 = vadd.f32 %v2367, %v2545
      %v2594 = vadd.f32 %v2368, %v2548
      %v2595 = vadd.f32 %v2369, %v2553
      %v2596 = vadd.f32 %v2370, %v2556
      %v2597 = vadd.f32 %v2371, %v2561
      %v2598 = vadd.f32 %v2372, %v2564
      %s2599 = scalar_lea.vmem %s1, 160
      %v2600 = vld [vmem:[%s2599] sm:$0xf]
      %v2601 = vld [vmem:[%s2599 + $0x4] sm:$0xf]
      %v2602 = vld [vmem:[%s2599 + $0x8] sm:$0xf]
      %v2603 = vld [vmem:[%s2599 + $0xc] sm:$0xf]
      %v2604 = vld [vmem:[%s2599 + $0x10] sm:$0xf]
      %v2605 = vld [vmem:[%s2599 + $0x14] sm:$0xf]
      %v2606 = vld [vmem:[%s2599 + $0x18] sm:$0xf]
      %v2607 = vld [vmem:[%s2599 + $0x1c] sm:$0xf]
      %v2616 = vunpack.c.l.b16 %v2600
      %v2617 = vunpack.c.l.b16 %v2601
      %v2618 = vunpack.c.l.b16 %v2602
      %v2619 = vunpack.c.l.b16 %v2603
      %v2620 = vunpack.c.l.b16 %v2604
      %v2621 = vunpack.c.l.b16 %v2605
      %v2622 = vunpack.c.l.b16 %v2606
      %v2623 = vunpack.c.l.b16 %v2607
      %v2624 = vpack.c.b16 %v2617, %v2616
      %v2625 = vpack.c.b16 %v2619, %v2618
      %v2626 = vpack.c.b16 %v2621, %v2620
      %v2627 = vpack.c.b16 %v2623, %v2622
      %2632 = vmatprep.subr.bf16.mxu0 0
      %2633 = vmatpush1.bf16.msra.mxu0 %v2624
      %2634 = vmatprep.subr.bf16.mxu0 0
      %2635 = vmatpush1.bf16.msra.mxu0 %v2625
      %2636 = vmatprep.subr.bf16.mxu0 0
      %2637 = vmatpush1.bf16.msra.mxu0 %v2626
      %2638 = vmatprep.subr.bf16.mxu0 0
      %2639 = vmatpush1.bf16.msra.mxu0 %v2627
      %2640 = vmatprep.subr.bf16.mxu0 0
      %2641 = vmatpush1.bf16.msra.mxu0 0
      %2642 = vmatprep.subr.bf16.mxu0 0
      %2643 = vmatpush1.bf16.msra.mxu0 0
      %2644 = vmatprep.subr.bf16.mxu0 0
      %2645 = vmatpush1.bf16.msra.mxu0 0
      %2646 = vmatprep.subr.bf16.mxu0 0
      %2647 = vmatpush1.bf16.msra.mxu0 0
      %2648 = vmatprep.subr.bf16.mxu0 0
      %2649 = vmatpush1.bf16.msra.mxu0 0
      %2650 = vmatprep.subr.bf16.mxu0 0
      %2651 = vmatpush1.bf16.msra.mxu0 0
      %2652 = vmatprep.subr.bf16.mxu0 0
      %2653 = vmatpush1.bf16.msra.mxu0 0
      %2654 = vmatprep.subr.bf16.mxu0 0
      %2655 = vmatpush1.bf16.msra.mxu0 0
      %2656 = vmatprep.subr.bf16.mxu0 0
      %2657 = vmatpush1.bf16.msra.mxu0 0
      %2658 = vmatprep.subr.bf16.mxu0 0
      %2659 = vmatpush1.bf16.msra.mxu0 0
      %2660 = vmatprep.subr.bf16.mxu0 0
      %2661 = vmatpush1.bf16.msra.mxu0 0
      %2662 = vmatprep.subr.bf16.mxu0 0
      %2663 = vmatpush1.bf16.msra.mxu0 0
      %2664 = vmatprep.mubr.bf16.mxu0 0
      %2665 = vmatmul.mubr.bf16.gmra.mrb[0].mxu0 %v619
      %v2666 = vpop.f32.mrb[0].mxu0
      %v2667 = vadd.f32 0.0, %v2666
      %v2668 = vpop.f32.mrb[0].mxu0
      %v2669 = vpop.f32.mrb[0].mxu0
      %v2670 = vadd.f32 0.0, %v2669
      %v2671 = vpop.f32.mrb[0].mxu0
      %2672 = vmatprep.mubr.bf16.mxu0 0
      %2673 = vmatmul.mubr.bf16.gmra.mrb[0].mxu0 %v622
      %v2674 = vpop.f32.mrb[0].mxu0
      %v2675 = vadd.f32 0.0, %v2674
      %v2676 = vpop.f32.mrb[0].mxu0
      %v2677 = vpop.f32.mrb[0].mxu0
      %v2678 = vadd.f32 0.0, %v2677
      %v2679 = vpop.f32.mrb[0].mxu0
      %2680 = vmatprep.mubr.bf16.mxu0 0
      %2681 = vmatmul.mubr.bf16.gmra.mrb[0].mxu0 %v625
      %v2682 = vpop.f32.mrb[0].mxu0
      %v2683 = vadd.f32 0.0, %v2682
      %v2684 = vpop.f32.mrb[0].mxu0
      %v2685 = vpop.f32.mrb[0].mxu0
      %v2686 = vadd.f32 0.0, %v2685
      %v2687 = vpop.f32.mrb[0].mxu0
      %2688 = vmatprep.mubr.bf16.mxu0 0
      %2689 = vmatmul.mubr.bf16.gmra.mrb[0].mxu0 %v628
      %v2690 = vpop.f32.mrb[0].mxu0
      %v2691 = vadd.f32 0.0, %v2690
      %v2692 = vpop.f32.mrb[0].mxu0
      %v2693 = vpop.f32.mrb[0].mxu0
      %v2694 = vadd.f32 0.0, %v2693
      %v2695 = vpop.f32.mrb[0].mxu0
      %2696 = vmatprep.mubr.bf16.mxu0 0
      %2697 = vmatmul.mubr.bf16.gmra.mrb[0].mxu0 %v631
      %v2698 = vpop.f32.mrb[0].mxu0
      %v2699 = vadd.f32 0.0, %v2698
      %v2700 = vpop.f32.mrb[0].mxu0
      %v2701 = vpop.f32.mrb[0].mxu0
      %v2702 = vadd.f32 0.0, %v2701
      %v2703 = vpop.f32.mrb[0].mxu0
      %2704 = vmatprep.mubr.bf16.mxu0 0
      %2705 = vmatmul.mubr.bf16.gmra.mrb[0].mxu0 %v634
      %v2706 = vpop.f32.mrb[0].mxu0
      %v2707 = vadd.f32 0.0, %v2706
      %v2708 = vpop.f32.mrb[0].mxu0
      %v2709 = vpop.f32.mrb[0].mxu0
      %v2710 = vadd.f32 0.0, %v2709
      %v2711 = vpop.f32.mrb[0].mxu0
      %2712 = vmatprep.mubr.bf16.mxu0 0
      %2713 = vmatmul.mubr.bf16.gmra.mrb[0].mxu0 %v637
      %v2714 = vpop.f32.mrb[0].mxu0
      %v2715 = vadd.f32 0.0, %v2714
      %v2716 = vpop.f32.mrb[0].mxu0
      %v2717 = vpop.f32.mrb[0].mxu0
      %v2718 = vadd.f32 0.0, %v2717
      %v2719 = vpop.f32.mrb[0].mxu0
      %2720 = vmatprep.mubr.bf16.mxu0 0
      %2721 = vmatmul.mubr.bf16.gmra.mrb[0].mxu0 %v640
      %v2722 = vpop.f32.mrb[0].mxu0
      %v2723 = vadd.f32 0.0, %v2722
      %v2724 = vpop.f32.mrb[0].mxu0
      %v2725 = vpop.f32.mrb[0].mxu0
      %v2726 = vadd.f32 0.0, %v2725
      %v2727 = vpop.f32.mrb[0].mxu0
      %2728 = vmatprep.mubr.bf16.mxu0 0
      %2729 = vmatmul.mubr.bf16.gmra.mrb[0].mxu0 %v643
      %v2730 = vpop.f32.mrb[0].mxu0
      %v2731 = vadd.f32 0.0, %v2730
      %v2732 = vpop.f32.mrb[0].mxu0
      %v2733 = vpop.f32.mrb[0].mxu0
      %v2734 = vadd.f32 0.0, %v2733
      %v2735 = vpop.f32.mrb[0].mxu0
      %2736 = vmatprep.mubr.bf16.mxu0 0
      %2737 = vmatmul.mubr.bf16.gmra.mrb[0].mxu0 %v646
      %v2738 = vpop.f32.mrb[0].mxu0
      %v2739 = vadd.f32 0.0, %v2738
      %v2740 = vpop.f32.mrb[0].mxu0
      %v2741 = vpop.f32.mrb[0].mxu0
      %v2742 = vadd.f32 0.0, %v2741
      %v2743 = vpop.f32.mrb[0].mxu0
      %2744 = vmatprep.mubr.bf16.mxu0 0
      %2745 = vmatmul.mubr.bf16.gmra.mrb[0].mxu0 %v649
      %v2746 = vpop.f32.mrb[0].mxu0
      %v2747 = vadd.f32 0.0, %v2746
      %v2748 = vpop.f32.mrb[0].mxu0
      %v2749 = vpop.f32.mrb[0].mxu0
      %v2750 = vadd.f32 0.0, %v2749
      %v2751 = vpop.f32.mrb[0].mxu0
      %2752 = vmatprep.mubr.bf16.mxu0 0
      %2753 = vmatmul.mubr.bf16.gmra.mrb[0].mxu0 %v652
      %v2754 = vpop.f32.mrb[0].mxu0
      %v2755 = vadd.f32 0.0, %v2754
      %v2756 = vpop.f32.mrb[0].mxu0
      %v2757 = vpop.f32.mrb[0].mxu0
      %v2758 = vadd.f32 0.0, %v2757
      %v2759 = vpop.f32.mrb[0].mxu0
      %2760 = vmatprep.mubr.bf16.mxu0 0
      %2761 = vmatmul.mubr.bf16.gmra.mrb[0].mxu0 %v655
      %v2762 = vpop.f32.mrb[0].mxu0
      %v2763 = vadd.f32 0.0, %v2762
      %v2764 = vpop.f32.mrb[0].mxu0
      %v2765 = vpop.f32.mrb[0].mxu0
      %v2766 = vadd.f32 0.0, %v2765
      %v2767 = vpop.f32.mrb[0].mxu0
      %2768 = vmatprep.mubr.bf16.mxu0 0
      %2769 = vmatmul.mubr.bf16.gmra.mrb[0].mxu0 %v658
      %v2770 = vpop.f32.mrb[0].mxu0
      %v2771 = vadd.f32 0.0, %v2770
      %v2772 = vpop.f32.mrb[0].mxu0
      %v2773 = vpop.f32.mrb[0].mxu0
      %v2774 = vadd.f32 0.0, %v2773
      %v2775 = vpop.f32.mrb[0].mxu0
      %2776 = vmatprep.mubr.bf16.mxu0 0
      %2777 = vmatmul.mubr.bf16.gmra.mrb[0].mxu0 %v661
      %v2778 = vpop.f32.mrb[0].mxu0
      %v2779 = vadd.f32 0.0, %v2778
      %v2780 = vpop.f32.mrb[0].mxu0
      %v2781 = vpop.f32.mrb[0].mxu0
      %v2782 = vadd.f32 0.0, %v2781
      %v2783 = vpop.f32.mrb[0].mxu0
      %2784 = vmatprep.mubr.bf16.mxu0 0
      %2785 = vmatmul.mubr.bf16.gmra.mrb[0].mxu0 %v664
      %v2786 = vpop.f32.mrb[0].mxu0
      %v2787 = vadd.f32 0.0, %v2786
      %v2788 = vpop.f32.mrb[0].mxu0
      %v2789 = vpop.f32.mrb[0].mxu0
      %v2790 = vadd.f32 0.0, %v2789
      %v2791 = vpop.f32.mrb[0].mxu0
      %2792 = vdwg.mxu0
      %v2793 = vrot.slane %v2667, 1
      %v2794 = vrot.slane %v2670, 1
      %v2795 = vrot.slane %v2675, 1
      %v2796 = vrot.slane %v2678, 1
      %v2797 = vrot.slane %v2683, 1
      %v2798 = vrot.slane %v2686, 1
      %v2799 = vrot.slane %v2691, 1
      %v2800 = vrot.slane %v2694, 1
      %v2801 = vrot.slane %v2699, 1
      %v2802 = vrot.slane %v2702, 1
      %v2803 = vrot.slane %v2707, 1
      %v2804 = vrot.slane %v2710, 1
      %v2805 = vrot.slane %v2715, 1
      %v2806 = vrot.slane %v2718, 1
      %v2807 = vrot.slane %v2723, 1
      %v2808 = vrot.slane %v2726, 1
      %v2809 = vrot.slane %v2731, 1
      %v2810 = vrot.slane %v2734, 1
      %v2811 = vrot.slane %v2739, 1
      %v2812 = vrot.slane %v2742, 1
      %v2813 = vrot.slane %v2747, 1
      %v2814 = vrot.slane %v2750, 1
      %v2815 = vrot.slane %v2755, 1
      %v2816 = vrot.slane %v2758, 1
      %v2817 = vrot.slane %v2763, 1
      %v2818 = vrot.slane %v2766, 1
      %v2819 = vrot.slane %v2771, 1
      %v2820 = vrot.slane %v2774, 1
      %v2821 = vrot.slane %v2779, 1
      %v2822 = vrot.slane %v2782, 1
      %v2823 = vrot.slane %v2787, 1
      %v2824 = vrot.slane %v2790, 1
      %v2825 = vsel %vm1762, %v2823, %v2824
      %v2826 = vsel %vm1762, %v2822, %v2823
      %v2827 = vsel %vm1762, %v2821, %v2822
      %v2828 = vsel %vm1762, %v2820, %v2821
      %v2829 = vsel %vm1762, %v2819, %v2820
      %v2830 = vsel %vm1762, %v2818, %v2819
      %v2831 = vsel %vm1762, %v2817, %v2818
      %v2832 = vsel %vm1762, %v2816, %v2817
      %v2833 = vsel %vm1762, %v2815, %v2816
      %v2834 = vsel %vm1762, %v2814, %v2815
      %v2835 = vsel %vm1762, %v2813, %v2814
      %v2836 = vsel %vm1762, %v2812, %v2813
      %v2837 = vsel %vm1762, %v2811, %v2812
      %v2838 = vsel %vm1762, %v2810, %v2811
      %v2839 = vsel %vm1762, %v2809, %v2810
      %v2840 = vsel %vm1762, %v2808, %v2809
      %v2841 = vsel %vm1762, %v2807, %v2808
      %v2842 = vsel %vm1762, %v2806, %v2807
      %v2843 = vsel %vm1762, %v2805, %v2806
      %v2844 = vsel %vm1762, %v2804, %v2805
      %v2845 = vsel %vm1762, %v2803, %v2804
      %v2846 = vsel %vm1762, %v2802, %v2803
      %v2847 = vsel %vm1762, %v2801, %v2802
      %v2848 = vsel %vm1762, %v2800, %v2801
      %v2849 = vsel %vm1762, %v2799, %v2800
      %v2850 = vsel %vm1762, %v2798, %v2799
      %v2851 = vsel %vm1762, %v2797, %v2798
      %v2852 = vsel %vm1762, %v2796, %v2797
      %v2853 = vsel %vm1762, %v2795, %v2796
      %v2854 = vsel %vm1762, %v2794, %v2795
      %v2855 = vsel %vm1762, %v2793, %v2794
      %v2856 = vsel %vm1762, %v2824, %v2793
      %v2857 = vmul.f32 %v2855, %v1830
      %v2858 = vmul.f32 %v2854, %v1835
      %v2859 = vmul.f32 %v2853, %v1840
      %v2860 = vmul.f32 %v2852, %v1845
      %v2861 = vmul.f32 %v2851, %v1850
      %v2862 = vmul.f32 %v2850, %v1855
      %v2863 = vmul.f32 %v2849, %v1860
      %v2864 = vmul.f32 %v2848, %v1865
      %v2865 = vmul.f32 %v2847, %v1870
      %v2866 = vmul.f32 %v2846, %v1875
      %v2867 = vmul.f32 %v2845, %v1880
      %v2868 = vmul.f32 %v2844, %v1885
      %v2869 = vmul.f32 %v2843, %v1890
      %v2870 = vmul.f32 %v2842, %v1895
      %v2871 = vmul.f32 %v2841, %v1900
      %v2872 = vmul.f32 %v2840, %v1905
      %v2873 = vmul.f32 %v2839, %v1910
      %v2874 = vmul.f32 %v2838, %v1915
      %v2875 = vmul.f32 %v2837, %v1920
      %v2876 = vmul.f32 %v2836, %v1925
      %v2877 = vmul.f32 %v2835, %v1930
      %v2878 = vmul.f32 %v2834, %v1935
      %v2879 = vmul.f32 %v2833, %v1940
      %v2880 = vmul.f32 %v2832, %v1945
      %v2881 = vmul.f32 %v2831, %v1950
      %v2882 = vmul.f32 %v2830, %v1955
      %v2883 = vmul.f32 %v2829, %v1960
      %v2884 = vmul.f32 %v2828, %v1965
      %v2885 = vmul.f32 %v2827, %v1970
      %v2886 = vmul.f32 %v2826, %v1975
      %v2887 = vmul.f32 %v2825, %v1980
      %v2888 = vmul.f32 %v2856, %v1985
      %v2889 = vadd.f32 %v2567, %v2857
      %v2890 = vadd.f32 %v2568, %v2858
      %v2891 = vadd.f32 %v2569, %v2859
      %v2892 = vadd.f32 %v2570, %v2860
      %v2893 = vadd.f32 %v2571, %v2861
      %v2894 = vadd.f32 %v2572, %v2862
      %v2895 = vadd.f32 %v2573, %v2863
      %v2896 = vadd.f32 %v2574, %v2864
      %v2897 = vadd.f32 %v2575, %v2865
      %v2898 = vadd.f32 %v2576, %v2866
      %v2899 = vadd.f32 %v2577, %v2867
      %v2900 = vadd.f32 %v2578, %v2868
      %v2901 = vadd.f32 %v2579, %v2869
      %v2902 = vadd.f32 %v2580, %v2870
      %v2903 = vadd.f32 %v2581, %v2871
      %v2904 = vadd.f32 %v2582, %v2872
      %v2905 = vadd.f32 %v2583, %v2873
      %v2906 = vadd.f32 %v2584, %v2874
      %v2907 = vadd.f32 %v2585, %v2875
      %v2908 = vadd.f32 %v2586, %v2876
      %v2909 = vadd.f32 %v2587, %v2877
      %v2910 = vadd.f32 %v2588, %v2878
      %v2911 = vadd.f32 %v2589, %v2879
      %v2912 = vadd.f32 %v2590, %v2880
      %v2913 = vadd.f32 %v2591, %v2881
      %v2914 = vadd.f32 %v2592, %v2882
      %v2915 = vadd.f32 %v2593, %v2883
      %v2916 = vadd.f32 %v2594, %v2884
      %v2917 = vadd.f32 %v2595, %v2885
      %v2918 = vadd.f32 %v2596, %v2886
      %v2919 = vadd.f32 %v2597, %v2887
      %v2920 = vadd.f32 %v2598, %v2888
      %v2921 = vld [vmem:[#allocation2] sm:$0xff]
      %v2922 = vld [vmem:[#allocation2 + $0x8] sm:$0xff]
      %v2923 = vld [vmem:[#allocation2 + $0x10] sm:$0xff]
      %v2924 = vld [vmem:[#allocation2 + $0x18] sm:$0xff]
      %v2925 = vld [vmem:[#allocation2 + $0x20] sm:$0xff]
      %v2926 = vld [vmem:[#allocation2 + $0x28] sm:$0xff]
      %v2927 = vld [vmem:[#allocation2 + $0x30] sm:$0xff]
      %v2928 = vld [vmem:[#allocation2 + $0x38] sm:$0xff]
      %v2929 = vld [vmem:[#allocation2 + $0x40] sm:$0xff]
      %v2930 = vld [vmem:[#allocation2 + $0x48] sm:$0xff]
      %v2931 = vld [vmem:[#allocation2 + $0x50] sm:$0xff]
      %v2932 = vld [vmem:[#allocation2 + $0x58] sm:$0xff]
      %v2933 = vld [vmem:[#allocation2 + $0x60] sm:$0xff]
      %v2934 = vld [vmem:[#allocation2 + $0x68] sm:$0xff]
      %v2935 = vld [vmem:[#allocation2 + $0x70] sm:$0xff]
      %v2936 = vld [vmem:[#allocation2 + $0x78] sm:$0xff]
      %v2937 = vld [vmem:[#allocation2 + $0x80] sm:$0xff]
      %v2938 = vld [vmem:[#allocation2 + $0x88] sm:$0xff]
      %v2939 = vld [vmem:[#allocation2 + $0x90] sm:$0xff]
      %v2940 = vld [vmem:[#allocation2 + $0x98] sm:$0xff]
      %v2941 = vld [vmem:[#allocation2 + $0xa0] sm:$0xff]
      %v2942 = vld [vmem:[#allocation2 + $0xa8] sm:$0xff]
      %v2943 = vld [vmem:[#allocation2 + $0xb0] sm:$0xff]
      %v2944 = vld [vmem:[#allocation2 + $0xb8] sm:$0xff]
      %v2945 = vld [vmem:[#allocation2 + $0xc0] sm:$0xff]
      %v2946 = vld [vmem:[#allocation2 + $0xc8] sm:$0xff]
      %v2947 = vld [vmem:[#allocation2 + $0xd0] sm:$0xff]
      %v2948 = vld [vmem:[#allocation2 + $0xd8] sm:$0xff]
      %v2949 = vld [vmem:[#allocation2 + $0xe0] sm:$0xff]
      %v2950 = vld [vmem:[#allocation2 + $0xe8] sm:$0xff]
      %v2951 = vld [vmem:[#allocation2 + $0xf0] sm:$0xff]
      %v2952 = vld [vmem:[#allocation2 + $0xf8] sm:$0xff]
      %v2953 = vadd.f32 %v2921, %v2889
      %v2954 = vadd.f32 %v2922, %v2890
      %v2955 = vadd.f32 %v2923, %v2891
      %v2956 = vadd.f32 %v2924, %v2892
      %v2957 = vadd.f32 %v2925, %v2893
      %v2958 = vadd.f32 %v2926, %v2894
      %v2959 = vadd.f32 %v2927, %v2895
      %v2960 = vadd.f32 %v2928, %v2896
      %v2961 = vadd.f32 %v2929, %v2897
      %v2962 = vadd.f32 %v2930, %v2898
      %v2963 = vadd.f32 %v2931, %v2899
      %v2964 = vadd.f32 %v2932, %v2900
      %v2965 = vadd.f32 %v2933, %v2901
      %v2966 = vadd.f32 %v2934, %v2902
      %v2967 = vadd.f32 %v2935, %v2903
      %v2968 = vadd.f32 %v2936, %v2904
      %v2969 = vadd.f32 %v2937, %v2905
      %v2970 = vadd.f32 %v2938, %v2906
      %v2971 = vadd.f32 %v2939, %v2907
      %v2972 = vadd.f32 %v2940, %v2908
      %v2973 = vadd.f32 %v2941, %v2909
      %v2974 = vadd.f32 %v2942, %v2910
      %v2975 = vadd.f32 %v2943, %v2911
      %v2976 = vadd.f32 %v2944, %v2912
      %v2977 = vadd.f32 %v2945, %v2913
      %v2978 = vadd.f32 %v2946, %v2914
      %v2979 = vadd.f32 %v2947, %v2915
      %v2980 = vadd.f32 %v2948, %v2916
      %v2981 = vadd.f32 %v2949, %v2917
      %v2982 = vadd.f32 %v2950, %v2918
      %v2983 = vadd.f32 %v2951, %v2919
      %v2984 = vadd.f32 %v2952, %v2920
      %2985 = vst.msk [vmem:[#allocation2] sm:$0xff] %vm617, %v2953
      %2986 = vst.msk [vmem:[#allocation2 + $0x8] sm:$0xff] %vm617, %v2954
      %2987 = vst.msk [vmem:[#allocation2 + $0x10] sm:$0xff] %vm617, %v2955
      %2988 = vst.msk [vmem:[#allocation2 + $0x18] sm:$0xff] %vm617, %v2956
      %2989 = vst.msk [vmem:[#allocation2 + $0x20] sm:$0xff] %vm617, %v2957
      %2990 = vst.msk [vmem:[#allocation2 + $0x28] sm:$0xff] %vm617, %v2958
      %2991 = vst.msk [vmem:[#allocation2 + $0x30] sm:$0xff] %vm617, %v2959
      %2992 = vst.msk [vmem:[#allocation2 + $0x38] sm:$0xff] %vm617, %v2960
      %2993 = vst.msk [vmem:[#allocation2 + $0x40] sm:$0xff] %vm617, %v2961
      %2994 = vst.msk [vmem:[#allocation2 + $0x48] sm:$0xff] %vm617, %v2962
      %2995 = vst.msk [vmem:[#allocation2 + $0x50] sm:$0xff] %vm617, %v2963
      %2996 = vst.msk [vmem:[#allocation2 + $0x58] sm:$0xff] %vm617, %v2964
      %2997 = vst.msk [vmem:[#allocation2 + $0x60] sm:$0xff] %vm617, %v2965
      %2998 = vst.msk [vmem:[#allocation2 + $0x68] sm:$0xff] %vm617, %v2966
      %2999 = vst.msk [vmem:[#allocation2 + $0x70] sm:$0xff] %vm617, %v2967
      %3000 = vst.msk [vmem:[#allocation2 + $0x78] sm:$0xff] %vm617, %v2968
      %3001 = vst.msk [vmem:[#allocation2 + $0x80] sm:$0xff] %vm617, %v2969
      %3002 = vst.msk [vmem:[#allocation2 + $0x88] sm:$0xff] %vm617, %v2970
      %3003 = vst.msk [vmem:[#allocation2 + $0x90] sm:$0xff] %vm617, %v2971
      %3004 = vst.msk [vmem:[#allocation2 + $0x98] sm:$0xff] %vm617, %v2972
      %3005 = vst.msk [vmem:[#allocation2 + $0xa0] sm:$0xff] %vm617, %v2973
      %3006 = vst.msk [vmem:[#allocation2 + $0xa8] sm:$0xff] %vm617, %v2974
      %3007 = vst.msk [vmem:[#allocation2 + $0xb0] sm:$0xff] %vm617, %v2975
      %3008 = vst.msk [vmem:[#allocation2 + $0xb8] sm:$0xff] %vm617, %v2976
      %3009 = vst.msk [vmem:[#allocation2 + $0xc0] sm:$0xff] %vm617, %v2977
      %3010 = vst.msk [vmem:[#allocation2 + $0xc8] sm:$0xff] %vm617, %v2978
      %3011 = vst.msk [vmem:[#allocation2 + $0xd0] sm:$0xff] %vm617, %v2979
      %3012 = vst.msk [vmem:[#allocation2 + $0xd8] sm:$0xff] %vm617, %v2980
      %3013 = vst.msk [vmem:[#allocation2 + $0xe0] sm:$0xff] %vm617, %v2981
      %3014 = vst.msk [vmem:[#allocation2 + $0xe8] sm:$0xff] %vm617, %v2982
      %3015 = vst.msk [vmem:[#allocation2 + $0xf0] sm:$0xff] %vm617, %v2983
      %3016 = vst.msk [vmem:[#allocation2 + $0xf8] sm:$0xff] %vm617, %v2984
      %s3017 = scalar_lea.vmem %s1, 192
      %v3018 = vld [vmem:[%s3017] sm:$0xf]
      %v3019 = vld [vmem:[%s3017 + $0x4] sm:$0xf]
      %v3020 = vld [vmem:[%s3017 + $0x8] sm:$0xf]
      %v3021 = vld [vmem:[%s3017 + $0xc] sm:$0xf]
      %v3022 = vld [vmem:[%s3017 + $0x10] sm:$0xf]
      %v3023 = vld [vmem:[%s3017 + $0x14] sm:$0xf]
      %v3024 = vld [vmem:[%s3017 + $0x18] sm:$0xf]
      %v3025 = vld [vmem:[%s3017 + $0x1c] sm:$0xf]
      %v3034 = vunpack.c.l.b16 %v3018
      %v3035 = vunpack.c.l.b16 %v3019
      %v3036 = vunpack.c.l.b16 %v3020
      %v3037 = vunpack.c.l.b16 %v3021
      %v3038 = vunpack.c.l.b16 %v3022
      %v3039 = vunpack.c.l.b16 %v3023
      %v3040 = vunpack.c.l.b16 %v3024
      %v3041 = vunpack.c.l.b16 %v3025
      %v3042 = vpack.c.b16 %v3035, %v3034
      %v3043 = vpack.c.b16 %v3037, %v3036
      %v3044 = vpack.c.b16 %v3039, %v3038
      %v3045 = vpack.c.b16 %v3041, %v3040
      %3050 = vmatprep.subr.bf16.mxu0 0
      %3051 = vmatpush1.bf16.msra.mxu0 %v3042
      %3052 = vmatprep.subr.bf16.mxu0 0
      %3053 = vmatpush1.bf16.msra.mxu0 %v3043
      %3054 = vmatprep.subr.bf16.mxu0 0
      %3055 = vmatpush1.bf16.msra.mxu0 %v3044
      %3056 = vmatprep.subr.bf16.mxu0 0
      %3057 = vmatpush1.bf16.msra.mxu0 %v3045
      %3058 = vmatprep.subr.bf16.mxu0 0
      %3059 = vmatpush1.bf16.msra.mxu0 0
      %3060 = vmatprep.subr.bf16.mxu0 0
      %3061 = vmatpush1.bf16.msra.mxu0 0
      %3062 = vmatprep.subr.bf16.mxu0 0
      %3063 = vmatpush1.bf16.msra.mxu0 0
      %3064 = vmatprep.subr.bf16.mxu0 0
      %3065 = vmatpush1.bf16.msra.mxu0 0
      %3066 = vmatprep.subr.bf16.mxu0 0
      %3067 = vmatpush1.bf16.msra.mxu0 0
      %3068 = vmatprep.subr.bf16.mxu0 0
      %3069 = vmatpush1.bf16.msra.mxu0 0
      %3070 = vmatprep.subr.bf16.mxu0 0
      %3071 = vmatpush1.bf16.msra.mxu0 0
      %3072 = vmatprep.subr.bf16.mxu0 0
      %3073 = vmatpush1.bf16.msra.mxu0 0
      %3074 = vmatprep.subr.bf16.mxu0 0
      %3075 = vmatpush1.bf16.msra.mxu0 0
      %3076 = vmatprep.subr.bf16.mxu0 0
      %3077 = vmatpush1.bf16.msra.mxu0 0
      %3078 = vmatprep.subr.bf16.mxu0 0
      %3079 = vmatpush1.bf16.msra.mxu0 0
      %3080 = vmatprep.subr.bf16.mxu0 0
      %3081 = vmatpush1.bf16.msra.mxu0 0
      %3082 = vmatprep.mubr.bf16.mxu0 0
      %3083 = vmatmul.mubr.bf16.gmra.mrb[0].mxu0 %v619
      %v3084 = vpop.f32.mrb[0].mxu0
      %v3085 = vadd.f32 0.0, %v3084
      %v3086 = vpop.f32.mrb[0].mxu0
      %v3087 = vpop.f32.mrb[0].mxu0
      %v3088 = vadd.f32 0.0, %v3087
      %v3089 = vpop.f32.mrb[0].mxu0
      %3090 = vmatprep.mubr.bf16.mxu0 0
      %3091 = vmatmul.mubr.bf16.gmra.mrb[0].mxu0 %v622
      %v3092 = vpop.f32.mrb[0].mxu0
      %v3093 = vadd.f32 0.0, %v3092
      %v3094 = vpop.f32.mrb[0].mxu0
      %v3095 = vpop.f32.mrb[0].mxu0
      %v3096 = vadd.f32 0.0, %v3095
      %v3097 = vpop.f32.mrb[0].mxu0
      %3098 = vmatprep.mubr.bf16.mxu0 0
      %3099 = vmatmul.mubr.bf16.gmra.mrb[0].mxu0 %v625
      %v3100 = vpop.f32.mrb[0].mxu0
      %v3101 = vadd.f32 0.0, %v3100
      %v3102 = vpop.f32.mrb[0].mxu0
      %v3103 = vpop.f32.mrb[0].mxu0
      %v3104 = vadd.f32 0.0, %v3103
      %v3105 = vpop.f32.mrb[0].mxu0
      %3106 = vmatprep.mubr.bf16.mxu0 0
      %3107 = vmatmul.mubr.bf16.gmra.mrb[0].mxu0 %v628
      %v3108 = vpop.f32.mrb[0].mxu0
      %v3109 = vadd.f32 0.0, %v3108
      %v3110 = vpop.f32.mrb[0].mxu0
      %v3111 = vpop.f32.mrb[0].mxu0
      %v3112 = vadd.f32 0.0, %v3111
      %v3113 = vpop.f32.mrb[0].mxu0
      %3114 = vmatprep.mubr.bf16.mxu0 0
      %3115 = vmatmul.mubr.bf16.gmra.mrb[0].mxu0 %v631
      %v3116 = vpop.f32.mrb[0].mxu0
      %v3117 = vadd.f32 0.0, %v3116
      %v3118 = vpop.f32.mrb[0].mxu0
      %v3119 = vpop.f32.mrb[0].mxu0
      %v3120 = vadd.f32 0.0, %v3119
      %v3121 = vpop.f32.mrb[0].mxu0
      %3122 = vmatprep.mubr.bf16.mxu0 0
      %3123 = vmatmul.mubr.bf16.gmra.mrb[0].mxu0 %v634
      %v3124 = vpop.f32.mrb[0].mxu0
      %v3125 = vadd.f32 0.0, %v3124
      %v3126 = vpop.f32.mrb[0].mxu0
      %v3127 = vpop.f32.mrb[0].mxu0
      %v3128 = vadd.f32 0.0, %v3127
      %v3129 = vpop.f32.mrb[0].mxu0
      %3130 = vmatprep.mubr.bf16.mxu0 0
      %3131 = vmatmul.mubr.bf16.gmra.mrb[0].mxu0 %v637
      %v3132 = vpop.f32.mrb[0].mxu0
      %v3133 = vadd.f32 0.0, %v3132
      %v3134 = vpop.f32.mrb[0].mxu0
      %v3135 = vpop.f32.mrb[0].mxu0
      %v3136 = vadd.f32 0.0, %v3135
      %v3137 = vpop.f32.mrb[0].mxu0
      %3138 = vmatprep.mubr.bf16.mxu0 0
      %3139 = vmatmul.mubr.bf16.gmra.mrb[0].mxu0 %v640
      %v3140 = vpop.f32.mrb[0].mxu0
      %v3141 = vadd.f32 0.0, %v3140
      %v3142 = vpop.f32.mrb[0].mxu0
      %v3143 = vpop.f32.mrb[0].mxu0
      %v3144 = vadd.f32 0.0, %v3143
      %v3145 = vpop.f32.mrb[0].mxu0
      %3146 = vmatprep.mubr.bf16.mxu0 0
      %3147 = vmatmul.mubr.bf16.gmra.mrb[0].mxu0 %v643
      %v3148 = vpop.f32.mrb[0].mxu0
      %v3149 = vadd.f32 0.0, %v3148
      %v3150 = vpop.f32.mrb[0].mxu0
      %v3151 = vpop.f32.mrb[0].mxu0
      %v3152 = vadd.f32 0.0, %v3151
      %v3153 = vpop.f32.mrb[0].mxu0
      %3154 = vmatprep.mubr.bf16.mxu0 0
      %3155 = vmatmul.mubr.bf16.gmra.mrb[0].mxu0 %v646
      %v3156 = vpop.f32.mrb[0].mxu0
      %v3157 = vadd.f32 0.0, %v3156
      %v3158 = vpop.f32.mrb[0].mxu0
      %v3159 = vpop.f32.mrb[0].mxu0
      %v3160 = vadd.f32 0.0, %v3159
      %v3161 = vpop.f32.mrb[0].mxu0
      %3162 = vmatprep.mubr.bf16.mxu0 0
      %3163 = vmatmul.mubr.bf16.gmra.mrb[0].mxu0 %v649
      %v3164 = vpop.f32.mrb[0].mxu0
      %v3165 = vadd.f32 0.0, %v3164
      %v3166 = vpop.f32.mrb[0].mxu0
      %v3167 = vpop.f32.mrb[0].mxu0
      %v3168 = vadd.f32 0.0, %v3167
      %v3169 = vpop.f32.mrb[0].mxu0
      %3170 = vmatprep.mubr.bf16.mxu0 0
      %3171 = vmatmul.mubr.bf16.gmra.mrb[0].mxu0 %v652
      %v3172 = vpop.f32.mrb[0].mxu0
      %v3173 = vadd.f32 0.0, %v3172
      %v3174 = vpop.f32.mrb[0].mxu0
      %v3175 = vpop.f32.mrb[0].mxu0
      %v3176 = vadd.f32 0.0, %v3175
      %v3177 = vpop.f32.mrb[0].mxu0
      %3178 = vmatprep.mubr.bf16.mxu0 0
      %3179 = vmatmul.mubr.bf16.gmra.mrb[0].mxu0 %v655
      %v3180 = vpop.f32.mrb[0].mxu0
      %v3181 = vadd.f32 0.0, %v3180
      %v3182 = vpop.f32.mrb[0].mxu0
      %v3183 = vpop.f32.mrb[0].mxu0
      %v3184 = vadd.f32 0.0, %v3183
      %v3185 = vpop.f32.mrb[0].mxu0
      %3186 = vmatprep.mubr.bf16.mxu0 0
      %3187 = vmatmul.mubr.bf16.gmra.mrb[0].mxu0 %v658
      %v3188 = vpop.f32.mrb[0].mxu0
      %v3189 = vadd.f32 0.0, %v3188
      %v3190 = vpop.f32.mrb[0].mxu0
      %v3191 = vpop.f32.mrb[0].mxu0
      %v3192 = vadd.f32 0.0, %v3191
      %v3193 = vpop.f32.mrb[0].mxu0
      %3194 = vmatprep.mubr.bf16.mxu0 0
      %3195 = vmatmul.mubr.bf16.gmra.mrb[0].mxu0 %v661
      %v3196 = vpop.f32.mrb[0].mxu0
      %v3197 = vadd.f32 0.0, %v3196
      %v3198 = vpop.f32.mrb[0].mxu0
      %v3199 = vpop.f32.mrb[0].mxu0
      %v3200 = vadd.f32 0.0, %v3199
      %v3201 = vpop.f32.mrb[0].mxu0
      %3202 = vmatprep.mubr.bf16.mxu0 0
      %3203 = vmatmul.mubr.bf16.gmra.mrb[0].mxu0 %v664
      %v3204 = vpop.f32.mrb[0].mxu0
      %v3205 = vadd.f32 0.0, %v3204
      %v3206 = vpop.f32.mrb[0].mxu0
      %v3207 = vpop.f32.mrb[0].mxu0
      %v3208 = vadd.f32 0.0, %v3207
      %v3209 = vpop.f32.mrb[0].mxu0
      %3210 = vdwg.mxu0
      %v3211 = vrot.slane %v3085, 7
      %v3212 = vrot.slane %v3088, 7
      %v3213 = vrot.slane %v3093, 7
      %v3214 = vrot.slane %v3096, 7
      %v3215 = vrot.slane %v3101, 7
      %v3216 = vrot.slane %v3104, 7
      %v3217 = vrot.slane %v3109, 7
      %v3218 = vrot.slane %v3112, 7
      %v3219 = vrot.slane %v3117, 7
      %v3220 = vrot.slane %v3120, 7
      %v3221 = vrot.slane %v3125, 7
      %v3222 = vrot.slane %v3128, 7
      %v3223 = vrot.slane %v3133, 7
      %v3224 = vrot.slane %v3136, 7
      %v3225 = vrot.slane %v3141, 7
      %v3226 = vrot.slane %v3144, 7
      %v3227 = vrot.slane %v3149, 7
      %v3228 = vrot.slane %v3152, 7
      %v3229 = vrot.slane %v3157, 7
      %v3230 = vrot.slane %v3160, 7
      %v3231 = vrot.slane %v3165, 7
      %v3232 = vrot.slane %v3168, 7
      %v3233 = vrot.slane %v3173, 7
      %v3234 = vrot.slane %v3176, 7
      %v3235 = vrot.slane %v3181, 7
      %v3236 = vrot.slane %v3184, 7
      %v3237 = vrot.slane %v3189, 7
      %v3238 = vrot.slane %v3192, 7
      %v3239 = vrot.slane %v3197, 7
      %v3240 = vrot.slane %v3200, 7
      %v3241 = vrot.slane %v3205, 7
      %v3242 = vrot.slane %v3208, 7
      %v3243 = vsel %vm861, %v3241, %v3242
      %v3244 = vsel %vm861, %v3240, %v3241
      %v3245 = vsel %vm861, %v3239, %v3240
      %v3246 = vsel %vm861, %v3238, %v3239
      %v3247 = vsel %vm861, %v3237, %v3238
      %v3248 = vsel %vm861, %v3236, %v3237
      %v3249 = vsel %vm861, %v3235, %v3236
      %v3250 = vsel %vm861, %v3234, %v3235
      %v3251 = vsel %vm861, %v3233, %v3234
      %v3252 = vsel %vm861, %v3232, %v3233
      %v3253 = vsel %vm861, %v3231, %v3232
      %v3254 = vsel %vm861, %v3230, %v3231
      %v3255 = vsel %vm861, %v3229, %v3230
      %v3256 = vsel %vm861, %v3228, %v3229
      %v3257 = vsel %vm861, %v3227, %v3228
      %v3258 = vsel %vm861, %v3226, %v3227
      %v3259 = vsel %vm861, %v3225, %v3226
      %v3260 = vsel %vm861, %v3224, %v3225
      %v3261 = vsel %vm861, %v3223, %v3224
      %v3262 = vsel %vm861, %v3222, %v3223
      %v3263 = vsel %vm861, %v3221, %v3222
      %v3264 = vsel %vm861, %v3220, %v3221
      %v3265 = vsel %vm861, %v3219, %v3220
      %v3266 = vsel %vm861, %v3218, %v3219
      %v3267 = vsel %vm861, %v3217, %v3218
      %v3268 = vsel %vm861, %v3216, %v3217
      %v3269 = vsel %vm861, %v3215, %v3216
      %v3270 = vsel %vm861, %v3214, %v3215
      %v3271 = vsel %vm861, %v3213, %v3214
      %v3272 = vsel %vm861, %v3212, %v3213
      %v3273 = vsel %vm861, %v3211, %v3212
      %v3274 = vsel %vm861, %v3242, %v3211
      %3276 = vset.pattern.permute.xlu0 0
      %3277 = vperm.xlu0 %3276, %v487
      %v3278 = vpop.permute.xlu0 %3277
      %3281 = vset.pattern.permute.xlu0 0
      %3282 = vperm.xlu0 %3281, %v488
      %v3283 = vpop.permute.xlu0 %3282
      %3286 = vset.pattern.permute.xlu0 0
      %3287 = vperm.xlu0 %3286, %v489
      %v3288 = vpop.permute.xlu0 %3287
      %3291 = vset.pattern.permute.xlu0 0
      %3292 = vperm.xlu0 %3291, %v490
      %v3293 = vpop.permute.xlu0 %3292
      %3296 = vset.pattern.permute.xlu0 0
      %3297 = vperm.xlu0 %3296, %v491
      %v3298 = vpop.permute.xlu0 %3297
      %3301 = vset.pattern.permute.xlu0 0
      %3302 = vperm.xlu0 %3301, %v492
      %v3303 = vpop.permute.xlu0 %3302
      %3306 = vset.pattern.permute.xlu0 0
      %3307 = vperm.xlu0 %3306, %v493
      %v3308 = vpop.permute.xlu0 %3307
      %3311 = vset.pattern.permute.xlu0 0
      %3312 = vperm.xlu0 %3311, %v494
      %v3313 = vpop.permute.xlu0 %3312
      %3316 = vset.pattern.permute.xlu0 0
      %3317 = vperm.xlu0 %3316, %v495
      %v3318 = vpop.permute.xlu0 %3317
      %3321 = vset.pattern.permute.xlu0 0
      %3322 = vperm.xlu0 %3321, %v496
      %v3323 = vpop.permute.xlu0 %3322
      %3326 = vset.pattern.permute.xlu0 0
      %3327 = vperm.xlu0 %3326, %v497
      %v3328 = vpop.permute.xlu0 %3327
      %3331 = vset.pattern.permute.xlu0 0
      %3332 = vperm.xlu0 %3331, %v498
      %v3333 = vpop.permute.xlu0 %3332
      %3336 = vset.pattern.permute.xlu0 0
      %3337 = vperm.xlu0 %3336, %v499
      %v3338 = vpop.permute.xlu0 %3337
      %3341 = vset.pattern.permute.xlu0 0
      %3342 = vperm.xlu0 %3341, %v500
      %v3343 = vpop.permute.xlu0 %3342
      %3346 = vset.pattern.permute.xlu0 0
      %3347 = vperm.xlu0 %3346, %v501
      %v3348 = vpop.permute.xlu0 %3347
      %3351 = vset.pattern.permute.xlu0 0
      %3352 = vperm.xlu0 %3351, %v502
      %v3353 = vpop.permute.xlu0 %3352
      %3356 = vset.pattern.permute.xlu0 0
      %3357 = vperm.xlu0 %3356, %v503
      %v3358 = vpop.permute.xlu0 %3357
      %3361 = vset.pattern.permute.xlu0 0
      %3362 = vperm.xlu0 %3361, %v504
      %v3363 = vpop.permute.xlu0 %3362
      %3366 = vset.pattern.permute.xlu0 0
      %3367 = vperm.xlu0 %3366, %v505
      %v3368 = vpop.permute.xlu0 %3367
      %3371 = vset.pattern.permute.xlu0 0
      %3372 = vperm.xlu0 %3371, %v506
      %v3373 = vpop.permute.xlu0 %3372
      %3376 = vset.pattern.permute.xlu0 0
      %3377 = vperm.xlu0 %3376, %v507
      %v3378 = vpop.permute.xlu0 %3377
      %3381 = vset.pattern.permute.xlu0 0
      %3382 = vperm.xlu0 %3381, %v508
      %v3383 = vpop.permute.xlu0 %3382
      %3386 = vset.pattern.permute.xlu0 0
      %3387 = vperm.xlu0 %3386, %v509
      %v3388 = vpop.permute.xlu0 %3387
      %3391 = vset.pattern.permute.xlu0 0
      %3392 = vperm.xlu0 %3391, %v510
      %v3393 = vpop.permute.xlu0 %3392
      %3396 = vset.pattern.permute.xlu0 0
      %3397 = vperm.xlu0 %3396, %v511
      %v3398 = vpop.permute.xlu0 %3397
      %3401 = vset.pattern.permute.xlu0 0
      %3402 = vperm.xlu0 %3401, %v512
      %v3403 = vpop.permute.xlu0 %3402
      %3406 = vset.pattern.permute.xlu0 0
      %3407 = vperm.xlu0 %3406, %v513
      %v3408 = vpop.permute.xlu0 %3407
      %3411 = vset.pattern.permute.xlu0 0
      %3412 = vperm.xlu0 %3411, %v514
      %v3413 = vpop.permute.xlu0 %3412
      %3416 = vset.pattern.permute.xlu0 0
      %3417 = vperm.xlu0 %3416, %v515
      %v3418 = vpop.permute.xlu0 %3417
      %3421 = vset.pattern.permute.xlu0 0
      %3422 = vperm.xlu0 %3421, %v516
      %v3423 = vpop.permute.xlu0 %3422
      %3426 = vset.pattern.permute.xlu0 0
      %3427 = vperm.xlu0 %3426, %v517
      %v3428 = vpop.permute.xlu0 %3427
      %3431 = vset.pattern.permute.xlu0 0
      %3432 = vperm.xlu0 %3431, %v518
      %v3433 = vpop.permute.xlu0 %3432
      %v3435 = vmul.f32 %v3272, %v3278
      %v3436 = vmul.f32 %v3271, %v3283
      %v3437 = vmul.f32 %v3270, %v3288
      %v3438 = vmul.f32 %v3269, %v3293
      %v3439 = vmul.f32 %v3268, %v3298
      %v3440 = vmul.f32 %v3267, %v3303
      %v3441 = vmul.f32 %v3266, %v3308
      %v3442 = vmul.f32 %v3265, %v3313
      %v3443 = vmul.f32 %v3264, %v3318
      %v3444 = vmul.f32 %v3263, %v3323
      %v3445 = vmul.f32 %v3262, %v3328
      %v3446 = vmul.f32 %v3261, %v3333
      %v3447 = vmul.f32 %v3260, %v3338
      %v3448 = vmul.f32 %v3259, %v3343
      %v3449 = vmul.f32 %v3258, %v3348
      %v3450 = vmul.f32 %v3257, %v3353
      %v3451 = vmul.f32 %v3256, %v3358
      %v3452 = vmul.f32 %v3255, %v3363
      %v3453 = vmul.f32 %v3254, %v3368
      %v3454 = vmul.f32 %v3253, %v3373
      %v3455 = vmul.f32 %v3252, %v3378
      %v3456 = vmul.f32 %v3251, %v3383
      %v3457 = vmul.f32 %v3250, %v3388
      %v3458 = vmul.f32 %v3249, %v3393
      %v3459 = vmul.f32 %v3248, %v3398
      %v3460 = vmul.f32 %v3247, %v3403
      %v3461 = vmul.f32 %v3246, %v3408
      %v3462 = vmul.f32 %v3245, %v3413
      %v3463 = vmul.f32 %v3244, %v3418
      %v3464 = vmul.f32 %v3243, %v3423
      %v3465 = vmul.f32 %v3274, %v3428
      %v3466 = vmul.f32 %v3273, %v3433
      %v3467 = vmul.f32 %v3435, %v1089
      %v3468 = vmul.f32 %v3436, %v1094
      %v3469 = vmul.f32 %v3437, %v1099
      %v3470 = vmul.f32 %v3438, %v1104
      %v3471 = vmul.f32 %v3439, %v1109
      %v3472 = vmul.f32 %v3440, %v1114
      %v3473 = vmul.f32 %v3441, %v1119
      %v3474 = vmul.f32 %v3442, %v1124
      %v3475 = vmul.f32 %v3443, %v1129
      %v3476 = vmul.f32 %v3444, %v1134
      %v3477 = vmul.f32 %v3445, %v1139
      %v3478 = vmul.f32 %v3446, %v1144
      %v3479 = vmul.f32 %v3447, %v1149
      %v3480 = vmul.f32 %v3448, %v1154
      %v3481 = vmul.f32 %v3449, %v1159
      %v3482 = vmul.f32 %v3450, %v1164
      %v3483 = vmul.f32 %v3451, %v1169
      %v3484 = vmul.f32 %v3452, %v1174
      %v3485 = vmul.f32 %v3453, %v1179
      %v3486 = vmul.f32 %v3454, %v1184
      %v3487 = vmul.f32 %v3455, %v1189
      %v3488 = vmul.f32 %v3456, %v1194
      %v3489 = vmul.f32 %v3457, %v1199
      %v3490 = vmul.f32 %v3458, %v1204
      %v3491 = vmul.f32 %v3459, %v1209
      %v3492 = vmul.f32 %v3460, %v1214
      %v3493 = vmul.f32 %v3461, %v1219
      %v3494 = vmul.f32 %v3462, %v1224
      %v3495 = vmul.f32 %v3463, %v1229
      %v3496 = vmul.f32 %v3464, %v1234
      %v3497 = vmul.f32 %v3465, %v1239
      %v3498 = vmul.f32 %v3466, %v1244
      %s3499 = scalar_lea.vmem %s1, 224
      %v3500 = vld [vmem:[%s3499] sm:$0xf]
      %v3501 = vld [vmem:[%s3499 + $0x4] sm:$0xf]
      %v3502 = vld [vmem:[%s3499 + $0x8] sm:$0xf]
      %v3503 = vld [vmem:[%s3499 + $0xc] sm:$0xf]
      %v3504 = vld [vmem:[%s3499 + $0x10] sm:$0xf]
      %v3505 = vld [vmem:[%s3499 + $0x14] sm:$0xf]
      %v3506 = vld [vmem:[%s3499 + $0x18] sm:$0xf]
      %v3507 = vld [vmem:[%s3499 + $0x1c] sm:$0xf]
      %v3516 = vunpack.c.l.b16 %v3500
      %v3517 = vunpack.c.l.b16 %v3501
      %v3518 = vunpack.c.l.b16 %v3502
      %v3519 = vunpack.c.l.b16 %v3503
      %v3520 = vunpack.c.l.b16 %v3504
      %v3521 = vunpack.c.l.b16 %v3505
      %v3522 = vunpack.c.l.b16 %v3506
      %v3523 = vunpack.c.l.b16 %v3507
      %v3524 = vpack.c.b16 %v3517, %v3516
      %v3525 = vpack.c.b16 %v3519, %v3518
      %v3526 = vpack.c.b16 %v3521, %v3520
      %v3527 = vpack.c.b16 %v3523, %v3522
      %3532 = vmatprep.subr.bf16.mxu0 0
      %3533 = vmatpush1.bf16.msra.mxu0 %v3524
      %3534 = vmatprep.subr.bf16.mxu0 0
      %3535 = vmatpush1.bf16.msra.mxu0 %v3525
      %3536 = vmatprep.subr.bf16.mxu0 0
      %3537 = vmatpush1.bf16.msra.mxu0 %v3526
      %3538 = vmatprep.subr.bf16.mxu0 0
      %3539 = vmatpush1.bf16.msra.mxu0 %v3527
      %3540 = vmatprep.subr.bf16.mxu0 0
      %3541 = vmatpush1.bf16.msra.mxu0 0
      %3542 = vmatprep.subr.bf16.mxu0 0
      %3543 = vmatpush1.bf16.msra.mxu0 0
      %3544 = vmatprep.subr.bf16.mxu0 0
      %3545 = vmatpush1.bf16.msra.mxu0 0
      %3546 = vmatprep.subr.bf16.mxu0 0
      %3547 = vmatpush1.bf16.msra.mxu0 0
      %3548 = vmatprep.subr.bf16.mxu0 0
      %3549 = vmatpush1.bf16.msra.mxu0 0
      %3550 = vmatprep.subr.bf16.mxu0 0
      %3551 = vmatpush1.bf16.msra.mxu0 0
      %3552 = vmatprep.subr.bf16.mxu0 0
      %3553 = vmatpush1.bf16.msra.mxu0 0
      %3554 = vmatprep.subr.bf16.mxu0 0
      %3555 = vmatpush1.bf16.msra.mxu0 0
      %3556 = vmatprep.subr.bf16.mxu0 0
      %3557 = vmatpush1.bf16.msra.mxu0 0
      %3558 = vmatprep.subr.bf16.mxu0 0
      %3559 = vmatpush1.bf16.msra.mxu0 0
      %3560 = vmatprep.subr.bf16.mxu0 0
      %3561 = vmatpush1.bf16.msra.mxu0 0
      %3562 = vmatprep.subr.bf16.mxu0 0
      %3563 = vmatpush1.bf16.msra.mxu0 0
      %3564 = vmatprep.mubr.bf16.mxu0 0
      %3565 = vmatmul.mubr.bf16.gmra.mrb[0].mxu0 %v619
      %v3566 = vpop.f32.mrb[0].mxu0
      %v3567 = vadd.f32 0.0, %v3566
      %v3568 = vpop.f32.mrb[0].mxu0
      %v3569 = vpop.f32.mrb[0].mxu0
      %v3570 = vadd.f32 0.0, %v3569
      %v3571 = vpop.f32.mrb[0].mxu0
      %3572 = vmatprep.mubr.bf16.mxu0 0
      %3573 = vmatmul.mubr.bf16.gmra.mrb[0].mxu0 %v622
      %v3574 = vpop.f32.mrb[0].mxu0
      %v3575 = vadd.f32 0.0, %v3574
      %v3576 = vpop.f32.mrb[0].mxu0
      %v3577 = vpop.f32.mrb[0].mxu0
      %v3578 = vadd.f32 0.0, %v3577
      %v3579 = vpop.f32.mrb[0].mxu0
      %3580 = vmatprep.mubr.bf16.mxu0 0
      %3581 = vmatmul.mubr.bf16.gmra.mrb[0].mxu0 %v625
      %v3582 = vpop.f32.mrb[0].mxu0
      %v3583 = vadd.f32 0.0, %v3582
      %v3584 = vpop.f32.mrb[0].mxu0
      %v3585 = vpop.f32.mrb[0].mxu0
      %v3586 = vadd.f32 0.0, %v3585
      %v3587 = vpop.f32.mrb[0].mxu0
      %3588 = vmatprep.mubr.bf16.mxu0 0
      %3589 = vmatmul.mubr.bf16.gmra.mrb[0].mxu0 %v628
      %v3590 = vpop.f32.mrb[0].mxu0
      %v3591 = vadd.f32 0.0, %v3590
      %v3592 = vpop.f32.mrb[0].mxu0
      %v3593 = vpop.f32.mrb[0].mxu0
      %v3594 = vadd.f32 0.0, %v3593
      %v3595 = vpop.f32.mrb[0].mxu0
      %3596 = vmatprep.mubr.bf16.mxu0 0
      %3597 = vmatmul.mubr.bf16.gmra.mrb[0].mxu0 %v631
      %v3598 = vpop.f32.mrb[0].mxu0
      %v3599 = vadd.f32 0.0, %v3598
      %v3600 = vpop.f32.mrb[0].mxu0
      %v3601 = vpop.f32.mrb[0].mxu0
      %v3602 = vadd.f32 0.0, %v3601
      %v3603 = vpop.f32.mrb[0].mxu0
      %3604 = vmatprep.mubr.bf16.mxu0 0
      %3605 = vmatmul.mubr.bf16.gmra.mrb[0].mxu0 %v634
      %v3606 = vpop.f32.mrb[0].mxu0
      %v3607 = vadd.f32 0.0, %v3606
      %v3608 = vpop.f32.mrb[0].mxu0
      %v3609 = vpop.f32.mrb[0].mxu0
      %v3610 = vadd.f32 0.0, %v3609
      %v3611 = vpop.f32.mrb[0].mxu0
      %3612 = vmatprep.mubr.bf16.mxu0 0
      %3613 = vmatmul.mubr.bf16.gmra.mrb[0].mxu0 %v637
      %v3614 = vpop.f32.mrb[0].mxu0
      %v3615 = vadd.f32 0.0, %v3614
      %v3616 = vpop.f32.mrb[0].mxu0
      %v3617 = vpop.f32.mrb[0].mxu0
      %v3618 = vadd.f32 0.0, %v3617
      %v3619 = vpop.f32.mrb[0].mxu0
      %3620 = vmatprep.mubr.bf16.mxu0 0
      %3621 = vmatmul.mubr.bf16.gmra.mrb[0].mxu0 %v640
      %v3622 = vpop.f32.mrb[0].mxu0
      %v3623 = vadd.f32 0.0, %v3622
      %v3624 = vpop.f32.mrb[0].mxu0
      %v3625 = vpop.f32.mrb[0].mxu0
      %v3626 = vadd.f32 0.0, %v3625
      %v3627 = vpop.f32.mrb[0].mxu0
      %3628 = vmatprep.mubr.bf16.mxu0 0
      %3629 = vmatmul.mubr.bf16.gmra.mrb[0].mxu0 %v643
      %v3630 = vpop.f32.mrb[0].mxu0
      %v3631 = vadd.f32 0.0, %v3630
      %v3632 = vpop.f32.mrb[0].mxu0
      %v3633 = vpop.f32.mrb[0].mxu0
      %v3634 = vadd.f32 0.0, %v3633
      %v3635 = vpop.f32.mrb[0].mxu0
      %3636 = vmatprep.mubr.bf16.mxu0 0
      %3637 = vmatmul.mubr.bf16.gmra.mrb[0].mxu0 %v646
      %v3638 = vpop.f32.mrb[0].mxu0
      %v3639 = vadd.f32 0.0, %v3638
      %v3640 = vpop.f32.mrb[0].mxu0
      %v3641 = vpop.f32.mrb[0].mxu0
      %v3642 = vadd.f32 0.0, %v3641
      %v3643 = vpop.f32.mrb[0].mxu0
      %3644 = vmatprep.mubr.bf16.mxu0 0
      %3645 = vmatmul.mubr.bf16.gmra.mrb[0].mxu0 %v649
      %v3646 = vpop.f32.mrb[0].mxu0
      %v3647 = vadd.f32 0.0, %v3646
      %v3648 = vpop.f32.mrb[0].mxu0
      %v3649 = vpop.f32.mrb[0].mxu0
      %v3650 = vadd.f32 0.0, %v3649
      %v3651 = vpop.f32.mrb[0].mxu0
      %3652 = vmatprep.mubr.bf16.mxu0 0
      %3653 = vmatmul.mubr.bf16.gmra.mrb[0].mxu0 %v652
      %v3654 = vpop.f32.mrb[0].mxu0
      %v3655 = vadd.f32 0.0, %v3654
      %v3656 = vpop.f32.mrb[0].mxu0
      %v3657 = vpop.f32.mrb[0].mxu0
      %v3658 = vadd.f32 0.0, %v3657
      %v3659 = vpop.f32.mrb[0].mxu0
      %3660 = vmatprep.mubr.bf16.mxu0 0
      %3661 = vmatmul.mubr.bf16.gmra.mrb[0].mxu0 %v655
      %v3662 = vpop.f32.mrb[0].mxu0
      %v3663 = vadd.f32 0.0, %v3662
      %v3664 = vpop.f32.mrb[0].mxu0
      %v3665 = vpop.f32.mrb[0].mxu0
      %v3666 = vadd.f32 0.0, %v3665
      %v3667 = vpop.f32.mrb[0].mxu0
      %3668 = vmatprep.mubr.bf16.mxu0 0
      %3669 = vmatmul.mubr.bf16.gmra.mrb[0].mxu0 %v658
      %v3670 = vpop.f32.mrb[0].mxu0
      %v3671 = vadd.f32 0.0, %v3670
      %v3672 = vpop.f32.mrb[0].mxu0
      %v3673 = vpop.f32.mrb[0].mxu0
      %v3674 = vadd.f32 0.0, %v3673
      %v3675 = vpop.f32.mrb[0].mxu0
      %3676 = vmatprep.mubr.bf16.mxu0 0
      %3677 = vmatmul.mubr.bf16.gmra.mrb[0].mxu0 %v661
      %v3678 = vpop.f32.mrb[0].mxu0
      %v3679 = vadd.f32 0.0, %v3678
      %v3680 = vpop.f32.mrb[0].mxu0
      %v3681 = vpop.f32.mrb[0].mxu0
      %v3682 = vadd.f32 0.0, %v3681
      %v3683 = vpop.f32.mrb[0].mxu0
      %3684 = vmatprep.mubr.bf16.mxu0 0
      %3685 = vmatmul.mubr.bf16.gmra.mrb[0].mxu0 %v664
      %v3686 = vpop.f32.mrb[0].mxu0
      %v3687 = vadd.f32 0.0, %v3686
      %v3688 = vpop.f32.mrb[0].mxu0
      %v3689 = vpop.f32.mrb[0].mxu0
      %v3690 = vadd.f32 0.0, %v3689
      %v3691 = vpop.f32.mrb[0].mxu0
      %3692 = vdwg.mxu0
      %v3693 = vmul.f32 %v3575, %v3278
      %v3694 = vmul.f32 %v3578, %v3283
      %v3695 = vmul.f32 %v3583, %v3288
      %v3696 = vmul.f32 %v3586, %v3293
      %v3697 = vmul.f32 %v3591, %v3298
      %v3698 = vmul.f32 %v3594, %v3303
      %v3699 = vmul.f32 %v3599, %v3308
      %v3700 = vmul.f32 %v3602, %v3313
      %v3701 = vmul.f32 %v3607, %v3318
      %v3702 = vmul.f32 %v3610, %v3323
      %v3703 = vmul.f32 %v3615, %v3328
      %v3704 = vmul.f32 %v3618, %v3333
      %v3705 = vmul.f32 %v3623, %v3338
      %v3706 = vmul.f32 %v3626, %v3343
      %v3707 = vmul.f32 %v3631, %v3348
      %v3708 = vmul.f32 %v3634, %v3353
      %v3709 = vmul.f32 %v3639, %v3358
      %v3710 = vmul.f32 %v3642, %v3363
      %v3711 = vmul.f32 %v3647, %v3368
      %v3712 = vmul.f32 %v3650, %v3373
      %v3713 = vmul.f32 %v3655, %v3378
      %v3714 = vmul.f32 %v3658, %v3383
      %v3715 = vmul.f32 %v3663, %v3388
      %v3716 = vmul.f32 %v3666, %v3393
      %v3717 = vmul.f32 %v3671, %v3398
      %v3718 = vmul.f32 %v3674, %v3403
      %v3719 = vmul.f32 %v3679, %v3408
      %v3720 = vmul.f32 %v3682, %v3413
      %v3721 = vmul.f32 %v3687, %v3418
      %v3722 = vmul.f32 %v3690, %v3423
      %v3723 = vmul.f32 %v3567, %v3428
      %v3724 = vmul.f32 %v3570, %v3433
      %v3725 = vadd.f32 %v3467, %v3693
      %v3726 = vadd.f32 %v3468, %v3694
      %v3727 = vadd.f32 %v3469, %v3695
      %v3728 = vadd.f32 %v3470, %v3696
      %v3729 = vadd.f32 %v3471, %v3697
      %v3730 = vadd.f32 %v3472, %v3698
      %v3731 = vadd.f32 %v3473, %v3699
      %v3732 = vadd.f32 %v3474, %v3700
      %v3733 = vadd.f32 %v3475, %v3701
      %v3734 = vadd.f32 %v3476, %v3702
      %v3735 = vadd.f32 %v3477, %v3703
      %v3736 = vadd.f32 %v3478, %v3704
      %v3737 = vadd.f32 %v3479, %v3705
      %v3738 = vadd.f32 %v3480, %v3706
      %v3739 = vadd.f32 %v3481, %v3707
      %v3740 = vadd.f32 %v3482, %v3708
      %v3741 = vadd.f32 %v3483, %v3709
      %v3742 = vadd.f32 %v3484, %v3710
      %v3743 = vadd.f32 %v3485, %v3711
      %v3744 = vadd.f32 %v3486, %v3712
      %v3745 = vadd.f32 %v3487, %v3713
      %v3746 = vadd.f32 %v3488, %v3714
      %v3747 = vadd.f32 %v3489, %v3715
      %v3748 = vadd.f32 %v3490, %v3716
      %v3749 = vadd.f32 %v3491, %v3717
      %v3750 = vadd.f32 %v3492, %v3718
      %v3751 = vadd.f32 %v3493, %v3719
      %v3752 = vadd.f32 %v3494, %v3720
      %v3753 = vadd.f32 %v3495, %v3721
      %v3754 = vadd.f32 %v3496, %v3722
      %v3755 = vadd.f32 %v3497, %v3723
      %v3756 = vadd.f32 %v3498, %v3724
      %s3757 = scalar_lea.vmem %s1, 256
      %v3758 = vld [vmem:[%s3757] sm:$0xf]
      %v3759 = vld [vmem:[%s3757 + $0x4] sm:$0xf]
      %v3760 = vld [vmem:[%s3757 + $0x8] sm:$0xf]
      %v3761 = vld [vmem:[%s3757 + $0xc] sm:$0xf]
      %v3762 = vld [vmem:[%s3757 + $0x10] sm:$0xf]
      %v3763 = vld [vmem:[%s3757 + $0x14] sm:$0xf]
      %v3764 = vld [vmem:[%s3757 + $0x18] sm:$0xf]
      %v3765 = vld [vmem:[%s3757 + $0x1c] sm:$0xf]
      %v3774 = vunpack.c.l.b16 %v3758
      %v3775 = vunpack.c.l.b16 %v3759
      %v3776 = vunpack.c.l.b16 %v3760
      %v3777 = vunpack.c.l.b16 %v3761
      %v3778 = vunpack.c.l.b16 %v3762
      %v3779 = vunpack.c.l.b16 %v3763
      %v3780 = vunpack.c.l.b16 %v3764
      %v3781 = vunpack.c.l.b16 %v3765
      %v3782 = vpack.c.b16 %v3775, %v3774
      %v3783 = vpack.c.b16 %v3777, %v3776
      %v3784 = vpack.c.b16 %v3779, %v3778
      %v3785 = vpack.c.b16 %v3781, %v3780
      %3790 = vmatprep.subr.bf16.mxu0 0
      %3791 = vmatpush1.bf16.msra.mxu0 %v3782
      %3792 = vmatprep.subr.bf16.mxu0 0
      %3793 = vmatpush1.bf16.msra.mxu0 %v3783
      %3794 = vmatprep.subr.bf16.mxu0 0
      %3795 = vmatpush1.bf16.msra.mxu0 %v3784
      %3796 = vmatprep.subr.bf16.mxu0 0
      %3797 = vmatpush1.bf16.msra.mxu0 %v3785
      %3798 = vmatprep.subr.bf16.mxu0 0
      %3799 = vmatpush1.bf16.msra.mxu0 0
      %3800 = vmatprep.subr.bf16.mxu0 0
      %3801 = vmatpush1.bf16.msra.mxu0 0
      %3802 = vmatprep.subr.bf16.mxu0 0
      %3803 = vmatpush1.bf16.msra.mxu0 0
      %3804 = vmatprep.subr.bf16.mxu0 0
      %3805 = vmatpush1.bf16.msra.mxu0 0
      %3806 = vmatprep.subr.bf16.mxu0 0
      %3807 = vmatpush1.bf16.msra.mxu0 0
      %3808 = vmatprep.subr.bf16.mxu0 0
      %3809 = vmatpush1.bf16.msra.mxu0 0
      %3810 = vmatprep.subr.bf16.mxu0 0
      %3811 = vmatpush1.bf16.msra.mxu0 0
      %3812 = vmatprep.subr.bf16.mxu0 0
      %3813 = vmatpush1.bf16.msra.mxu0 0
      %3814 = vmatprep.subr.bf16.mxu0 0
      %3815 = vmatpush1.bf16.msra.mxu0 0
      %3816 = vmatprep.subr.bf16.mxu0 0
      %3817 = vmatpush1.bf16.msra.mxu0 0
      %3818 = vmatprep.subr.bf16.mxu0 0
      %3819 = vmatpush1.bf16.msra.mxu0 0
      %3820 = vmatprep.subr.bf16.mxu0 0
      %3821 = vmatpush1.bf16.msra.mxu0 0
      %3822 = vmatprep.mubr.bf16.mxu0 0
      %3823 = vmatmul.mubr.bf16.gmra.mrb[0].mxu0 %v619
      %v3824 = vpop.f32.mrb[0].mxu0
      %v3825 = vadd.f32 0.0, %v3824
      %v3826 = vpop.f32.mrb[0].mxu0
      %v3827 = vpop.f32.mrb[0].mxu0
      %v3828 = vadd.f32 0.0, %v3827
      %v3829 = vpop.f32.mrb[0].mxu0
      %3830 = vmatprep.mubr.bf16.mxu0 0
      %3831 = vmatmul.mubr.bf16.gmra.mrb[0].mxu0 %v622
      %v3832 = vpop.f32.mrb[0].mxu0
      %v3833 = vadd.f32 0.0, %v3832
      %v3834 = vpop.f32.mrb[0].mxu0
      %v3835 = vpop.f32.mrb[0].mxu0
      %v3836 = vadd.f32 0.0, %v3835
      %v3837 = vpop.f32.mrb[0].mxu0
      %3838 = vmatprep.mubr.bf16.mxu0 0
      %3839 = vmatmul.mubr.bf16.gmra.mrb[0].mxu0 %v625
      %v3840 = vpop.f32.mrb[0].mxu0
      %v3841 = vadd.f32 0.0, %v3840
      %v3842 = vpop.f32.mrb[0].mxu0
      %v3843 = vpop.f32.mrb[0].mxu0
      %v3844 = vadd.f32 0.0, %v3843
      %v3845 = vpop.f32.mrb[0].mxu0
      %3846 = vmatprep.mubr.bf16.mxu0 0
      %3847 = vmatmul.mubr.bf16.gmra.mrb[0].mxu0 %v628
      %v3848 = vpop.f32.mrb[0].mxu0
      %v3849 = vadd.f32 0.0, %v3848
      %v3850 = vpop.f32.mrb[0].mxu0
      %v3851 = vpop.f32.mrb[0].mxu0
      %v3852 = vadd.f32 0.0, %v3851
      %v3853 = vpop.f32.mrb[0].mxu0
      %3854 = vmatprep.mubr.bf16.mxu0 0
      %3855 = vmatmul.mubr.bf16.gmra.mrb[0].mxu0 %v631
      %v3856 = vpop.f32.mrb[0].mxu0
      %v3857 = vadd.f32 0.0, %v3856
      %v3858 = vpop.f32.mrb[0].mxu0
      %v3859 = vpop.f32.mrb[0].mxu0
      %v3860 = vadd.f32 0.0, %v3859
      %v3861 = vpop.f32.mrb[0].mxu0
      %3862 = vmatprep.mubr.bf16.mxu0 0
      %3863 = vmatmul.mubr.bf16.gmra.mrb[0].mxu0 %v634
      %v3864 = vpop.f32.mrb[0].mxu0
      %v3865 = vadd.f32 0.0, %v3864
      %v3866 = vpop.f32.mrb[0].mxu0
      %v3867 = vpop.f32.mrb[0].mxu0
      %v3868 = vadd.f32 0.0, %v3867
      %v3869 = vpop.f32.mrb[0].mxu0
      %3870 = vmatprep.mubr.bf16.mxu0 0
      %3871 = vmatmul.mubr.bf16.gmra.mrb[0].mxu0 %v637
      %v3872 = vpop.f32.mrb[0].mxu0
      %v3873 = vadd.f32 0.0, %v3872
      %v3874 = vpop.f32.mrb[0].mxu0
      %v3875 = vpop.f32.mrb[0].mxu0
      %v3876 = vadd.f32 0.0, %v3875
      %v3877 = vpop.f32.mrb[0].mxu0
      %3878 = vmatprep.mubr.bf16.mxu0 0
      %3879 = vmatmul.mubr.bf16.gmra.mrb[0].mxu0 %v640
      %v3880 = vpop.f32.mrb[0].mxu0
      %v3881 = vadd.f32 0.0, %v3880
      %v3882 = vpop.f32.mrb[0].mxu0
      %v3883 = vpop.f32.mrb[0].mxu0
      %v3884 = vadd.f32 0.0, %v3883
      %v3885 = vpop.f32.mrb[0].mxu0
      %3886 = vmatprep.mubr.bf16.mxu0 0
      %3887 = vmatmul.mubr.bf16.gmra.mrb[0].mxu0 %v643
      %v3888 = vpop.f32.mrb[0].mxu0
      %v3889 = vadd.f32 0.0, %v3888
      %v3890 = vpop.f32.mrb[0].mxu0
      %v3891 = vpop.f32.mrb[0].mxu0
      %v3892 = vadd.f32 0.0, %v3891
      %v3893 = vpop.f32.mrb[0].mxu0
      %3894 = vmatprep.mubr.bf16.mxu0 0
      %3895 = vmatmul.mubr.bf16.gmra.mrb[0].mxu0 %v646
      %v3896 = vpop.f32.mrb[0].mxu0
      %v3897 = vadd.f32 0.0, %v3896
      %v3898 = vpop.f32.mrb[0].mxu0
      %v3899 = vpop.f32.mrb[0].mxu0
      %v3900 = vadd.f32 0.0, %v3899
      %v3901 = vpop.f32.mrb[0].mxu0
      %3902 = vmatprep.mubr.bf16.mxu0 0
      %3903 = vmatmul.mubr.bf16.gmra.mrb[0].mxu0 %v649
      %v3904 = vpop.f32.mrb[0].mxu0
      %v3905 = vadd.f32 0.0, %v3904
      %v3906 = vpop.f32.mrb[0].mxu0
      %v3907 = vpop.f32.mrb[0].mxu0
      %v3908 = vadd.f32 0.0, %v3907
      %v3909 = vpop.f32.mrb[0].mxu0
      %3910 = vmatprep.mubr.bf16.mxu0 0
      %3911 = vmatmul.mubr.bf16.gmra.mrb[0].mxu0 %v652
      %v3912 = vpop.f32.mrb[0].mxu0
      %v3913 = vadd.f32 0.0, %v3912
      %v3914 = vpop.f32.mrb[0].mxu0
      %v3915 = vpop.f32.mrb[0].mxu0
      %v3916 = vadd.f32 0.0, %v3915
      %v3917 = vpop.f32.mrb[0].mxu0
      %3918 = vmatprep.mubr.bf16.mxu0 0
      %3919 = vmatmul.mubr.bf16.gmra.mrb[0].mxu0 %v655
      %v3920 = vpop.f32.mrb[0].mxu0
      %v3921 = vadd.f32 0.0, %v3920
      %v3922 = vpop.f32.mrb[0].mxu0
      %v3923 = vpop.f32.mrb[0].mxu0
      %v3924 = vadd.f32 0.0, %v3923
      %v3925 = vpop.f32.mrb[0].mxu0
      %3926 = vmatprep.mubr.bf16.mxu0 0
      %3927 = vmatmul.mubr.bf16.gmra.mrb[0].mxu0 %v658
      %v3928 = vpop.f32.mrb[0].mxu0
      %v3929 = vadd.f32 0.0, %v3928
      %v3930 = vpop.f32.mrb[0].mxu0
      %v3931 = vpop.f32.mrb[0].mxu0
      %v3932 = vadd.f32 0.0, %v3931
      %v3933 = vpop.f32.mrb[0].mxu0
      %3934 = vmatprep.mubr.bf16.mxu0 0
      %3935 = vmatmul.mubr.bf16.gmra.mrb[0].mxu0 %v661
      %v3936 = vpop.f32.mrb[0].mxu0
      %v3937 = vadd.f32 0.0, %v3936
      %v3938 = vpop.f32.mrb[0].mxu0
      %v3939 = vpop.f32.mrb[0].mxu0
      %v3940 = vadd.f32 0.0, %v3939
      %v3941 = vpop.f32.mrb[0].mxu0
      %3942 = vmatprep.mubr.bf16.mxu0 0
      %3943 = vmatmul.mubr.bf16.gmra.mrb[0].mxu0 %v664
      %v3944 = vpop.f32.mrb[0].mxu0
      %v3945 = vadd.f32 0.0, %v3944
      %v3946 = vpop.f32.mrb[0].mxu0
      %v3947 = vpop.f32.mrb[0].mxu0
      %v3948 = vadd.f32 0.0, %v3947
      %v3949 = vpop.f32.mrb[0].mxu0
      %3950 = vdwg.mxu0
      %v3951 = vrot.slane %v3825, 1
      %v3952 = vrot.slane %v3828, 1
      %v3953 = vrot.slane %v3833, 1
      %v3954 = vrot.slane %v3836, 1
      %v3955 = vrot.slane %v3841, 1
      %v3956 = vrot.slane %v3844, 1
      %v3957 = vrot.slane %v3849, 1
      %v3958 = vrot.slane %v3852, 1
      %v3959 = vrot.slane %v3857, 1
      %v3960 = vrot.slane %v3860, 1
      %v3961 = vrot.slane %v3865, 1
      %v3962 = vrot.slane %v3868, 1
      %v3963 = vrot.slane %v3873, 1
      %v3964 = vrot.slane %v3876, 1
      %v3965 = vrot.slane %v3881, 1
      %v3966 = vrot.slane %v3884, 1
      %v3967 = vrot.slane %v3889, 1
      %v3968 = vrot.slane %v3892, 1
      %v3969 = vrot.slane %v3897, 1
      %v3970 = vrot.slane %v3900, 1
      %v3971 = vrot.slane %v3905, 1
      %v3972 = vrot.slane %v3908, 1
      %v3973 = vrot.slane %v3913, 1
      %v3974 = vrot.slane %v3916, 1
      %v3975 = vrot.slane %v3921, 1
      %v3976 = vrot.slane %v3924, 1
      %v3977 = vrot.slane %v3929, 1
      %v3978 = vrot.slane %v3932, 1
      %v3979 = vrot.slane %v3937, 1
      %v3980 = vrot.slane %v3940, 1
      %v3981 = vrot.slane %v3945, 1
      %v3982 = vrot.slane %v3948, 1
      %v3983 = vsel %vm1762, %v3981, %v3982
      %v3984 = vsel %vm1762, %v3980, %v3981
      %v3985 = vsel %vm1762, %v3979, %v3980
      %v3986 = vsel %vm1762, %v3978, %v3979
      %v3987 = vsel %vm1762, %v3977, %v3978
      %v3988 = vsel %vm1762, %v3976, %v3977
      %v3989 = vsel %vm1762, %v3975, %v3976
      %v3990 = vsel %vm1762, %v3974, %v3975
      %v3991 = vsel %vm1762, %v3973, %v3974
      %v3992 = vsel %vm1762, %v3972, %v3973
      %v3993 = vsel %vm1762, %v3971, %v3972
      %v3994 = vsel %vm1762, %v3970, %v3971
      %v3995 = vsel %vm1762, %v3969, %v3970
      %v3996 = vsel %vm1762, %v3968, %v3969
      %v3997 = vsel %vm1762, %v3967, %v3968
      %v3998 = vsel %vm1762, %v3966, %v3967
      %v3999 = vsel %vm1762, %v3965, %v3966
      %v4000 = vsel %vm1762, %v3964, %v3965
      %v4001 = vsel %vm1762, %v3963, %v3964
      %v4002 = vsel %vm1762, %v3962, %v3963
      %v4003 = vsel %vm1762, %v3961, %v3962
      %v4004 = vsel %vm1762, %v3960, %v3961
      %v4005 = vsel %vm1762, %v3959, %v3960
      %v4006 = vsel %vm1762, %v3958, %v3959
      %v4007 = vsel %vm1762, %v3957, %v3958
      %v4008 = vsel %vm1762, %v3956, %v3957
      %v4009 = vsel %vm1762, %v3955, %v3956
      %v4010 = vsel %vm1762, %v3954, %v3955
      %v4011 = vsel %vm1762, %v3953, %v3954
      %v4012 = vsel %vm1762, %v3952, %v3953
      %v4013 = vsel %vm1762, %v3951, %v3952
      %v4014 = vsel %vm1762, %v3982, %v3951
      %v4015 = vmul.f32 %v4011, %v3278
      %v4016 = vmul.f32 %v4010, %v3283
      %v4017 = vmul.f32 %v4009, %v3288
      %v4018 = vmul.f32 %v4008, %v3293
      %v4019 = vmul.f32 %v4007, %v3298
      %v4020 = vmul.f32 %v4006, %v3303
      %v4021 = vmul.f32 %v4005, %v3308
      %v4022 = vmul.f32 %v4004, %v3313
      %v4023 = vmul.f32 %v4003, %v3318
      %v4024 = vmul.f32 %v4002, %v3323
      %v4025 = vmul.f32 %v4001, %v3328
      %v4026 = vmul.f32 %v4000, %v3333
      %v4027 = vmul.f32 %v3999, %v3338
      %v4028 = vmul.f32 %v3998, %v3343
      %v4029 = vmul.f32 %v3997, %v3348
      %v4030 = vmul.f32 %v3996, %v3353
      %v4031 = vmul.f32 %v3995, %v3358
      %v4032 = vmul.f32 %v3994, %v3363
      %v4033 = vmul.f32 %v3993, %v3368
      %v4034 = vmul.f32 %v3992, %v3373
      %v4035 = vmul.f32 %v3991, %v3378
      %v4036 = vmul.f32 %v3990, %v3383
      %v4037 = vmul.f32 %v3989, %v3388
      %v4038 = vmul.f32 %v3988, %v3393
      %v4039 = vmul.f32 %v3987, %v3398
      %v4040 = vmul.f32 %v3986, %v3403
      %v4041 = vmul.f32 %v3985, %v3408
      %v4042 = vmul.f32 %v3984, %v3413
      %v4043 = vmul.f32 %v3983, %v3418
      %v4044 = vmul.f32 %v4014, %v3423
      %v4045 = vmul.f32 %v4013, %v3428
      %v4046 = vmul.f32 %v4012, %v3433
      %v4047 = vmul.f32 %v4015, %v1830
      %v4048 = vmul.f32 %v4016, %v1835
      %v4049 = vmul.f32 %v4017, %v1840
      %v4050 = vmul.f32 %v4018, %v1845
      %v4051 = vmul.f32 %v4019, %v1850
      %v4052 = vmul.f32 %v4020, %v1855
      %v4053 = vmul.f32 %v4021, %v1860
      %v4054 = vmul.f32 %v4022, %v1865
      %v4055 = vmul.f32 %v4023, %v1870
      %v4056 = vmul.f32 %v4024, %v1875
      %v4057 = vmul.f32 %v4025, %v1880
      %v4058 = vmul.f32 %v4026, %v1885
      %v4059 = vmul.f32 %v4027, %v1890
      %v4060 = vmul.f32 %v4028, %v1895
      %v4061 = vmul.f32 %v4029, %v1900
      %v4062 = vmul.f32 %v4030, %v1905
      %v4063 = vmul.f32 %v4031, %v1910
      %v4064 = vmul.f32 %v4032, %v1915
      %v4065 = vmul.f32 %v4033, %v1920
      %v4066 = vmul.f32 %v4034, %v1925
      %v4067 = vmul.f32 %v4035, %v1930
      %v4068 = vmul.f32 %v4036, %v1935
      %v4069 = vmul.f32 %v4037, %v1940
      %v4070 = vmul.f32 %v4038, %v1945
      %v4071 = vmul.f32 %v4039, %v1950
      %v4072 = vmul.f32 %v4040, %v1955
      %v4073 = vmul.f32 %v4041, %v1960
      %v4074 = vmul.f32 %v4042, %v1965
      %v4075 = vmul.f32 %v4043, %v1970
      %v4076 = vmul.f32 %v4044, %v1975
      %v4077 = vmul.f32 %v4045, %v1980
      %v4078 = vmul.f32 %v4046, %v1985
      %v4079 = vadd.f32 %v3725, %v4047
      %v4080 = vadd.f32 %v3726, %v4048
      %v4081 = vadd.f32 %v3727, %v4049
      %v4082 = vadd.f32 %v3728, %v4050
      %v4083 = vadd.f32 %v3729, %v4051
      %v4084 = vadd.f32 %v3730, %v4052
      %v4085 = vadd.f32 %v3731, %v4053
      %v4086 = vadd.f32 %v3732, %v4054
      %v4087 = vadd.f32 %v3733, %v4055
      %v4088 = vadd.f32 %v3734, %v4056
      %v4089 = vadd.f32 %v3735, %v4057
      %v4090 = vadd.f32 %v3736, %v4058
      %v4091 = vadd.f32 %v3737, %v4059
      %v4092 = vadd.f32 %v3738, %v4060
      %v4093 = vadd.f32 %v3739, %v4061
      %v4094 = vadd.f32 %v3740, %v4062
      %v4095 = vadd.f32 %v3741, %v4063
      %v4096 = vadd.f32 %v3742, %v4064
      %v4097 = vadd.f32 %v3743, %v4065
      %v4098 = vadd.f32 %v3744, %v4066
      %v4099 = vadd.f32 %v3745, %v4067
      %v4100 = vadd.f32 %v3746, %v4068
      %v4101 = vadd.f32 %v3747, %v4069
      %v4102 = vadd.f32 %v3748, %v4070
      %v4103 = vadd.f32 %v3749, %v4071
      %v4104 = vadd.f32 %v3750, %v4072
      %v4105 = vadd.f32 %v3751, %v4073
      %v4106 = vadd.f32 %v3752, %v4074
      %v4107 = vadd.f32 %v3753, %v4075
      %v4108 = vadd.f32 %v3754, %v4076
      %v4109 = vadd.f32 %v3755, %v4077
      %v4110 = vadd.f32 %v3756, %v4078
      %v4111 = vld [vmem:[#allocation2] sm:$0xff]
      %v4112 = vld [vmem:[#allocation2 + $0x8] sm:$0xff]
      %v4113 = vld [vmem:[#allocation2 + $0x10] sm:$0xff]
      %v4114 = vld [vmem:[#allocation2 + $0x18] sm:$0xff]
      %v4115 = vld [vmem:[#allocation2 + $0x20] sm:$0xff]
      %v4116 = vld [vmem:[#allocation2 + $0x28] sm:$0xff]
      %v4117 = vld [vmem:[#allocation2 + $0x30] sm:$0xff]
      %v4118 = vld [vmem:[#allocation2 + $0x38] sm:$0xff]
      %v4119 = vld [vmem:[#allocation2 + $0x40] sm:$0xff]
      %v4120 = vld [vmem:[#allocation2 + $0x48] sm:$0xff]
      %v4121 = vld [vmem:[#allocation2 + $0x50] sm:$0xff]
      %v4122 = vld [vmem:[#allocation2 + $0x58] sm:$0xff]
      %v4123 = vld [vmem:[#allocation2 + $0x60] sm:$0xff]
      %v4124 = vld [vmem:[#allocation2 + $0x68] sm:$0xff]
      %v4125 = vld [vmem:[#allocation2 + $0x70] sm:$0xff]
      %v4126 = vld [vmem:[#allocation2 + $0x78] sm:$0xff]
      %v4127 = vld [vmem:[#allocation2 + $0x80] sm:$0xff]
      %v4128 = vld [vmem:[#allocation2 + $0x88] sm:$0xff]
      %v4129 = vld [vmem:[#allocation2 + $0x90] sm:$0xff]
      %v4130 = vld [vmem:[#allocation2 + $0x98] sm:$0xff]
      %v4131 = vld [vmem:[#allocation2 + $0xa0] sm:$0xff]
      %v4132 = vld [vmem:[#allocation2 + $0xa8] sm:$0xff]
      %v4133 = vld [vmem:[#allocation2 + $0xb0] sm:$0xff]
      %v4134 = vld [vmem:[#allocation2 + $0xb8] sm:$0xff]
      %v4135 = vld [vmem:[#allocation2 + $0xc0] sm:$0xff]
      %v4136 = vld [vmem:[#allocation2 + $0xc8] sm:$0xff]
      %v4137 = vld [vmem:[#allocation2 + $0xd0] sm:$0xff]
      %v4138 = vld [vmem:[#allocation2 + $0xd8] sm:$0xff]
      %v4139 = vld [vmem:[#allocation2 + $0xe0] sm:$0xff]
      %v4140 = vld [vmem:[#allocation2 + $0xe8] sm:$0xff]
      %v4141 = vld [vmem:[#allocation2 + $0xf0] sm:$0xff]
      %v4142 = vld [vmem:[#allocation2 + $0xf8] sm:$0xff]
      %v4143 = vadd.f32 %v4111, %v4079
      %v4144 = vadd.f32 %v4112, %v4080
      %v4145 = vadd.f32 %v4113, %v4081
      %v4146 = vadd.f32 %v4114, %v4082
      %v4147 = vadd.f32 %v4115, %v4083
      %v4148 = vadd.f32 %v4116, %v4084
      %v4149 = vadd.f32 %v4117, %v4085
      %v4150 = vadd.f32 %v4118, %v4086
      %v4151 = vadd.f32 %v4119, %v4087
      %v4152 = vadd.f32 %v4120, %v4088
      %v4153 = vadd.f32 %v4121, %v4089
      %v4154 = vadd.f32 %v4122, %v4090
      %v4155 = vadd.f32 %v4123, %v4091
      %v4156 = vadd.f32 %v4124, %v4092
      %v4157 = vadd.f32 %v4125, %v4093
      %v4158 = vadd.f32 %v4126, %v4094
      %v4159 = vadd.f32 %v4127, %v4095
      %v4160 = vadd.f32 %v4128, %v4096
      %v4161 = vadd.f32 %v4129, %v4097
      %v4162 = vadd.f32 %v4130, %v4098
      %v4163 = vadd.f32 %v4131, %v4099
      %v4164 = vadd.f32 %v4132, %v4100
      %v4165 = vadd.f32 %v4133, %v4101
      %v4166 = vadd.f32 %v4134, %v4102
      %v4167 = vadd.f32 %v4135, %v4103
      %v4168 = vadd.f32 %v4136, %v4104
      %v4169 = vadd.f32 %v4137, %v4105
      %v4170 = vadd.f32 %v4138, %v4106
      %v4171 = vadd.f32 %v4139, %v4107
      %v4172 = vadd.f32 %v4140, %v4108
      %v4173 = vadd.f32 %v4141, %v4109
      %v4174 = vadd.f32 %v4142, %v4110
      %4175 = vst.msk [vmem:[#allocation2] sm:$0xff] %vm617, %v4143
      %4176 = vst.msk [vmem:[#allocation2 + $0x8] sm:$0xff] %vm617, %v4144
      %4177 = vst.msk [vmem:[#allocation2 + $0x10] sm:$0xff] %vm617, %v4145
      %4178 = vst.msk [vmem:[#allocation2 + $0x18] sm:$0xff] %vm617, %v4146
      %4179 = vst.msk [vmem:[#allocation2 + $0x20] sm:$0xff] %vm617, %v4147
      %4180 = vst.msk [vmem:[#allocation2 + $0x28] sm:$0xff] %vm617, %v4148
      %4181 = vst.msk [vmem:[#allocation2 + $0x30] sm:$0xff] %vm617, %v4149
      %4182 = vst.msk [vmem:[#allocation2 + $0x38] sm:$0xff] %vm617, %v4150
      %4183 = vst.msk [vmem:[#allocation2 + $0x40] sm:$0xff] %vm617, %v4151
      %4184 = vst.msk [vmem:[#allocation2 + $0x48] sm:$0xff] %vm617, %v4152
      %4185 = vst.msk [vmem:[#allocation2 + $0x50] sm:$0xff] %vm617, %v4153
      %4186 = vst.msk [vmem:[#allocation2 + $0x58] sm:$0xff] %vm617, %v4154
      %4187 = vst.msk [vmem:[#allocation2 + $0x60] sm:$0xff] %vm617, %v4155
      %4188 = vst.msk [vmem:[#allocation2 + $0x68] sm:$0xff] %vm617, %v4156
      %4189 = vst.msk [vmem:[#allocation2 + $0x70] sm:$0xff] %vm617, %v4157
      %4190 = vst.msk [vmem:[#allocation2 + $0x78] sm:$0xff] %vm617, %v4158
      %4191 = vst.msk [vmem:[#allocation2 + $0x80] sm:$0xff] %vm617, %v4159
      %4192 = vst.msk [vmem:[#allocation2 + $0x88] sm:$0xff] %vm617, %v4160
      %4193 = vst.msk [vmem:[#allocation2 + $0x90] sm:$0xff] %vm617, %v4161
      %4194 = vst.msk [vmem:[#allocation2 + $0x98] sm:$0xff] %vm617, %v4162
      %4195 = vst.msk [vmem:[#allocation2 + $0xa0] sm:$0xff] %vm617, %v4163
      %4196 = vst.msk [vmem:[#allocation2 + $0xa8] sm:$0xff] %vm617, %v4164
      %4197 = vst.msk [vmem:[#allocation2 + $0xb0] sm:$0xff] %vm617, %v4165
      %4198 = vst.msk [vmem:[#allocation2 + $0xb8] sm:$0xff] %vm617, %v4166
      %4199 = vst.msk [vmem:[#allocation2 + $0xc0] sm:$0xff] %vm617, %v4167
      %4200 = vst.msk [vmem:[#allocation2 + $0xc8] sm:$0xff] %vm617, %v4168
      %4201 = vst.msk [vmem:[#allocation2 + $0xd0] sm:$0xff] %vm617, %v4169
      %4202 = vst.msk [vmem:[#allocation2 + $0xd8] sm:$0xff] %vm617, %v4170
      %4203 = vst.msk [vmem:[#allocation2 + $0xe0] sm:$0xff] %vm617, %v4171
      %4204 = vst.msk [vmem:[#allocation2 + $0xe8] sm:$0xff] %vm617, %v4172
      %4205 = vst.msk [vmem:[#allocation2 + $0xf0] sm:$0xff] %vm617, %v4173
      %4206 = vst.msk [vmem:[#allocation2 + $0xf8] sm:$0xff] %vm617, %v4174
      %v4207 = vld [vmem:[#allocation2] sm:$0xff]
      %v4208 = vld [vmem:[#allocation2 + $0x8] sm:$0xff]
      %v4209 = vld [vmem:[#allocation2 + $0x10] sm:$0xff]
      %v4210 = vld [vmem:[#allocation2 + $0x18] sm:$0xff]
      %v4211 = vld [vmem:[#allocation2 + $0x20] sm:$0xff]
      %v4212 = vld [vmem:[#allocation2 + $0x28] sm:$0xff]
      %v4213 = vld [vmem:[#allocation2 + $0x30] sm:$0xff]
      %v4214 = vld [vmem:[#allocation2 + $0x38] sm:$0xff]
      %v4215 = vld [vmem:[#allocation2 + $0x40] sm:$0xff]
      %v4216 = vld [vmem:[#allocation2 + $0x48] sm:$0xff]
      %v4217 = vld [vmem:[#allocation2 + $0x50] sm:$0xff]
      %v4218 = vld [vmem:[#allocation2 + $0x58] sm:$0xff]
      %v4219 = vld [vmem:[#allocation2 + $0x60] sm:$0xff]
      %v4220 = vld [vmem:[#allocation2 + $0x68] sm:$0xff]
      %v4221 = vld [vmem:[#allocation2 + $0x70] sm:$0xff]
      %v4222 = vld [vmem:[#allocation2 + $0x78] sm:$0xff]
      %v4223 = vld [vmem:[#allocation2 + $0x80] sm:$0xff]
      %v4224 = vld [vmem:[#allocation2 + $0x88] sm:$0xff]
      %v4225 = vld [vmem:[#allocation2 + $0x90] sm:$0xff]
      %v4226 = vld [vmem:[#allocation2 + $0x98] sm:$0xff]
      %v4227 = vld [vmem:[#allocation2 + $0xa0] sm:$0xff]
      %v4228 = vld [vmem:[#allocation2 + $0xa8] sm:$0xff]
      %v4229 = vld [vmem:[#allocation2 + $0xb0] sm:$0xff]
      %v4230 = vld [vmem:[#allocation2 + $0xb8] sm:$0xff]
      %v4231 = vld [vmem:[#allocation2 + $0xc0] sm:$0xff]
      %v4232 = vld [vmem:[#allocation2 + $0xc8] sm:$0xff]
      %v4233 = vld [vmem:[#allocation2 + $0xd0] sm:$0xff]
      %v4234 = vld [vmem:[#allocation2 + $0xd8] sm:$0xff]
      %v4235 = vld [vmem:[#allocation2 + $0xe0] sm:$0xff]
      %v4236 = vld [vmem:[#allocation2 + $0xe8] sm:$0xff]
      %v4237 = vld [vmem:[#allocation2 + $0xf0] sm:$0xff]
      %v4238 = vld [vmem:[#allocation2 + $0xf8] sm:$0xff]
      %v4239 = vpack.c.bf16 %v4208, %v4207
      %v4240 = vpack.c.bf16 %v4210, %v4209
      %v4241 = vpack.c.bf16 %v4212, %v4211
      %v4242 = vpack.c.bf16 %v4214, %v4213
      %v4243 = vpack.c.bf16 %v4216, %v4215
      %v4244 = vpack.c.bf16 %v4218, %v4217
      %v4245 = vpack.c.bf16 %v4220, %v4219
      %v4246 = vpack.c.bf16 %v4222, %v4221
      %v4247 = vpack.c.bf16 %v4224, %v4223
      %v4248 = vpack.c.bf16 %v4226, %v4225
      %v4249 = vpack.c.bf16 %v4228, %v4227
      %v4250 = vpack.c.bf16 %v4230, %v4229
      %v4251 = vpack.c.bf16 %v4232, %v4231
      %v4252 = vpack.c.bf16 %v4234, %v4233
      %v4253 = vpack.c.bf16 %v4236, %v4235
      %v4254 = vpack.c.bf16 %v4238, %v4237
      %v4271 = vunpack.c.l.b16 %v4239
      %v4272 = vunpack.c.h.b16 %v4239
      %v4273 = vunpack.c.l.b16 %v4240
      %v4274 = vunpack.c.h.b16 %v4240
      %v4275 = vunpack.c.l.b16 %v4241
      %v4276 = vunpack.c.h.b16 %v4241
      %v4277 = vunpack.c.l.b16 %v4242
      %v4278 = vunpack.c.h.b16 %v4242
      %v4279 = vunpack.c.l.b16 %v4243
      %v4280 = vunpack.c.h.b16 %v4243
      %v4281 = vunpack.c.l.b16 %v4244
      %v4282 = vunpack.c.h.b16 %v4244
      %v4283 = vunpack.c.l.b16 %v4245
      %v4284 = vunpack.c.h.b16 %v4245
      %v4285 = vunpack.c.l.b16 %v4246
      %v4286 = vunpack.c.h.b16 %v4246
      %v4287 = vunpack.c.l.b16 %v4247
      %v4288 = vunpack.c.h.b16 %v4247
      %v4289 = vunpack.c.l.b16 %v4248
      %v4290 = vunpack.c.h.b16 %v4248
      %v4291 = vunpack.c.l.b16 %v4249
      %v4292 = vunpack.c.h.b16 %v4249
      %v4293 = vunpack.c.l.b16 %v4250
      %v4294 = vunpack.c.h.b16 %v4250
      %v4295 = vunpack.c.l.b16 %v4251
      %v4296 = vunpack.c.h.b16 %v4251
      %v4297 = vunpack.c.l.b16 %v4252
      %v4298 = vunpack.c.h.b16 %v4252
      %v4299 = vunpack.c.l.b16 %v4253
      %v4300 = vunpack.c.h.b16 %v4253
      %v4301 = vunpack.c.l.b16 %v4254
      %v4302 = vunpack.c.h.b16 %v4254
      %v4303 = vpack.c.b16 %v4271, %v4271
      %v4304 = vpack.c.b16 %v4272, %v4272
      %v4305 = vpack.c.b16 %v4273, %v4273
      %v4306 = vpack.c.b16 %v4274, %v4274
      %v4307 = vpack.c.b16 %v4275, %v4275
      %v4308 = vpack.c.b16 %v4276, %v4276
      %v4309 = vpack.c.b16 %v4277, %v4277
      %v4310 = vpack.c.b16 %v4278, %v4278
      %v4311 = vpack.c.b16 %v4279, %v4279
      %v4312 = vpack.c.b16 %v4280, %v4280
      %v4313 = vpack.c.b16 %v4281, %v4281
      %v4314 = vpack.c.b16 %v4282, %v4282
      %v4315 = vpack.c.b16 %v4283, %v4283
      %v4316 = vpack.c.b16 %v4284, %v4284
      %v4317 = vpack.c.b16 %v4285, %v4285
      %v4318 = vpack.c.b16 %v4286, %v4286
      %v4319 = vpack.c.b16 %v4287, %v4287
      %v4320 = vpack.c.b16 %v4288, %v4288
      %v4321 = vpack.c.b16 %v4289, %v4289
      %v4322 = vpack.c.b16 %v4290, %v4290
      %v4323 = vpack.c.b16 %v4291, %v4291
      %v4324 = vpack.c.b16 %v4292, %v4292
      %v4325 = vpack.c.b16 %v4293, %v4293
      %v4326 = vpack.c.b16 %v4294, %v4294
      %v4327 = vpack.c.b16 %v4295, %v4295
      %v4328 = vpack.c.b16 %v4296, %v4296
      %v4329 = vpack.c.b16 %v4297, %v4297
      %v4330 = vpack.c.b16 %v4298, %v4298
      %v4331 = vpack.c.b16 %v4299, %v4299
      %v4332 = vpack.c.b16 %v4300, %v4300
      %v4333 = vpack.c.b16 %v4301, %v4301
      %v4334 = vpack.c.b16 %v4302, %v4302
      %vm4367 = vcmask 519168
      %4368 = vst.msk [vmem:[%s258] sm:$0xf] %vm4367, %v4303
      %4369 = vst.msk [vmem:[%s258 + $0x4] sm:$0xf] %vm4367, %v4304
      %4370 = vst.msk [vmem:[%s258 + $0x8] sm:$0xf] %vm4367, %v4305
      %4371 = vst.msk [vmem:[%s258 + $0xc] sm:$0xf] %vm4367, %v4306
      %4372 = vst.msk [vmem:[%s258 + $0x10] sm:$0xf] %vm4367, %v4307
      %4373 = vst.msk [vmem:[%s258 + $0x14] sm:$0xf] %vm4367, %v4308
      %4374 = vst.msk [vmem:[%s258 + $0x18] sm:$0xf] %vm4367, %v4309
      %4375 = vst.msk [vmem:[%s258 + $0x1c] sm:$0xf] %vm4367, %v4310
      %4376 = vst.msk [vmem:[%s258 + $0x20] sm:$0xf] %vm4367, %v4311
      %4377 = vst.msk [vmem:[%s258 + $0x24] sm:$0xf] %vm4367, %v4312
      %4378 = vst.msk [vmem:[%s258 + $0x28] sm:$0xf] %vm4367, %v4313
      %4379 = vst.msk [vmem:[%s258 + $0x2c] sm:$0xf] %vm4367, %v4314
      %4380 = vst.msk [vmem:[%s258 + $0x30] sm:$0xf] %vm4367, %v4315
      %4381 = vst.msk [vmem:[%s258 + $0x34] sm:$0xf] %vm4367, %v4316
      %4382 = vst.msk [vmem:[%s258 + $0x38] sm:$0xf] %vm4367, %v4317
      %4383 = vst.msk [vmem:[%s258 + $0x3c] sm:$0xf] %vm4367, %v4318
      %4384 = vst.msk [vmem:[%s258 + $0x40] sm:$0xf] %vm4367, %v4319
      %4385 = vst.msk [vmem:[%s258 + $0x44] sm:$0xf] %vm4367, %v4320
      %4386 = vst.msk [vmem:[%s258 + $0x48] sm:$0xf] %vm4367, %v4321
      %4387 = vst.msk [vmem:[%s258 + $0x4c] sm:$0xf] %vm4367, %v4322
      %4388 = vst.msk [vmem:[%s258 + $0x50] sm:$0xf] %vm4367, %v4323
      %4389 = vst.msk [vmem:[%s258 + $0x54] sm:$0xf] %vm4367, %v4324
      %4390 = vst.msk [vmem:[%s258 + $0x58] sm:$0xf] %vm4367, %v4325
      %4391 = vst.msk [vmem:[%s258 + $0x5c] sm:$0xf] %vm4367, %v4326
      %4392 = vst.msk [vmem:[%s258 + $0x60] sm:$0xf] %vm4367, %v4327
      %4393 = vst.msk [vmem:[%s258 + $0x64] sm:$0xf] %vm4367, %v4328
      %4394 = vst.msk [vmem:[%s258 + $0x68] sm:$0xf] %vm4367, %v4329
      %4395 = vst.msk [vmem:[%s258 + $0x6c] sm:$0xf] %vm4367, %v4330
      %4396 = vst.msk [vmem:[%s258 + $0x70] sm:$0xf] %vm4367, %v4331
      %4397 = vst.msk [vmem:[%s258 + $0x74] sm:$0xf] %vm4367, %v4332
      %4398 = vst.msk [vmem:[%s258 + $0x78] sm:$0xf] %vm4367, %v4333
      %4399 = vst.msk [vmem:[%s258 + $0x7c] sm:$0xf] %vm4367, %v4334
      %v4400 = vsel %vm617, %v4207, 0.0
      %v4401 = vsel %vm617, %v4208, 0.0
      %v4402 = vadd.f32 %v4400, %v4401
      %v4403 = vsel %vm617, %v4209, 0.0
      %v4404 = vadd.f32 %v4402, %v4403
      %v4405 = vsel %vm617, %v4210, 0.0
      %v4406 = vadd.f32 %v4404, %v4405
      %v4407 = vsel %vm617, %v4211, 0.0
      %v4408 = vadd.f32 %v4406, %v4407
      %v4409 = vsel %vm617, %v4212, 0.0
      %v4410 = vadd.f32 %v4408, %v4409
      %v4411 = vsel %vm617, %v4213, 0.0
      %v4412 = vadd.f32 %v4410, %v4411
      %v4413 = vsel %vm617, %v4214, 0.0
      %v4414 = vadd.f32 %v4412, %v4413
      %v4415 = vsel %vm617, %v4215, 0.0
      %v4416 = vadd.f32 %v4414, %v4415
      %v4417 = vsel %vm617, %v4216, 0.0
      %v4418 = vadd.f32 %v4416, %v4417
      %v4419 = vsel %vm617, %v4217, 0.0
      %v4420 = vadd.f32 %v4418, %v4419
      %v4421 = vsel %vm617, %v4218, 0.0
      %v4422 = vadd.f32 %v4420, %v4421
      %v4423 = vsel %vm617, %v4219, 0.0
      %v4424 = vadd.f32 %v4422, %v4423
      %v4425 = vsel %vm617, %v4220, 0.0
      %v4426 = vadd.f32 %v4424, %v4425
      %v4427 = vsel %vm617, %v4221, 0.0
      %v4428 = vadd.f32 %v4426, %v4427
      %v4429 = vsel %vm617, %v4222, 0.0
      %v4430 = vadd.f32 %v4428, %v4429
      %v4431 = vsel %vm617, %v4223, 0.0
      %v4432 = vadd.f32 %v4430, %v4431
      %v4433 = vsel %vm617, %v4224, 0.0
      %v4434 = vadd.f32 %v4432, %v4433
      %v4435 = vsel %vm617, %v4225, 0.0
      %v4436 = vadd.f32 %v4434, %v4435
      %v4437 = vsel %vm617, %v4226, 0.0
      %v4438 = vadd.f32 %v4436, %v4437
      %v4439 = vsel %vm617, %v4227, 0.0
      %v4440 = vadd.f32 %v4438, %v4439
      %v4441 = vsel %vm617, %v4228, 0.0
      %v4442 = vadd.f32 %v4440, %v4441
      %v4443 = vsel %vm617, %v4229, 0.0
      %v4444 = vadd.f32 %v4442, %v4443
      %v4445 = vsel %vm617, %v4230, 0.0
      %v4446 = vadd.f32 %v4444, %v4445
      %v4447 = vsel %vm617, %v4231, 0.0
      %v4448 = vadd.f32 %v4446, %v4447
      %v4449 = vsel %vm617, %v4232, 0.0
      %v4450 = vadd.f32 %v4448, %v4449
      %v4451 = vsel %vm617, %v4233, 0.0
      %v4452 = vadd.f32 %v4450, %v4451
      %v4453 = vsel %vm617, %v4234, 0.0
      %v4454 = vadd.f32 %v4452, %v4453
      %v4455 = vsel %vm617, %v4235, 0.0
      %v4456 = vadd.f32 %v4454, %v4455
      %v4457 = vsel %vm617, %v4236, 0.0
      %v4458 = vadd.f32 %v4456, %v4457
      %v4459 = vsel %vm617, %v4237, 0.0
      %v4460 = vadd.f32 %v4458, %v4459
      %v4461 = vsel %vm617, %v4238, 0.0
      %v4462 = vadd.f32 %v4460, %v4461
      %v4463 = vrot.slane %v4462, 4
      %v4464 = vadd.f32 %v4462, %v4463
      %v4465 = vrot.slane %v4464, 2
      %v4466 = vadd.f32 %v4464, %v4465
      %v4467 = vrot.slane %v4466, 1
      %v4468 = vadd.f32 %v4466, %v4467
      %v4469 = vmul.f32 %v4207, %v4207
      %v4470 = vmul.f32 %v4208, %v4208
      %v4471 = vmul.f32 %v4209, %v4209
      %v4472 = vmul.f32 %v4210, %v4210
      %v4473 = vmul.f32 %v4211, %v4211
      %v4474 = vmul.f32 %v4212, %v4212
      %v4475 = vmul.f32 %v4213, %v4213
      %v4476 = vmul.f32 %v4214, %v4214
      %v4477 = vmul.f32 %v4215, %v4215
      %v4478 = vmul.f32 %v4216, %v4216
      %v4479 = vmul.f32 %v4217, %v4217
      %v4480 = vmul.f32 %v4218, %v4218
      %v4481 = vmul.f32 %v4219, %v4219
      %v4482 = vmul.f32 %v4220, %v4220
      %v4483 = vmul.f32 %v4221, %v4221
      %v4484 = vmul.f32 %v4222, %v4222
      %v4485 = vmul.f32 %v4223, %v4223
      %v4486 = vmul.f32 %v4224, %v4224
      %v4487 = vmul.f32 %v4225, %v4225
      %v4488 = vmul.f32 %v4226, %v4226
      %v4489 = vmul.f32 %v4227, %v4227
      %v4490 = vmul.f32 %v4228, %v4228
      %v4491 = vmul.f32 %v4229, %v4229
      %v4492 = vmul.f32 %v4230, %v4230
      %v4493 = vmul.f32 %v4231, %v4231
      %v4494 = vmul.f32 %v4232, %v4232
      %v4495 = vmul.f32 %v4233, %v4233
      %v4496 = vmul.f32 %v4234, %v4234
      %v4497 = vmul.f32 %v4235, %v4235
      %v4498 = vmul.f32 %v4236, %v4236
      %v4499 = vmul.f32 %v4237, %v4237
      %v4500 = vmul.f32 %v4238, %v4238
      %v4501 = vsel %vm617, %v4469, 0.0
      %v4502 = vsel %vm617, %v4470, 0.0
      %v4503 = vadd.f32 %v4501, %v4502
      %v4504 = vsel %vm617, %v4471, 0.0
      %v4505 = vadd.f32 %v4503, %v4504
      %v4506 = vsel %vm617, %v4472, 0.0
      %v4507 = vadd.f32 %v4505, %v4506
      %v4508 = vsel %vm617, %v4473, 0.0
      %v4509 = vadd.f32 %v4507, %v4508
      %v4510 = vsel %vm617, %v4474, 0.0
      %v4511 = vadd.f32 %v4509, %v4510
      %v4512 = vsel %vm617, %v4475, 0.0
      %v4513 = vadd.f32 %v4511, %v4512
      %v4514 = vsel %vm617, %v4476, 0.0
      %v4515 = vadd.f32 %v4513, %v4514
      %v4516 = vsel %vm617, %v4477, 0.0
      %v4517 = vadd.f32 %v4515, %v4516
      %v4518 = vsel %vm617, %v4478, 0.0
      %v4519 = vadd.f32 %v4517, %v4518
      %v4520 = vsel %vm617, %v4479, 0.0
      %v4521 = vadd.f32 %v4519, %v4520
      %v4522 = vsel %vm617, %v4480, 0.0
      %v4523 = vadd.f32 %v4521, %v4522
      %v4524 = vsel %vm617, %v4481, 0.0
      %v4525 = vadd.f32 %v4523, %v4524
      %v4526 = vsel %vm617, %v4482, 0.0
      %v4527 = vadd.f32 %v4525, %v4526
      %v4528 = vsel %vm617, %v4483, 0.0
      %v4529 = vadd.f32 %v4527, %v4528
      %v4530 = vsel %vm617, %v4484, 0.0
      %v4531 = vadd.f32 %v4529, %v4530
      %v4532 = vsel %vm617, %v4485, 0.0
      %v4533 = vadd.f32 %v4531, %v4532
      %v4534 = vsel %vm617, %v4486, 0.0
      %v4535 = vadd.f32 %v4533, %v4534
      %v4536 = vsel %vm617, %v4487, 0.0
      %v4537 = vadd.f32 %v4535, %v4536
      %v4538 = vsel %vm617, %v4488, 0.0
      %v4539 = vadd.f32 %v4537, %v4538
      %v4540 = vsel %vm617, %v4489, 0.0
      %v4541 = vadd.f32 %v4539, %v4540
      %v4542 = vsel %vm617, %v4490, 0.0
      %v4543 = vadd.f32 %v4541, %v4542
      %v4544 = vsel %vm617, %v4491, 0.0
      %v4545 = vadd.f32 %v4543, %v4544
      %v4546 = vsel %vm617, %v4492, 0.0
      %v4547 = vadd.f32 %v4545, %v4546
      %v4548 = vsel %vm617, %v4493, 0.0
      %v4549 = vadd.f32 %v4547, %v4548
      %v4550 = vsel %vm617, %v4494, 0.0
      %v4551 = vadd.f32 %v4549, %v4550
      %v4552 = vsel %vm617, %v4495, 0.0
      %v4553 = vadd.f32 %v4551, %v4552
      %v4554 = vsel %vm617, %v4496, 0.0
      %v4555 = vadd.f32 %v4553, %v4554
      %v4556 = vsel %vm617, %v4497, 0.0
      %v4557 = vadd.f32 %v4555, %v4556
      %v4558 = vsel %vm617, %v4498, 0.0
      %v4559 = vadd.f32 %v4557, %v4558
      %v4560 = vsel %vm617, %v4499, 0.0
      %v4561 = vadd.f32 %v4559, %v4560
      %v4562 = vsel %vm617, %v4500, 0.0
      %v4563 = vadd.f32 %v4561, %v4562
      %v4564 = vrot.slane %v4563, 4
      %v4565 = vadd.f32 %v4563, %v4564
      %v4566 = vrot.slane %v4565, 2
      %v4567 = vadd.f32 %v4565, %v4566
      %v4568 = vrot.slane %v4567, 1
      %v4569 = vadd.f32 %v4567, %v4568
      %vm4570 = vcmask 1040384
      %v4571 = vsel %vm4570, %v4468, %v4569
      %vm4572 = vcmask 517120
      %4573 = vst.msk [vmem:[%s262] sm:$0x3] %vm4572, %v4571
      %p4574 = scmp.lt.s32.totalorder %s18, 1
      %s4575 = scalar_select %p4574, %s18, 1
      %s4576 = smul.addr %s4575, 32
      %s4577 = smul.addr %s4576, 4
      %s4578 = scalar_lea.vmem %s5, %s4577
      %p4579 = scmp.lt.s32.totalorder %s18, 1
      %s4580 = scalar_select %p4579, %s18, 1
      %s4581 = smul.addr %s4580, 2
      %s4582 = scalar_lea.vmem %s6, %s4581
      // Predicated region
      $region41: #{basic_block.4} parent=39 // pred_check
        %p4583 = pneg %p146
      $region42: #{basic_block.4} parent=39 // pred_check_branch
        %4585 = sbr.rel (%p4583) target = $region44
      $region43: #{basic_block.4} parent=39 // pred_region
        _
      $region44: #{basic_block.4} parent=39 // pred_fallthru
        _
      // Predicated region
      $region45: #{basic_block.4} parent=39 // pred_check
        %p4586 = pneg %p172
      $region46: #{basic_block.4} parent=39 // pred_check_branch
        %4588 = sbr.rel (%p4586) target = $region48
      $region47: #{basic_block.4} parent=39 // pred_region
        _
      $region48: #{basic_block.4} parent=39 // pred_fallthru
        _
    $region40: #{basic_block.4} parent=5 // pred_fallthru
      _
    %p4589 = scmp.le.s32.totalorder 2, %s13
    // Predicated region
    $region49: #{basic_block.4} parent=5 // pred_check
      %p4590 = pneg %p4589
    $region50: #{basic_block.4} parent=5 // pred_check_branch
      %4592 = sbr.rel (%p4590) target = $region52
    $region51: #{basic_block.4} parent=5 // pred_region
      %s4593 = ssub.s32 %s13, 2
      // Predicated region
      $region53: #{basic_block.4} parent=51 // pred_check
        %p4594 = pneg %p152
      $region54: #{basic_block.4} parent=51 // pred_check_branch
        %4596 = sbr.rel (%p4594) target = $region56
      $region55: #{basic_block.4} parent=51 // pred_region
        %p4597 = scmp.lt.s32.totalorder %s19, 1
        %s4598 = scalar_select %p4597, %s19, 1
        %s4599 = smul.addr %s4598, 32
        %s4600 = smul.addr %s4599, 4
        %s4601 = scalar_lea.vmem %s5, %s4600
      $region56: #{basic_block.4} parent=51 // pred_fallthru
        _
      // Predicated region
      $region57: #{basic_block.4} parent=51 // pred_check
        %p4602 = pneg %p178
      $region58: #{basic_block.4} parent=51 // pred_check_branch
        %4604 = sbr.rel (%p4602) target = $region60
      $region59: #{basic_block.4} parent=51 // pred_region
        %p4605 = scmp.lt.s32.totalorder %s19, 1
        %s4606 = scalar_select %p4605, %s19, 1
        %s4607 = smul.addr %s4606, 2
        %s4608 = scalar_lea.vmem %s6, %s4607
      $region60: #{basic_block.4} parent=51 // pred_fallthru
        _
    $region52: #{basic_block.4} parent=5 // pred_fallthru
      _
  $region6: #{basic_block.4} parent=0 // loop_footer
    %s17 = sadd.s32 1, %s13
  $region7: #{basic_block.4} parent=0 // loop_footer_branch
    %12 = sbr.rel target = $region3
  $region8: #{basic_block.4} parent=0 // loop_exit
    _

// kernel: basic_block.3
$region0: #{basic_block.3}
  #allocation0 [shape = 'u32[]', space=smem, size = 0x4, offset = 0x4, fixed_abs, tag = 'smem constant byte address 0x4 - core index']
  #allocation1 [shape = 'u32[144,128]{1,0:T(1,128)}', space=vmem, size = 0x12000, scoped, tag = 'internal scratch']
  #allocation2 [shape = 'f32[256,64]{1,0:T(8,128)}', space=vmem, size = 0x20000, scoped, tag = 'scratch operand']
  %s0 = inlined_call_operand.vmem [shape: bf16[2,16,16,64], index: 0, kind: input, shape index: {}]
  %s1 = inlined_call_operand.vmem [shape: bf16[9,64,64], index: 1, kind: input, shape index: {}]
  %s2 = inlined_call_operand.vmem [shape: f32[4,256,1], index: 2, kind: input, shape index: {}]
  %s3 = inlined_call_operand.vmem [shape: bf16[2,16,16,64], index: 3, kind: output, shape index: {0}]
  %s4 = inlined_call_operand.vmem [shape: f32[2,2,64], index: 4, kind: output, shape index: {1}]
  %5 = xla_tuple %s3, %s4
  %s6 = sld [smem:[#allocation0]]
  $region53: #{basic_block.3} parent=0
    _
  %s8 = ssub.s32 1, %s6
  %s9 = scalar_select 0, %s8, %s6
  loop: start=0, step=1, limit=4
  $region2: #{basic_block.3} parent=0 // loop_pre_header
    _
  $region3: #{basic_block.3} parent=0 // loop_header
    %s11 = sphi 0, %s15
    %p12 = scmp.ge.s32.totalorder %s11, 4
    %s21 = sphi 0, %s23
    %s24 = sphi 0, %s21
    %s25 = sphi 0, %s24
    %s41 = sphi 0, %s25
    %s45 = sphi 0, %s45
    %s47 = sphi 0, %s45
    %s48 = sphi 0, %s47
    %s62 = sphi 0, %s48
    %s66 = sphi 0, %s66
    %s68 = sphi 0, %s66
    %s69 = sphi 0, %s68
    %s83 = sphi 0, %s69
    %s89 = sphi 0, %s91
    %s92 = sphi 0, %s89
    %s93 = sphi 0, %s92
    %s109 = sphi 0, %s93
    %s115 = sphi 0, %s117
    %s118 = sphi 0, %s115
    %s119 = sphi 0, %s118
    %s135 = sphi 0, %s119
  $region4: #{basic_block.3} parent=0 // loop_header_branch
    %14 = sbr.rel (%p12) target = $region8
  $region5: #{basic_block.3} parent=0 // loop_body
    %s16 = ssub.s32 %s11, 1
    %s17 = ssub.s32 %s11, 2
    %s18 = sadd.s32 %s11, 1
    %s19 = ssub.s32 %s11, %s18
    %p20 = scmp.eq.s32.totalorder %s19, 0
    %s22 = sadd.s32 %s21, 1
    %s23 = scalar_select %p20, %s21, %s22
    %p26 = pneg %p20
    %p27 = scmp.eq.s32.totalorder %s11, 1
    %p28 = por %p26, %p27
    %p29 = scmp.ne.s32.totalorder %s21, %s24
    %p30 = scmp.eq.s32.totalorder %s11, 0
    %p31 = por %p29, %p30
    %p32 = scmp.ne.s32.totalorder %s21, %s24
    %p33 = scmp.eq.s32.totalorder %s16, 1
    %p34 = por %p32, %p33
    %p35 = scmp.ne.s32.totalorder %s24, %s25
    %p36 = scmp.eq.s32.totalorder %s16, 0
    %p37 = por %p35, %p36
    %p38 = scmp.ne.s32.totalorder %s24, %s25
    %p39 = scmp.eq.s32.totalorder %s17, 1
    %p40 = por %p38, %p39
    %p42 = scmp.ne.s32.totalorder %s25, %s41
    %p43 = scmp.eq.s32.totalorder %s17, 0
    %p44 = por %p42, %p43
    %s46 = sadd.s32 %s45, 1
    %p49 = scmp.eq.s32.totalorder %s11, 1
    %p50 = scmp.ne.s32.totalorder %s45, %s47
    %p51 = scmp.eq.s32.totalorder %s11, 0
    %p52 = por %p50, %p51
    %p53 = scmp.ne.s32.totalorder %s45, %s47
    %p54 = scmp.eq.s32.totalorder %s16, 1
    %p55 = por %p53, %p54
    %p56 = scmp.ne.s32.totalorder %s47, %s48
    %p57 = scmp.eq.s32.totalorder %s16, 0
    %p58 = por %p56, %p57
    %p59 = scmp.ne.s32.totalorder %s47, %s48
    %p60 = scmp.eq.s32.totalorder %s17, 1
    %p61 = por %p59, %p60
    %p63 = scmp.ne.s32.totalorder %s48, %s62
    %p64 = scmp.eq.s32.totalorder %s17, 0
    %p65 = por %p63, %p64
    %s67 = sadd.s32 %s66, 1
    %p70 = scmp.eq.s32.totalorder %s11, 1
    %p71 = scmp.ne.s32.totalorder %s66, %s68
    %p72 = scmp.eq.s32.totalorder %s11, 0
    %p73 = por %p71, %p72
    %p74 = scmp.ne.s32.totalorder %s66, %s68
    %p75 = scmp.eq.s32.totalorder %s16, 1
    %p76 = por %p74, %p75
    %p77 = scmp.ne.s32.totalorder %s68, %s69
    %p78 = scmp.eq.s32.totalorder %s16, 0
    %p79 = por %p77, %p78
    %p80 = scmp.ne.s32.totalorder %s68, %s69
    %p81 = scmp.eq.s32.totalorder %s17, 1
    %p82 = por %p80, %p81
    %p84 = scmp.ne.s32.totalorder %s69, %s83
    %p85 = scmp.eq.s32.totalorder %s17, 0
    %p86 = por %p84, %p85
    %s87 = ssub.s32 %s11, %s18
    %p88 = scmp.eq.s32.totalorder %s87, 0
    %s90 = sadd.s32 %s89, 1
    %s91 = scalar_select %p88, %s89, %s90
    %p94 = pneg %p88
    %p95 = scmp.eq.s32.totalorder %s11, 1
    %p96 = por %p94, %p95
    %p97 = scmp.ne.s32.totalorder %s89, %s92
    %p98 = scmp.eq.s32.totalorder %s11, 0
    %p99 = por %p97, %p98
    %p100 = scmp.ne.s32.totalorder %s89, %s92
    %p101 = scmp.eq.s32.totalorder %s16, 1
    %p102 = por %p100, %p101
    %p103 = scmp.ne.s32.totalorder %s92, %s93
    %p104 = scmp.eq.s32.totalorder %s16, 0
    %p105 = por %p103, %p104
    %p106 = scmp.ne.s32.totalorder %s92, %s93
    %p107 = scmp.eq.s32.totalorder %s17, 1
    %p108 = por %p106, %p107
    %p110 = scmp.ne.s32.totalorder %s93, %s109
    %p111 = scmp.eq.s32.totalorder %s17, 0
    %p112 = por %p110, %p111
    %s113 = ssub.s32 %s11, %s18
    %p114 = scmp.eq.s32.totalorder %s113, 0
    %s116 = sadd.s32 %s115, 1
    %s117 = scalar_select %p114, %s115, %s116
    %p120 = pneg %p114
    %p121 = scmp.eq.s32.totalorder %s11, 1
    %p122 = por %p120, %p121
    %p123 = scmp.ne.s32.totalorder %s115, %s118
    %p124 = scmp.eq.s32.totalorder %s11, 0
    %p125 = por %p123, %p124
    %p126 = scmp.ne.s32.totalorder %s115, %s118
    %p127 = scmp.eq.s32.totalorder %s16, 1
    %p128 = por %p126, %p127
    %p129 = scmp.ne.s32.totalorder %s118, %s119
    %p130 = scmp.eq.s32.totalorder %s16, 0
    %p131 = por %p129, %p130
    %p132 = scmp.ne.s32.totalorder %s118, %s119
    %p133 = scmp.eq.s32.totalorder %s17, 1
    %p134 = por %p132, %p133
    %p136 = scmp.ne.s32.totalorder %s119, %s135
    %p137 = scmp.eq.s32.totalorder %s17, 0
    %p138 = por %p136, %p137
    %p139 = scmp.le.s32.totalorder 1, %s11
    %p140 = scmp.lt.s32.totalorder %s11, 3
    %p141 = pnand %p139, %p140
    %p142 = pneg %p141
    // Predicated region
    $region9: #{basic_block.3} parent=5 // pred_check
      _
    $region10: #{basic_block.3} parent=5 // pred_check_branch
      %144 = sbr.rel (%p141) target = $region12
    $region11: #{basic_block.3} parent=5 // pred_region
      %s145 = ssub.s32 %s11, 1
      // Predicated region
      $region13: #{basic_block.3} parent=11 // pred_check
        %p146 = pneg %p58
      $region14: #{basic_block.3} parent=11 // pred_check_branch
        %148 = sbr.rel (%p146) target = $region16
      $region15: #{basic_block.3} parent=11 // pred_region
        _
      $region16: #{basic_block.3} parent=11 // pred_fallthru
        _
      // Predicated region
      $region17: #{basic_block.3} parent=11 // pred_check
        %p149 = pneg %p79
      $region18: #{basic_block.3} parent=11 // pred_check_branch
        %151 = sbr.rel (%p149) target = $region20
      $region19: #{basic_block.3} parent=11 // pred_region
        _
      $region20: #{basic_block.3} parent=11 // pred_fallthru
        _
    $region12: #{basic_block.3} parent=5 // pred_fallthru
      _
    %p152 = scmp.lt.s32.totalorder %s11, 2
    // Predicated region
    $region21: #{basic_block.3} parent=5 // pred_check
      %p153 = pneg %p152
    $region22: #{basic_block.3} parent=5 // pred_check_branch
      %155 = sbr.rel (%p153) target = $region24
    $region23: #{basic_block.3} parent=5 // pred_region
      // Predicated region
      $region25: #{basic_block.3} parent=23 // pred_check
        %p156 = pneg %p31
      $region26: #{basic_block.3} parent=23 // pred_check_branch
        %158 = sbr.rel (%p156) target = $region28
      $region27: #{basic_block.3} parent=23 // pred_region
        %p159 = scmp.lt.s32.totalorder %s11, 1
        %s160 = scalar_select %p159, %s11, 1
        %s161 = smul.addr %s160, 32
        %s162 = smul.addr %s161, 4
        %s163 = scalar_lea.vmem %s0, %s162
      $region28: #{basic_block.3} parent=23 // pred_fallthru
        _
    $region24: #{basic_block.3} parent=5 // pred_fallthru
      _
    %p164 = scmp.le.s32.totalorder 1, %s11
    %p165 = scmp.lt.s32.totalorder %s11, 3
    %p166 = pnand %p164, %p165
    %p167 = pneg %p166
    // Predicated region
    $region29: #{basic_block.3} parent=5 // pred_check
      _
    $region30: #{basic_block.3} parent=5 // pred_check_branch
      %169 = sbr.rel (%p166) target = $region32
    $region31: #{basic_block.3} parent=5 // pred_region
      %s170 = ssub.s32 %s11, 1
      %p171 = scmp.lt.s32.totalorder %s16, 1
      %s172 = scalar_select %p171, %s16, 1
      %s173 = smul.addr %s172, 32
      %s174 = smul.addr %s173, 4
      %s175 = scalar_lea.vmem %s0, %s174
      %p176 = pneg %p37
      %p177 = pneg %p34
      %p178 = pneg %p58
      %p179 = pneg %p55
      %p180 = pneg %p79
      %p181 = pneg %p76
      %p182 = pneg %p105
      %p183 = pneg %p102
      %p184 = scmp.lt.s32.totalorder %s16, 1
      %s185 = scalar_select %p184, %s16, 1
      %s186 = smul.addr %s185, 32
      %s187 = smul.addr %s186, 4
      %s188 = scalar_lea.vmem %s3, %s187
      %p189 = pneg %p131
      %p190 = pneg %p128
      %p191 = scmp.lt.s32.totalorder %s16, 1
      %s192 = scalar_select %p191, %s16, 1
      %s193 = smul.addr %s192, 2
      %s194 = scalar_lea.vmem %s4, %s193
      %p195 = scmp.lt.s32.totalorder %s16, 1
      %s196 = scalar_select %p195, %s16, 1
      %s197 = smul.addr %s196, 32
      %s198 = smul.addr %s197, 4
      %s199 = scalar_lea.vmem %s0, %s198
      %p200 = scmp.lt.s32.totalorder %s16, 1
      %s201 = scalar_select %p200, %s16, 1
      %s202 = smul.addr %s201, 32
      %s203 = smul.addr %s202, 4
      %s204 = scalar_lea.vmem %s3, %s203
      %p205 = scmp.lt.s32.totalorder %s16, 1
      %s206 = scalar_select %p205, %s16, 1
      %s207 = smul.addr %s206, 2
      %s208 = scalar_lea.vmem %s4, %s207
      %v210 = vld [vmem:[%s199] sm:$0xf]
      %v211 = vld [vmem:[%s199 + $0x4] sm:$0xf]
      %v212 = vld [vmem:[%s199 + $0x8] sm:$0xf]
      %v213 = vld [vmem:[%s199 + $0xc] sm:$0xf]
      %v214 = vld [vmem:[%s199 + $0x10] sm:$0xf]
      %v215 = vld [vmem:[%s199 + $0x14] sm:$0xf]
      %v216 = vld [vmem:[%s199 + $0x18] sm:$0xf]
      %v217 = vld [vmem:[%s199 + $0x1c] sm:$0xf]
      %v218 = vld [vmem:[%s199 + $0x20] sm:$0xf]
      %v219 = vld [vmem:[%s199 + $0x24] sm:$0xf]
      %v220 = vld [vmem:[%s199 + $0x28] sm:$0xf]
      %v221 = vld [vmem:[%s199 + $0x2c] sm:$0xf]
      %v222 = vld [vmem:[%s199 + $0x30] sm:$0xf]
      %v223 = vld [vmem:[%s199 + $0x34] sm:$0xf]
      %v224 = vld [vmem:[%s199 + $0x38] sm:$0xf]
      %v225 = vld [vmem:[%s199 + $0x3c] sm:$0xf]
      %v226 = vld [vmem:[%s199 + $0x40] sm:$0xf]
      %v227 = vld [vmem:[%s199 + $0x44] sm:$0xf]
      %v228 = vld [vmem:[%s199 + $0x48] sm:$0xf]
      %v229 = vld [vmem:[%s199 + $0x4c] sm:$0xf]
      %v230 = vld [vmem:[%s199 + $0x50] sm:$0xf]
      %v231 = vld [vmem:[%s199 + $0x54] sm:$0xf]
      %v232 = vld [vmem:[%s199 + $0x58] sm:$0xf]
      %v233 = vld [vmem:[%s199 + $0x5c] sm:$0xf]
      %v234 = vld [vmem:[%s199 + $0x60] sm:$0xf]
      %v235 = vld [vmem:[%s199 + $0x64] sm:$0xf]
      %v236 = vld [vmem:[%s199 + $0x68] sm:$0xf]
      %v237 = vld [vmem:[%s199 + $0x6c] sm:$0xf]
      %v238 = vld [vmem:[%s199 + $0x70] sm:$0xf]
      %v239 = vld [vmem:[%s199 + $0x74] sm:$0xf]
      %v240 = vld [vmem:[%s199 + $0x78] sm:$0xf]
      %v241 = vld [vmem:[%s199 + $0x7c] sm:$0xf]
      %v242 = vld [vmem:[%s2] sm:$0xff]
      %v243 = vld [vmem:[%s2 + $0x8] sm:$0xff]
      %v244 = vld [vmem:[%s2 + $0x10] sm:$0xff]
      %v245 = vld [vmem:[%s2 + $0x18] sm:$0xff]
      %v246 = vld [vmem:[%s2 + $0x20] sm:$0xff]
      %v247 = vld [vmem:[%s2 + $0x28] sm:$0xff]
      %v248 = vld [vmem:[%s2 + $0x30] sm:$0xff]
      %v249 = vld [vmem:[%s2 + $0x38] sm:$0xff]
      %v250 = vld [vmem:[%s2 + $0x40] sm:$0xff]
      %v251 = vld [vmem:[%s2 + $0x48] sm:$0xff]
      %v252 = vld [vmem:[%s2 + $0x50] sm:$0xff]
      %v253 = vld [vmem:[%s2 + $0x58] sm:$0xff]
      %v254 = vld [vmem:[%s2 + $0x60] sm:$0xff]
      %v255 = vld [vmem:[%s2 + $0x68] sm:$0xff]
      %v256 = vld [vmem:[%s2 + $0x70] sm:$0xff]
      %v257 = vld [vmem:[%s2 + $0x78] sm:$0xff]
      %v258 = vld [vmem:[%s2 + $0x80] sm:$0xff]
      %v259 = vld [vmem:[%s2 + $0x88] sm:$0xff]
      %v260 = vld [vmem:[%s2 + $0x90] sm:$0xff]
      %v261 = vld [vmem:[%s2 + $0x98] sm:$0xff]
      %v262 = vld [vmem:[%s2 + $0xa0] sm:$0xff]
      %v263 = vld [vmem:[%s2 + $0xa8] sm:$0xff]
      %v264 = vld [vmem:[%s2 + $0xb0] sm:$0xff]
      %v265 = vld [vmem:[%s2 + $0xb8] sm:$0xff]
      %v266 = vld [vmem:[%s2 + $0xc0] sm:$0xff]
      %v267 = vld [vmem:[%s2 + $0xc8] sm:$0xff]
      %v268 = vld [vmem:[%s2 + $0xd0] sm:$0xff]
      %v269 = vld [vmem:[%s2 + $0xd8] sm:$0xff]
      %v270 = vld [vmem:[%s2 + $0xe0] sm:$0xff]
      %v271 = vld [vmem:[%s2 + $0xe8] sm:$0xff]
      %v272 = vld [vmem:[%s2 + $0xf0] sm:$0xff]
      %v273 = vld [vmem:[%s2 + $0xf8] sm:$0xff]
      %s274 = scalar_lea.vmem %s2, 256
      %v275 = vld [vmem:[%s274] sm:$0xff]
      %v276 = vld [vmem:[%s274 + $0x8] sm:$0xff]
      %v277 = vld [vmem:[%s274 + $0x10] sm:$0xff]
      %v278 = vld [vmem:[%s274 + $0x18] sm:$0xff]
      %v279 = vld [vmem:[%s274 + $0x20] sm:$0xff]
      %v280 = vld [vmem:[%s274 + $0x28] sm:$0xff]
      %v281 = vld [vmem:[%s274 + $0x30] sm:$0xff]
      %v282 = vld [vmem:[%s274 + $0x38] sm:$0xff]
      %v283 = vld [vmem:[%s274 + $0x40] sm:$0xff]
      %v284 = vld [vmem:[%s274 + $0x48] sm:$0xff]
      %v285 = vld [vmem:[%s274 + $0x50] sm:$0xff]
      %v286 = vld [vmem:[%s274 + $0x58] sm:$0xff]
      %v287 = vld [vmem:[%s274 + $0x60] sm:$0xff]
      %v288 = vld [vmem:[%s274 + $0x68] sm:$0xff]
      %v289 = vld [vmem:[%s274 + $0x70] sm:$0xff]
      %v290 = vld [vmem:[%s274 + $0x78] sm:$0xff]
      %v291 = vld [vmem:[%s274 + $0x80] sm:$0xff]
      %v292 = vld [vmem:[%s274 + $0x88] sm:$0xff]
      %v293 = vld [vmem:[%s274 + $0x90] sm:$0xff]
      %v294 = vld [vmem:[%s274 + $0x98] sm:$0xff]
      %v295 = vld [vmem:[%s274 + $0xa0] sm:$0xff]
      %v296 = vld [vmem:[%s274 + $0xa8] sm:$0xff]
      %v297 = vld [vmem:[%s274 + $0xb0] sm:$0xff]
      %v298 = vld [vmem:[%s274 + $0xb8] sm:$0xff]
      %v299 = vld [vmem:[%s274 + $0xc0] sm:$0xff]
      %v300 = vld [vmem:[%s274 + $0xc8] sm:$0xff]
      %v301 = vld [vmem:[%s274 + $0xd0] sm:$0xff]
      %v302 = vld [vmem:[%s274 + $0xd8] sm:$0xff]
      %v303 = vld [vmem:[%s274 + $0xe0] sm:$0xff]
      %v304 = vld [vmem:[%s274 + $0xe8] sm:$0xff]
      %v305 = vld [vmem:[%s274 + $0xf0] sm:$0xff]
      %v306 = vld [vmem:[%s274 + $0xf8] sm:$0xff]
      %s307 = scalar_lea.vmem %s2, 512
      %v308 = vld [vmem:[%s307] sm:$0xff]
      %v309 = vld [vmem:[%s307 + $0x8] sm:$0xff]
      %v310 = vld [vmem:[%s307 + $0x10] sm:$0xff]
      %v311 = vld [vmem:[%s307 + $0x18] sm:$0xff]
      %v312 = vld [vmem:[%s307 + $0x20] sm:$0xff]
      %v313 = vld [vmem:[%s307 + $0x28] sm:$0xff]
      %v314 = vld [vmem:[%s307 + $0x30] sm:$0xff]
      %v315 = vld [vmem:[%s307 + $0x38] sm:$0xff]
      %v316 = vld [vmem:[%s307 + $0x40] sm:$0xff]
      %v317 = vld [vmem:[%s307 + $0x48] sm:$0xff]
      %v318 = vld [vmem:[%s307 + $0x50] sm:$0xff]
      %v319 = vld [vmem:[%s307 + $0x58] sm:$0xff]
      %v320 = vld [vmem:[%s307 + $0x60] sm:$0xff]
      %v321 = vld [vmem:[%s307 + $0x68] sm:$0xff]
      %v322 = vld [vmem:[%s307 + $0x70] sm:$0xff]
      %v323 = vld [vmem:[%s307 + $0x78] sm:$0xff]
      %v324 = vld [vmem:[%s307 + $0x80] sm:$0xff]
      %v325 = vld [vmem:[%s307 + $0x88] sm:$0xff]
      %v326 = vld [vmem:[%s307 + $0x90] sm:$0xff]
      %v327 = vld [vmem:[%s307 + $0x98] sm:$0xff]
      %v328 = vld [vmem:[%s307 + $0xa0] sm:$0xff]
      %v329 = vld [vmem:[%s307 + $0xa8] sm:$0xff]
      %v330 = vld [vmem:[%s307 + $0xb0] sm:$0xff]
      %v331 = vld [vmem:[%s307 + $0xb8] sm:$0xff]
      %v332 = vld [vmem:[%s307 + $0xc0] sm:$0xff]
      %v333 = vld [vmem:[%s307 + $0xc8] sm:$0xff]
      %v334 = vld [vmem:[%s307 + $0xd0] sm:$0xff]
      %v335 = vld [vmem:[%s307 + $0xd8] sm:$0xff]
      %v336 = vld [vmem:[%s307 + $0xe0] sm:$0xff]
      %v337 = vld [vmem:[%s307 + $0xe8] sm:$0xff]
      %v338 = vld [vmem:[%s307 + $0xf0] sm:$0xff]
      %v339 = vld [vmem:[%s307 + $0xf8] sm:$0xff]
      %s340 = scalar_lea.vmem %s2, 768
      %v341 = vld [vmem:[%s340] sm:$0xff]
      %v342 = vld [vmem:[%s340 + $0x8] sm:$0xff]
      %v343 = vld [vmem:[%s340 + $0x10] sm:$0xff]
      %v344 = vld [vmem:[%s340 + $0x18] sm:$0xff]
      %v345 = vld [vmem:[%s340 + $0x20] sm:$0xff]
      %v346 = vld [vmem:[%s340 + $0x28] sm:$0xff]
      %v347 = vld [vmem:[%s340 + $0x30] sm:$0xff]
      %v348 = vld [vmem:[%s340 + $0x38] sm:$0xff]
      %v349 = vld [vmem:[%s340 + $0x40] sm:$0xff]
      %v350 = vld [vmem:[%s340 + $0x48] sm:$0xff]
      %v351 = vld [vmem:[%s340 + $0x50] sm:$0xff]
      %v352 = vld [vmem:[%s340 + $0x58] sm:$0xff]
      %v353 = vld [vmem:[%s340 + $0x60] sm:$0xff]
      %v354 = vld [vmem:[%s340 + $0x68] sm:$0xff]
      %v355 = vld [vmem:[%s340 + $0x70] sm:$0xff]
      %v356 = vld [vmem:[%s340 + $0x78] sm:$0xff]
      %v357 = vld [vmem:[%s340 + $0x80] sm:$0xff]
      %v358 = vld [vmem:[%s340 + $0x88] sm:$0xff]
      %v359 = vld [vmem:[%s340 + $0x90] sm:$0xff]
      %v360 = vld [vmem:[%s340 + $0x98] sm:$0xff]
      %v361 = vld [vmem:[%s340 + $0xa0] sm:$0xff]
      %v362 = vld [vmem:[%s340 + $0xa8] sm:$0xff]
      %v363 = vld [vmem:[%s340 + $0xb0] sm:$0xff]
      %v364 = vld [vmem:[%s340 + $0xb8] sm:$0xff]
      %v365 = vld [vmem:[%s340 + $0xc0] sm:$0xff]
      %v366 = vld [vmem:[%s340 + $0xc8] sm:$0xff]
      %v367 = vld [vmem:[%s340 + $0xd0] sm:$0xff]
      %v368 = vld [vmem:[%s340 + $0xd8] sm:$0xff]
      %v369 = vld [vmem:[%s340 + $0xe0] sm:$0xff]
      %v370 = vld [vmem:[%s340 + $0xe8] sm:$0xff]
      %v371 = vld [vmem:[%s340 + $0xf0] sm:$0xff]
      %v372 = vld [vmem:[%s340 + $0xf8] sm:$0xff]
      %v373 = vld [vmem:[%s1] sm:$0xf]
      %v374 = vld [vmem:[%s1 + $0x4] sm:$0xf]
      %v375 = vld [vmem:[%s1 + $0x8] sm:$0xf]
      %v376 = vld [vmem:[%s1 + $0xc] sm:$0xf]
      %v377 = vld [vmem:[%s1 + $0x10] sm:$0xf]
      %v378 = vld [vmem:[%s1 + $0x14] sm:$0xf]
      %v379 = vld [vmem:[%s1 + $0x18] sm:$0xf]
      %v380 = vld [vmem:[%s1 + $0x1c] sm:$0xf]
      %v413 = vunpack.c.l.b16 %v210
      %v414 = vunpack.c.l.b16 %v211
      %v415 = vunpack.c.l.b16 %v212
      %v416 = vunpack.c.l.b16 %v213
      %v417 = vunpack.c.l.b16 %v214
      %v418 = vunpack.c.l.b16 %v215
      %v419 = vunpack.c.l.b16 %v216
      %v420 = vunpack.c.l.b16 %v217
      %v421 = vunpack.c.l.b16 %v218
      %v422 = vunpack.c.l.b16 %v219
      %v423 = vunpack.c.l.b16 %v220
      %v424 = vunpack.c.l.b16 %v221
      %v425 = vunpack.c.l.b16 %v222
      %v426 = vunpack.c.l.b16 %v223
      %v427 = vunpack.c.l.b16 %v224
      %v428 = vunpack.c.l.b16 %v225
      %v429 = vunpack.c.l.b16 %v226
      %v430 = vunpack.c.l.b16 %v227
      %v431 = vunpack.c.l.b16 %v228
      %v432 = vunpack.c.l.b16 %v229
      %v433 = vunpack.c.l.b16 %v230
      %v434 = vunpack.c.l.b16 %v231
      %v435 = vunpack.c.l.b16 %v232
      %v436 = vunpack.c.l.b16 %v233
      %v437 = vunpack.c.l.b16 %v234
      %v438 = vunpack.c.l.b16 %v235
      %v439 = vunpack.c.l.b16 %v236
      %v440 = vunpack.c.l.b16 %v237
      %v441 = vunpack.c.l.b16 %v238
      %v442 = vunpack.c.l.b16 %v239
      %v443 = vunpack.c.l.b16 %v240
      %v444 = vunpack.c.l.b16 %v241
      %v445 = vpack.c.b16 %v414, %v413
      %v446 = vpack.c.b16 %v416, %v415
      %v447 = vpack.c.b16 %v418, %v417
      %v448 = vpack.c.b16 %v420, %v419
      %v449 = vpack.c.b16 %v422, %v421
      %v450 = vpack.c.b16 %v424, %v423
      %v451 = vpack.c.b16 %v426, %v425
      %v452 = vpack.c.b16 %v428, %v427
      %v453 = vpack.c.b16 %v430, %v429
      %v454 = vpack.c.b16 %v432, %v431
      %v455 = vpack.c.b16 %v434, %v433
      %v456 = vpack.c.b16 %v436, %v435
      %v457 = vpack.c.b16 %v438, %v437
      %v458 = vpack.c.b16 %v440, %v439
      %v459 = vpack.c.b16 %v442, %v441
      %v460 = vpack.c.b16 %v444, %v443
      %v469 = vunpack.c.l.b16 %v373
      %v470 = vunpack.c.l.b16 %v374
      %v471 = vunpack.c.l.b16 %v375
      %v472 = vunpack.c.l.b16 %v376
      %v473 = vunpack.c.l.b16 %v377
      %v474 = vunpack.c.l.b16 %v378
      %v475 = vunpack.c.l.b16 %v379
      %v476 = vunpack.c.l.b16 %v380
      %v477 = vpack.c.b16 %v470, %v469
      %v478 = vpack.c.b16 %v472, %v471
      %v479 = vpack.c.b16 %v474, %v473
      %v480 = vpack.c.b16 %v476, %v475
      %vm485 = vcmask 523264
      %v487 = vsel %vm485, %v445, 0
      %v490 = vsel %vm485, %v446, 0
      %v493 = vsel %vm485, %v447, 0
      %v496 = vsel %vm485, %v448, 0
      %v499 = vsel %vm485, %v449, 0
      %v502 = vsel %vm485, %v450, 0
      %v505 = vsel %vm485, %v451, 0
      %v508 = vsel %vm485, %v452, 0
      %v511 = vsel %vm485, %v453, 0
      %v514 = vsel %vm485, %v454, 0
      %v517 = vsel %vm485, %v455, 0
      %v520 = vsel %vm485, %v456, 0
      %v523 = vsel %vm485, %v457, 0
      %v526 = vsel %vm485, %v458, 0
      %v529 = vsel %vm485, %v459, 0
      %v532 = vsel %vm485, %v460, 0
      %534 = vmatprep.subr.bf16.mxu0 0
      %535 = vmatpush1.bf16.msra.mxu0 %v477
      %536 = vmatprep.subr.bf16.mxu0 0
      %537 = vmatpush1.bf16.msra.mxu0 %v478
      %538 = vmatprep.subr.bf16.mxu0 0
      %539 = vmatpush1.bf16.msra.mxu0 %v479
      %540 = vmatprep.subr.bf16.mxu0 0
      %541 = vmatpush1.bf16.msra.mxu0 %v480
      %542 = vmatprep.subr.bf16.mxu0 0
      %543 = vmatpush1.bf16.msra.mxu0 0
      %544 = vmatprep.subr.bf16.mxu0 0
      %545 = vmatpush1.bf16.msra.mxu0 0
      %546 = vmatprep.subr.bf16.mxu0 0
      %547 = vmatpush1.bf16.msra.mxu0 0
      %548 = vmatprep.subr.bf16.mxu0 0
      %549 = vmatpush1.bf16.msra.mxu0 0
      %550 = vmatprep.subr.bf16.mxu0 0
      %551 = vmatpush1.bf16.msra.mxu0 0
      %552 = vmatprep.subr.bf16.mxu0 0
      %553 = vmatpush1.bf16.msra.mxu0 0
      %554 = vmatprep.subr.bf16.mxu0 0
      %555 = vmatpush1.bf16.msra.mxu0 0
      %556 = vmatprep.subr.bf16.mxu0 0
      %557 = vmatpush1.bf16.msra.mxu0 0
      %558 = vmatprep.subr.bf16.mxu0 0
      %559 = vmatpush1.bf16.msra.mxu0 0
      %560 = vmatprep.subr.bf16.mxu0 0
      %561 = vmatpush1.bf16.msra.mxu0 0
      %562 = vmatprep.subr.bf16.mxu0 0
      %563 = vmatpush1.bf16.msra.mxu0 0
      %564 = vmatprep.subr.bf16.mxu0 0
      %565 = vmatpush1.bf16.msra.mxu0 0
      %566 = vmatprep.mubr.bf16.mxu0 0
      %567 = vmatmul.mubr.bf16.gmra.mrb[0].mxu0 %v487
      %v568 = vpop.f32.mrb[0].mxu0
      %v569 = vadd.f32 0.0, %v568
      %v570 = vpop.f32.mrb[0].mxu0
      %v571 = vpop.f32.mrb[0].mxu0
      %v572 = vadd.f32 0.0, %v571
      %v573 = vpop.f32.mrb[0].mxu0
      %574 = vmatprep.mubr.bf16.mxu0 0
      %575 = vmatmul.mubr.bf16.gmra.mrb[0].mxu0 %v490
      %v576 = vpop.f32.mrb[0].mxu0
      %v577 = vadd.f32 0.0, %v576
      %v578 = vpop.f32.mrb[0].mxu0
      %v579 = vpop.f32.mrb[0].mxu0
      %v580 = vadd.f32 0.0, %v579
      %v581 = vpop.f32.mrb[0].mxu0
      %582 = vmatprep.mubr.bf16.mxu0 0
      %583 = vmatmul.mubr.bf16.gmra.mrb[0].mxu0 %v493
      %v584 = vpop.f32.mrb[0].mxu0
      %v585 = vadd.f32 0.0, %v584
      %v586 = vpop.f32.mrb[0].mxu0
      %v587 = vpop.f32.mrb[0].mxu0
      %v588 = vadd.f32 0.0, %v587
      %v589 = vpop.f32.mrb[0].mxu0
      %590 = vmatprep.mubr.bf16.mxu0 0
      %591 = vmatmul.mubr.bf16.gmra.mrb[0].mxu0 %v496
      %v592 = vpop.f32.mrb[0].mxu0
      %v593 = vadd.f32 0.0, %v592
      %v594 = vpop.f32.mrb[0].mxu0
      %v595 = vpop.f32.mrb[0].mxu0
      %v596 = vadd.f32 0.0, %v595
      %v597 = vpop.f32.mrb[0].mxu0
      %598 = vmatprep.mubr.bf16.mxu0 0
      %599 = vmatmul.mubr.bf16.gmra.mrb[0].mxu0 %v499
      %v600 = vpop.f32.mrb[0].mxu0
      %v601 = vadd.f32 0.0, %v600
      %v602 = vpop.f32.mrb[0].mxu0
      %v603 = vpop.f32.mrb[0].mxu0
      %v604 = vadd.f32 0.0, %v603
      %v605 = vpop.f32.mrb[0].mxu0
      %606 = vmatprep.mubr.bf16.mxu0 0
      %607 = vmatmul.mubr.bf16.gmra.mrb[0].mxu0 %v502
      %v608 = vpop.f32.mrb[0].mxu0
      %v609 = vadd.f32 0.0, %v608
      %v610 = vpop.f32.mrb[0].mxu0
      %v611 = vpop.f32.mrb[0].mxu0
      %v612 = vadd.f32 0.0, %v611
      %v613 = vpop.f32.mrb[0].mxu0
      %614 = vmatprep.mubr.bf16.mxu0 0
      %615 = vmatmul.mubr.bf16.gmra.mrb[0].mxu0 %v505
      %v616 = vpop.f32.mrb[0].mxu0
      %v617 = vadd.f32 0.0, %v616
      %v618 = vpop.f32.mrb[0].mxu0
      %v619 = vpop.f32.mrb[0].mxu0
      %v620 = vadd.f32 0.0, %v619
      %v621 = vpop.f32.mrb[0].mxu0
      %622 = vmatprep.mubr.bf16.mxu0 0
      %623 = vmatmul.mubr.bf16.gmra.mrb[0].mxu0 %v508
      %v624 = vpop.f32.mrb[0].mxu0
      %v625 = vadd.f32 0.0, %v624
      %v626 = vpop.f32.mrb[0].mxu0
      %v627 = vpop.f32.mrb[0].mxu0
      %v628 = vadd.f32 0.0, %v627
      %v629 = vpop.f32.mrb[0].mxu0
      %630 = vmatprep.mubr.bf16.mxu0 0
      %631 = vmatmul.mubr.bf16.gmra.mrb[0].mxu0 %v511
      %v632 = vpop.f32.mrb[0].mxu0
      %v633 = vadd.f32 0.0, %v632
      %v634 = vpop.f32.mrb[0].mxu0
      %v635 = vpop.f32.mrb[0].mxu0
      %v636 = vadd.f32 0.0, %v635
      %v637 = vpop.f32.mrb[0].mxu0
      %638 = vmatprep.mubr.bf16.mxu0 0
      %639 = vmatmul.mubr.bf16.gmra.mrb[0].mxu0 %v514
      %v640 = vpop.f32.mrb[0].mxu0
      %v641 = vadd.f32 0.0, %v640
      %v642 = vpop.f32.mrb[0].mxu0
      %v643 = vpop.f32.mrb[0].mxu0
      %v644 = vadd.f32 0.0, %v643
      %v645 = vpop.f32.mrb[0].mxu0
      %646 = vmatprep.mubr.bf16.mxu0 0
      %647 = vmatmul.mubr.bf16.gmra.mrb[0].mxu0 %v517
      %v648 = vpop.f32.mrb[0].mxu0
      %v649 = vadd.f32 0.0, %v648
      %v650 = vpop.f32.mrb[0].mxu0
      %v651 = vpop.f32.mrb[0].mxu0
      %v652 = vadd.f32 0.0, %v651
      %v653 = vpop.f32.mrb[0].mxu0
      %654 = vmatprep.mubr.bf16.mxu0 0
      %655 = vmatmul.mubr.bf16.gmra.mrb[0].mxu0 %v520
      %v656 = vpop.f32.mrb[0].mxu0
      %v657 = vadd.f32 0.0, %v656
      %v658 = vpop.f32.mrb[0].mxu0
      %v659 = vpop.f32.mrb[0].mxu0
      %v660 = vadd.f32 0.0, %v659
      %v661 = vpop.f32.mrb[0].mxu0
      %662 = vmatprep.mubr.bf16.mxu0 0
      %663 = vmatmul.mubr.bf16.gmra.mrb[0].mxu0 %v523
      %v664 = vpop.f32.mrb[0].mxu0
      %v665 = vadd.f32 0.0, %v664
      %v666 = vpop.f32.mrb[0].mxu0
      %v667 = vpop.f32.mrb[0].mxu0
      %v668 = vadd.f32 0.0, %v667
      %v669 = vpop.f32.mrb[0].mxu0
      %670 = vmatprep.mubr.bf16.mxu0 0
      %671 = vmatmul.mubr.bf16.gmra.mrb[0].mxu0 %v526
      %v672 = vpop.f32.mrb[0].mxu0
      %v673 = vadd.f32 0.0, %v672
      %v674 = vpop.f32.mrb[0].mxu0
      %v675 = vpop.f32.mrb[0].mxu0
      %v676 = vadd.f32 0.0, %v675
      %v677 = vpop.f32.mrb[0].mxu0
      %678 = vmatprep.mubr.bf16.mxu0 0
      %679 = vmatmul.mubr.bf16.gmra.mrb[0].mxu0 %v529
      %v680 = vpop.f32.mrb[0].mxu0
      %v681 = vadd.f32 0.0, %v680
      %v682 = vpop.f32.mrb[0].mxu0
      %v683 = vpop.f32.mrb[0].mxu0
      %v684 = vadd.f32 0.0, %v683
      %v685 = vpop.f32.mrb[0].mxu0
      %686 = vmatprep.mubr.bf16.mxu0 0
      %687 = vmatmul.mubr.bf16.gmra.mrb[0].mxu0 %v532
      %v688 = vpop.f32.mrb[0].mxu0
      %v689 = vadd.f32 0.0, %v688
      %v690 = vpop.f32.mrb[0].mxu0
      %v691 = vpop.f32.mrb[0].mxu0
      %v692 = vadd.f32 0.0, %v691
      %v693 = vpop.f32.mrb[0].mxu0
      %694 = vdwg.mxu0
      %v695 = vrot.slane %v569, 7
      %v696 = vrot.slane %v572, 7
      %v697 = vrot.slane %v577, 7
      %v698 = vrot.slane %v580, 7
      %v699 = vrot.slane %v585, 7
      %v700 = vrot.slane %v588, 7
      %v701 = vrot.slane %v593, 7
      %v702 = vrot.slane %v596, 7
      %v703 = vrot.slane %v601, 7
      %v704 = vrot.slane %v604, 7
      %v705 = vrot.slane %v609, 7
      %v706 = vrot.slane %v612, 7
      %v707 = vrot.slane %v617, 7
      %v708 = vrot.slane %v620, 7
      %v709 = vrot.slane %v625, 7
      %v710 = vrot.slane %v628, 7
      %v711 = vrot.slane %v633, 7
      %v712 = vrot.slane %v636, 7
      %v713 = vrot.slane %v641, 7
      %v714 = vrot.slane %v644, 7
      %v715 = vrot.slane %v649, 7
      %v716 = vrot.slane %v652, 7
      %v717 = vrot.slane %v657, 7
      %v718 = vrot.slane %v660, 7
      %v719 = vrot.slane %v665, 7
      %v720 = vrot.slane %v668, 7
      %v721 = vrot.slane %v673, 7
      %v722 = vrot.slane %v676, 7
      %v723 = vrot.slane %v681, 7
      %v724 = vrot.slane %v684, 7
      %v725 = vrot.slane %v689, 7
      %v726 = vrot.slane %v692, 7
      %v727 = vlaneseq
      %v728 = vshrl.u32 %v727, 7
      %vm729 = vcmp.lt.s32.totalorder %v728, 1
      %v730 = vsel %vm729, %v725, %v726
      %v731 = vsel %vm729, %v724, %v725
      %v732 = vsel %vm729, %v723, %v724
      %v733 = vsel %vm729, %v722, %v723
      %v734 = vsel %vm729, %v721, %v722
      %v735 = vsel %vm729, %v720, %v721
      %v736 = vsel %vm729, %v719, %v720
      %v737 = vsel %vm729, %v718, %v719
      %v738 = vsel %vm729, %v717, %v718
      %v739 = vsel %vm729, %v716, %v717
      %v740 = vsel %vm729, %v715, %v716
      %v741 = vsel %vm729, %v714, %v715
      %v742 = vsel %vm729, %v713, %v714
      %v743 = vsel %vm729, %v712, %v713
      %v744 = vsel %vm729, %v711, %v712
      %v745 = vsel %vm729, %v710, %v711
      %v746 = vsel %vm729, %v709, %v710
      %v747 = vsel %vm729, %v708, %v709
      %v748 = vsel %vm729, %v707, %v708
      %v749 = vsel %vm729, %v706, %v707
      %v750 = vsel %vm729, %v705, %v706
      %v751 = vsel %vm729, %v704, %v705
      %v752 = vsel %vm729, %v703, %v704
      %v753 = vsel %vm729, %v702, %v703
      %v754 = vsel %vm729, %v701, %v702
      %v755 = vsel %vm729, %v700, %v701
      %v756 = vsel %vm729, %v699, %v700
      %v757 = vsel %vm729, %v698, %v699
      %v758 = vsel %vm729, %v697, %v698
      %v759 = vsel %vm729, %v696, %v697
      %v760 = vsel %vm729, %v695, %v696
      %v761 = vsel %vm729, %v726, %v695
      %763 = vset.pattern.permute.xlu0 0
      %764 = vperm.xlu0 %763, %v242
      %v765 = vpop.permute.xlu0 %764
      %768 = vset.pattern.permute.xlu0 0
      %769 = vperm.xlu0 %768, %v243
      %v770 = vpop.permute.xlu0 %769
      %773 = vset.pattern.permute.xlu0 0
      %774 = vperm.xlu0 %773, %v244
      %v775 = vpop.permute.xlu0 %774
      %778 = vset.pattern.permute.xlu0 0
      %779 = vperm.xlu0 %778, %v245
      %v780 = vpop.permute.xlu0 %779
      %783 = vset.pattern.permute.xlu0 0
      %784 = vperm.xlu0 %783, %v246
      %v785 = vpop.permute.xlu0 %784
      %788 = vset.pattern.permute.xlu0 0
      %789 = vperm.xlu0 %788, %v247
      %v790 = vpop.permute.xlu0 %789
      %793 = vset.pattern.permute.xlu0 0
      %794 = vperm.xlu0 %793, %v248
      %v795 = vpop.permute.xlu0 %794
      %798 = vset.pattern.permute.xlu0 0
      %799 = vperm.xlu0 %798, %v249
      %v800 = vpop.permute.xlu0 %799
      %803 = vset.pattern.permute.xlu0 0
      %804 = vperm.xlu0 %803, %v250
      %v805 = vpop.permute.xlu0 %804
      %808 = vset.pattern.permute.xlu0 0
      %809 = vperm.xlu0 %808, %v251
      %v810 = vpop.permute.xlu0 %809
      %813 = vset.pattern.permute.xlu0 0
      %814 = vperm.xlu0 %813, %v252
      %v815 = vpop.permute.xlu0 %814
      %818 = vset.pattern.permute.xlu0 0
      %819 = vperm.xlu0 %818, %v253
      %v820 = vpop.permute.xlu0 %819
      %823 = vset.pattern.permute.xlu0 0
      %824 = vperm.xlu0 %823, %v254
      %v825 = vpop.permute.xlu0 %824
      %828 = vset.pattern.permute.xlu0 0
      %829 = vperm.xlu0 %828, %v255
      %v830 = vpop.permute.xlu0 %829
      %833 = vset.pattern.permute.xlu0 0
      %834 = vperm.xlu0 %833, %v256
      %v835 = vpop.permute.xlu0 %834
      %838 = vset.pattern.permute.xlu0 0
      %839 = vperm.xlu0 %838, %v257
      %v840 = vpop.permute.xlu0 %839
      %843 = vset.pattern.permute.xlu0 0
      %844 = vperm.xlu0 %843, %v258
      %v845 = vpop.permute.xlu0 %844
      %848 = vset.pattern.permute.xlu0 0
      %849 = vperm.xlu0 %848, %v259
      %v850 = vpop.permute.xlu0 %849
      %853 = vset.pattern.permute.xlu0 0
      %854 = vperm.xlu0 %853, %v260
      %v855 = vpop.permute.xlu0 %854
      %858 = vset.pattern.permute.xlu0 0
      %859 = vperm.xlu0 %858, %v261
      %v860 = vpop.permute.xlu0 %859
      %863 = vset.pattern.permute.xlu0 0
      %864 = vperm.xlu0 %863, %v262
      %v865 = vpop.permute.xlu0 %864
      %868 = vset.pattern.permute.xlu0 0
      %869 = vperm.xlu0 %868, %v263
      %v870 = vpop.permute.xlu0 %869
      %873 = vset.pattern.permute.xlu0 0
      %874 = vperm.xlu0 %873, %v264
      %v875 = vpop.permute.xlu0 %874
      %878 = vset.pattern.permute.xlu0 0
      %879 = vperm.xlu0 %878, %v265
      %v880 = vpop.permute.xlu0 %879
      %883 = vset.pattern.permute.xlu0 0
      %884 = vperm.xlu0 %883, %v266
      %v885 = vpop.permute.xlu0 %884
      %888 = vset.pattern.permute.xlu0 0
      %889 = vperm.xlu0 %888, %v267
      %v890 = vpop.permute.xlu0 %889
      %893 = vset.pattern.permute.xlu0 0
      %894 = vperm.xlu0 %893, %v268
      %v895 = vpop.permute.xlu0 %894
      %898 = vset.pattern.permute.xlu0 0
      %899 = vperm.xlu0 %898, %v269
      %v900 = vpop.permute.xlu0 %899
      %903 = vset.pattern.permute.xlu0 0
      %904 = vperm.xlu0 %903, %v270
      %v905 = vpop.permute.xlu0 %904
      %908 = vset.pattern.permute.xlu0 0
      %909 = vperm.xlu0 %908, %v271
      %v910 = vpop.permute.xlu0 %909
      %913 = vset.pattern.permute.xlu0 0
      %914 = vperm.xlu0 %913, %v272
      %v915 = vpop.permute.xlu0 %914
      %918 = vset.pattern.permute.xlu0 0
      %919 = vperm.xlu0 %918, %v273
      %v920 = vpop.permute.xlu0 %919
      %v922 = vmul.f32 %v731, %v765
      %v923 = vmul.f32 %v730, %v770
      %v924 = vmul.f32 %v761, %v775
      %v925 = vmul.f32 %v760, %v780
      %v926 = vmul.f32 %v759, %v785
      %v927 = vmul.f32 %v758, %v790
      %v928 = vmul.f32 %v757, %v795
      %v929 = vmul.f32 %v756, %v800
      %v930 = vmul.f32 %v755, %v805
      %v931 = vmul.f32 %v754, %v810
      %v932 = vmul.f32 %v753, %v815
      %v933 = vmul.f32 %v752, %v820
      %v934 = vmul.f32 %v751, %v825
      %v935 = vmul.f32 %v750, %v830
      %v936 = vmul.f32 %v749, %v835
      %v937 = vmul.f32 %v748, %v840
      %v938 = vmul.f32 %v747, %v845
      %v939 = vmul.f32 %v746, %v850
      %v940 = vmul.f32 %v745, %v855
      %v941 = vmul.f32 %v744, %v860
      %v942 = vmul.f32 %v743, %v865
      %v943 = vmul.f32 %v742, %v870
      %v944 = vmul.f32 %v741, %v875
      %v945 = vmul.f32 %v740, %v880
      %v946 = vmul.f32 %v739, %v885
      %v947 = vmul.f32 %v738, %v890
      %v948 = vmul.f32 %v737, %v895
      %v949 = vmul.f32 %v736, %v900
      %v950 = vmul.f32 %v735, %v905
      %v951 = vmul.f32 %v734, %v910
      %v952 = vmul.f32 %v733, %v915
      %v953 = vmul.f32 %v732, %v920
      %955 = vset.pattern.permute.xlu0 0
      %956 = vperm.xlu0 %955, %v308
      %v957 = vpop.permute.xlu0 %956
      %960 = vset.pattern.permute.xlu0 0
      %961 = vperm.xlu0 %960, %v309
      %v962 = vpop.permute.xlu0 %961
      %965 = vset.pattern.permute.xlu0 0
      %966 = vperm.xlu0 %965, %v310
      %v967 = vpop.permute.xlu0 %966
      %970 = vset.pattern.permute.xlu0 0
      %971 = vperm.xlu0 %970, %v311
      %v972 = vpop.permute.xlu0 %971
      %975 = vset.pattern.permute.xlu0 0
      %976 = vperm.xlu0 %975, %v312
      %v977 = vpop.permute.xlu0 %976
      %980 = vset.pattern.permute.xlu0 0
      %981 = vperm.xlu0 %980, %v313
      %v982 = vpop.permute.xlu0 %981
      %985 = vset.pattern.permute.xlu0 0
      %986 = vperm.xlu0 %985, %v314
      %v987 = vpop.permute.xlu0 %986
      %990 = vset.pattern.permute.xlu0 0
      %991 = vperm.xlu0 %990, %v315
      %v992 = vpop.permute.xlu0 %991
      %995 = vset.pattern.permute.xlu0 0
      %996 = vperm.xlu0 %995, %v316
      %v997 = vpop.permute.xlu0 %996
      %1000 = vset.pattern.permute.xlu0 0
      %1001 = vperm.xlu0 %1000, %v317
      %v1002 = vpop.permute.xlu0 %1001
      %1005 = vset.pattern.permute.xlu0 0
      %1006 = vperm.xlu0 %1005, %v318
      %v1007 = vpop.permute.xlu0 %1006
      %1010 = vset.pattern.permute.xlu0 0
      %1011 = vperm.xlu0 %1010, %v319
      %v1012 = vpop.permute.xlu0 %1011
      %1015 = vset.pattern.permute.xlu0 0
      %1016 = vperm.xlu0 %1015, %v320
      %v1017 = vpop.permute.xlu0 %1016
      %1020 = vset.pattern.permute.xlu0 0
      %1021 = vperm.xlu0 %1020, %v321
      %v1022 = vpop.permute.xlu0 %1021
      %1025 = vset.pattern.permute.xlu0 0
      %1026 = vperm.xlu0 %1025, %v322
      %v1027 = vpop.permute.xlu0 %1026
      %1030 = vset.pattern.permute.xlu0 0
      %1031 = vperm.xlu0 %1030, %v323
      %v1032 = vpop.permute.xlu0 %1031
      %1035 = vset.pattern.permute.xlu0 0
      %1036 = vperm.xlu0 %1035, %v324
      %v1037 = vpop.permute.xlu0 %1036
      %1040 = vset.pattern.permute.xlu0 0
      %1041 = vperm.xlu0 %1040, %v325
      %v1042 = vpop.permute.xlu0 %1041
      %1045 = vset.pattern.permute.xlu0 0
      %1046 = vperm.xlu0 %1045, %v326
      %v1047 = vpop.permute.xlu0 %1046
      %1050 = vset.pattern.permute.xlu0 0
      %1051 = vperm.xlu0 %1050, %v327
      %v1052 = vpop.permute.xlu0 %1051
      %1055 = vset.pattern.permute.xlu0 0
      %1056 = vperm.xlu0 %1055, %v328
      %v1057 = vpop.permute.xlu0 %1056
      %1060 = vset.pattern.permute.xlu0 0
      %1061 = vperm.xlu0 %1060, %v329
      %v1062 = vpop.permute.xlu0 %1061
      %1065 = vset.pattern.permute.xlu0 0
      %1066 = vperm.xlu0 %1065, %v330
      %v1067 = vpop.permute.xlu0 %1066
      %1070 = vset.pattern.permute.xlu0 0
      %1071 = vperm.xlu0 %1070, %v331
      %v1072 = vpop.permute.xlu0 %1071
      %1075 = vset.pattern.permute.xlu0 0
      %1076 = vperm.xlu0 %1075, %v332
      %v1077 = vpop.permute.xlu0 %1076
      %1080 = vset.pattern.permute.xlu0 0
      %1081 = vperm.xlu0 %1080, %v333
      %v1082 = vpop.permute.xlu0 %1081
      %1085 = vset.pattern.permute.xlu0 0
      %1086 = vperm.xlu0 %1085, %v334
      %v1087 = vpop.permute.xlu0 %1086
      %1090 = vset.pattern.permute.xlu0 0
      %1091 = vperm.xlu0 %1090, %v335
      %v1092 = vpop.permute.xlu0 %1091
      %1095 = vset.pattern.permute.xlu0 0
      %1096 = vperm.xlu0 %1095, %v336
      %v1097 = vpop.permute.xlu0 %1096
      %1100 = vset.pattern.permute.xlu0 0
      %1101 = vperm.xlu0 %1100, %v337
      %v1102 = vpop.permute.xlu0 %1101
      %1105 = vset.pattern.permute.xlu0 0
      %1106 = vperm.xlu0 %1105, %v338
      %v1107 = vpop.permute.xlu0 %1106
      %1110 = vset.pattern.permute.xlu0 0
      %1111 = vperm.xlu0 %1110, %v339
      %v1112 = vpop.permute.xlu0 %1111
      %v1114 = vmul.f32 %v922, %v957
      %v1115 = vmul.f32 %v923, %v962
      %v1116 = vmul.f32 %v924, %v967
      %v1117 = vmul.f32 %v925, %v972
      %v1118 = vmul.f32 %v926, %v977
      %v1119 = vmul.f32 %v927, %v982
      %v1120 = vmul.f32 %v928, %v987
      %v1121 = vmul.f32 %v929, %v992
      %v1122 = vmul.f32 %v930, %v997
      %v1123 = vmul.f32 %v931, %v1002
      %v1124 = vmul.f32 %v932, %v1007
      %v1125 = vmul.f32 %v933, %v1012
      %v1126 = vmul.f32 %v934, %v1017
      %v1127 = vmul.f32 %v935, %v1022
      %v1128 = vmul.f32 %v936, %v1027
      %v1129 = vmul.f32 %v937, %v1032
      %v1130 = vmul.f32 %v938, %v1037
      %v1131 = vmul.f32 %v939, %v1042
      %v1132 = vmul.f32 %v940, %v1047
      %v1133 = vmul.f32 %v941, %v1052
      %v1134 = vmul.f32 %v942, %v1057
      %v1135 = vmul.f32 %v943, %v1062
      %v1136 = vmul.f32 %v944, %v1067
      %v1137 = vmul.f32 %v945, %v1072
      %v1138 = vmul.f32 %v946, %v1077
      %v1139 = vmul.f32 %v947, %v1082
      %v1140 = vmul.f32 %v948, %v1087
      %v1141 = vmul.f32 %v949, %v1092
      %v1142 = vmul.f32 %v950, %v1097
      %v1143 = vmul.f32 %v951, %v1102
      %v1144 = vmul.f32 %v952, %v1107
      %v1145 = vmul.f32 %v953, %v1112
      %s1146 = scalar_lea.vmem %s1, 32
      %v1147 = vld [vmem:[%s1146] sm:$0xf]
      %v1148 = vld [vmem:[%s1146 + $0x4] sm:$0xf]
      %v1149 = vld [vmem:[%s1146 + $0x8] sm:$0xf]
      %v1150 = vld [vmem:[%s1146 + $0xc] sm:$0xf]
      %v1151 = vld [vmem:[%s1146 + $0x10] sm:$0xf]
      %v1152 = vld [vmem:[%s1146 + $0x14] sm:$0xf]
      %v1153 = vld [vmem:[%s1146 + $0x18] sm:$0xf]
      %v1154 = vld [vmem:[%s1146 + $0x1c] sm:$0xf]
      %v1163 = vunpack.c.l.b16 %v1147
      %v1164 = vunpack.c.l.b16 %v1148
      %v1165 = vunpack.c.l.b16 %v1149
      %v1166 = vunpack.c.l.b16 %v1150
      %v1167 = vunpack.c.l.b16 %v1151
      %v1168 = vunpack.c.l.b16 %v1152
      %v1169 = vunpack.c.l.b16 %v1153
      %v1170 = vunpack.c.l.b16 %v1154
      %v1171 = vpack.c.b16 %v1164, %v1163
      %v1172 = vpack.c.b16 %v1166, %v1165
      %v1173 = vpack.c.b16 %v1168, %v1167
      %v1174 = vpack.c.b16 %v1170, %v1169
      %1179 = vmatprep.subr.bf16.mxu0 0
      %1180 = vmatpush1.bf16.msra.mxu0 %v1171
      %1181 = vmatprep.subr.bf16.mxu0 0
      %1182 = vmatpush1.bf16.msra.mxu0 %v1172
      %1183 = vmatprep.subr.bf16.mxu0 0
      %1184 = vmatpush1.bf16.msra.mxu0 %v1173
      %1185 = vmatprep.subr.bf16.mxu0 0
      %1186 = vmatpush1.bf16.msra.mxu0 %v1174
      %1187 = vmatprep.subr.bf16.mxu0 0
      %1188 = vmatpush1.bf16.msra.mxu0 0
      %1189 = vmatprep.subr.bf16.mxu0 0
      %1190 = vmatpush1.bf16.msra.mxu0 0
      %1191 = vmatprep.subr.bf16.mxu0 0
      %1192 = vmatpush1.bf16.msra.mxu0 0
      %1193 = vmatprep.subr.bf16.mxu0 0
      %1194 = vmatpush1.bf16.msra.mxu0 0
      %1195 = vmatprep.subr.bf16.mxu0 0
      %1196 = vmatpush1.bf16.msra.mxu0 0
      %1197 = vmatprep.subr.bf16.mxu0 0
      %1198 = vmatpush1.bf16.msra.mxu0 0
      %1199 = vmatprep.subr.bf16.mxu0 0
      %1200 = vmatpush1.bf16.msra.mxu0 0
      %1201 = vmatprep.subr.bf16.mxu0 0
      %1202 = vmatpush1.bf16.msra.mxu0 0
      %1203 = vmatprep.subr.bf16.mxu0 0
      %1204 = vmatpush1.bf16.msra.mxu0 0
      %1205 = vmatprep.subr.bf16.mxu0 0
      %1206 = vmatpush1.bf16.msra.mxu0 0
      %1207 = vmatprep.subr.bf16.mxu0 0
      %1208 = vmatpush1.bf16.msra.mxu0 0
      %1209 = vmatprep.subr.bf16.mxu0 0
      %1210 = vmatpush1.bf16.msra.mxu0 0
      %1211 = vmatprep.mubr.bf16.mxu0 0
      %1212 = vmatmul.mubr.bf16.gmra.mrb[0].mxu0 %v487
      %v1213 = vpop.f32.mrb[0].mxu0
      %v1214 = vadd.f32 0.0, %v1213
      %v1215 = vpop.f32.mrb[0].mxu0
      %v1216 = vpop.f32.mrb[0].mxu0
      %v1217 = vadd.f32 0.0, %v1216
      %v1218 = vpop.f32.mrb[0].mxu0
      %1219 = vmatprep.mubr.bf16.mxu0 0
      %1220 = vmatmul.mubr.bf16.gmra.mrb[0].mxu0 %v490
      %v1221 = vpop.f32.mrb[0].mxu0
      %v1222 = vadd.f32 0.0, %v1221
      %v1223 = vpop.f32.mrb[0].mxu0
      %v1224 = vpop.f32.mrb[0].mxu0
      %v1225 = vadd.f32 0.0, %v1224
      %v1226 = vpop.f32.mrb[0].mxu0
      %1227 = vmatprep.mubr.bf16.mxu0 0
      %1228 = vmatmul.mubr.bf16.gmra.mrb[0].mxu0 %v493
      %v1229 = vpop.f32.mrb[0].mxu0
      %v1230 = vadd.f32 0.0, %v1229
      %v1231 = vpop.f32.mrb[0].mxu0
      %v1232 = vpop.f32.mrb[0].mxu0
      %v1233 = vadd.f32 0.0, %v1232
      %v1234 = vpop.f32.mrb[0].mxu0
      %1235 = vmatprep.mubr.bf16.mxu0 0
      %1236 = vmatmul.mubr.bf16.gmra.mrb[0].mxu0 %v496
      %v1237 = vpop.f32.mrb[0].mxu0
      %v1238 = vadd.f32 0.0, %v1237
      %v1239 = vpop.f32.mrb[0].mxu0
      %v1240 = vpop.f32.mrb[0].mxu0
      %v1241 = vadd.f32 0.0, %v1240
      %v1242 = vpop.f32.mrb[0].mxu0
      %1243 = vmatprep.mubr.bf16.mxu0 0
      %1244 = vmatmul.mubr.bf16.gmra.mrb[0].mxu0 %v499
      %v1245 = vpop.f32.mrb[0].mxu0
      %v1246 = vadd.f32 0.0, %v1245
      %v1247 = vpop.f32.mrb[0].mxu0
      %v1248 = vpop.f32.mrb[0].mxu0
      %v1249 = vadd.f32 0.0, %v1248
      %v1250 = vpop.f32.mrb[0].mxu0
      %1251 = vmatprep.mubr.bf16.mxu0 0
      %1252 = vmatmul.mubr.bf16.gmra.mrb[0].mxu0 %v502
      %v1253 = vpop.f32.mrb[0].mxu0
      %v1254 = vadd.f32 0.0, %v1253
      %v1255 = vpop.f32.mrb[0].mxu0
      %v1256 = vpop.f32.mrb[0].mxu0
      %v1257 = vadd.f32 0.0, %v1256
      %v1258 = vpop.f32.mrb[0].mxu0
      %1259 = vmatprep.mubr.bf16.mxu0 0
      %1260 = vmatmul.mubr.bf16.gmra.mrb[0].mxu0 %v505
      %v1261 = vpop.f32.mrb[0].mxu0
      %v1262 = vadd.f32 0.0, %v1261
      %v1263 = vpop.f32.mrb[0].mxu0
      %v1264 = vpop.f32.mrb[0].mxu0
      %v1265 = vadd.f32 0.0, %v1264
      %v1266 = vpop.f32.mrb[0].mxu0
      %1267 = vmatprep.mubr.bf16.mxu0 0
      %1268 = vmatmul.mubr.bf16.gmra.mrb[0].mxu0 %v508
      %v1269 = vpop.f32.mrb[0].mxu0
      %v1270 = vadd.f32 0.0, %v1269
      %v1271 = vpop.f32.mrb[0].mxu0
      %v1272 = vpop.f32.mrb[0].mxu0
      %v1273 = vadd.f32 0.0, %v1272
      %v1274 = vpop.f32.mrb[0].mxu0
      %1275 = vmatprep.mubr.bf16.mxu0 0
      %1276 = vmatmul.mubr.bf16.gmra.mrb[0].mxu0 %v511
      %v1277 = vpop.f32.mrb[0].mxu0
      %v1278 = vadd.f32 0.0, %v1277
      %v1279 = vpop.f32.mrb[0].mxu0
      %v1280 = vpop.f32.mrb[0].mxu0
      %v1281 = vadd.f32 0.0, %v1280
      %v1282 = vpop.f32.mrb[0].mxu0
      %1283 = vmatprep.mubr.bf16.mxu0 0
      %1284 = vmatmul.mubr.bf16.gmra.mrb[0].mxu0 %v514
      %v1285 = vpop.f32.mrb[0].mxu0
      %v1286 = vadd.f32 0.0, %v1285
      %v1287 = vpop.f32.mrb[0].mxu0
      %v1288 = vpop.f32.mrb[0].mxu0
      %v1289 = vadd.f32 0.0, %v1288
      %v1290 = vpop.f32.mrb[0].mxu0
      %1291 = vmatprep.mubr.bf16.mxu0 0
      %1292 = vmatmul.mubr.bf16.gmra.mrb[0].mxu0 %v517
      %v1293 = vpop.f32.mrb[0].mxu0
      %v1294 = vadd.f32 0.0, %v1293
      %v1295 = vpop.f32.mrb[0].mxu0
      %v1296 = vpop.f32.mrb[0].mxu0
      %v1297 = vadd.f32 0.0, %v1296
      %v1298 = vpop.f32.mrb[0].mxu0
      %1299 = vmatprep.mubr.bf16.mxu0 0
      %1300 = vmatmul.mubr.bf16.gmra.mrb[0].mxu0 %v520
      %v1301 = vpop.f32.mrb[0].mxu0
      %v1302 = vadd.f32 0.0, %v1301
      %v1303 = vpop.f32.mrb[0].mxu0
      %v1304 = vpop.f32.mrb[0].mxu0
      %v1305 = vadd.f32 0.0, %v1304
      %v1306 = vpop.f32.mrb[0].mxu0
      %1307 = vmatprep.mubr.bf16.mxu0 0
      %1308 = vmatmul.mubr.bf16.gmra.mrb[0].mxu0 %v523
      %v1309 = vpop.f32.mrb[0].mxu0
      %v1310 = vadd.f32 0.0, %v1309
      %v1311 = vpop.f32.mrb[0].mxu0
      %v1312 = vpop.f32.mrb[0].mxu0
      %v1313 = vadd.f32 0.0, %v1312
      %v1314 = vpop.f32.mrb[0].mxu0
      %1315 = vmatprep.mubr.bf16.mxu0 0
      %1316 = vmatmul.mubr.bf16.gmra.mrb[0].mxu0 %v526
      %v1317 = vpop.f32.mrb[0].mxu0
      %v1318 = vadd.f32 0.0, %v1317
      %v1319 = vpop.f32.mrb[0].mxu0
      %v1320 = vpop.f32.mrb[0].mxu0
      %v1321 = vadd.f32 0.0, %v1320
      %v1322 = vpop.f32.mrb[0].mxu0
      %1323 = vmatprep.mubr.bf16.mxu0 0
      %1324 = vmatmul.mubr.bf16.gmra.mrb[0].mxu0 %v529
      %v1325 = vpop.f32.mrb[0].mxu0
      %v1326 = vadd.f32 0.0, %v1325
      %v1327 = vpop.f32.mrb[0].mxu0
      %v1328 = vpop.f32.mrb[0].mxu0
      %v1329 = vadd.f32 0.0, %v1328
      %v1330 = vpop.f32.mrb[0].mxu0
      %1331 = vmatprep.mubr.bf16.mxu0 0
      %1332 = vmatmul.mubr.bf16.gmra.mrb[0].mxu0 %v532
      %v1333 = vpop.f32.mrb[0].mxu0
      %v1334 = vadd.f32 0.0, %v1333
      %v1335 = vpop.f32.mrb[0].mxu0
      %v1336 = vpop.f32.mrb[0].mxu0
      %v1337 = vadd.f32 0.0, %v1336
      %v1338 = vpop.f32.mrb[0].mxu0
      %1339 = vdwg.mxu0
      %v1340 = vmul.f32 %v1334, %v765
      %v1341 = vmul.f32 %v1337, %v770
      %v1342 = vmul.f32 %v1214, %v775
      %v1343 = vmul.f32 %v1217, %v780
      %v1344 = vmul.f32 %v1222, %v785
      %v1345 = vmul.f32 %v1225, %v790
      %v1346 = vmul.f32 %v1230, %v795
      %v1347 = vmul.f32 %v1233, %v800
      %v1348 = vmul.f32 %v1238, %v805
      %v1349 = vmul.f32 %v1241, %v810
      %v1350 = vmul.f32 %v1246, %v815
      %v1351 = vmul.f32 %v1249, %v820
      %v1352 = vmul.f32 %v1254, %v825
      %v1353 = vmul.f32 %v1257, %v830
      %v1354 = vmul.f32 %v1262, %v835
      %v1355 = vmul.f32 %v1265, %v840
      %v1356 = vmul.f32 %v1270, %v845
      %v1357 = vmul.f32 %v1273, %v850
      %v1358 = vmul.f32 %v1278, %v855
      %v1359 = vmul.f32 %v1281, %v860
      %v1360 = vmul.f32 %v1286, %v865
      %v1361 = vmul.f32 %v1289, %v870
      %v1362 = vmul.f32 %v1294, %v875
      %v1363 = vmul.f32 %v1297, %v880
      %v1364 = vmul.f32 %v1302, %v885
      %v1365 = vmul.f32 %v1305, %v890
      %v1366 = vmul.f32 %v1310, %v895
      %v1367 = vmul.f32 %v1313, %v900
      %v1368 = vmul.f32 %v1318, %v905
      %v1369 = vmul.f32 %v1321, %v910
      %v1370 = vmul.f32 %v1326, %v915
      %v1371 = vmul.f32 %v1329, %v920
      %v1372 = vadd.f32 %v1114, %v1340
      %v1373 = vadd.f32 %v1115, %v1341
      %v1374 = vadd.f32 %v1116, %v1342
      %v1375 = vadd.f32 %v1117, %v1343
      %v1376 = vadd.f32 %v1118, %v1344
      %v1377 = vadd.f32 %v1119, %v1345
      %v1378 = vadd.f32 %v1120, %v1346
      %v1379 = vadd.f32 %v1121, %v1347
      %v1380 = vadd.f32 %v1122, %v1348
      %v1381 = vadd.f32 %v1123, %v1349
      %v1382 = vadd.f32 %v1124, %v1350
      %v1383 = vadd.f32 %v1125, %v1351
      %v1384 = vadd.f32 %v1126, %v1352
      %v1385 = vadd.f32 %v1127, %v1353
      %v1386 = vadd.f32 %v1128, %v1354
      %v1387 = vadd.f32 %v1129, %v1355
      %v1388 = vadd.f32 %v1130, %v1356
      %v1389 = vadd.f32 %v1131, %v1357
      %v1390 = vadd.f32 %v1132, %v1358
      %v1391 = vadd.f32 %v1133, %v1359
      %v1392 = vadd.f32 %v1134, %v1360
      %v1393 = vadd.f32 %v1135, %v1361
      %v1394 = vadd.f32 %v1136, %v1362
      %v1395 = vadd.f32 %v1137, %v1363
      %v1396 = vadd.f32 %v1138, %v1364
      %v1397 = vadd.f32 %v1139, %v1365
      %v1398 = vadd.f32 %v1140, %v1366
      %v1399 = vadd.f32 %v1141, %v1367
      %v1400 = vadd.f32 %v1142, %v1368
      %v1401 = vadd.f32 %v1143, %v1369
      %v1402 = vadd.f32 %v1144, %v1370
      %v1403 = vadd.f32 %v1145, %v1371
      %s1404 = scalar_lea.vmem %s1, 64
      %v1405 = vld [vmem:[%s1404] sm:$0xf]
      %v1406 = vld [vmem:[%s1404 + $0x4] sm:$0xf]
      %v1407 = vld [vmem:[%s1404 + $0x8] sm:$0xf]
      %v1408 = vld [vmem:[%s1404 + $0xc] sm:$0xf]
      %v1409 = vld [vmem:[%s1404 + $0x10] sm:$0xf]
      %v1410 = vld [vmem:[%s1404 + $0x14] sm:$0xf]
      %v1411 = vld [vmem:[%s1404 + $0x18] sm:$0xf]
      %v1412 = vld [vmem:[%s1404 + $0x1c] sm:$0xf]
      %v1421 = vunpack.c.l.b16 %v1405
      %v1422 = vunpack.c.l.b16 %v1406
      %v1423 = vunpack.c.l.b16 %v1407
      %v1424 = vunpack.c.l.b16 %v1408
      %v1425 = vunpack.c.l.b16 %v1409
      %v1426 = vunpack.c.l.b16 %v1410
      %v1427 = vunpack.c.l.b16 %v1411
      %v1428 = vunpack.c.l.b16 %v1412
      %v1429 = vpack.c.b16 %v1422, %v1421
      %v1430 = vpack.c.b16 %v1424, %v1423
      %v1431 = vpack.c.b16 %v1426, %v1425
      %v1432 = vpack.c.b16 %v1428, %v1427
      %1437 = vmatprep.subr.bf16.mxu0 0
      %1438 = vmatpush1.bf16.msra.mxu0 %v1429
      %1439 = vmatprep.subr.bf16.mxu0 0
      %1440 = vmatpush1.bf16.msra.mxu0 %v1430
      %1441 = vmatprep.subr.bf16.mxu0 0
      %1442 = vmatpush1.bf16.msra.mxu0 %v1431
      %1443 = vmatprep.subr.bf16.mxu0 0
      %1444 = vmatpush1.bf16.msra.mxu0 %v1432
      %1445 = vmatprep.subr.bf16.mxu0 0
      %1446 = vmatpush1.bf16.msra.mxu0 0
      %1447 = vmatprep.subr.bf16.mxu0 0
      %1448 = vmatpush1.bf16.msra.mxu0 0
      %1449 = vmatprep.subr.bf16.mxu0 0
      %1450 = vmatpush1.bf16.msra.mxu0 0
      %1451 = vmatprep.subr.bf16.mxu0 0
      %1452 = vmatpush1.bf16.msra.mxu0 0
      %1453 = vmatprep.subr.bf16.mxu0 0
      %1454 = vmatpush1.bf16.msra.mxu0 0
      %1455 = vmatprep.subr.bf16.mxu0 0
      %1456 = vmatpush1.bf16.msra.mxu0 0
      %1457 = vmatprep.subr.bf16.mxu0 0
      %1458 = vmatpush1.bf16.msra.mxu0 0
      %1459 = vmatprep.subr.bf16.mxu0 0
      %1460 = vmatpush1.bf16.msra.mxu0 0
      %1461 = vmatprep.subr.bf16.mxu0 0
      %1462 = vmatpush1.bf16.msra.mxu0 0
      %1463 = vmatprep.subr.bf16.mxu0 0
      %1464 = vmatpush1.bf16.msra.mxu0 0
      %1465 = vmatprep.subr.bf16.mxu0 0
      %1466 = vmatpush1.bf16.msra.mxu0 0
      %1467 = vmatprep.subr.bf16.mxu0 0
      %1468 = vmatpush1.bf16.msra.mxu0 0
      %1469 = vmatprep.mubr.bf16.mxu0 0
      %1470 = vmatmul.mubr.bf16.gmra.mrb[0].mxu0 %v487
      %v1471 = vpop.f32.mrb[0].mxu0
      %v1472 = vadd.f32 0.0, %v1471
      %v1473 = vpop.f32.mrb[0].mxu0
      %v1474 = vpop.f32.mrb[0].mxu0
      %v1475 = vadd.f32 0.0, %v1474
      %v1476 = vpop.f32.mrb[0].mxu0
      %1477 = vmatprep.mubr.bf16.mxu0 0
      %1478 = vmatmul.mubr.bf16.gmra.mrb[0].mxu0 %v490
      %v1479 = vpop.f32.mrb[0].mxu0
      %v1480 = vadd.f32 0.0, %v1479
      %v1481 = vpop.f32.mrb[0].mxu0
      %v1482 = vpop.f32.mrb[0].mxu0
      %v1483 = vadd.f32 0.0, %v1482
      %v1484 = vpop.f32.mrb[0].mxu0
      %1485 = vmatprep.mubr.bf16.mxu0 0
      %1486 = vmatmul.mubr.bf16.gmra.mrb[0].mxu0 %v493
      %v1487 = vpop.f32.mrb[0].mxu0
      %v1488 = vadd.f32 0.0, %v1487
      %v1489 = vpop.f32.mrb[0].mxu0
      %v1490 = vpop.f32.mrb[0].mxu0
      %v1491 = vadd.f32 0.0, %v1490
      %v1492 = vpop.f32.mrb[0].mxu0
      %1493 = vmatprep.mubr.bf16.mxu0 0
      %1494 = vmatmul.mubr.bf16.gmra.mrb[0].mxu0 %v496
      %v1495 = vpop.f32.mrb[0].mxu0
      %v1496 = vadd.f32 0.0, %v1495
      %v1497 = vpop.f32.mrb[0].mxu0
      %v1498 = vpop.f32.mrb[0].mxu0
      %v1499 = vadd.f32 0.0, %v1498
      %v1500 = vpop.f32.mrb[0].mxu0
      %1501 = vmatprep.mubr.bf16.mxu0 0
      %1502 = vmatmul.mubr.bf16.gmra.mrb[0].mxu0 %v499
      %v1503 = vpop.f32.mrb[0].mxu0
      %v1504 = vadd.f32 0.0, %v1503
      %v1505 = vpop.f32.mrb[0].mxu0
      %v1506 = vpop.f32.mrb[0].mxu0
      %v1507 = vadd.f32 0.0, %v1506
      %v1508 = vpop.f32.mrb[0].mxu0
      %1509 = vmatprep.mubr.bf16.mxu0 0
      %1510 = vmatmul.mubr.bf16.gmra.mrb[0].mxu0 %v502
      %v1511 = vpop.f32.mrb[0].mxu0
      %v1512 = vadd.f32 0.0, %v1511
      %v1513 = vpop.f32.mrb[0].mxu0
      %v1514 = vpop.f32.mrb[0].mxu0
      %v1515 = vadd.f32 0.0, %v1514
      %v1516 = vpop.f32.mrb[0].mxu0
      %1517 = vmatprep.mubr.bf16.mxu0 0
      %1518 = vmatmul.mubr.bf16.gmra.mrb[0].mxu0 %v505
      %v1519 = vpop.f32.mrb[0].mxu0
      %v1520 = vadd.f32 0.0, %v1519
      %v1521 = vpop.f32.mrb[0].mxu0
      %v1522 = vpop.f32.mrb[0].mxu0
      %v1523 = vadd.f32 0.0, %v1522
      %v1524 = vpop.f32.mrb[0].mxu0
      %1525 = vmatprep.mubr.bf16.mxu0 0
      %1526 = vmatmul.mubr.bf16.gmra.mrb[0].mxu0 %v508
      %v1527 = vpop.f32.mrb[0].mxu0
      %v1528 = vadd.f32 0.0, %v1527
      %v1529 = vpop.f32.mrb[0].mxu0
      %v1530 = vpop.f32.mrb[0].mxu0
      %v1531 = vadd.f32 0.0, %v1530
      %v1532 = vpop.f32.mrb[0].mxu0
      %1533 = vmatprep.mubr.bf16.mxu0 0
      %1534 = vmatmul.mubr.bf16.gmra.mrb[0].mxu0 %v511
      %v1535 = vpop.f32.mrb[0].mxu0
      %v1536 = vadd.f32 0.0, %v1535
      %v1537 = vpop.f32.mrb[0].mxu0
      %v1538 = vpop.f32.mrb[0].mxu0
      %v1539 = vadd.f32 0.0, %v1538
      %v1540 = vpop.f32.mrb[0].mxu0
      %1541 = vmatprep.mubr.bf16.mxu0 0
      %1542 = vmatmul.mubr.bf16.gmra.mrb[0].mxu0 %v514
      %v1543 = vpop.f32.mrb[0].mxu0
      %v1544 = vadd.f32 0.0, %v1543
      %v1545 = vpop.f32.mrb[0].mxu0
      %v1546 = vpop.f32.mrb[0].mxu0
      %v1547 = vadd.f32 0.0, %v1546
      %v1548 = vpop.f32.mrb[0].mxu0
      %1549 = vmatprep.mubr.bf16.mxu0 0
      %1550 = vmatmul.mubr.bf16.gmra.mrb[0].mxu0 %v517
      %v1551 = vpop.f32.mrb[0].mxu0
      %v1552 = vadd.f32 0.0, %v1551
      %v1553 = vpop.f32.mrb[0].mxu0
      %v1554 = vpop.f32.mrb[0].mxu0
      %v1555 = vadd.f32 0.0, %v1554
      %v1556 = vpop.f32.mrb[0].mxu0
      %1557 = vmatprep.mubr.bf16.mxu0 0
      %1558 = vmatmul.mubr.bf16.gmra.mrb[0].mxu0 %v520
      %v1559 = vpop.f32.mrb[0].mxu0
      %v1560 = vadd.f32 0.0, %v1559
      %v1561 = vpop.f32.mrb[0].mxu0
      %v1562 = vpop.f32.mrb[0].mxu0
      %v1563 = vadd.f32 0.0, %v1562
      %v1564 = vpop.f32.mrb[0].mxu0
      %1565 = vmatprep.mubr.bf16.mxu0 0
      %1566 = vmatmul.mubr.bf16.gmra.mrb[0].mxu0 %v523
      %v1567 = vpop.f32.mrb[0].mxu0
      %v1568 = vadd.f32 0.0, %v1567
      %v1569 = vpop.f32.mrb[0].mxu0
      %v1570 = vpop.f32.mrb[0].mxu0
      %v1571 = vadd.f32 0.0, %v1570
      %v1572 = vpop.f32.mrb[0].mxu0
      %1573 = vmatprep.mubr.bf16.mxu0 0
      %1574 = vmatmul.mubr.bf16.gmra.mrb[0].mxu0 %v526
      %v1575 = vpop.f32.mrb[0].mxu0
      %v1576 = vadd.f32 0.0, %v1575
      %v1577 = vpop.f32.mrb[0].mxu0
      %v1578 = vpop.f32.mrb[0].mxu0
      %v1579 = vadd.f32 0.0, %v1578
      %v1580 = vpop.f32.mrb[0].mxu0
      %1581 = vmatprep.mubr.bf16.mxu0 0
      %1582 = vmatmul.mubr.bf16.gmra.mrb[0].mxu0 %v529
      %v1583 = vpop.f32.mrb[0].mxu0
      %v1584 = vadd.f32 0.0, %v1583
      %v1585 = vpop.f32.mrb[0].mxu0
      %v1586 = vpop.f32.mrb[0].mxu0
      %v1587 = vadd.f32 0.0, %v1586
      %v1588 = vpop.f32.mrb[0].mxu0
      %1589 = vmatprep.mubr.bf16.mxu0 0
      %1590 = vmatmul.mubr.bf16.gmra.mrb[0].mxu0 %v532
      %v1591 = vpop.f32.mrb[0].mxu0
      %v1592 = vadd.f32 0.0, %v1591
      %v1593 = vpop.f32.mrb[0].mxu0
      %v1594 = vpop.f32.mrb[0].mxu0
      %v1595 = vadd.f32 0.0, %v1594
      %v1596 = vpop.f32.mrb[0].mxu0
      %1597 = vdwg.mxu0
      %v1598 = vrot.slane %v1472, 1
      %v1599 = vrot.slane %v1475, 1
      %v1600 = vrot.slane %v1480, 1
      %v1601 = vrot.slane %v1483, 1
      %v1602 = vrot.slane %v1488, 1
      %v1603 = vrot.slane %v1491, 1
      %v1604 = vrot.slane %v1496, 1
      %v1605 = vrot.slane %v1499, 1
      %v1606 = vrot.slane %v1504, 1
      %v1607 = vrot.slane %v1507, 1
      %v1608 = vrot.slane %v1512, 1
      %v1609 = vrot.slane %v1515, 1
      %v1610 = vrot.slane %v1520, 1
      %v1611 = vrot.slane %v1523, 1
      %v1612 = vrot.slane %v1528, 1
      %v1613 = vrot.slane %v1531, 1
      %v1614 = vrot.slane %v1536, 1
      %v1615 = vrot.slane %v1539, 1
      %v1616 = vrot.slane %v1544, 1
      %v1617 = vrot.slane %v1547, 1
      %v1618 = vrot.slane %v1552, 1
      %v1619 = vrot.slane %v1555, 1
      %v1620 = vrot.slane %v1560, 1
      %v1621 = vrot.slane %v1563, 1
      %v1622 = vrot.slane %v1568, 1
      %v1623 = vrot.slane %v1571, 1
      %v1624 = vrot.slane %v1576, 1
      %v1625 = vrot.slane %v1579, 1
      %v1626 = vrot.slane %v1584, 1
      %v1627 = vrot.slane %v1587, 1
      %v1628 = vrot.slane %v1592, 1
      %v1629 = vrot.slane %v1595, 1
      %vm1630 = vcmp.lt.s32.totalorder %v728, 7
      %v1631 = vsel %vm1630, %v1628, %v1629
      %v1632 = vsel %vm1630, %v1627, %v1628
      %v1633 = vsel %vm1630, %v1626, %v1627
      %v1634 = vsel %vm1630, %v1625, %v1626
      %v1635 = vsel %vm1630, %v1624, %v1625
      %v1636 = vsel %vm1630, %v1623, %v1624
      %v1637 = vsel %vm1630, %v1622, %v1623
      %v1638 = vsel %vm1630, %v1621, %v1622
      %v1639 = vsel %vm1630, %v1620, %v1621
      %v1640 = vsel %vm1630, %v1619, %v1620
      %v1641 = vsel %vm1630, %v1618, %v1619
      %v1642 = vsel %vm1630, %v1617, %v1618
      %v1643 = vsel %vm1630, %v1616, %v1617
      %v1644 = vsel %vm1630, %v1615, %v1616
      %v1645 = vsel %vm1630, %v1614, %v1615
      %v1646 = vsel %vm1630, %v1613, %v1614
      %v1647 = vsel %vm1630, %v1612, %v1613
      %v1648 = vsel %vm1630, %v1611, %v1612
      %v1649 = vsel %vm1630, %v1610, %v1611
      %v1650 = vsel %vm1630, %v1609, %v1610
      %v1651 = vsel %vm1630, %v1608, %v1609
      %v1652 = vsel %vm1630, %v1607, %v1608
      %v1653 = vsel %vm1630, %v1606, %v1607
      %v1654 = vsel %vm1630, %v1605, %v1606
      %v1655 = vsel %vm1630, %v1604, %v1605
      %v1656 = vsel %vm1630, %v1603, %v1604
      %v1657 = vsel %vm1630, %v1602, %v1603
      %v1658 = vsel %vm1630, %v1601, %v1602
      %v1659 = vsel %vm1630, %v1600, %v1601
      %v1660 = vsel %vm1630, %v1599, %v1600
      %v1661 = vsel %vm1630, %v1598, %v1599
      %v1662 = vsel %vm1630, %v1629, %v1598
      %v1663 = vmul.f32 %v1631, %v765
      %v1664 = vmul.f32 %v1662, %v770
      %v1665 = vmul.f32 %v1661, %v775
      %v1666 = vmul.f32 %v1660, %v780
      %v1667 = vmul.f32 %v1659, %v785
      %v1668 = vmul.f32 %v1658, %v790
      %v1669 = vmul.f32 %v1657, %v795
      %v1670 = vmul.f32 %v1656, %v800
      %v1671 = vmul.f32 %v1655, %v805
      %v1672 = vmul.f32 %v1654, %v810
      %v1673 = vmul.f32 %v1653, %v815
      %v1674 = vmul.f32 %v1652, %v820
      %v1675 = vmul.f32 %v1651, %v825
      %v1676 = vmul.f32 %v1650, %v830
      %v1677 = vmul.f32 %v1649, %v835
      %v1678 = vmul.f32 %v1648, %v840
      %v1679 = vmul.f32 %v1647, %v845
      %v1680 = vmul.f32 %v1646, %v850
      %v1681 = vmul.f32 %v1645, %v855
      %v1682 = vmul.f32 %v1644, %v860
      %v1683 = vmul.f32 %v1643, %v865
      %v1684 = vmul.f32 %v1642, %v870
      %v1685 = vmul.f32 %v1641, %v875
      %v1686 = vmul.f32 %v1640, %v880
      %v1687 = vmul.f32 %v1639, %v885
      %v1688 = vmul.f32 %v1638, %v890
      %v1689 = vmul.f32 %v1637, %v895
      %v1690 = vmul.f32 %v1636, %v900
      %v1691 = vmul.f32 %v1635, %v905
      %v1692 = vmul.f32 %v1634, %v910
      %v1693 = vmul.f32 %v1633, %v915
      %v1694 = vmul.f32 %v1632, %v920
      %1696 = vset.pattern.permute.xlu0 0
      %1697 = vperm.xlu0 %1696, %v341
      %v1698 = vpop.permute.xlu0 %1697
      %1701 = vset.pattern.permute.xlu0 0
      %1702 = vperm.xlu0 %1701, %v342
      %v1703 = vpop.permute.xlu0 %1702
      %1706 = vset.pattern.permute.xlu0 0
      %1707 = vperm.xlu0 %1706, %v343
      %v1708 = vpop.permute.xlu0 %1707
      %1711 = vset.pattern.permute.xlu0 0
      %1712 = vperm.xlu0 %1711, %v344
      %v1713 = vpop.permute.xlu0 %1712
      %1716 = vset.pattern.permute.xlu0 0
      %1717 = vperm.xlu0 %1716, %v345
      %v1718 = vpop.permute.xlu0 %1717
      %1721 = vset.pattern.permute.xlu0 0
      %1722 = vperm.xlu0 %1721, %v346
      %v1723 = vpop.permute.xlu0 %1722
      %1726 = vset.pattern.permute.xlu0 0
      %1727 = vperm.xlu0 %1726, %v347
      %v1728 = vpop.permute.xlu0 %1727
      %1731 = vset.pattern.permute.xlu0 0
      %1732 = vperm.xlu0 %1731, %v348
      %v1733 = vpop.permute.xlu0 %1732
      %1736 = vset.pattern.permute.xlu0 0
      %1737 = vperm.xlu0 %1736, %v349
      %v1738 = vpop.permute.xlu0 %1737
      %1741 = vset.pattern.permute.xlu0 0
      %1742 = vperm.xlu0 %1741, %v350
      %v1743 = vpop.permute.xlu0 %1742
      %1746 = vset.pattern.permute.xlu0 0
      %1747 = vperm.xlu0 %1746, %v351
      %v1748 = vpop.permute.xlu0 %1747
      %1751 = vset.pattern.permute.xlu0 0
      %1752 = vperm.xlu0 %1751, %v352
      %v1753 = vpop.permute.xlu0 %1752
      %1756 = vset.pattern.permute.xlu0 0
      %1757 = vperm.xlu0 %1756, %v353
      %v1758 = vpop.permute.xlu0 %1757
      %1761 = vset.pattern.permute.xlu0 0
      %1762 = vperm.xlu0 %1761, %v354
      %v1763 = vpop.permute.xlu0 %1762
      %1766 = vset.pattern.permute.xlu0 0
      %1767 = vperm.xlu0 %1766, %v355
      %v1768 = vpop.permute.xlu0 %1767
      %1771 = vset.pattern.permute.xlu0 0
      %1772 = vperm.xlu0 %1771, %v356
      %v1773 = vpop.permute.xlu0 %1772
      %1776 = vset.pattern.permute.xlu0 0
      %1777 = vperm.xlu0 %1776, %v357
      %v1778 = vpop.permute.xlu0 %1777
      %1781 = vset.pattern.permute.xlu0 0
      %1782 = vperm.xlu0 %1781, %v358
      %v1783 = vpop.permute.xlu0 %1782
      %1786 = vset.pattern.permute.xlu0 0
      %1787 = vperm.xlu0 %1786, %v359
      %v1788 = vpop.permute.xlu0 %1787
      %1791 = vset.pattern.permute.xlu0 0
      %1792 = vperm.xlu0 %1791, %v360
      %v1793 = vpop.permute.xlu0 %1792
      %1796 = vset.pattern.permute.xlu0 0
      %1797 = vperm.xlu0 %1796, %v361
      %v1798 = vpop.permute.xlu0 %1797
      %1801 = vset.pattern.permute.xlu0 0
      %1802 = vperm.xlu0 %1801, %v362
      %v1803 = vpop.permute.xlu0 %1802
      %1806 = vset.pattern.permute.xlu0 0
      %1807 = vperm.xlu0 %1806, %v363
      %v1808 = vpop.permute.xlu0 %1807
      %1811 = vset.pattern.permute.xlu0 0
      %1812 = vperm.xlu0 %1811, %v364
      %v1813 = vpop.permute.xlu0 %1812
      %1816 = vset.pattern.permute.xlu0 0
      %1817 = vperm.xlu0 %1816, %v365
      %v1818 = vpop.permute.xlu0 %1817
      %1821 = vset.pattern.permute.xlu0 0
      %1822 = vperm.xlu0 %1821, %v366
      %v1823 = vpop.permute.xlu0 %1822
      %1826 = vset.pattern.permute.xlu0 0
      %1827 = vperm.xlu0 %1826, %v367
      %v1828 = vpop.permute.xlu0 %1827
      %1831 = vset.pattern.permute.xlu0 0
      %1832 = vperm.xlu0 %1831, %v368
      %v1833 = vpop.permute.xlu0 %1832
      %1836 = vset.pattern.permute.xlu0 0
      %1837 = vperm.xlu0 %1836, %v369
      %v1838 = vpop.permute.xlu0 %1837
      %1841 = vset.pattern.permute.xlu0 0
      %1842 = vperm.xlu0 %1841, %v370
      %v1843 = vpop.permute.xlu0 %1842
      %1846 = vset.pattern.permute.xlu0 0
      %1847 = vperm.xlu0 %1846, %v371
      %v1848 = vpop.permute.xlu0 %1847
      %1851 = vset.pattern.permute.xlu0 0
      %1852 = vperm.xlu0 %1851, %v372
      %v1853 = vpop.permute.xlu0 %1852
      %v1855 = vmul.f32 %v1663, %v1698
      %v1856 = vmul.f32 %v1664, %v1703
      %v1857 = vmul.f32 %v1665, %v1708
      %v1858 = vmul.f32 %v1666, %v1713
      %v1859 = vmul.f32 %v1667, %v1718
      %v1860 = vmul.f32 %v1668, %v1723
      %v1861 = vmul.f32 %v1669, %v1728
      %v1862 = vmul.f32 %v1670, %v1733
      %v1863 = vmul.f32 %v1671, %v1738
      %v1864 = vmul.f32 %v1672, %v1743
      %v1865 = vmul.f32 %v1673, %v1748
      %v1866 = vmul.f32 %v1674, %v1753
      %v1867 = vmul.f32 %v1675, %v1758
      %v1868 = vmul.f32 %v1676, %v1763
      %v1869 = vmul.f32 %v1677, %v1768
      %v1870 = vmul.f32 %v1678, %v1773
      %v1871 = vmul.f32 %v1679, %v1778
      %v1872 = vmul.f32 %v1680, %v1783
      %v1873 = vmul.f32 %v1681, %v1788
      %v1874 = vmul.f32 %v1682, %v1793
      %v1875 = vmul.f32 %v1683, %v1798
      %v1876 = vmul.f32 %v1684, %v1803
      %v1877 = vmul.f32 %v1685, %v1808
      %v1878 = vmul.f32 %v1686, %v1813
      %v1879 = vmul.f32 %v1687, %v1818
      %v1880 = vmul.f32 %v1688, %v1823
      %v1881 = vmul.f32 %v1689, %v1828
      %v1882 = vmul.f32 %v1690, %v1833
      %v1883 = vmul.f32 %v1691, %v1838
      %v1884 = vmul.f32 %v1692, %v1843
      %v1885 = vmul.f32 %v1693, %v1848
      %v1886 = vmul.f32 %v1694, %v1853
      %v1887 = vadd.f32 %v1372, %v1855
      %v1888 = vadd.f32 %v1373, %v1856
      %v1889 = vadd.f32 %v1374, %v1857
      %v1890 = vadd.f32 %v1375, %v1858
      %v1891 = vadd.f32 %v1376, %v1859
      %v1892 = vadd.f32 %v1377, %v1860
      %v1893 = vadd.f32 %v1378, %v1861
      %v1894 = vadd.f32 %v1379, %v1862
      %v1895 = vadd.f32 %v1380, %v1863
      %v1896 = vadd.f32 %v1381, %v1864
      %v1897 = vadd.f32 %v1382, %v1865
      %v1898 = vadd.f32 %v1383, %v1866
      %v1899 = vadd.f32 %v1384, %v1867
      %v1900 = vadd.f32 %v1385, %v1868
      %v1901 = vadd.f32 %v1386, %v1869
      %v1902 = vadd.f32 %v1387, %v1870
      %v1903 = vadd.f32 %v1388, %v1871
      %v1904 = vadd.f32 %v1389, %v1872
      %v1905 = vadd.f32 %v1390, %v1873
      %v1906 = vadd.f32 %v1391, %v1874
      %v1907 = vadd.f32 %v1392, %v1875
      %v1908 = vadd.f32 %v1393, %v1876
      %v1909 = vadd.f32 %v1394, %v1877
      %v1910 = vadd.f32 %v1395, %v1878
      %v1911 = vadd.f32 %v1396, %v1879
      %v1912 = vadd.f32 %v1397, %v1880
      %v1913 = vadd.f32 %v1398, %v1881
      %v1914 = vadd.f32 %v1399, %v1882
      %v1915 = vadd.f32 %v1400, %v1883
      %v1916 = vadd.f32 %v1401, %v1884
      %v1917 = vadd.f32 %v1402, %v1885
      %v1918 = vadd.f32 %v1403, %v1886
      %1919 = vst.msk [vmem:[#allocation2] sm:$0xff] %vm485, %v1887
      %1920 = vst.msk [vmem:[#allocation2 + $0x8] sm:$0xff] %vm485, %v1888
      %1921 = vst.msk [vmem:[#allocation2 + $0x10] sm:$0xff] %vm485, %v1889
      %1922 = vst.msk [vmem:[#allocation2 + $0x18] sm:$0xff] %vm485, %v1890
      %1923 = vst.msk [vmem:[#allocation2 + $0x20] sm:$0xff] %vm485, %v1891
      %1924 = vst.msk [vmem:[#allocation2 + $0x28] sm:$0xff] %vm485, %v1892
      %1925 = vst.msk [vmem:[#allocation2 + $0x30] sm:$0xff] %vm485, %v1893
      %1926 = vst.msk [vmem:[#allocation2 + $0x38] sm:$0xff] %vm485, %v1894
      %1927 = vst.msk [vmem:[#allocation2 + $0x40] sm:$0xff] %vm485, %v1895
      %1928 = vst.msk [vmem:[#allocation2 + $0x48] sm:$0xff] %vm485, %v1896
      %1929 = vst.msk [vmem:[#allocation2 + $0x50] sm:$0xff] %vm485, %v1897
      %1930 = vst.msk [vmem:[#allocation2 + $0x58] sm:$0xff] %vm485, %v1898
      %1931 = vst.msk [vmem:[#allocation2 + $0x60] sm:$0xff] %vm485, %v1899
      %1932 = vst.msk [vmem:[#allocation2 + $0x68] sm:$0xff] %vm485, %v1900
      %1933 = vst.msk [vmem:[#allocation2 + $0x70] sm:$0xff] %vm485, %v1901
      %1934 = vst.msk [vmem:[#allocation2 + $0x78] sm:$0xff] %vm485, %v1902
      %1935 = vst.msk [vmem:[#allocation2 + $0x80] sm:$0xff] %vm485, %v1903
      %1936 = vst.msk [vmem:[#allocation2 + $0x88] sm:$0xff] %vm485, %v1904
      %1937 = vst.msk [vmem:[#allocation2 + $0x90] sm:$0xff] %vm485, %v1905
      %1938 = vst.msk [vmem:[#allocation2 + $0x98] sm:$0xff] %vm485, %v1906
      %1939 = vst.msk [vmem:[#allocation2 + $0xa0] sm:$0xff] %vm485, %v1907
      %1940 = vst.msk [vmem:[#allocation2 + $0xa8] sm:$0xff] %vm485, %v1908
      %1941 = vst.msk [vmem:[#allocation2 + $0xb0] sm:$0xff] %vm485, %v1909
      %1942 = vst.msk [vmem:[#allocation2 + $0xb8] sm:$0xff] %vm485, %v1910
      %1943 = vst.msk [vmem:[#allocation2 + $0xc0] sm:$0xff] %vm485, %v1911
      %1944 = vst.msk [vmem:[#allocation2 + $0xc8] sm:$0xff] %vm485, %v1912
      %1945 = vst.msk [vmem:[#allocation2 + $0xd0] sm:$0xff] %vm485, %v1913
      %1946 = vst.msk [vmem:[#allocation2 + $0xd8] sm:$0xff] %vm485, %v1914
      %1947 = vst.msk [vmem:[#allocation2 + $0xe0] sm:$0xff] %vm485, %v1915
      %1948 = vst.msk [vmem:[#allocation2 + $0xe8] sm:$0xff] %vm485, %v1916
      %1949 = vst.msk [vmem:[#allocation2 + $0xf0] sm:$0xff] %vm485, %v1917
      %1950 = vst.msk [vmem:[#allocation2 + $0xf8] sm:$0xff] %vm485, %v1918
      %s1951 = scalar_lea.vmem %s1, 96
      %v1952 = vld [vmem:[%s1951] sm:$0xf]
      %v1953 = vld [vmem:[%s1951 + $0x4] sm:$0xf]
      %v1954 = vld [vmem:[%s1951 + $0x8] sm:$0xf]
      %v1955 = vld [vmem:[%s1951 + $0xc] sm:$0xf]
      %v1956 = vld [vmem:[%s1951 + $0x10] sm:$0xf]
      %v1957 = vld [vmem:[%s1951 + $0x14] sm:$0xf]
      %v1958 = vld [vmem:[%s1951 + $0x18] sm:$0xf]
      %v1959 = vld [vmem:[%s1951 + $0x1c] sm:$0xf]
      %v1968 = vunpack.c.l.b16 %v1952
      %v1969 = vunpack.c.l.b16 %v1953
      %v1970 = vunpack.c.l.b16 %v1954
      %v1971 = vunpack.c.l.b16 %v1955
      %v1972 = vunpack.c.l.b16 %v1956
      %v1973 = vunpack.c.l.b16 %v1957
      %v1974 = vunpack.c.l.b16 %v1958
      %v1975 = vunpack.c.l.b16 %v1959
      %v1976 = vpack.c.b16 %v1969, %v1968
      %v1977 = vpack.c.b16 %v1971, %v1970
      %v1978 = vpack.c.b16 %v1973, %v1972
      %v1979 = vpack.c.b16 %v1975, %v1974
      %1984 = vmatprep.subr.bf16.mxu0 0
      %1985 = vmatpush1.bf16.msra.mxu0 %v1976
      %1986 = vmatprep.subr.bf16.mxu0 0
      %1987 = vmatpush1.bf16.msra.mxu0 %v1977
      %1988 = vmatprep.subr.bf16.mxu0 0
      %1989 = vmatpush1.bf16.msra.mxu0 %v1978
      %1990 = vmatprep.subr.bf16.mxu0 0
      %1991 = vmatpush1.bf16.msra.mxu0 %v1979
      %1992 = vmatprep.subr.bf16.mxu0 0
      %1993 = vmatpush1.bf16.msra.mxu0 0
      %1994 = vmatprep.subr.bf16.mxu0 0
      %1995 = vmatpush1.bf16.msra.mxu0 0
      %1996 = vmatprep.subr.bf16.mxu0 0
      %1997 = vmatpush1.bf16.msra.mxu0 0
      %1998 = vmatprep.subr.bf16.mxu0 0
      %1999 = vmatpush1.bf16.msra.mxu0 0
      %2000 = vmatprep.subr.bf16.mxu0 0
      %2001 = vmatpush1.bf16.msra.mxu0 0
      %2002 = vmatprep.subr.bf16.mxu0 0
      %2003 = vmatpush1.bf16.msra.mxu0 0
      %2004 = vmatprep.subr.bf16.mxu0 0
      %2005 = vmatpush1.bf16.msra.mxu0 0
      %2006 = vmatprep.subr.bf16.mxu0 0
      %2007 = vmatpush1.bf16.msra.mxu0 0
      %2008 = vmatprep.subr.bf16.mxu0 0
      %2009 = vmatpush1.bf16.msra.mxu0 0
      %2010 = vmatprep.subr.bf16.mxu0 0
      %2011 = vmatpush1.bf16.msra.mxu0 0
      %2012 = vmatprep.subr.bf16.mxu0 0
      %2013 = vmatpush1.bf16.msra.mxu0 0
      %2014 = vmatprep.subr.bf16.mxu0 0
      %2015 = vmatpush1.bf16.msra.mxu0 0
      %2016 = vmatprep.mubr.bf16.mxu0 0
      %2017 = vmatmul.mubr.bf16.gmra.mrb[0].mxu0 %v487
      %v2018 = vpop.f32.mrb[0].mxu0
      %v2019 = vadd.f32 0.0, %v2018
      %v2020 = vpop.f32.mrb[0].mxu0
      %v2021 = vpop.f32.mrb[0].mxu0
      %v2022 = vadd.f32 0.0, %v2021
      %v2023 = vpop.f32.mrb[0].mxu0
      %2024 = vmatprep.mubr.bf16.mxu0 0
      %2025 = vmatmul.mubr.bf16.gmra.mrb[0].mxu0 %v490
      %v2026 = vpop.f32.mrb[0].mxu0
      %v2027 = vadd.f32 0.0, %v2026
      %v2028 = vpop.f32.mrb[0].mxu0
      %v2029 = vpop.f32.mrb[0].mxu0
      %v2030 = vadd.f32 0.0, %v2029
      %v2031 = vpop.f32.mrb[0].mxu0
      %2032 = vmatprep.mubr.bf16.mxu0 0
      %2033 = vmatmul.mubr.bf16.gmra.mrb[0].mxu0 %v493
      %v2034 = vpop.f32.mrb[0].mxu0
      %v2035 = vadd.f32 0.0, %v2034
      %v2036 = vpop.f32.mrb[0].mxu0
      %v2037 = vpop.f32.mrb[0].mxu0
      %v2038 = vadd.f32 0.0, %v2037
      %v2039 = vpop.f32.mrb[0].mxu0
      %2040 = vmatprep.mubr.bf16.mxu0 0
      %2041 = vmatmul.mubr.bf16.gmra.mrb[0].mxu0 %v496
      %v2042 = vpop.f32.mrb[0].mxu0
      %v2043 = vadd.f32 0.0, %v2042
      %v2044 = vpop.f32.mrb[0].mxu0
      %v2045 = vpop.f32.mrb[0].mxu0
      %v2046 = vadd.f32 0.0, %v2045
      %v2047 = vpop.f32.mrb[0].mxu0
      %2048 = vmatprep.mubr.bf16.mxu0 0
      %2049 = vmatmul.mubr.bf16.gmra.mrb[0].mxu0 %v499
      %v2050 = vpop.f32.mrb[0].mxu0
      %v2051 = vadd.f32 0.0, %v2050
      %v2052 = vpop.f32.mrb[0].mxu0
      %v2053 = vpop.f32.mrb[0].mxu0
      %v2054 = vadd.f32 0.0, %v2053
      %v2055 = vpop.f32.mrb[0].mxu0
      %2056 = vmatprep.mubr.bf16.mxu0 0
      %2057 = vmatmul.mubr.bf16.gmra.mrb[0].mxu0 %v502
      %v2058 = vpop.f32.mrb[0].mxu0
      %v2059 = vadd.f32 0.0, %v2058
      %v2060 = vpop.f32.mrb[0].mxu0
      %v2061 = vpop.f32.mrb[0].mxu0
      %v2062 = vadd.f32 0.0, %v2061
      %v2063 = vpop.f32.mrb[0].mxu0
      %2064 = vmatprep.mubr.bf16.mxu0 0
      %2065 = vmatmul.mubr.bf16.gmra.mrb[0].mxu0 %v505
      %v2066 = vpop.f32.mrb[0].mxu0
      %v2067 = vadd.f32 0.0, %v2066
      %v2068 = vpop.f32.mrb[0].mxu0
      %v2069 = vpop.f32.mrb[0].mxu0
      %v2070 = vadd.f32 0.0, %v2069
      %v2071 = vpop.f32.mrb[0].mxu0
      %2072 = vmatprep.mubr.bf16.mxu0 0
      %2073 = vmatmul.mubr.bf16.gmra.mrb[0].mxu0 %v508
      %v2074 = vpop.f32.mrb[0].mxu0
      %v2075 = vadd.f32 0.0, %v2074
      %v2076 = vpop.f32.mrb[0].mxu0
      %v2077 = vpop.f32.mrb[0].mxu0
      %v2078 = vadd.f32 0.0, %v2077
      %v2079 = vpop.f32.mrb[0].mxu0
      %2080 = vmatprep.mubr.bf16.mxu0 0
      %2081 = vmatmul.mubr.bf16.gmra.mrb[0].mxu0 %v511
      %v2082 = vpop.f32.mrb[0].mxu0
      %v2083 = vadd.f32 0.0, %v2082
      %v2084 = vpop.f32.mrb[0].mxu0
      %v2085 = vpop.f32.mrb[0].mxu0
      %v2086 = vadd.f32 0.0, %v2085
      %v2087 = vpop.f32.mrb[0].mxu0
      %2088 = vmatprep.mubr.bf16.mxu0 0
      %2089 = vmatmul.mubr.bf16.gmra.mrb[0].mxu0 %v514
      %v2090 = vpop.f32.mrb[0].mxu0
      %v2091 = vadd.f32 0.0, %v2090
      %v2092 = vpop.f32.mrb[0].mxu0
      %v2093 = vpop.f32.mrb[0].mxu0
      %v2094 = vadd.f32 0.0, %v2093
      %v2095 = vpop.f32.mrb[0].mxu0
      %2096 = vmatprep.mubr.bf16.mxu0 0
      %2097 = vmatmul.mubr.bf16.gmra.mrb[0].mxu0 %v517
      %v2098 = vpop.f32.mrb[0].mxu0
      %v2099 = vadd.f32 0.0, %v2098
      %v2100 = vpop.f32.mrb[0].mxu0
      %v2101 = vpop.f32.mrb[0].mxu0
      %v2102 = vadd.f32 0.0, %v2101
      %v2103 = vpop.f32.mrb[0].mxu0
      %2104 = vmatprep.mubr.bf16.mxu0 0
      %2105 = vmatmul.mubr.bf16.gmra.mrb[0].mxu0 %v520
      %v2106 = vpop.f32.mrb[0].mxu0
      %v2107 = vadd.f32 0.0, %v2106
      %v2108 = vpop.f32.mrb[0].mxu0
      %v2109 = vpop.f32.mrb[0].mxu0
      %v2110 = vadd.f32 0.0, %v2109
      %v2111 = vpop.f32.mrb[0].mxu0
      %2112 = vmatprep.mubr.bf16.mxu0 0
      %2113 = vmatmul.mubr.bf16.gmra.mrb[0].mxu0 %v523
      %v2114 = vpop.f32.mrb[0].mxu0
      %v2115 = vadd.f32 0.0, %v2114
      %v2116 = vpop.f32.mrb[0].mxu0
      %v2117 = vpop.f32.mrb[0].mxu0
      %v2118 = vadd.f32 0.0, %v2117
      %v2119 = vpop.f32.mrb[0].mxu0
      %2120 = vmatprep.mubr.bf16.mxu0 0
      %2121 = vmatmul.mubr.bf16.gmra.mrb[0].mxu0 %v526
      %v2122 = vpop.f32.mrb[0].mxu0
      %v2123 = vadd.f32 0.0, %v2122
      %v2124 = vpop.f32.mrb[0].mxu0
      %v2125 = vpop.f32.mrb[0].mxu0
      %v2126 = vadd.f32 0.0, %v2125
      %v2127 = vpop.f32.mrb[0].mxu0
      %2128 = vmatprep.mubr.bf16.mxu0 0
      %2129 = vmatmul.mubr.bf16.gmra.mrb[0].mxu0 %v529
      %v2130 = vpop.f32.mrb[0].mxu0
      %v2131 = vadd.f32 0.0, %v2130
      %v2132 = vpop.f32.mrb[0].mxu0
      %v2133 = vpop.f32.mrb[0].mxu0
      %v2134 = vadd.f32 0.0, %v2133
      %v2135 = vpop.f32.mrb[0].mxu0
      %2136 = vmatprep.mubr.bf16.mxu0 0
      %2137 = vmatmul.mubr.bf16.gmra.mrb[0].mxu0 %v532
      %v2138 = vpop.f32.mrb[0].mxu0
      %v2139 = vadd.f32 0.0, %v2138
      %v2140 = vpop.f32.mrb[0].mxu0
      %v2141 = vpop.f32.mrb[0].mxu0
      %v2142 = vadd.f32 0.0, %v2141
      %v2143 = vpop.f32.mrb[0].mxu0
      %2144 = vdwg.mxu0
      %v2145 = vrot.slane %v2019, 7
      %v2146 = vrot.slane %v2022, 7
      %v2147 = vrot.slane %v2027, 7
      %v2148 = vrot.slane %v2030, 7
      %v2149 = vrot.slane %v2035, 7
      %v2150 = vrot.slane %v2038, 7
      %v2151 = vrot.slane %v2043, 7
      %v2152 = vrot.slane %v2046, 7
      %v2153 = vrot.slane %v2051, 7
      %v2154 = vrot.slane %v2054, 7
      %v2155 = vrot.slane %v2059, 7
      %v2156 = vrot.slane %v2062, 7
      %v2157 = vrot.slane %v2067, 7
      %v2158 = vrot.slane %v2070, 7
      %v2159 = vrot.slane %v2075, 7
      %v2160 = vrot.slane %v2078, 7
      %v2161 = vrot.slane %v2083, 7
      %v2162 = vrot.slane %v2086, 7
      %v2163 = vrot.slane %v2091, 7
      %v2164 = vrot.slane %v2094, 7
      %v2165 = vrot.slane %v2099, 7
      %v2166 = vrot.slane %v2102, 7
      %v2167 = vrot.slane %v2107, 7
      %v2168 = vrot.slane %v2110, 7
      %v2169 = vrot.slane %v2115, 7
      %v2170 = vrot.slane %v2118, 7
      %v2171 = vrot.slane %v2123, 7
      %v2172 = vrot.slane %v2126, 7
      %v2173 = vrot.slane %v2131, 7
      %v2174 = vrot.slane %v2134, 7
      %v2175 = vrot.slane %v2139, 7
      %v2176 = vrot.slane %v2142, 7
      %v2177 = vsel %vm729, %v2175, %v2176
      %v2178 = vsel %vm729, %v2174, %v2175
      %v2179 = vsel %vm729, %v2173, %v2174
      %v2180 = vsel %vm729, %v2172, %v2173
      %v2181 = vsel %vm729, %v2171, %v2172
      %v2182 = vsel %vm729, %v2170, %v2171
      %v2183 = vsel %vm729, %v2169, %v2170
      %v2184 = vsel %vm729, %v2168, %v2169
      %v2185 = vsel %vm729, %v2167, %v2168
      %v2186 = vsel %vm729, %v2166, %v2167
      %v2187 = vsel %vm729, %v2165, %v2166
      %v2188 = vsel %vm729, %v2164, %v2165
      %v2189 = vsel %vm729, %v2163, %v2164
      %v2190 = vsel %vm729, %v2162, %v2163
      %v2191 = vsel %vm729, %v2161, %v2162
      %v2192 = vsel %vm729, %v2160, %v2161
      %v2193 = vsel %vm729, %v2159, %v2160
      %v2194 = vsel %vm729, %v2158, %v2159
      %v2195 = vsel %vm729, %v2157, %v2158
      %v2196 = vsel %vm729, %v2156, %v2157
      %v2197 = vsel %vm729, %v2155, %v2156
      %v2198 = vsel %vm729, %v2154, %v2155
      %v2199 = vsel %vm729, %v2153, %v2154
      %v2200 = vsel %vm729, %v2152, %v2153
      %v2201 = vsel %vm729, %v2151, %v2152
      %v2202 = vsel %vm729, %v2150, %v2151
      %v2203 = vsel %vm729, %v2149, %v2150
      %v2204 = vsel %vm729, %v2148, %v2149
      %v2205 = vsel %vm729, %v2147, %v2148
      %v2206 = vsel %vm729, %v2146, %v2147
      %v2207 = vsel %vm729, %v2145, %v2146
      %v2208 = vsel %vm729, %v2176, %v2145
      %v2209 = vmul.f32 %v2208, %v957
      %v2210 = vmul.f32 %v2207, %v962
      %v2211 = vmul.f32 %v2206, %v967
      %v2212 = vmul.f32 %v2205, %v972
      %v2213 = vmul.f32 %v2204, %v977
      %v2214 = vmul.f32 %v2203, %v982
      %v2215 = vmul.f32 %v2202, %v987
      %v2216 = vmul.f32 %v2201, %v992
      %v2217 = vmul.f32 %v2200, %v997
      %v2218 = vmul.f32 %v2199, %v1002
      %v2219 = vmul.f32 %v2198, %v1007
      %v2220 = vmul.f32 %v2197, %v1012
      %v2221 = vmul.f32 %v2196, %v1017
      %v2222 = vmul.f32 %v2195, %v1022
      %v2223 = vmul.f32 %v2194, %v1027
      %v2224 = vmul.f32 %v2193, %v1032
      %v2225 = vmul.f32 %v2192, %v1037
      %v2226 = vmul.f32 %v2191, %v1042
      %v2227 = vmul.f32 %v2190, %v1047
      %v2228 = vmul.f32 %v2189, %v1052
      %v2229 = vmul.f32 %v2188, %v1057
      %v2230 = vmul.f32 %v2187, %v1062
      %v2231 = vmul.f32 %v2186, %v1067
      %v2232 = vmul.f32 %v2185, %v1072
      %v2233 = vmul.f32 %v2184, %v1077
      %v2234 = vmul.f32 %v2183, %v1082
      %v2235 = vmul.f32 %v2182, %v1087
      %v2236 = vmul.f32 %v2181, %v1092
      %v2237 = vmul.f32 %v2180, %v1097
      %v2238 = vmul.f32 %v2179, %v1102
      %v2239 = vmul.f32 %v2178, %v1107
      %v2240 = vmul.f32 %v2177, %v1112
      %s2241 = scalar_lea.vmem %s1, 128
      %v2242 = vld [vmem:[%s2241] sm:$0xf]
      %v2243 = vld [vmem:[%s2241 + $0x4] sm:$0xf]
      %v2244 = vld [vmem:[%s2241 + $0x8] sm:$0xf]
      %v2245 = vld [vmem:[%s2241 + $0xc] sm:$0xf]
      %v2246 = vld [vmem:[%s2241 + $0x10] sm:$0xf]
      %v2247 = vld [vmem:[%s2241 + $0x14] sm:$0xf]
      %v2248 = vld [vmem:[%s2241 + $0x18] sm:$0xf]
      %v2249 = vld [vmem:[%s2241 + $0x1c] sm:$0xf]
      %v2258 = vunpack.c.l.b16 %v2242
      %v2259 = vunpack.c.l.b16 %v2243
      %v2260 = vunpack.c.l.b16 %v2244
      %v2261 = vunpack.c.l.b16 %v2245
      %v2262 = vunpack.c.l.b16 %v2246
      %v2263 = vunpack.c.l.b16 %v2247
      %v2264 = vunpack.c.l.b16 %v2248
      %v2265 = vunpack.c.l.b16 %v2249
      %v2266 = vpack.c.b16 %v2259, %v2258
      %v2267 = vpack.c.b16 %v2261, %v2260
      %v2268 = vpack.c.b16 %v2263, %v2262
      %v2269 = vpack.c.b16 %v2265, %v2264
      %2274 = vmatprep.subr.bf16.mxu0 0
      %2275 = vmatpush1.bf16.msra.mxu0 %v2266
      %2276 = vmatprep.subr.bf16.mxu0 0
      %2277 = vmatpush1.bf16.msra.mxu0 %v2267
      %2278 = vmatprep.subr.bf16.mxu0 0
      %2279 = vmatpush1.bf16.msra.mxu0 %v2268
      %2280 = vmatprep.subr.bf16.mxu0 0
      %2281 = vmatpush1.bf16.msra.mxu0 %v2269
      %2282 = vmatprep.subr.bf16.mxu0 0
      %2283 = vmatpush1.bf16.msra.mxu0 0
      %2284 = vmatprep.subr.bf16.mxu0 0
      %2285 = vmatpush1.bf16.msra.mxu0 0
      %2286 = vmatprep.subr.bf16.mxu0 0
      %2287 = vmatpush1.bf16.msra.mxu0 0
      %2288 = vmatprep.subr.bf16.mxu0 0
      %2289 = vmatpush1.bf16.msra.mxu0 0
      %2290 = vmatprep.subr.bf16.mxu0 0
      %2291 = vmatpush1.bf16.msra.mxu0 0
      %2292 = vmatprep.subr.bf16.mxu0 0
      %2293 = vmatpush1.bf16.msra.mxu0 0
      %2294 = vmatprep.subr.bf16.mxu0 0
      %2295 = vmatpush1.bf16.msra.mxu0 0
      %2296 = vmatprep.subr.bf16.mxu0 0
      %2297 = vmatpush1.bf16.msra.mxu0 0
      %2298 = vmatprep.subr.bf16.mxu0 0
      %2299 = vmatpush1.bf16.msra.mxu0 0
      %2300 = vmatprep.subr.bf16.mxu0 0
      %2301 = vmatpush1.bf16.msra.mxu0 0
      %2302 = vmatprep.subr.bf16.mxu0 0
      %2303 = vmatpush1.bf16.msra.mxu0 0
      %2304 = vmatprep.subr.bf16.mxu0 0
      %2305 = vmatpush1.bf16.msra.mxu0 0
      %2306 = vmatprep.mubr.bf16.mxu0 0
      %2307 = vmatmul.mubr.bf16.gmra.mrb[0].mxu0 %v487
      %v2308 = vpop.f32.mrb[0].mxu0
      %v2309 = vadd.f32 0.0, %v2308
      %v2310 = vpop.f32.mrb[0].mxu0
      %v2311 = vpop.f32.mrb[0].mxu0
      %v2312 = vadd.f32 0.0, %v2311
      %v2313 = vpop.f32.mrb[0].mxu0
      %2314 = vmatprep.mubr.bf16.mxu0 0
      %2315 = vmatmul.mubr.bf16.gmra.mrb[0].mxu0 %v490
      %v2316 = vpop.f32.mrb[0].mxu0
      %v2317 = vadd.f32 0.0, %v2316
      %v2318 = vpop.f32.mrb[0].mxu0
      %v2319 = vpop.f32.mrb[0].mxu0
      %v2320 = vadd.f32 0.0, %v2319
      %v2321 = vpop.f32.mrb[0].mxu0
      %2322 = vmatprep.mubr.bf16.mxu0 0
      %2323 = vmatmul.mubr.bf16.gmra.mrb[0].mxu0 %v493
      %v2324 = vpop.f32.mrb[0].mxu0
      %v2325 = vadd.f32 0.0, %v2324
      %v2326 = vpop.f32.mrb[0].mxu0
      %v2327 = vpop.f32.mrb[0].mxu0
      %v2328 = vadd.f32 0.0, %v2327
      %v2329 = vpop.f32.mrb[0].mxu0
      %2330 = vmatprep.mubr.bf16.mxu0 0
      %2331 = vmatmul.mubr.bf16.gmra.mrb[0].mxu0 %v496
      %v2332 = vpop.f32.mrb[0].mxu0
      %v2333 = vadd.f32 0.0, %v2332
      %v2334 = vpop.f32.mrb[0].mxu0
      %v2335 = vpop.f32.mrb[0].mxu0
      %v2336 = vadd.f32 0.0, %v2335
      %v2337 = vpop.f32.mrb[0].mxu0
      %2338 = vmatprep.mubr.bf16.mxu0 0
      %2339 = vmatmul.mubr.bf16.gmra.mrb[0].mxu0 %v499
      %v2340 = vpop.f32.mrb[0].mxu0
      %v2341 = vadd.f32 0.0, %v2340
      %v2342 = vpop.f32.mrb[0].mxu0
      %v2343 = vpop.f32.mrb[0].mxu0
      %v2344 = vadd.f32 0.0, %v2343
      %v2345 = vpop.f32.mrb[0].mxu0
      %2346 = vmatprep.mubr.bf16.mxu0 0
      %2347 = vmatmul.mubr.bf16.gmra.mrb[0].mxu0 %v502
      %v2348 = vpop.f32.mrb[0].mxu0
      %v2349 = vadd.f32 0.0, %v2348
      %v2350 = vpop.f32.mrb[0].mxu0
      %v2351 = vpop.f32.mrb[0].mxu0
      %v2352 = vadd.f32 0.0, %v2351
      %v2353 = vpop.f32.mrb[0].mxu0
      %2354 = vmatprep.mubr.bf16.mxu0 0
      %2355 = vmatmul.mubr.bf16.gmra.mrb[0].mxu0 %v505
      %v2356 = vpop.f32.mrb[0].mxu0
      %v2357 = vadd.f32 0.0, %v2356
      %v2358 = vpop.f32.mrb[0].mxu0
      %v2359 = vpop.f32.mrb[0].mxu0
      %v2360 = vadd.f32 0.0, %v2359
      %v2361 = vpop.f32.mrb[0].mxu0
      %2362 = vmatprep.mubr.bf16.mxu0 0
      %2363 = vmatmul.mubr.bf16.gmra.mrb[0].mxu0 %v508
      %v2364 = vpop.f32.mrb[0].mxu0
      %v2365 = vadd.f32 0.0, %v2364
      %v2366 = vpop.f32.mrb[0].mxu0
      %v2367 = vpop.f32.mrb[0].mxu0
      %v2368 = vadd.f32 0.0, %v2367
      %v2369 = vpop.f32.mrb[0].mxu0
      %2370 = vmatprep.mubr.bf16.mxu0 0
      %2371 = vmatmul.mubr.bf16.gmra.mrb[0].mxu0 %v511
      %v2372 = vpop.f32.mrb[0].mxu0
      %v2373 = vadd.f32 0.0, %v2372
      %v2374 = vpop.f32.mrb[0].mxu0
      %v2375 = vpop.f32.mrb[0].mxu0
      %v2376 = vadd.f32 0.0, %v2375
      %v2377 = vpop.f32.mrb[0].mxu0
      %2378 = vmatprep.mubr.bf16.mxu0 0
      %2379 = vmatmul.mubr.bf16.gmra.mrb[0].mxu0 %v514
      %v2380 = vpop.f32.mrb[0].mxu0
      %v2381 = vadd.f32 0.0, %v2380
      %v2382 = vpop.f32.mrb[0].mxu0
      %v2383 = vpop.f32.mrb[0].mxu0
      %v2384 = vadd.f32 0.0, %v2383
      %v2385 = vpop.f32.mrb[0].mxu0
      %2386 = vmatprep.mubr.bf16.mxu0 0
      %2387 = vmatmul.mubr.bf16.gmra.mrb[0].mxu0 %v517
      %v2388 = vpop.f32.mrb[0].mxu0
      %v2389 = vadd.f32 0.0, %v2388
      %v2390 = vpop.f32.mrb[0].mxu0
      %v2391 = vpop.f32.mrb[0].mxu0
      %v2392 = vadd.f32 0.0, %v2391
      %v2393 = vpop.f32.mrb[0].mxu0
      %2394 = vmatprep.mubr.bf16.mxu0 0
      %2395 = vmatmul.mubr.bf16.gmra.mrb[0].mxu0 %v520
      %v2396 = vpop.f32.mrb[0].mxu0
      %v2397 = vadd.f32 0.0, %v2396
      %v2398 = vpop.f32.mrb[0].mxu0
      %v2399 = vpop.f32.mrb[0].mxu0
      %v2400 = vadd.f32 0.0, %v2399
      %v2401 = vpop.f32.mrb[0].mxu0
      %2402 = vmatprep.mubr.bf16.mxu0 0
      %2403 = vmatmul.mubr.bf16.gmra.mrb[0].mxu0 %v523
      %v2404 = vpop.f32.mrb[0].mxu0
      %v2405 = vadd.f32 0.0, %v2404
      %v2406 = vpop.f32.mrb[0].mxu0
      %v2407 = vpop.f32.mrb[0].mxu0
      %v2408 = vadd.f32 0.0, %v2407
      %v2409 = vpop.f32.mrb[0].mxu0
      %2410 = vmatprep.mubr.bf16.mxu0 0
      %2411 = vmatmul.mubr.bf16.gmra.mrb[0].mxu0 %v526
      %v2412 = vpop.f32.mrb[0].mxu0
      %v2413 = vadd.f32 0.0, %v2412
      %v2414 = vpop.f32.mrb[0].mxu0
      %v2415 = vpop.f32.mrb[0].mxu0
      %v2416 = vadd.f32 0.0, %v2415
      %v2417 = vpop.f32.mrb[0].mxu0
      %2418 = vmatprep.mubr.bf16.mxu0 0
      %2419 = vmatmul.mubr.bf16.gmra.mrb[0].mxu0 %v529
      %v2420 = vpop.f32.mrb[0].mxu0
      %v2421 = vadd.f32 0.0, %v2420
      %v2422 = vpop.f32.mrb[0].mxu0
      %v2423 = vpop.f32.mrb[0].mxu0
      %v2424 = vadd.f32 0.0, %v2423
      %v2425 = vpop.f32.mrb[0].mxu0
      %2426 = vmatprep.mubr.bf16.mxu0 0
      %2427 = vmatmul.mubr.bf16.gmra.mrb[0].mxu0 %v532
      %v2428 = vpop.f32.mrb[0].mxu0
      %v2429 = vadd.f32 0.0, %v2428
      %v2430 = vpop.f32.mrb[0].mxu0
      %v2431 = vpop.f32.mrb[0].mxu0
      %v2432 = vadd.f32 0.0, %v2431
      %v2433 = vpop.f32.mrb[0].mxu0
      %2434 = vdwg.mxu0
      %v2435 = vadd.f32 %v2209, %v2309
      %v2436 = vadd.f32 %v2210, %v2312
      %v2437 = vadd.f32 %v2211, %v2317
      %v2438 = vadd.f32 %v2212, %v2320
      %v2439 = vadd.f32 %v2213, %v2325
      %v2440 = vadd.f32 %v2214, %v2328
      %v2441 = vadd.f32 %v2215, %v2333
      %v2442 = vadd.f32 %v2216, %v2336
      %v2443 = vadd.f32 %v2217, %v2341
      %v2444 = vadd.f32 %v2218, %v2344
      %v2445 = vadd.f32 %v2219, %v2349
      %v2446 = vadd.f32 %v2220, %v2352
      %v2447 = vadd.f32 %v2221, %v2357
      %v2448 = vadd.f32 %v2222, %v2360
      %v2449 = vadd.f32 %v2223, %v2365
      %v2450 = vadd.f32 %v2224, %v2368
      %v2451 = vadd.f32 %v2225, %v2373
      %v2452 = vadd.f32 %v2226, %v2376
      %v2453 = vadd.f32 %v2227, %v2381
      %v2454 = vadd.f32 %v2228, %v2384
      %v2455 = vadd.f32 %v2229, %v2389
      %v2456 = vadd.f32 %v2230, %v2392
      %v2457 = vadd.f32 %v2231, %v2397
      %v2458 = vadd.f32 %v2232, %v2400
      %v2459 = vadd.f32 %v2233, %v2405
      %v2460 = vadd.f32 %v2234, %v2408
      %v2461 = vadd.f32 %v2235, %v2413
      %v2462 = vadd.f32 %v2236, %v2416
      %v2463 = vadd.f32 %v2237, %v2421
      %v2464 = vadd.f32 %v2238, %v2424
      %v2465 = vadd.f32 %v2239, %v2429
      %v2466 = vadd.f32 %v2240, %v2432
      %s2467 = scalar_lea.vmem %s1, 160
      %v2468 = vld [vmem:[%s2467] sm:$0xf]
      %v2469 = vld [vmem:[%s2467 + $0x4] sm:$0xf]
      %v2470 = vld [vmem:[%s2467 + $0x8] sm:$0xf]
      %v2471 = vld [vmem:[%s2467 + $0xc] sm:$0xf]
      %v2472 = vld [vmem:[%s2467 + $0x10] sm:$0xf]
      %v2473 = vld [vmem:[%s2467 + $0x14] sm:$0xf]
      %v2474 = vld [vmem:[%s2467 + $0x18] sm:$0xf]
      %v2475 = vld [vmem:[%s2467 + $0x1c] sm:$0xf]
      %v2484 = vunpack.c.l.b16 %v2468
      %v2485 = vunpack.c.l.b16 %v2469
      %v2486 = vunpack.c.l.b16 %v2470
      %v2487 = vunpack.c.l.b16 %v2471
      %v2488 = vunpack.c.l.b16 %v2472
      %v2489 = vunpack.c.l.b16 %v2473
      %v2490 = vunpack.c.l.b16 %v2474
      %v2491 = vunpack.c.l.b16 %v2475
      %v2492 = vpack.c.b16 %v2485, %v2484
      %v2493 = vpack.c.b16 %v2487, %v2486
      %v2494 = vpack.c.b16 %v2489, %v2488
      %v2495 = vpack.c.b16 %v2491, %v2490
      %2500 = vmatprep.subr.bf16.mxu0 0
      %2501 = vmatpush1.bf16.msra.mxu0 %v2492
      %2502 = vmatprep.subr.bf16.mxu0 0
      %2503 = vmatpush1.bf16.msra.mxu0 %v2493
      %2504 = vmatprep.subr.bf16.mxu0 0
      %2505 = vmatpush1.bf16.msra.mxu0 %v2494
      %2506 = vmatprep.subr.bf16.mxu0 0
      %2507 = vmatpush1.bf16.msra.mxu0 %v2495
      %2508 = vmatprep.subr.bf16.mxu0 0
      %2509 = vmatpush1.bf16.msra.mxu0 0
      %2510 = vmatprep.subr.bf16.mxu0 0
      %2511 = vmatpush1.bf16.msra.mxu0 0
      %2512 = vmatprep.subr.bf16.mxu0 0
      %2513 = vmatpush1.bf16.msra.mxu0 0
      %2514 = vmatprep.subr.bf16.mxu0 0
      %2515 = vmatpush1.bf16.msra.mxu0 0
      %2516 = vmatprep.subr.bf16.mxu0 0
      %2517 = vmatpush1.bf16.msra.mxu0 0
      %2518 = vmatprep.subr.bf16.mxu0 0
      %2519 = vmatpush1.bf16.msra.mxu0 0
      %2520 = vmatprep.subr.bf16.mxu0 0
      %2521 = vmatpush1.bf16.msra.mxu0 0
      %2522 = vmatprep.subr.bf16.mxu0 0
      %2523 = vmatpush1.bf16.msra.mxu0 0
      %2524 = vmatprep.subr.bf16.mxu0 0
      %2525 = vmatpush1.bf16.msra.mxu0 0
      %2526 = vmatprep.subr.bf16.mxu0 0
      %2527 = vmatpush1.bf16.msra.mxu0 0
      %2528 = vmatprep.subr.bf16.mxu0 0
      %2529 = vmatpush1.bf16.msra.mxu0 0
      %2530 = vmatprep.subr.bf16.mxu0 0
      %2531 = vmatpush1.bf16.msra.mxu0 0
      %2532 = vmatprep.mubr.bf16.mxu0 0
      %2533 = vmatmul.mubr.bf16.gmra.mrb[0].mxu0 %v487
      %v2534 = vpop.f32.mrb[0].mxu0
      %v2535 = vadd.f32 0.0, %v2534
      %v2536 = vpop.f32.mrb[0].mxu0
      %v2537 = vpop.f32.mrb[0].mxu0
      %v2538 = vadd.f32 0.0, %v2537
      %v2539 = vpop.f32.mrb[0].mxu0
      %2540 = vmatprep.mubr.bf16.mxu0 0
      %2541 = vmatmul.mubr.bf16.gmra.mrb[0].mxu0 %v490
      %v2542 = vpop.f32.mrb[0].mxu0
      %v2543 = vadd.f32 0.0, %v2542
      %v2544 = vpop.f32.mrb[0].mxu0
      %v2545 = vpop.f32.mrb[0].mxu0
      %v2546 = vadd.f32 0.0, %v2545
      %v2547 = vpop.f32.mrb[0].mxu0
      %2548 = vmatprep.mubr.bf16.mxu0 0
      %2549 = vmatmul.mubr.bf16.gmra.mrb[0].mxu0 %v493
      %v2550 = vpop.f32.mrb[0].mxu0
      %v2551 = vadd.f32 0.0, %v2550
      %v2552 = vpop.f32.mrb[0].mxu0
      %v2553 = vpop.f32.mrb[0].mxu0
      %v2554 = vadd.f32 0.0, %v2553
      %v2555 = vpop.f32.mrb[0].mxu0
      %2556 = vmatprep.mubr.bf16.mxu0 0
      %2557 = vmatmul.mubr.bf16.gmra.mrb[0].mxu0 %v496
      %v2558 = vpop.f32.mrb[0].mxu0
      %v2559 = vadd.f32 0.0, %v2558
      %v2560 = vpop.f32.mrb[0].mxu0
      %v2561 = vpop.f32.mrb[0].mxu0
      %v2562 = vadd.f32 0.0, %v2561
      %v2563 = vpop.f32.mrb[0].mxu0
      %2564 = vmatprep.mubr.bf16.mxu0 0
      %2565 = vmatmul.mubr.bf16.gmra.mrb[0].mxu0 %v499
      %v2566 = vpop.f32.mrb[0].mxu0
      %v2567 = vadd.f32 0.0, %v2566
      %v2568 = vpop.f32.mrb[0].mxu0
      %v2569 = vpop.f32.mrb[0].mxu0
      %v2570 = vadd.f32 0.0, %v2569
      %v2571 = vpop.f32.mrb[0].mxu0
      %2572 = vmatprep.mubr.bf16.mxu0 0
      %2573 = vmatmul.mubr.bf16.gmra.mrb[0].mxu0 %v502
      %v2574 = vpop.f32.mrb[0].mxu0
      %v2575 = vadd.f32 0.0, %v2574
      %v2576 = vpop.f32.mrb[0].mxu0
      %v2577 = vpop.f32.mrb[0].mxu0
      %v2578 = vadd.f32 0.0, %v2577
      %v2579 = vpop.f32.mrb[0].mxu0
      %2580 = vmatprep.mubr.bf16.mxu0 0
      %2581 = vmatmul.mubr.bf16.gmra.mrb[0].mxu0 %v505
      %v2582 = vpop.f32.mrb[0].mxu0
      %v2583 = vadd.f32 0.0, %v2582
      %v2584 = vpop.f32.mrb[0].mxu0
      %v2585 = vpop.f32.mrb[0].mxu0
      %v2586 = vadd.f32 0.0, %v2585
      %v2587 = vpop.f32.mrb[0].mxu0
      %2588 = vmatprep.mubr.bf16.mxu0 0
      %2589 = vmatmul.mubr.bf16.gmra.mrb[0].mxu0 %v508
      %v2590 = vpop.f32.mrb[0].mxu0
      %v2591 = vadd.f32 0.0, %v2590
      %v2592 = vpop.f32.mrb[0].mxu0
      %v2593 = vpop.f32.mrb[0].mxu0
      %v2594 = vadd.f32 0.0, %v2593
      %v2595 = vpop.f32.mrb[0].mxu0
      %2596 = vmatprep.mubr.bf16.mxu0 0
      %2597 = vmatmul.mubr.bf16.gmra.mrb[0].mxu0 %v511
      %v2598 = vpop.f32.mrb[0].mxu0
      %v2599 = vadd.f32 0.0, %v2598
      %v2600 = vpop.f32.mrb[0].mxu0
      %v2601 = vpop.f32.mrb[0].mxu0
      %v2602 = vadd.f32 0.0, %v2601
      %v2603 = vpop.f32.mrb[0].mxu0
      %2604 = vmatprep.mubr.bf16.mxu0 0
      %2605 = vmatmul.mubr.bf16.gmra.mrb[0].mxu0 %v514
      %v2606 = vpop.f32.mrb[0].mxu0
      %v2607 = vadd.f32 0.0, %v2606
      %v2608 = vpop.f32.mrb[0].mxu0
      %v2609 = vpop.f32.mrb[0].mxu0
      %v2610 = vadd.f32 0.0, %v2609
      %v2611 = vpop.f32.mrb[0].mxu0
      %2612 = vmatprep.mubr.bf16.mxu0 0
      %2613 = vmatmul.mubr.bf16.gmra.mrb[0].mxu0 %v517
      %v2614 = vpop.f32.mrb[0].mxu0
      %v2615 = vadd.f32 0.0, %v2614
      %v2616 = vpop.f32.mrb[0].mxu0
      %v2617 = vpop.f32.mrb[0].mxu0
      %v2618 = vadd.f32 0.0, %v2617
      %v2619 = vpop.f32.mrb[0].mxu0
      %2620 = vmatprep.mubr.bf16.mxu0 0
      %2621 = vmatmul.mubr.bf16.gmra.mrb[0].mxu0 %v520
      %v2622 = vpop.f32.mrb[0].mxu0
      %v2623 = vadd.f32 0.0, %v2622
      %v2624 = vpop.f32.mrb[0].mxu0
      %v2625 = vpop.f32.mrb[0].mxu0
      %v2626 = vadd.f32 0.0, %v2625
      %v2627 = vpop.f32.mrb[0].mxu0
      %2628 = vmatprep.mubr.bf16.mxu0 0
      %2629 = vmatmul.mubr.bf16.gmra.mrb[0].mxu0 %v523
      %v2630 = vpop.f32.mrb[0].mxu0
      %v2631 = vadd.f32 0.0, %v2630
      %v2632 = vpop.f32.mrb[0].mxu0
      %v2633 = vpop.f32.mrb[0].mxu0
      %v2634 = vadd.f32 0.0, %v2633
      %v2635 = vpop.f32.mrb[0].mxu0
      %2636 = vmatprep.mubr.bf16.mxu0 0
      %2637 = vmatmul.mubr.bf16.gmra.mrb[0].mxu0 %v526
      %v2638 = vpop.f32.mrb[0].mxu0
      %v2639 = vadd.f32 0.0, %v2638
      %v2640 = vpop.f32.mrb[0].mxu0
      %v2641 = vpop.f32.mrb[0].mxu0
      %v2642 = vadd.f32 0.0, %v2641
      %v2643 = vpop.f32.mrb[0].mxu0
      %2644 = vmatprep.mubr.bf16.mxu0 0
      %2645 = vmatmul.mubr.bf16.gmra.mrb[0].mxu0 %v529
      %v2646 = vpop.f32.mrb[0].mxu0
      %v2647 = vadd.f32 0.0, %v2646
      %v2648 = vpop.f32.mrb[0].mxu0
      %v2649 = vpop.f32.mrb[0].mxu0
      %v2650 = vadd.f32 0.0, %v2649
      %v2651 = vpop.f32.mrb[0].mxu0
      %2652 = vmatprep.mubr.bf16.mxu0 0
      %2653 = vmatmul.mubr.bf16.gmra.mrb[0].mxu0 %v532
      %v2654 = vpop.f32.mrb[0].mxu0
      %v2655 = vadd.f32 0.0, %v2654
      %v2656 = vpop.f32.mrb[0].mxu0
      %v2657 = vpop.f32.mrb[0].mxu0
      %v2658 = vadd.f32 0.0, %v2657
      %v2659 = vpop.f32.mrb[0].mxu0
      %2660 = vdwg.mxu0
      %v2661 = vrot.slane %v2535, 1
      %v2662 = vrot.slane %v2538, 1
      %v2663 = vrot.slane %v2543, 1
      %v2664 = vrot.slane %v2546, 1
      %v2665 = vrot.slane %v2551, 1
      %v2666 = vrot.slane %v2554, 1
      %v2667 = vrot.slane %v2559, 1
      %v2668 = vrot.slane %v2562, 1
      %v2669 = vrot.slane %v2567, 1
      %v2670 = vrot.slane %v2570, 1
      %v2671 = vrot.slane %v2575, 1
      %v2672 = vrot.slane %v2578, 1
      %v2673 = vrot.slane %v2583, 1
      %v2674 = vrot.slane %v2586, 1
      %v2675 = vrot.slane %v2591, 1
      %v2676 = vrot.slane %v2594, 1
      %v2677 = vrot.slane %v2599, 1
      %v2678 = vrot.slane %v2602, 1
      %v2679 = vrot.slane %v2607, 1
      %v2680 = vrot.slane %v2610, 1
      %v2681 = vrot.slane %v2615, 1
      %v2682 = vrot.slane %v2618, 1
      %v2683 = vrot.slane %v2623, 1
      %v2684 = vrot.slane %v2626, 1
      %v2685 = vrot.slane %v2631, 1
      %v2686 = vrot.slane %v2634, 1
      %v2687 = vrot.slane %v2639, 1
      %v2688 = vrot.slane %v2642, 1
      %v2689 = vrot.slane %v2647, 1
      %v2690 = vrot.slane %v2650, 1
      %v2691 = vrot.slane %v2655, 1
      %v2692 = vrot.slane %v2658, 1
      %v2693 = vsel %vm1630, %v2691, %v2692
      %v2694 = vsel %vm1630, %v2690, %v2691
      %v2695 = vsel %vm1630, %v2689, %v2690
      %v2696 = vsel %vm1630, %v2688, %v2689
      %v2697 = vsel %vm1630, %v2687, %v2688
      %v2698 = vsel %vm1630, %v2686, %v2687
      %v2699 = vsel %vm1630, %v2685, %v2686
      %v2700 = vsel %vm1630, %v2684, %v2685
      %v2701 = vsel %vm1630, %v2683, %v2684
      %v2702 = vsel %vm1630, %v2682, %v2683
      %v2703 = vsel %vm1630, %v2681, %v2682
      %v2704 = vsel %vm1630, %v2680, %v2681
      %v2705 = vsel %vm1630, %v2679, %v2680
      %v2706 = vsel %vm1630, %v2678, %v2679
      %v2707 = vsel %vm1630, %v2677, %v2678
      %v2708 = vsel %vm1630, %v2676, %v2677
      %v2709 = vsel %vm1630, %v2675, %v2676
      %v2710 = vsel %vm1630, %v2674, %v2675
      %v2711 = vsel %vm1630, %v2673, %v2674
      %v2712 = vsel %vm1630, %v2672, %v2673
      %v2713 = vsel %vm1630, %v2671, %v2672
      %v2714 = vsel %vm1630, %v2670, %v2671
      %v2715 = vsel %vm1630, %v2669, %v2670
      %v2716 = vsel %vm1630, %v2668, %v2669
      %v2717 = vsel %vm1630, %v2667, %v2668
      %v2718 = vsel %vm1630, %v2666, %v2667
      %v2719 = vsel %vm1630, %v2665, %v2666
      %v2720 = vsel %vm1630, %v2664, %v2665
      %v2721 = vsel %vm1630, %v2663, %v2664
      %v2722 = vsel %vm1630, %v2662, %v2663
      %v2723 = vsel %vm1630, %v2661, %v2662
      %v2724 = vsel %vm1630, %v2692, %v2661
      %v2725 = vmul.f32 %v2723, %v1698
      %v2726 = vmul.f32 %v2722, %v1703
      %v2727 = vmul.f32 %v2721, %v1708
      %v2728 = vmul.f32 %v2720, %v1713
      %v2729 = vmul.f32 %v2719, %v1718
      %v2730 = vmul.f32 %v2718, %v1723
      %v2731 = vmul.f32 %v2717, %v1728
      %v2732 = vmul.f32 %v2716, %v1733
      %v2733 = vmul.f32 %v2715, %v1738
      %v2734 = vmul.f32 %v2714, %v1743
      %v2735 = vmul.f32 %v2713, %v1748
      %v2736 = vmul.f32 %v2712, %v1753
      %v2737 = vmul.f32 %v2711, %v1758
      %v2738 = vmul.f32 %v2710, %v1763
      %v2739 = vmul.f32 %v2709, %v1768
      %v2740 = vmul.f32 %v2708, %v1773
      %v2741 = vmul.f32 %v2707, %v1778
      %v2742 = vmul.f32 %v2706, %v1783
      %v2743 = vmul.f32 %v2705, %v1788
      %v2744 = vmul.f32 %v2704, %v1793
      %v2745 = vmul.f32 %v2703, %v1798
      %v2746 = vmul.f32 %v2702, %v1803
      %v2747 = vmul.f32 %v2701, %v1808
      %v2748 = vmul.f32 %v2700, %v1813
      %v2749 = vmul.f32 %v2699, %v1818
      %v2750 = vmul.f32 %v2698, %v1823
      %v2751 = vmul.f32 %v2697, %v1828
      %v2752 = vmul.f32 %v2696, %v1833
      %v2753 = vmul.f32 %v2695, %v1838
      %v2754 = vmul.f32 %v2694, %v1843
      %v2755 = vmul.f32 %v2693, %v1848
      %v2756 = vmul.f32 %v2724, %v1853
      %v2757 = vadd.f32 %v2435, %v2725
      %v2758 = vadd.f32 %v2436, %v2726
      %v2759 = vadd.f32 %v2437, %v2727
      %v2760 = vadd.f32 %v2438, %v2728
      %v2761 = vadd.f32 %v2439, %v2729
      %v2762 = vadd.f32 %v2440, %v2730
      %v2763 = vadd.f32 %v2441, %v2731
      %v2764 = vadd.f32 %v2442, %v2732
      %v2765 = vadd.f32 %v2443, %v2733
      %v2766 = vadd.f32 %v2444, %v2734
      %v2767 = vadd.f32 %v2445, %v2735
      %v2768 = vadd.f32 %v2446, %v2736
      %v2769 = vadd.f32 %v2447, %v2737
      %v2770 = vadd.f32 %v2448, %v2738
      %v2771 = vadd.f32 %v2449, %v2739
      %v2772 = vadd.f32 %v2450, %v2740
      %v2773 = vadd.f32 %v2451, %v2741
      %v2774 = vadd.f32 %v2452, %v2742
      %v2775 = vadd.f32 %v2453, %v2743
      %v2776 = vadd.f32 %v2454, %v2744
      %v2777 = vadd.f32 %v2455, %v2745
      %v2778 = vadd.f32 %v2456, %v2746
      %v2779 = vadd.f32 %v2457, %v2747
      %v2780 = vadd.f32 %v2458, %v2748
      %v2781 = vadd.f32 %v2459, %v2749
      %v2782 = vadd.f32 %v2460, %v2750
      %v2783 = vadd.f32 %v2461, %v2751
      %v2784 = vadd.f32 %v2462, %v2752
      %v2785 = vadd.f32 %v2463, %v2753
      %v2786 = vadd.f32 %v2464, %v2754
      %v2787 = vadd.f32 %v2465, %v2755
      %v2788 = vadd.f32 %v2466, %v2756
      %v2789 = vld [vmem:[#allocation2] sm:$0xff]
      %v2790 = vld [vmem:[#allocation2 + $0x8] sm:$0xff]
      %v2791 = vld [vmem:[#allocation2 + $0x10] sm:$0xff]
      %v2792 = vld [vmem:[#allocation2 + $0x18] sm:$0xff]
      %v2793 = vld [vmem:[#allocation2 + $0x20] sm:$0xff]
      %v2794 = vld [vmem:[#allocation2 + $0x28] sm:$0xff]
      %v2795 = vld [vmem:[#allocation2 + $0x30] sm:$0xff]
      %v2796 = vld [vmem:[#allocation2 + $0x38] sm:$0xff]
      %v2797 = vld [vmem:[#allocation2 + $0x40] sm:$0xff]
      %v2798 = vld [vmem:[#allocation2 + $0x48] sm:$0xff]
      %v2799 = vld [vmem:[#allocation2 + $0x50] sm:$0xff]
      %v2800 = vld [vmem:[#allocation2 + $0x58] sm:$0xff]
      %v2801 = vld [vmem:[#allocation2 + $0x60] sm:$0xff]
      %v2802 = vld [vmem:[#allocation2 + $0x68] sm:$0xff]
      %v2803 = vld [vmem:[#allocation2 + $0x70] sm:$0xff]
      %v2804 = vld [vmem:[#allocation2 + $0x78] sm:$0xff]
      %v2805 = vld [vmem:[#allocation2 + $0x80] sm:$0xff]
      %v2806 = vld [vmem:[#allocation2 + $0x88] sm:$0xff]
      %v2807 = vld [vmem:[#allocation2 + $0x90] sm:$0xff]
      %v2808 = vld [vmem:[#allocation2 + $0x98] sm:$0xff]
      %v2809 = vld [vmem:[#allocation2 + $0xa0] sm:$0xff]
      %v2810 = vld [vmem:[#allocation2 + $0xa8] sm:$0xff]
      %v2811 = vld [vmem:[#allocation2 + $0xb0] sm:$0xff]
      %v2812 = vld [vmem:[#allocation2 + $0xb8] sm:$0xff]
      %v2813 = vld [vmem:[#allocation2 + $0xc0] sm:$0xff]
      %v2814 = vld [vmem:[#allocation2 + $0xc8] sm:$0xff]
      %v2815 = vld [vmem:[#allocation2 + $0xd0] sm:$0xff]
      %v2816 = vld [vmem:[#allocation2 + $0xd8] sm:$0xff]
      %v2817 = vld [vmem:[#allocation2 + $0xe0] sm:$0xff]
      %v2818 = vld [vmem:[#allocation2 + $0xe8] sm:$0xff]
      %v2819 = vld [vmem:[#allocation2 + $0xf0] sm:$0xff]
      %v2820 = vld [vmem:[#allocation2 + $0xf8] sm:$0xff]
      %v2821 = vadd.f32 %v2789, %v2757
      %v2822 = vadd.f32 %v2790, %v2758
      %v2823 = vadd.f32 %v2791, %v2759
      %v2824 = vadd.f32 %v2792, %v2760
      %v2825 = vadd.f32 %v2793, %v2761
      %v2826 = vadd.f32 %v2794, %v2762
      %v2827 = vadd.f32 %v2795, %v2763
      %v2828 = vadd.f32 %v2796, %v2764
      %v2829 = vadd.f32 %v2797, %v2765
      %v2830 = vadd.f32 %v2798, %v2766
      %v2831 = vadd.f32 %v2799, %v2767
      %v2832 = vadd.f32 %v2800, %v2768
      %v2833 = vadd.f32 %v2801, %v2769
      %v2834 = vadd.f32 %v2802, %v2770
      %v2835 = vadd.f32 %v2803, %v2771
      %v2836 = vadd.f32 %v2804, %v2772
      %v2837 = vadd.f32 %v2805, %v2773
      %v2838 = vadd.f32 %v2806, %v2774
      %v2839 = vadd.f32 %v2807, %v2775
      %v2840 = vadd.f32 %v2808, %v2776
      %v2841 = vadd.f32 %v2809, %v2777
      %v2842 = vadd.f32 %v2810, %v2778
      %v2843 = vadd.f32 %v2811, %v2779
      %v2844 = vadd.f32 %v2812, %v2780
      %v2845 = vadd.f32 %v2813, %v2781
      %v2846 = vadd.f32 %v2814, %v2782
      %v2847 = vadd.f32 %v2815, %v2783
      %v2848 = vadd.f32 %v2816, %v2784
      %v2849 = vadd.f32 %v2817, %v2785
      %v2850 = vadd.f32 %v2818, %v2786
      %v2851 = vadd.f32 %v2819, %v2787
      %v2852 = vadd.f32 %v2820, %v2788
      %2853 = vst.msk [vmem:[#allocation2] sm:$0xff] %vm485, %v2821
      %2854 = vst.msk [vmem:[#allocation2 + $0x8] sm:$0xff] %vm485, %v2822
      %2855 = vst.msk [vmem:[#allocation2 + $0x10] sm:$0xff] %vm485, %v2823
      %2856 = vst.msk [vmem:[#allocation2 + $0x18] sm:$0xff] %vm485, %v2824
      %2857 = vst.msk [vmem:[#allocation2 + $0x20] sm:$0xff] %vm485, %v2825
      %2858 = vst.msk [vmem:[#allocation2 + $0x28] sm:$0xff] %vm485, %v2826
      %2859 = vst.msk [vmem:[#allocation2 + $0x30] sm:$0xff] %vm485, %v2827
      %2860 = vst.msk [vmem:[#allocation2 + $0x38] sm:$0xff] %vm485, %v2828
      %2861 = vst.msk [vmem:[#allocation2 + $0x40] sm:$0xff] %vm485, %v2829
      %2862 = vst.msk [vmem:[#allocation2 + $0x48] sm:$0xff] %vm485, %v2830
      %2863 = vst.msk [vmem:[#allocation2 + $0x50] sm:$0xff] %vm485, %v2831
      %2864 = vst.msk [vmem:[#allocation2 + $0x58] sm:$0xff] %vm485, %v2832
      %2865 = vst.msk [vmem:[#allocation2 + $0x60] sm:$0xff] %vm485, %v2833
      %2866 = vst.msk [vmem:[#allocation2 + $0x68] sm:$0xff] %vm485, %v2834
      %2867 = vst.msk [vmem:[#allocation2 + $0x70] sm:$0xff] %vm485, %v2835
      %2868 = vst.msk [vmem:[#allocation2 + $0x78] sm:$0xff] %vm485, %v2836
      %2869 = vst.msk [vmem:[#allocation2 + $0x80] sm:$0xff] %vm485, %v2837
      %2870 = vst.msk [vmem:[#allocation2 + $0x88] sm:$0xff] %vm485, %v2838
      %2871 = vst.msk [vmem:[#allocation2 + $0x90] sm:$0xff] %vm485, %v2839
      %2872 = vst.msk [vmem:[#allocation2 + $0x98] sm:$0xff] %vm485, %v2840
      %2873 = vst.msk [vmem:[#allocation2 + $0xa0] sm:$0xff] %vm485, %v2841
      %2874 = vst.msk [vmem:[#allocation2 + $0xa8] sm:$0xff] %vm485, %v2842
      %2875 = vst.msk [vmem:[#allocation2 + $0xb0] sm:$0xff] %vm485, %v2843
      %2876 = vst.msk [vmem:[#allocation2 + $0xb8] sm:$0xff] %vm485, %v2844
      %2877 = vst.msk [vmem:[#allocation2 + $0xc0] sm:$0xff] %vm485, %v2845
      %2878 = vst.msk [vmem:[#allocation2 + $0xc8] sm:$0xff] %vm485, %v2846
      %2879 = vst.msk [vmem:[#allocation2 + $0xd0] sm:$0xff] %vm485, %v2847
      %2880 = vst.msk [vmem:[#allocation2 + $0xd8] sm:$0xff] %vm485, %v2848
      %2881 = vst.msk [vmem:[#allocation2 + $0xe0] sm:$0xff] %vm485, %v2849
      %2882 = vst.msk [vmem:[#allocation2 + $0xe8] sm:$0xff] %vm485, %v2850
      %2883 = vst.msk [vmem:[#allocation2 + $0xf0] sm:$0xff] %vm485, %v2851
      %2884 = vst.msk [vmem:[#allocation2 + $0xf8] sm:$0xff] %vm485, %v2852
      %s2885 = scalar_lea.vmem %s1, 192
      %v2886 = vld [vmem:[%s2885] sm:$0xf]
      %v2887 = vld [vmem:[%s2885 + $0x4] sm:$0xf]
      %v2888 = vld [vmem:[%s2885 + $0x8] sm:$0xf]
      %v2889 = vld [vmem:[%s2885 + $0xc] sm:$0xf]
      %v2890 = vld [vmem:[%s2885 + $0x10] sm:$0xf]
      %v2891 = vld [vmem:[%s2885 + $0x14] sm:$0xf]
      %v2892 = vld [vmem:[%s2885 + $0x18] sm:$0xf]
      %v2893 = vld [vmem:[%s2885 + $0x1c] sm:$0xf]
      %v2902 = vunpack.c.l.b16 %v2886
      %v2903 = vunpack.c.l.b16 %v2887
      %v2904 = vunpack.c.l.b16 %v2888
      %v2905 = vunpack.c.l.b16 %v2889
      %v2906 = vunpack.c.l.b16 %v2890
      %v2907 = vunpack.c.l.b16 %v2891
      %v2908 = vunpack.c.l.b16 %v2892
      %v2909 = vunpack.c.l.b16 %v2893
      %v2910 = vpack.c.b16 %v2903, %v2902
      %v2911 = vpack.c.b16 %v2905, %v2904
      %v2912 = vpack.c.b16 %v2907, %v2906
      %v2913 = vpack.c.b16 %v2909, %v2908
      %2918 = vmatprep.subr.bf16.mxu0 0
      %2919 = vmatpush1.bf16.msra.mxu0 %v2910
      %2920 = vmatprep.subr.bf16.mxu0 0
      %2921 = vmatpush1.bf16.msra.mxu0 %v2911
      %2922 = vmatprep.subr.bf16.mxu0 0
      %2923 = vmatpush1.bf16.msra.mxu0 %v2912
      %2924 = vmatprep.subr.bf16.mxu0 0
      %2925 = vmatpush1.bf16.msra.mxu0 %v2913
      %2926 = vmatprep.subr.bf16.mxu0 0
      %2927 = vmatpush1.bf16.msra.mxu0 0
      %2928 = vmatprep.subr.bf16.mxu0 0
      %2929 = vmatpush1.bf16.msra.mxu0 0
      %2930 = vmatprep.subr.bf16.mxu0 0
      %2931 = vmatpush1.bf16.msra.mxu0 0
      %2932 = vmatprep.subr.bf16.mxu0 0
      %2933 = vmatpush1.bf16.msra.mxu0 0
      %2934 = vmatprep.subr.bf16.mxu0 0
      %2935 = vmatpush1.bf16.msra.mxu0 0
      %2936 = vmatprep.subr.bf16.mxu0 0
      %2937 = vmatpush1.bf16.msra.mxu0 0
      %2938 = vmatprep.subr.bf16.mxu0 0
      %2939 = vmatpush1.bf16.msra.mxu0 0
      %2940 = vmatprep.subr.bf16.mxu0 0
      %2941 = vmatpush1.bf16.msra.mxu0 0
      %2942 = vmatprep.subr.bf16.mxu0 0
      %2943 = vmatpush1.bf16.msra.mxu0 0
      %2944 = vmatprep.subr.bf16.mxu0 0
      %2945 = vmatpush1.bf16.msra.mxu0 0
      %2946 = vmatprep.subr.bf16.mxu0 0
      %2947 = vmatpush1.bf16.msra.mxu0 0
      %2948 = vmatprep.subr.bf16.mxu0 0
      %2949 = vmatpush1.bf16.msra.mxu0 0
      %2950 = vmatprep.mubr.bf16.mxu0 0
      %2951 = vmatmul.mubr.bf16.gmra.mrb[0].mxu0 %v487
      %v2952 = vpop.f32.mrb[0].mxu0
      %v2953 = vadd.f32 0.0, %v2952
      %v2954 = vpop.f32.mrb[0].mxu0
      %v2955 = vpop.f32.mrb[0].mxu0
      %v2956 = vadd.f32 0.0, %v2955
      %v2957 = vpop.f32.mrb[0].mxu0
      %2958 = vmatprep.mubr.bf16.mxu0 0
      %2959 = vmatmul.mubr.bf16.gmra.mrb[0].mxu0 %v490
      %v2960 = vpop.f32.mrb[0].mxu0
      %v2961 = vadd.f32 0.0, %v2960
      %v2962 = vpop.f32.mrb[0].mxu0
      %v2963 = vpop.f32.mrb[0].mxu0
      %v2964 = vadd.f32 0.0, %v2963
      %v2965 = vpop.f32.mrb[0].mxu0
      %2966 = vmatprep.mubr.bf16.mxu0 0
      %2967 = vmatmul.mubr.bf16.gmra.mrb[0].mxu0 %v493
      %v2968 = vpop.f32.mrb[0].mxu0
      %v2969 = vadd.f32 0.0, %v2968
      %v2970 = vpop.f32.mrb[0].mxu0
      %v2971 = vpop.f32.mrb[0].mxu0
      %v2972 = vadd.f32 0.0, %v2971
      %v2973 = vpop.f32.mrb[0].mxu0
      %2974 = vmatprep.mubr.bf16.mxu0 0
      %2975 = vmatmul.mubr.bf16.gmra.mrb[0].mxu0 %v496
      %v2976 = vpop.f32.mrb[0].mxu0
      %v2977 = vadd.f32 0.0, %v2976
      %v2978 = vpop.f32.mrb[0].mxu0
      %v2979 = vpop.f32.mrb[0].mxu0
      %v2980 = vadd.f32 0.0, %v2979
      %v2981 = vpop.f32.mrb[0].mxu0
      %2982 = vmatprep.mubr.bf16.mxu0 0
      %2983 = vmatmul.mubr.bf16.gmra.mrb[0].mxu0 %v499
      %v2984 = vpop.f32.mrb[0].mxu0
      %v2985 = vadd.f32 0.0, %v2984
      %v2986 = vpop.f32.mrb[0].mxu0
      %v2987 = vpop.f32.mrb[0].mxu0
      %v2988 = vadd.f32 0.0, %v2987
      %v2989 = vpop.f32.mrb[0].mxu0
      %2990 = vmatprep.mubr.bf16.mxu0 0
      %2991 = vmatmul.mubr.bf16.gmra.mrb[0].mxu0 %v502
      %v2992 = vpop.f32.mrb[0].mxu0
      %v2993 = vadd.f32 0.0, %v2992
      %v2994 = vpop.f32.mrb[0].mxu0
      %v2995 = vpop.f32.mrb[0].mxu0
      %v2996 = vadd.f32 0.0, %v2995
      %v2997 = vpop.f32.mrb[0].mxu0
      %2998 = vmatprep.mubr.bf16.mxu0 0
      %2999 = vmatmul.mubr.bf16.gmra.mrb[0].mxu0 %v505
      %v3000 = vpop.f32.mrb[0].mxu0
      %v3001 = vadd.f32 0.0, %v3000
      %v3002 = vpop.f32.mrb[0].mxu0
      %v3003 = vpop.f32.mrb[0].mxu0
      %v3004 = vadd.f32 0.0, %v3003
      %v3005 = vpop.f32.mrb[0].mxu0
      %3006 = vmatprep.mubr.bf16.mxu0 0
      %3007 = vmatmul.mubr.bf16.gmra.mrb[0].mxu0 %v508
      %v3008 = vpop.f32.mrb[0].mxu0
      %v3009 = vadd.f32 0.0, %v3008
      %v3010 = vpop.f32.mrb[0].mxu0
      %v3011 = vpop.f32.mrb[0].mxu0
      %v3012 = vadd.f32 0.0, %v3011
      %v3013 = vpop.f32.mrb[0].mxu0
      %3014 = vmatprep.mubr.bf16.mxu0 0
      %3015 = vmatmul.mubr.bf16.gmra.mrb[0].mxu0 %v511
      %v3016 = vpop.f32.mrb[0].mxu0
      %v3017 = vadd.f32 0.0, %v3016
      %v3018 = vpop.f32.mrb[0].mxu0
      %v3019 = vpop.f32.mrb[0].mxu0
      %v3020 = vadd.f32 0.0, %v3019
      %v3021 = vpop.f32.mrb[0].mxu0
      %3022 = vmatprep.mubr.bf16.mxu0 0
      %3023 = vmatmul.mubr.bf16.gmra.mrb[0].mxu0 %v514
      %v3024 = vpop.f32.mrb[0].mxu0
      %v3025 = vadd.f32 0.0, %v3024
      %v3026 = vpop.f32.mrb[0].mxu0
      %v3027 = vpop.f32.mrb[0].mxu0
      %v3028 = vadd.f32 0.0, %v3027
      %v3029 = vpop.f32.mrb[0].mxu0
      %3030 = vmatprep.mubr.bf16.mxu0 0
      %3031 = vmatmul.mubr.bf16.gmra.mrb[0].mxu0 %v517
      %v3032 = vpop.f32.mrb[0].mxu0
      %v3033 = vadd.f32 0.0, %v3032
      %v3034 = vpop.f32.mrb[0].mxu0
      %v3035 = vpop.f32.mrb[0].mxu0
      %v3036 = vadd.f32 0.0, %v3035
      %v3037 = vpop.f32.mrb[0].mxu0
      %3038 = vmatprep.mubr.bf16.mxu0 0
      %3039 = vmatmul.mubr.bf16.gmra.mrb[0].mxu0 %v520
      %v3040 = vpop.f32.mrb[0].mxu0
      %v3041 = vadd.f32 0.0, %v3040
      %v3042 = vpop.f32.mrb[0].mxu0
      %v3043 = vpop.f32.mrb[0].mxu0
      %v3044 = vadd.f32 0.0, %v3043
      %v3045 = vpop.f32.mrb[0].mxu0
      %3046 = vmatprep.mubr.bf16.mxu0 0
      %3047 = vmatmul.mubr.bf16.gmra.mrb[0].mxu0 %v523
      %v3048 = vpop.f32.mrb[0].mxu0
      %v3049 = vadd.f32 0.0, %v3048
      %v3050 = vpop.f32.mrb[0].mxu0
      %v3051 = vpop.f32.mrb[0].mxu0
      %v3052 = vadd.f32 0.0, %v3051
      %v3053 = vpop.f32.mrb[0].mxu0
      %3054 = vmatprep.mubr.bf16.mxu0 0
      %3055 = vmatmul.mubr.bf16.gmra.mrb[0].mxu0 %v526
      %v3056 = vpop.f32.mrb[0].mxu0
      %v3057 = vadd.f32 0.0, %v3056
      %v3058 = vpop.f32.mrb[0].mxu0
      %v3059 = vpop.f32.mrb[0].mxu0
      %v3060 = vadd.f32 0.0, %v3059
      %v3061 = vpop.f32.mrb[0].mxu0
      %3062 = vmatprep.mubr.bf16.mxu0 0
      %3063 = vmatmul.mubr.bf16.gmra.mrb[0].mxu0 %v529
      %v3064 = vpop.f32.mrb[0].mxu0
      %v3065 = vadd.f32 0.0, %v3064
      %v3066 = vpop.f32.mrb[0].mxu0
      %v3067 = vpop.f32.mrb[0].mxu0
      %v3068 = vadd.f32 0.0, %v3067
      %v3069 = vpop.f32.mrb[0].mxu0
      %3070 = vmatprep.mubr.bf16.mxu0 0
      %3071 = vmatmul.mubr.bf16.gmra.mrb[0].mxu0 %v532
      %v3072 = vpop.f32.mrb[0].mxu0
      %v3073 = vadd.f32 0.0, %v3072
      %v3074 = vpop.f32.mrb[0].mxu0
      %v3075 = vpop.f32.mrb[0].mxu0
      %v3076 = vadd.f32 0.0, %v3075
      %v3077 = vpop.f32.mrb[0].mxu0
      %3078 = vdwg.mxu0
      %v3079 = vrot.slane %v2953, 7
      %v3080 = vrot.slane %v2956, 7
      %v3081 = vrot.slane %v2961, 7
      %v3082 = vrot.slane %v2964, 7
      %v3083 = vrot.slane %v2969, 7
      %v3084 = vrot.slane %v2972, 7
      %v3085 = vrot.slane %v2977, 7
      %v3086 = vrot.slane %v2980, 7
      %v3087 = vrot.slane %v2985, 7
      %v3088 = vrot.slane %v2988, 7
      %v3089 = vrot.slane %v2993, 7
      %v3090 = vrot.slane %v2996, 7
      %v3091 = vrot.slane %v3001, 7
      %v3092 = vrot.slane %v3004, 7
      %v3093 = vrot.slane %v3009, 7
      %v3094 = vrot.slane %v3012, 7
      %v3095 = vrot.slane %v3017, 7
      %v3096 = vrot.slane %v3020, 7
      %v3097 = vrot.slane %v3025, 7
      %v3098 = vrot.slane %v3028, 7
      %v3099 = vrot.slane %v3033, 7
      %v3100 = vrot.slane %v3036, 7
      %v3101 = vrot.slane %v3041, 7
      %v3102 = vrot.slane %v3044, 7
      %v3103 = vrot.slane %v3049, 7
      %v3104 = vrot.slane %v3052, 7
      %v3105 = vrot.slane %v3057, 7
      %v3106 = vrot.slane %v3060, 7
      %v3107 = vrot.slane %v3065, 7
      %v3108 = vrot.slane %v3068, 7
      %v3109 = vrot.slane %v3073, 7
      %v3110 = vrot.slane %v3076, 7
      %v3111 = vsel %vm729, %v3109, %v3110
      %v3112 = vsel %vm729, %v3108, %v3109
      %v3113 = vsel %vm729, %v3107, %v3108
      %v3114 = vsel %vm729, %v3106, %v3107
      %v3115 = vsel %vm729, %v3105, %v3106
      %v3116 = vsel %vm729, %v3104, %v3105
      %v3117 = vsel %vm729, %v3103, %v3104
      %v3118 = vsel %vm729, %v3102, %v3103
      %v3119 = vsel %vm729, %v3101, %v3102
      %v3120 = vsel %vm729, %v3100, %v3101
      %v3121 = vsel %vm729, %v3099, %v3100
      %v3122 = vsel %vm729, %v3098, %v3099
      %v3123 = vsel %vm729, %v3097, %v3098
      %v3124 = vsel %vm729, %v3096, %v3097
      %v3125 = vsel %vm729, %v3095, %v3096
      %v3126 = vsel %vm729, %v3094, %v3095
      %v3127 = vsel %vm729, %v3093, %v3094
      %v3128 = vsel %vm729, %v3092, %v3093
      %v3129 = vsel %vm729, %v3091, %v3092
      %v3130 = vsel %vm729, %v3090, %v3091
      %v3131 = vsel %vm729, %v3089, %v3090
      %v3132 = vsel %vm729, %v3088, %v3089
      %v3133 = vsel %vm729, %v3087, %v3088
      %v3134 = vsel %vm729, %v3086, %v3087
      %v3135 = vsel %vm729, %v3085, %v3086
      %v3136 = vsel %vm729, %v3084, %v3085
      %v3137 = vsel %vm729, %v3083, %v3084
      %v3138 = vsel %vm729, %v3082, %v3083
      %v3139 = vsel %vm729, %v3081, %v3082
      %v3140 = vsel %vm729, %v3080, %v3081
      %v3141 = vsel %vm729, %v3079, %v3080
      %v3142 = vsel %vm729, %v3110, %v3079
      %3144 = vset.pattern.permute.xlu0 0
      %3145 = vperm.xlu0 %3144, %v275
      %v3146 = vpop.permute.xlu0 %3145
      %3149 = vset.pattern.permute.xlu0 0
      %3150 = vperm.xlu0 %3149, %v276
      %v3151 = vpop.permute.xlu0 %3150
      %3154 = vset.pattern.permute.xlu0 0
      %3155 = vperm.xlu0 %3154, %v277
      %v3156 = vpop.permute.xlu0 %3155
      %3159 = vset.pattern.permute.xlu0 0
      %3160 = vperm.xlu0 %3159, %v278
      %v3161 = vpop.permute.xlu0 %3160
      %3164 = vset.pattern.permute.xlu0 0
      %3165 = vperm.xlu0 %3164, %v279
      %v3166 = vpop.permute.xlu0 %3165
      %3169 = vset.pattern.permute.xlu0 0
      %3170 = vperm.xlu0 %3169, %v280
      %v3171 = vpop.permute.xlu0 %3170
      %3174 = vset.pattern.permute.xlu0 0
      %3175 = vperm.xlu0 %3174, %v281
      %v3176 = vpop.permute.xlu0 %3175
      %3179 = vset.pattern.permute.xlu0 0
      %3180 = vperm.xlu0 %3179, %v282
      %v3181 = vpop.permute.xlu0 %3180
      %3184 = vset.pattern.permute.xlu0 0
      %3185 = vperm.xlu0 %3184, %v283
      %v3186 = vpop.permute.xlu0 %3185
      %3189 = vset.pattern.permute.xlu0 0
      %3190 = vperm.xlu0 %3189, %v284
      %v3191 = vpop.permute.xlu0 %3190
      %3194 = vset.pattern.permute.xlu0 0
      %3195 = vperm.xlu0 %3194, %v285
      %v3196 = vpop.permute.xlu0 %3195
      %3199 = vset.pattern.permute.xlu0 0
      %3200 = vperm.xlu0 %3199, %v286
      %v3201 = vpop.permute.xlu0 %3200
      %3204 = vset.pattern.permute.xlu0 0
      %3205 = vperm.xlu0 %3204, %v287
      %v3206 = vpop.permute.xlu0 %3205
      %3209 = vset.pattern.permute.xlu0 0
      %3210 = vperm.xlu0 %3209, %v288
      %v3211 = vpop.permute.xlu0 %3210
      %3214 = vset.pattern.permute.xlu0 0
      %3215 = vperm.xlu0 %3214, %v289
      %v3216 = vpop.permute.xlu0 %3215
      %3219 = vset.pattern.permute.xlu0 0
      %3220 = vperm.xlu0 %3219, %v290
      %v3221 = vpop.permute.xlu0 %3220
      %3224 = vset.pattern.permute.xlu0 0
      %3225 = vperm.xlu0 %3224, %v291
      %v3226 = vpop.permute.xlu0 %3225
      %3229 = vset.pattern.permute.xlu0 0
      %3230 = vperm.xlu0 %3229, %v292
      %v3231 = vpop.permute.xlu0 %3230
      %3234 = vset.pattern.permute.xlu0 0
      %3235 = vperm.xlu0 %3234, %v293
      %v3236 = vpop.permute.xlu0 %3235
      %3239 = vset.pattern.permute.xlu0 0
      %3240 = vperm.xlu0 %3239, %v294
      %v3241 = vpop.permute.xlu0 %3240
      %3244 = vset.pattern.permute.xlu0 0
      %3245 = vperm.xlu0 %3244, %v295
      %v3246 = vpop.permute.xlu0 %3245
      %3249 = vset.pattern.permute.xlu0 0
      %3250 = vperm.xlu0 %3249, %v296
      %v3251 = vpop.permute.xlu0 %3250
      %3254 = vset.pattern.permute.xlu0 0
      %3255 = vperm.xlu0 %3254, %v297
      %v3256 = vpop.permute.xlu0 %3255
      %3259 = vset.pattern.permute.xlu0 0
      %3260 = vperm.xlu0 %3259, %v298
      %v3261 = vpop.permute.xlu0 %3260
      %3264 = vset.pattern.permute.xlu0 0
      %3265 = vperm.xlu0 %3264, %v299
      %v3266 = vpop.permute.xlu0 %3265
      %3269 = vset.pattern.permute.xlu0 0
      %3270 = vperm.xlu0 %3269, %v300
      %v3271 = vpop.permute.xlu0 %3270
      %3274 = vset.pattern.permute.xlu0 0
      %3275 = vperm.xlu0 %3274, %v301
      %v3276 = vpop.permute.xlu0 %3275
      %3279 = vset.pattern.permute.xlu0 0
      %3280 = vperm.xlu0 %3279, %v302
      %v3281 = vpop.permute.xlu0 %3280
      %3284 = vset.pattern.permute.xlu0 0
      %3285 = vperm.xlu0 %3284, %v303
      %v3286 = vpop.permute.xlu0 %3285
      %3289 = vset.pattern.permute.xlu0 0
      %3290 = vperm.xlu0 %3289, %v304
      %v3291 = vpop.permute.xlu0 %3290
      %3294 = vset.pattern.permute.xlu0 0
      %3295 = vperm.xlu0 %3294, %v305
      %v3296 = vpop.permute.xlu0 %3295
      %3299 = vset.pattern.permute.xlu0 0
      %3300 = vperm.xlu0 %3299, %v306
      %v3301 = vpop.permute.xlu0 %3300
      %v3303 = vmul.f32 %v3140, %v3146
      %v3304 = vmul.f32 %v3139, %v3151
      %v3305 = vmul.f32 %v3138, %v3156
      %v3306 = vmul.f32 %v3137, %v3161
      %v3307 = vmul.f32 %v3136, %v3166
      %v3308 = vmul.f32 %v3135, %v3171
      %v3309 = vmul.f32 %v3134, %v3176
      %v3310 = vmul.f32 %v3133, %v3181
      %v3311 = vmul.f32 %v3132, %v3186
      %v3312 = vmul.f32 %v3131, %v3191
      %v3313 = vmul.f32 %v3130, %v3196
      %v3314 = vmul.f32 %v3129, %v3201
      %v3315 = vmul.f32 %v3128, %v3206
      %v3316 = vmul.f32 %v3127, %v3211
      %v3317 = vmul.f32 %v3126, %v3216
      %v3318 = vmul.f32 %v3125, %v3221
      %v3319 = vmul.f32 %v3124, %v3226
      %v3320 = vmul.f32 %v3123, %v3231
      %v3321 = vmul.f32 %v3122, %v3236
      %v3322 = vmul.f32 %v3121, %v3241
      %v3323 = vmul.f32 %v3120, %v3246
      %v3324 = vmul.f32 %v3119, %v3251
      %v3325 = vmul.f32 %v3118, %v3256
      %v3326 = vmul.f32 %v3117, %v3261
      %v3327 = vmul.f32 %v3116, %v3266
      %v3328 = vmul.f32 %v3115, %v3271
      %v3329 = vmul.f32 %v3114, %v3276
      %v3330 = vmul.f32 %v3113, %v3281
      %v3331 = vmul.f32 %v3112, %v3286
      %v3332 = vmul.f32 %v3111, %v3291
      %v3333 = vmul.f32 %v3142, %v3296
      %v3334 = vmul.f32 %v3141, %v3301
      %v3335 = vmul.f32 %v3303, %v957
      %v3336 = vmul.f32 %v3304, %v962
      %v3337 = vmul.f32 %v3305, %v967
      %v3338 = vmul.f32 %v3306, %v972
      %v3339 = vmul.f32 %v3307, %v977
      %v3340 = vmul.f32 %v3308, %v982
      %v3341 = vmul.f32 %v3309, %v987
      %v3342 = vmul.f32 %v3310, %v992
      %v3343 = vmul.f32 %v3311, %v997
      %v3344 = vmul.f32 %v3312, %v1002
      %v3345 = vmul.f32 %v3313, %v1007
      %v3346 = vmul.f32 %v3314, %v1012
      %v3347 = vmul.f32 %v3315, %v1017
      %v3348 = vmul.f32 %v3316, %v1022
      %v3349 = vmul.f32 %v3317, %v1027
      %v3350 = vmul.f32 %v3318, %v1032
      %v3351 = vmul.f32 %v3319, %v1037
      %v3352 = vmul.f32 %v3320, %v1042
      %v3353 = vmul.f32 %v3321, %v1047
      %v3354 = vmul.f32 %v3322, %v1052
      %v3355 = vmul.f32 %v3323, %v1057
      %v3356 = vmul.f32 %v3324, %v1062
      %v3357 = vmul.f32 %v3325, %v1067
      %v3358 = vmul.f32 %v3326, %v1072
      %v3359 = vmul.f32 %v3327, %v1077
      %v3360 = vmul.f32 %v3328, %v1082
      %v3361 = vmul.f32 %v3329, %v1087
      %v3362 = vmul.f32 %v3330, %v1092
      %v3363 = vmul.f32 %v3331, %v1097
      %v3364 = vmul.f32 %v3332, %v1102
      %v3365 = vmul.f32 %v3333, %v1107
      %v3366 = vmul.f32 %v3334, %v1112
      %s3367 = scalar_lea.vmem %s1, 224
      %v3368 = vld [vmem:[%s3367] sm:$0xf]
      %v3369 = vld [vmem:[%s3367 + $0x4] sm:$0xf]
      %v3370 = vld [vmem:[%s3367 + $0x8] sm:$0xf]
      %v3371 = vld [vmem:[%s3367 + $0xc] sm:$0xf]
      %v3372 = vld [vmem:[%s3367 + $0x10] sm:$0xf]
      %v3373 = vld [vmem:[%s3367 + $0x14] sm:$0xf]
      %v3374 = vld [vmem:[%s3367 + $0x18] sm:$0xf]
      %v3375 = vld [vmem:[%s3367 + $0x1c] sm:$0xf]
      %v3384 = vunpack.c.l.b16 %v3368
      %v3385 = vunpack.c.l.b16 %v3369
      %v3386 = vunpack.c.l.b16 %v3370
      %v3387 = vunpack.c.l.b16 %v3371
      %v3388 = vunpack.c.l.b16 %v3372
      %v3389 = vunpack.c.l.b16 %v3373
      %v3390 = vunpack.c.l.b16 %v3374
      %v3391 = vunpack.c.l.b16 %v3375
      %v3392 = vpack.c.b16 %v3385, %v3384
      %v3393 = vpack.c.b16 %v3387, %v3386
      %v3394 = vpack.c.b16 %v3389, %v3388
      %v3395 = vpack.c.b16 %v3391, %v3390
      %3400 = vmatprep.subr.bf16.mxu0 0
      %3401 = vmatpush1.bf16.msra.mxu0 %v3392
      %3402 = vmatprep.subr.bf16.mxu0 0
      %3403 = vmatpush1.bf16.msra.mxu0 %v3393
      %3404 = vmatprep.subr.bf16.mxu0 0
      %3405 = vmatpush1.bf16.msra.mxu0 %v3394
      %3406 = vmatprep.subr.bf16.mxu0 0
      %3407 = vmatpush1.bf16.msra.mxu0 %v3395
      %3408 = vmatprep.subr.bf16.mxu0 0
      %3409 = vmatpush1.bf16.msra.mxu0 0
      %3410 = vmatprep.subr.bf16.mxu0 0
      %3411 = vmatpush1.bf16.msra.mxu0 0
      %3412 = vmatprep.subr.bf16.mxu0 0
      %3413 = vmatpush1.bf16.msra.mxu0 0
      %3414 = vmatprep.subr.bf16.mxu0 0
      %3415 = vmatpush1.bf16.msra.mxu0 0
      %3416 = vmatprep.subr.bf16.mxu0 0
      %3417 = vmatpush1.bf16.msra.mxu0 0
      %3418 = vmatprep.subr.bf16.mxu0 0
      %3419 = vmatpush1.bf16.msra.mxu0 0
      %3420 = vmatprep.subr.bf16.mxu0 0
      %3421 = vmatpush1.bf16.msra.mxu0 0
      %3422 = vmatprep.subr.bf16.mxu0 0
      %3423 = vmatpush1.bf16.msra.mxu0 0
      %3424 = vmatprep.subr.bf16.mxu0 0
      %3425 = vmatpush1.bf16.msra.mxu0 0
      %3426 = vmatprep.subr.bf16.mxu0 0
      %3427 = vmatpush1.bf16.msra.mxu0 0
      %3428 = vmatprep.subr.bf16.mxu0 0
      %3429 = vmatpush1.bf16.msra.mxu0 0
      %3430 = vmatprep.subr.bf16.mxu0 0
      %3431 = vmatpush1.bf16.msra.mxu0 0
      %3432 = vmatprep.mubr.bf16.mxu0 0
      %3433 = vmatmul.mubr.bf16.gmra.mrb[0].mxu0 %v487
      %v3434 = vpop.f32.mrb[0].mxu0
      %v3435 = vadd.f32 0.0, %v3434
      %v3436 = vpop.f32.mrb[0].mxu0
      %v3437 = vpop.f32.mrb[0].mxu0
      %v3438 = vadd.f32 0.0, %v3437
      %v3439 = vpop.f32.mrb[0].mxu0
      %3440 = vmatprep.mubr.bf16.mxu0 0
      %3441 = vmatmul.mubr.bf16.gmra.mrb[0].mxu0 %v490
      %v3442 = vpop.f32.mrb[0].mxu0
      %v3443 = vadd.f32 0.0, %v3442
      %v3444 = vpop.f32.mrb[0].mxu0
      %v3445 = vpop.f32.mrb[0].mxu0
      %v3446 = vadd.f32 0.0, %v3445
      %v3447 = vpop.f32.mrb[0].mxu0
      %3448 = vmatprep.mubr.bf16.mxu0 0
      %3449 = vmatmul.mubr.bf16.gmra.mrb[0].mxu0 %v493
      %v3450 = vpop.f32.mrb[0].mxu0
      %v3451 = vadd.f32 0.0, %v3450
      %v3452 = vpop.f32.mrb[0].mxu0
      %v3453 = vpop.f32.mrb[0].mxu0
      %v3454 = vadd.f32 0.0, %v3453
      %v3455 = vpop.f32.mrb[0].mxu0
      %3456 = vmatprep.mubr.bf16.mxu0 0
      %3457 = vmatmul.mubr.bf16.gmra.mrb[0].mxu0 %v496
      %v3458 = vpop.f32.mrb[0].mxu0
      %v3459 = vadd.f32 0.0, %v3458
      %v3460 = vpop.f32.mrb[0].mxu0
      %v3461 = vpop.f32.mrb[0].mxu0
      %v3462 = vadd.f32 0.0, %v3461
      %v3463 = vpop.f32.mrb[0].mxu0
      %3464 = vmatprep.mubr.bf16.mxu0 0
      %3465 = vmatmul.mubr.bf16.gmra.mrb[0].mxu0 %v499
      %v3466 = vpop.f32.mrb[0].mxu0
      %v3467 = vadd.f32 0.0, %v3466
      %v3468 = vpop.f32.mrb[0].mxu0
      %v3469 = vpop.f32.mrb[0].mxu0
      %v3470 = vadd.f32 0.0, %v3469
      %v3471 = vpop.f32.mrb[0].mxu0
      %3472 = vmatprep.mubr.bf16.mxu0 0
      %3473 = vmatmul.mubr.bf16.gmra.mrb[0].mxu0 %v502
      %v3474 = vpop.f32.mrb[0].mxu0
      %v3475 = vadd.f32 0.0, %v3474
      %v3476 = vpop.f32.mrb[0].mxu0
      %v3477 = vpop.f32.mrb[0].mxu0
      %v3478 = vadd.f32 0.0, %v3477
      %v3479 = vpop.f32.mrb[0].mxu0
      %3480 = vmatprep.mubr.bf16.mxu0 0
      %3481 = vmatmul.mubr.bf16.gmra.mrb[0].mxu0 %v505
      %v3482 = vpop.f32.mrb[0].mxu0
      %v3483 = vadd.f32 0.0, %v3482
      %v3484 = vpop.f32.mrb[0].mxu0
      %v3485 = vpop.f32.mrb[0].mxu0
      %v3486 = vadd.f32 0.0, %v3485
      %v3487 = vpop.f32.mrb[0].mxu0
      %3488 = vmatprep.mubr.bf16.mxu0 0
      %3489 = vmatmul.mubr.bf16.gmra.mrb[0].mxu0 %v508
      %v3490 = vpop.f32.mrb[0].mxu0
      %v3491 = vadd.f32 0.0, %v3490
      %v3492 = vpop.f32.mrb[0].mxu0
      %v3493 = vpop.f32.mrb[0].mxu0
      %v3494 = vadd.f32 0.0, %v3493
      %v3495 = vpop.f32.mrb[0].mxu0
      %3496 = vmatprep.mubr.bf16.mxu0 0
      %3497 = vmatmul.mubr.bf16.gmra.mrb[0].mxu0 %v511
      %v3498 = vpop.f32.mrb[0].mxu0
      %v3499 = vadd.f32 0.0, %v3498
      %v3500 = vpop.f32.mrb[0].mxu0
      %v3501 = vpop.f32.mrb[0].mxu0
      %v3502 = vadd.f32 0.0, %v3501
      %v3503 = vpop.f32.mrb[0].mxu0
      %3504 = vmatprep.mubr.bf16.mxu0 0
      %3505 = vmatmul.mubr.bf16.gmra.mrb[0].mxu0 %v514
      %v3506 = vpop.f32.mrb[0].mxu0
      %v3507 = vadd.f32 0.0, %v3506
      %v3508 = vpop.f32.mrb[0].mxu0
      %v3509 = vpop.f32.mrb[0].mxu0
      %v3510 = vadd.f32 0.0, %v3509
      %v3511 = vpop.f32.mrb[0].mxu0
      %3512 = vmatprep.mubr.bf16.mxu0 0
      %3513 = vmatmul.mubr.bf16.gmra.mrb[0].mxu0 %v517
      %v3514 = vpop.f32.mrb[0].mxu0
      %v3515 = vadd.f32 0.0, %v3514
      %v3516 = vpop.f32.mrb[0].mxu0
      %v3517 = vpop.f32.mrb[0].mxu0
      %v3518 = vadd.f32 0.0, %v3517
      %v3519 = vpop.f32.mrb[0].mxu0
      %3520 = vmatprep.mubr.bf16.mxu0 0
      %3521 = vmatmul.mubr.bf16.gmra.mrb[0].mxu0 %v520
      %v3522 = vpop.f32.mrb[0].mxu0
      %v3523 = vadd.f32 0.0, %v3522
      %v3524 = vpop.f32.mrb[0].mxu0
      %v3525 = vpop.f32.mrb[0].mxu0
      %v3526 = vadd.f32 0.0, %v3525
      %v3527 = vpop.f32.mrb[0].mxu0
      %3528 = vmatprep.mubr.bf16.mxu0 0
      %3529 = vmatmul.mubr.bf16.gmra.mrb[0].mxu0 %v523
      %v3530 = vpop.f32.mrb[0].mxu0
      %v3531 = vadd.f32 0.0, %v3530
      %v3532 = vpop.f32.mrb[0].mxu0
      %v3533 = vpop.f32.mrb[0].mxu0
      %v3534 = vadd.f32 0.0, %v3533
      %v3535 = vpop.f32.mrb[0].mxu0
      %3536 = vmatprep.mubr.bf16.mxu0 0
      %3537 = vmatmul.mubr.bf16.gmra.mrb[0].mxu0 %v526
      %v3538 = vpop.f32.mrb[0].mxu0
      %v3539 = vadd.f32 0.0, %v3538
      %v3540 = vpop.f32.mrb[0].mxu0
      %v3541 = vpop.f32.mrb[0].mxu0
      %v3542 = vadd.f32 0.0, %v3541
      %v3543 = vpop.f32.mrb[0].mxu0
      %3544 = vmatprep.mubr.bf16.mxu0 0
      %3545 = vmatmul.mubr.bf16.gmra.mrb[0].mxu0 %v529
      %v3546 = vpop.f32.mrb[0].mxu0
      %v3547 = vadd.f32 0.0, %v3546
      %v3548 = vpop.f32.mrb[0].mxu0
      %v3549 = vpop.f32.mrb[0].mxu0
      %v3550 = vadd.f32 0.0, %v3549
      %v3551 = vpop.f32.mrb[0].mxu0
      %3552 = vmatprep.mubr.bf16.mxu0 0
      %3553 = vmatmul.mubr.bf16.gmra.mrb[0].mxu0 %v532
      %v3554 = vpop.f32.mrb[0].mxu0
      %v3555 = vadd.f32 0.0, %v3554
      %v3556 = vpop.f32.mrb[0].mxu0
      %v3557 = vpop.f32.mrb[0].mxu0
      %v3558 = vadd.f32 0.0, %v3557
      %v3559 = vpop.f32.mrb[0].mxu0
      %3560 = vdwg.mxu0
      %v3561 = vmul.f32 %v3443, %v3146
      %v3562 = vmul.f32 %v3446, %v3151
      %v3563 = vmul.f32 %v3451, %v3156
      %v3564 = vmul.f32 %v3454, %v3161
      %v3565 = vmul.f32 %v3459, %v3166
      %v3566 = vmul.f32 %v3462, %v3171
      %v3567 = vmul.f32 %v3467, %v3176
      %v3568 = vmul.f32 %v3470, %v3181
      %v3569 = vmul.f32 %v3475, %v3186
      %v3570 = vmul.f32 %v3478, %v3191
      %v3571 = vmul.f32 %v3483, %v3196
      %v3572 = vmul.f32 %v3486, %v3201
      %v3573 = vmul.f32 %v3491, %v3206
      %v3574 = vmul.f32 %v3494, %v3211
      %v3575 = vmul.f32 %v3499, %v3216
      %v3576 = vmul.f32 %v3502, %v3221
      %v3577 = vmul.f32 %v3507, %v3226
      %v3578 = vmul.f32 %v3510, %v3231
      %v3579 = vmul.f32 %v3515, %v3236
      %v3580 = vmul.f32 %v3518, %v3241
      %v3581 = vmul.f32 %v3523, %v3246
      %v3582 = vmul.f32 %v3526, %v3251
      %v3583 = vmul.f32 %v3531, %v3256
      %v3584 = vmul.f32 %v3534, %v3261
      %v3585 = vmul.f32 %v3539, %v3266
      %v3586 = vmul.f32 %v3542, %v3271
      %v3587 = vmul.f32 %v3547, %v3276
      %v3588 = vmul.f32 %v3550, %v3281
      %v3589 = vmul.f32 %v3555, %v3286
      %v3590 = vmul.f32 %v3558, %v3291
      %v3591 = vmul.f32 %v3435, %v3296
      %v3592 = vmul.f32 %v3438, %v3301
      %v3593 = vadd.f32 %v3335, %v3561
      %v3594 = vadd.f32 %v3336, %v3562
      %v3595 = vadd.f32 %v3337, %v3563
      %v3596 = vadd.f32 %v3338, %v3564
      %v3597 = vadd.f32 %v3339, %v3565
      %v3598 = vadd.f32 %v3340, %v3566
      %v3599 = vadd.f32 %v3341, %v3567
      %v3600 = vadd.f32 %v3342, %v3568
      %v3601 = vadd.f32 %v3343, %v3569
      %v3602 = vadd.f32 %v3344, %v3570
      %v3603 = vadd.f32 %v3345, %v3571
      %v3604 = vadd.f32 %v3346, %v3572
      %v3605 = vadd.f32 %v3347, %v3573
      %v3606 = vadd.f32 %v3348, %v3574
      %v3607 = vadd.f32 %v3349, %v3575
      %v3608 = vadd.f32 %v3350, %v3576
      %v3609 = vadd.f32 %v3351, %v3577
      %v3610 = vadd.f32 %v3352, %v3578
      %v3611 = vadd.f32 %v3353, %v3579
      %v3612 = vadd.f32 %v3354, %v3580
      %v3613 = vadd.f32 %v3355, %v3581
      %v3614 = vadd.f32 %v3356, %v3582
      %v3615 = vadd.f32 %v3357, %v3583
      %v3616 = vadd.f32 %v3358, %v3584
      %v3617 = vadd.f32 %v3359, %v3585
      %v3618 = vadd.f32 %v3360, %v3586
      %v3619 = vadd.f32 %v3361, %v3587
      %v3620 = vadd.f32 %v3362, %v3588
      %v3621 = vadd.f32 %v3363, %v3589
      %v3622 = vadd.f32 %v3364, %v3590
      %v3623 = vadd.f32 %v3365, %v3591
      %v3624 = vadd.f32 %v3366, %v3592
      %s3625 = scalar_lea.vmem %s1, 256
      %v3626 = vld [vmem:[%s3625] sm:$0xf]
      %v3627 = vld [vmem:[%s3625 + $0x4] sm:$0xf]
      %v3628 = vld [vmem:[%s3625 + $0x8] sm:$0xf]
      %v3629 = vld [vmem:[%s3625 + $0xc] sm:$0xf]
      %v3630 = vld [vmem:[%s3625 + $0x10] sm:$0xf]
      %v3631 = vld [vmem:[%s3625 + $0x14] sm:$0xf]
      %v3632 = vld [vmem:[%s3625 + $0x18] sm:$0xf]
      %v3633 = vld [vmem:[%s3625 + $0x1c] sm:$0xf]
      %v3642 = vunpack.c.l.b16 %v3626
      %v3643 = vunpack.c.l.b16 %v3627
      %v3644 = vunpack.c.l.b16 %v3628
      %v3645 = vunpack.c.l.b16 %v3629
      %v3646 = vunpack.c.l.b16 %v3630
      %v3647 = vunpack.c.l.b16 %v3631
      %v3648 = vunpack.c.l.b16 %v3632
      %v3649 = vunpack.c.l.b16 %v3633
      %v3650 = vpack.c.b16 %v3643, %v3642
      %v3651 = vpack.c.b16 %v3645, %v3644
      %v3652 = vpack.c.b16 %v3647, %v3646
      %v3653 = vpack.c.b16 %v3649, %v3648
      %3658 = vmatprep.subr.bf16.mxu0 0
      %3659 = vmatpush1.bf16.msra.mxu0 %v3650
      %3660 = vmatprep.subr.bf16.mxu0 0
      %3661 = vmatpush1.bf16.msra.mxu0 %v3651
      %3662 = vmatprep.subr.bf16.mxu0 0
      %3663 = vmatpush1.bf16.msra.mxu0 %v3652
      %3664 = vmatprep.subr.bf16.mxu0 0
      %3665 = vmatpush1.bf16.msra.mxu0 %v3653
      %3666 = vmatprep.subr.bf16.mxu0 0
      %3667 = vmatpush1.bf16.msra.mxu0 0
      %3668 = vmatprep.subr.bf16.mxu0 0
      %3669 = vmatpush1.bf16.msra.mxu0 0
      %3670 = vmatprep.subr.bf16.mxu0 0
      %3671 = vmatpush1.bf16.msra.mxu0 0
      %3672 = vmatprep.subr.bf16.mxu0 0
      %3673 = vmatpush1.bf16.msra.mxu0 0
      %3674 = vmatprep.subr.bf16.mxu0 0
      %3675 = vmatpush1.bf16.msra.mxu0 0
      %3676 = vmatprep.subr.bf16.mxu0 0
      %3677 = vmatpush1.bf16.msra.mxu0 0
      %3678 = vmatprep.subr.bf16.mxu0 0
      %3679 = vmatpush1.bf16.msra.mxu0 0
      %3680 = vmatprep.subr.bf16.mxu0 0
      %3681 = vmatpush1.bf16.msra.mxu0 0
      %3682 = vmatprep.subr.bf16.mxu0 0
      %3683 = vmatpush1.bf16.msra.mxu0 0
      %3684 = vmatprep.subr.bf16.mxu0 0
      %3685 = vmatpush1.bf16.msra.mxu0 0
      %3686 = vmatprep.subr.bf16.mxu0 0
      %3687 = vmatpush1.bf16.msra.mxu0 0
      %3688 = vmatprep.subr.bf16.mxu0 0
      %3689 = vmatpush1.bf16.msra.mxu0 0
      %3690 = vmatprep.mubr.bf16.mxu0 0
      %3691 = vmatmul.mubr.bf16.gmra.mrb[0].mxu0 %v487
      %v3692 = vpop.f32.mrb[0].mxu0
      %v3693 = vadd.f32 0.0, %v3692
      %v3694 = vpop.f32.mrb[0].mxu0
      %v3695 = vpop.f32.mrb[0].mxu0
      %v3696 = vadd.f32 0.0, %v3695
      %v3697 = vpop.f32.mrb[0].mxu0
      %3698 = vmatprep.mubr.bf16.mxu0 0
      %3699 = vmatmul.mubr.bf16.gmra.mrb[0].mxu0 %v490
      %v3700 = vpop.f32.mrb[0].mxu0
      %v3701 = vadd.f32 0.0, %v3700
      %v3702 = vpop.f32.mrb[0].mxu0
      %v3703 = vpop.f32.mrb[0].mxu0
      %v3704 = vadd.f32 0.0, %v3703
      %v3705 = vpop.f32.mrb[0].mxu0
      %3706 = vmatprep.mubr.bf16.mxu0 0
      %3707 = vmatmul.mubr.bf16.gmra.mrb[0].mxu0 %v493
      %v3708 = vpop.f32.mrb[0].mxu0
      %v3709 = vadd.f32 0.0, %v3708
      %v3710 = vpop.f32.mrb[0].mxu0
      %v3711 = vpop.f32.mrb[0].mxu0
      %v3712 = vadd.f32 0.0, %v3711
      %v3713 = vpop.f32.mrb[0].mxu0
      %3714 = vmatprep.mubr.bf16.mxu0 0
      %3715 = vmatmul.mubr.bf16.gmra.mrb[0].mxu0 %v496
      %v3716 = vpop.f32.mrb[0].mxu0
      %v3717 = vadd.f32 0.0, %v3716
      %v3718 = vpop.f32.mrb[0].mxu0
      %v3719 = vpop.f32.mrb[0].mxu0
      %v3720 = vadd.f32 0.0, %v3719
      %v3721 = vpop.f32.mrb[0].mxu0
      %3722 = vmatprep.mubr.bf16.mxu0 0
      %3723 = vmatmul.mubr.bf16.gmra.mrb[0].mxu0 %v499
      %v3724 = vpop.f32.mrb[0].mxu0
      %v3725 = vadd.f32 0.0, %v3724
      %v3726 = vpop.f32.mrb[0].mxu0
      %v3727 = vpop.f32.mrb[0].mxu0
      %v3728 = vadd.f32 0.0, %v3727
      %v3729 = vpop.f32.mrb[0].mxu0
      %3730 = vmatprep.mubr.bf16.mxu0 0
      %3731 = vmatmul.mubr.bf16.gmra.mrb[0].mxu0 %v502
      %v3732 = vpop.f32.mrb[0].mxu0
      %v3733 = vadd.f32 0.0, %v3732
      %v3734 = vpop.f32.mrb[0].mxu0
      %v3735 = vpop.f32.mrb[0].mxu0
      %v3736 = vadd.f32 0.0, %v3735
      %v3737 = vpop.f32.mrb[0].mxu0
      %3738 = vmatprep.mubr.bf16.mxu0 0
      %3739 = vmatmul.mubr.bf16.gmra.mrb[0].mxu0 %v505
      %v3740 = vpop.f32.mrb[0].mxu0
      %v3741 = vadd.f32 0.0, %v3740
      %v3742 = vpop.f32.mrb[0].mxu0
      %v3743 = vpop.f32.mrb[0].mxu0
      %v3744 = vadd.f32 0.0, %v3743
      %v3745 = vpop.f32.mrb[0].mxu0
      %3746 = vmatprep.mubr.bf16.mxu0 0
      %3747 = vmatmul.mubr.bf16.gmra.mrb[0].mxu0 %v508
      %v3748 = vpop.f32.mrb[0].mxu0
      %v3749 = vadd.f32 0.0, %v3748
      %v3750 = vpop.f32.mrb[0].mxu0
      %v3751 = vpop.f32.mrb[0].mxu0
      %v3752 = vadd.f32 0.0, %v3751
      %v3753 = vpop.f32.mrb[0].mxu0
      %3754 = vmatprep.mubr.bf16.mxu0 0
      %3755 = vmatmul.mubr.bf16.gmra.mrb[0].mxu0 %v511
      %v3756 = vpop.f32.mrb[0].mxu0
      %v3757 = vadd.f32 0.0, %v3756
      %v3758 = vpop.f32.mrb[0].mxu0
      %v3759 = vpop.f32.mrb[0].mxu0
      %v3760 = vadd.f32 0.0, %v3759
      %v3761 = vpop.f32.mrb[0].mxu0
      %3762 = vmatprep.mubr.bf16.mxu0 0
      %3763 = vmatmul.mubr.bf16.gmra.mrb[0].mxu0 %v514
      %v3764 = vpop.f32.mrb[0].mxu0
      %v3765 = vadd.f32 0.0, %v3764
      %v3766 = vpop.f32.mrb[0].mxu0
      %v3767 = vpop.f32.mrb[0].mxu0
      %v3768 = vadd.f32 0.0, %v3767
      %v3769 = vpop.f32.mrb[0].mxu0
      %3770 = vmatprep.mubr.bf16.mxu0 0
      %3771 = vmatmul.mubr.bf16.gmra.mrb[0].mxu0 %v517
      %v3772 = vpop.f32.mrb[0].mxu0
      %v3773 = vadd.f32 0.0, %v3772
      %v3774 = vpop.f32.mrb[0].mxu0
      %v3775 = vpop.f32.mrb[0].mxu0
      %v3776 = vadd.f32 0.0, %v3775
      %v3777 = vpop.f32.mrb[0].mxu0
      %3778 = vmatprep.mubr.bf16.mxu0 0
      %3779 = vmatmul.mubr.bf16.gmra.mrb[0].mxu0 %v520
      %v3780 = vpop.f32.mrb[0].mxu0
      %v3781 = vadd.f32 0.0, %v3780
      %v3782 = vpop.f32.mrb[0].mxu0
      %v3783 = vpop.f32.mrb[0].mxu0
      %v3784 = vadd.f32 0.0, %v3783
      %v3785 = vpop.f32.mrb[0].mxu0
      %3786 = vmatprep.mubr.bf16.mxu0 0
      %3787 = vmatmul.mubr.bf16.gmra.mrb[0].mxu0 %v523
      %v3788 = vpop.f32.mrb[0].mxu0
      %v3789 = vadd.f32 0.0, %v3788
      %v3790 = vpop.f32.mrb[0].mxu0
      %v3791 = vpop.f32.mrb[0].mxu0
      %v3792 = vadd.f32 0.0, %v3791
      %v3793 = vpop.f32.mrb[0].mxu0
      %3794 = vmatprep.mubr.bf16.mxu0 0
      %3795 = vmatmul.mubr.bf16.gmra.mrb[0].mxu0 %v526
      %v3796 = vpop.f32.mrb[0].mxu0
      %v3797 = vadd.f32 0.0, %v3796
      %v3798 = vpop.f32.mrb[0].mxu0
      %v3799 = vpop.f32.mrb[0].mxu0
      %v3800 = vadd.f32 0.0, %v3799
      %v3801 = vpop.f32.mrb[0].mxu0
      %3802 = vmatprep.mubr.bf16.mxu0 0
      %3803 = vmatmul.mubr.bf16.gmra.mrb[0].mxu0 %v529
      %v3804 = vpop.f32.mrb[0].mxu0
      %v3805 = vadd.f32 0.0, %v3804
      %v3806 = vpop.f32.mrb[0].mxu0
      %v3807 = vpop.f32.mrb[0].mxu0
      %v3808 = vadd.f32 0.0, %v3807
      %v3809 = vpop.f32.mrb[0].mxu0
      %3810 = vmatprep.mubr.bf16.mxu0 0
      %3811 = vmatmul.mubr.bf16.gmra.mrb[0].mxu0 %v532
      %v3812 = vpop.f32.mrb[0].mxu0
      %v3813 = vadd.f32 0.0, %v3812
      %v3814 = vpop.f32.mrb[0].mxu0
      %v3815 = vpop.f32.mrb[0].mxu0
      %v3816 = vadd.f32 0.0, %v3815
      %v3817 = vpop.f32.mrb[0].mxu0
      %3818 = vdwg.mxu0
      %v3819 = vrot.slane %v3693, 1
      %v3820 = vrot.slane %v3696, 1
      %v3821 = vrot.slane %v3701, 1
      %v3822 = vrot.slane %v3704, 1
      %v3823 = vrot.slane %v3709, 1
      %v3824 = vrot.slane %v3712, 1
      %v3825 = vrot.slane %v3717, 1
      %v3826 = vrot.slane %v3720, 1
      %v3827 = vrot.slane %v3725, 1
      %v3828 = vrot.slane %v3728, 1
      %v3829 = vrot.slane %v3733, 1
      %v3830 = vrot.slane %v3736, 1
      %v3831 = vrot.slane %v3741, 1
      %v3832 = vrot.slane %v3744, 1
      %v3833 = vrot.slane %v3749, 1
      %v3834 = vrot.slane %v3752, 1
      %v3835 = vrot.slane %v3757, 1
      %v3836 = vrot.slane %v3760, 1
      %v3837 = vrot.slane %v3765, 1
      %v3838 = vrot.slane %v3768, 1
      %v3839 = vrot.slane %v3773, 1
      %v3840 = vrot.slane %v3776, 1
      %v3841 = vrot.slane %v3781, 1
      %v3842 = vrot.slane %v3784, 1
      %v3843 = vrot.slane %v3789, 1
      %v3844 = vrot.slane %v3792, 1
      %v3845 = vrot.slane %v3797, 1
      %v3846 = vrot.slane %v3800, 1
      %v3847 = vrot.slane %v3805, 1
      %v3848 = vrot.slane %v3808, 1
      %v3849 = vrot.slane %v3813, 1
      %v3850 = vrot.slane %v3816, 1
      %v3851 = vsel %vm1630, %v3849, %v3850
      %v3852 = vsel %vm1630, %v3848, %v3849
      %v3853 = vsel %vm1630, %v3847, %v3848
      %v3854 = vsel %vm1630, %v3846, %v3847
      %v3855 = vsel %vm1630, %v3845, %v3846
      %v3856 = vsel %vm1630, %v3844, %v3845
      %v3857 = vsel %vm1630, %v3843, %v3844
      %v3858 = vsel %vm1630, %v3842, %v3843
      %v3859 = vsel %vm1630, %v3841, %v3842
      %v3860 = vsel %vm1630, %v3840, %v3841
      %v3861 = vsel %vm1630, %v3839, %v3840
      %v3862 = vsel %vm1630, %v3838, %v3839
      %v3863 = vsel %vm1630, %v3837, %v3838
      %v3864 = vsel %vm1630, %v3836, %v3837
      %v3865 = vsel %vm1630, %v3835, %v3836
      %v3866 = vsel %vm1630, %v3834, %v3835
      %v3867 = vsel %vm1630, %v3833, %v3834
      %v3868 = vsel %vm1630, %v3832, %v3833
      %v3869 = vsel %vm1630, %v3831, %v3832
      %v3870 = vsel %vm1630, %v3830, %v3831
      %v3871 = vsel %vm1630, %v3829, %v3830
      %v3872 = vsel %vm1630, %v3828, %v3829
      %v3873 = vsel %vm1630, %v3827, %v3828
      %v3874 = vsel %vm1630, %v3826, %v3827
      %v3875 = vsel %vm1630, %v3825, %v3826
      %v3876 = vsel %vm1630, %v3824, %v3825
      %v3877 = vsel %vm1630, %v3823, %v3824
      %v3878 = vsel %vm1630, %v3822, %v3823
      %v3879 = vsel %vm1630, %v3821, %v3822
      %v3880 = vsel %vm1630, %v3820, %v3821
      %v3881 = vsel %vm1630, %v3819, %v3820
      %v3882 = vsel %vm1630, %v3850, %v3819
      %v3883 = vmul.f32 %v3879, %v3146
      %v3884 = vmul.f32 %v3878, %v3151
      %v3885 = vmul.f32 %v3877, %v3156
      %v3886 = vmul.f32 %v3876, %v3161
      %v3887 = vmul.f32 %v3875, %v3166
      %v3888 = vmul.f32 %v3874, %v3171
      %v3889 = vmul.f32 %v3873, %v3176
      %v3890 = vmul.f32 %v3872, %v3181
      %v3891 = vmul.f32 %v3871, %v3186
      %v3892 = vmul.f32 %v3870, %v3191
      %v3893 = vmul.f32 %v3869, %v3196
      %v3894 = vmul.f32 %v3868, %v3201
      %v3895 = vmul.f32 %v3867, %v3206
      %v3896 = vmul.f32 %v3866, %v3211
      %v3897 = vmul.f32 %v3865, %v3216
      %v3898 = vmul.f32 %v3864, %v3221
      %v3899 = vmul.f32 %v3863, %v3226
      %v3900 = vmul.f32 %v3862, %v3231
      %v3901 = vmul.f32 %v3861, %v3236
      %v3902 = vmul.f32 %v3860, %v3241
      %v3903 = vmul.f32 %v3859, %v3246
      %v3904 = vmul.f32 %v3858, %v3251
      %v3905 = vmul.f32 %v3857, %v3256
      %v3906 = vmul.f32 %v3856, %v3261
      %v3907 = vmul.f32 %v3855, %v3266
      %v3908 = vmul.f32 %v3854, %v3271
      %v3909 = vmul.f32 %v3853, %v3276
      %v3910 = vmul.f32 %v3852, %v3281
      %v3911 = vmul.f32 %v3851, %v3286
      %v3912 = vmul.f32 %v3882, %v3291
      %v3913 = vmul.f32 %v3881, %v3296
      %v3914 = vmul.f32 %v3880, %v3301
      %v3915 = vmul.f32 %v3883, %v1698
      %v3916 = vmul.f32 %v3884, %v1703
      %v3917 = vmul.f32 %v3885, %v1708
      %v3918 = vmul.f32 %v3886, %v1713
      %v3919 = vmul.f32 %v3887, %v1718
      %v3920 = vmul.f32 %v3888, %v1723
      %v3921 = vmul.f32 %v3889, %v1728
      %v3922 = vmul.f32 %v3890, %v1733
      %v3923 = vmul.f32 %v3891, %v1738
      %v3924 = vmul.f32 %v3892, %v1743
      %v3925 = vmul.f32 %v3893, %v1748
      %v3926 = vmul.f32 %v3894, %v1753
      %v3927 = vmul.f32 %v3895, %v1758
      %v3928 = vmul.f32 %v3896, %v1763
      %v3929 = vmul.f32 %v3897, %v1768
      %v3930 = vmul.f32 %v3898, %v1773
      %v3931 = vmul.f32 %v3899, %v1778
      %v3932 = vmul.f32 %v3900, %v1783
      %v3933 = vmul.f32 %v3901, %v1788
      %v3934 = vmul.f32 %v3902, %v1793
      %v3935 = vmul.f32 %v3903, %v1798
      %v3936 = vmul.f32 %v3904, %v1803
      %v3937 = vmul.f32 %v3905, %v1808
      %v3938 = vmul.f32 %v3906, %v1813
      %v3939 = vmul.f32 %v3907, %v1818
      %v3940 = vmul.f32 %v3908, %v1823
      %v3941 = vmul.f32 %v3909, %v1828
      %v3942 = vmul.f32 %v3910, %v1833
      %v3943 = vmul.f32 %v3911, %v1838
      %v3944 = vmul.f32 %v3912, %v1843
      %v3945 = vmul.f32 %v3913, %v1848
      %v3946 = vmul.f32 %v3914, %v1853
      %v3947 = vadd.f32 %v3593, %v3915
      %v3948 = vadd.f32 %v3594, %v3916
      %v3949 = vadd.f32 %v3595, %v3917
      %v3950 = vadd.f32 %v3596, %v3918
      %v3951 = vadd.f32 %v3597, %v3919
      %v3952 = vadd.f32 %v3598, %v3920
      %v3953 = vadd.f32 %v3599, %v3921
      %v3954 = vadd.f32 %v3600, %v3922
      %v3955 = vadd.f32 %v3601, %v3923
      %v3956 = vadd.f32 %v3602, %v3924
      %v3957 = vadd.f32 %v3603, %v3925
      %v3958 = vadd.f32 %v3604, %v3926
      %v3959 = vadd.f32 %v3605, %v3927
      %v3960 = vadd.f32 %v3606, %v3928
      %v3961 = vadd.f32 %v3607, %v3929
      %v3962 = vadd.f32 %v3608, %v3930
      %v3963 = vadd.f32 %v3609, %v3931
      %v3964 = vadd.f32 %v3610, %v3932
      %v3965 = vadd.f32 %v3611, %v3933
      %v3966 = vadd.f32 %v3612, %v3934
      %v3967 = vadd.f32 %v3613, %v3935
      %v3968 = vadd.f32 %v3614, %v3936
      %v3969 = vadd.f32 %v3615, %v3937
      %v3970 = vadd.f32 %v3616, %v3938
      %v3971 = vadd.f32 %v3617, %v3939
      %v3972 = vadd.f32 %v3618, %v3940
      %v3973 = vadd.f32 %v3619, %v3941
      %v3974 = vadd.f32 %v3620, %v3942
      %v3975 = vadd.f32 %v3621, %v3943
      %v3976 = vadd.f32 %v3622, %v3944
      %v3977 = vadd.f32 %v3623, %v3945
      %v3978 = vadd.f32 %v3624, %v3946
      %v3979 = vld [vmem:[#allocation2] sm:$0xff]
      %v3980 = vld [vmem:[#allocation2 + $0x8] sm:$0xff]
      %v3981 = vld [vmem:[#allocation2 + $0x10] sm:$0xff]
      %v3982 = vld [vmem:[#allocation2 + $0x18] sm:$0xff]
      %v3983 = vld [vmem:[#allocation2 + $0x20] sm:$0xff]
      %v3984 = vld [vmem:[#allocation2 + $0x28] sm:$0xff]
      %v3985 = vld [vmem:[#allocation2 + $0x30] sm:$0xff]
      %v3986 = vld [vmem:[#allocation2 + $0x38] sm:$0xff]
      %v3987 = vld [vmem:[#allocation2 + $0x40] sm:$0xff]
      %v3988 = vld [vmem:[#allocation2 + $0x48] sm:$0xff]
      %v3989 = vld [vmem:[#allocation2 + $0x50] sm:$0xff]
      %v3990 = vld [vmem:[#allocation2 + $0x58] sm:$0xff]
      %v3991 = vld [vmem:[#allocation2 + $0x60] sm:$0xff]
      %v3992 = vld [vmem:[#allocation2 + $0x68] sm:$0xff]
      %v3993 = vld [vmem:[#allocation2 + $0x70] sm:$0xff]
      %v3994 = vld [vmem:[#allocation2 + $0x78] sm:$0xff]
      %v3995 = vld [vmem:[#allocation2 + $0x80] sm:$0xff]
      %v3996 = vld [vmem:[#allocation2 + $0x88] sm:$0xff]
      %v3997 = vld [vmem:[#allocation2 + $0x90] sm:$0xff]
      %v3998 = vld [vmem:[#allocation2 + $0x98] sm:$0xff]
      %v3999 = vld [vmem:[#allocation2 + $0xa0] sm:$0xff]
      %v4000 = vld [vmem:[#allocation2 + $0xa8] sm:$0xff]
      %v4001 = vld [vmem:[#allocation2 + $0xb0] sm:$0xff]
      %v4002 = vld [vmem:[#allocation2 + $0xb8] sm:$0xff]
      %v4003 = vld [vmem:[#allocation2 + $0xc0] sm:$0xff]
      %v4004 = vld [vmem:[#allocation2 + $0xc8] sm:$0xff]
      %v4005 = vld [vmem:[#allocation2 + $0xd0] sm:$0xff]
      %v4006 = vld [vmem:[#allocation2 + $0xd8] sm:$0xff]
      %v4007 = vld [vmem:[#allocation2 + $0xe0] sm:$0xff]
      %v4008 = vld [vmem:[#allocation2 + $0xe8] sm:$0xff]
      %v4009 = vld [vmem:[#allocation2 + $0xf0] sm:$0xff]
      %v4010 = vld [vmem:[#allocation2 + $0xf8] sm:$0xff]
      %v4011 = vadd.f32 %v3979, %v3947
      %v4012 = vadd.f32 %v3980, %v3948
      %v4013 = vadd.f32 %v3981, %v3949
      %v4014 = vadd.f32 %v3982, %v3950
      %v4015 = vadd.f32 %v3983, %v3951
      %v4016 = vadd.f32 %v3984, %v3952
      %v4017 = vadd.f32 %v3985, %v3953
      %v4018 = vadd.f32 %v3986, %v3954
      %v4019 = vadd.f32 %v3987, %v3955
      %v4020 = vadd.f32 %v3988, %v3956
      %v4021 = vadd.f32 %v3989, %v3957
      %v4022 = vadd.f32 %v3990, %v3958
      %v4023 = vadd.f32 %v3991, %v3959
      %v4024 = vadd.f32 %v3992, %v3960
      %v4025 = vadd.f32 %v3993, %v3961
      %v4026 = vadd.f32 %v3994, %v3962
      %v4027 = vadd.f32 %v3995, %v3963
      %v4028 = vadd.f32 %v3996, %v3964
      %v4029 = vadd.f32 %v3997, %v3965
      %v4030 = vadd.f32 %v3998, %v3966
      %v4031 = vadd.f32 %v3999, %v3967
      %v4032 = vadd.f32 %v4000, %v3968
      %v4033 = vadd.f32 %v4001, %v3969
      %v4034 = vadd.f32 %v4002, %v3970
      %v4035 = vadd.f32 %v4003, %v3971
      %v4036 = vadd.f32 %v4004, %v3972
      %v4037 = vadd.f32 %v4005, %v3973
      %v4038 = vadd.f32 %v4006, %v3974
      %v4039 = vadd.f32 %v4007, %v3975
      %v4040 = vadd.f32 %v4008, %v3976
      %v4041 = vadd.f32 %v4009, %v3977
      %v4042 = vadd.f32 %v4010, %v3978
      %4043 = vst.msk [vmem:[#allocation2] sm:$0xff] %vm485, %v4011
      %4044 = vst.msk [vmem:[#allocation2 + $0x8] sm:$0xff] %vm485, %v4012
      %4045 = vst.msk [vmem:[#allocation2 + $0x10] sm:$0xff] %vm485, %v4013
      %4046 = vst.msk [vmem:[#allocation2 + $0x18] sm:$0xff] %vm485, %v4014
      %4047 = vst.msk [vmem:[#allocation2 + $0x20] sm:$0xff] %vm485, %v4015
      %4048 = vst.msk [vmem:[#allocation2 + $0x28] sm:$0xff] %vm485, %v4016
      %4049 = vst.msk [vmem:[#allocation2 + $0x30] sm:$0xff] %vm485, %v4017
      %4050 = vst.msk [vmem:[#allocation2 + $0x38] sm:$0xff] %vm485, %v4018
      %4051 = vst.msk [vmem:[#allocation2 + $0x40] sm:$0xff] %vm485, %v4019
      %4052 = vst.msk [vmem:[#allocation2 + $0x48] sm:$0xff] %vm485, %v4020
      %4053 = vst.msk [vmem:[#allocation2 + $0x50] sm:$0xff] %vm485, %v4021
      %4054 = vst.msk [vmem:[#allocation2 + $0x58] sm:$0xff] %vm485, %v4022
      %4055 = vst.msk [vmem:[#allocation2 + $0x60] sm:$0xff] %vm485, %v4023
      %4056 = vst.msk [vmem:[#allocation2 + $0x68] sm:$0xff] %vm485, %v4024
      %4057 = vst.msk [vmem:[#allocation2 + $0x70] sm:$0xff] %vm485, %v4025
      %4058 = vst.msk [vmem:[#allocation2 + $0x78] sm:$0xff] %vm485, %v4026
      %4059 = vst.msk [vmem:[#allocation2 + $0x80] sm:$0xff] %vm485, %v4027
      %4060 = vst.msk [vmem:[#allocation2 + $0x88] sm:$0xff] %vm485, %v4028
      %4061 = vst.msk [vmem:[#allocation2 + $0x90] sm:$0xff] %vm485, %v4029
      %4062 = vst.msk [vmem:[#allocation2 + $0x98] sm:$0xff] %vm485, %v4030
      %4063 = vst.msk [vmem:[#allocation2 + $0xa0] sm:$0xff] %vm485, %v4031
      %4064 = vst.msk [vmem:[#allocation2 + $0xa8] sm:$0xff] %vm485, %v4032
      %4065 = vst.msk [vmem:[#allocation2 + $0xb0] sm:$0xff] %vm485, %v4033
      %4066 = vst.msk [vmem:[#allocation2 + $0xb8] sm:$0xff] %vm485, %v4034
      %4067 = vst.msk [vmem:[#allocation2 + $0xc0] sm:$0xff] %vm485, %v4035
      %4068 = vst.msk [vmem:[#allocation2 + $0xc8] sm:$0xff] %vm485, %v4036
      %4069 = vst.msk [vmem:[#allocation2 + $0xd0] sm:$0xff] %vm485, %v4037
      %4070 = vst.msk [vmem:[#allocation2 + $0xd8] sm:$0xff] %vm485, %v4038
      %4071 = vst.msk [vmem:[#allocation2 + $0xe0] sm:$0xff] %vm485, %v4039
      %4072 = vst.msk [vmem:[#allocation2 + $0xe8] sm:$0xff] %vm485, %v4040
      %4073 = vst.msk [vmem:[#allocation2 + $0xf0] sm:$0xff] %vm485, %v4041
      %4074 = vst.msk [vmem:[#allocation2 + $0xf8] sm:$0xff] %vm485, %v4042
      %v4075 = vld [vmem:[#allocation2] sm:$0xff]
      %v4076 = vld [vmem:[#allocation2 + $0x8] sm:$0xff]
      %v4077 = vld [vmem:[#allocation2 + $0x10] sm:$0xff]
      %v4078 = vld [vmem:[#allocation2 + $0x18] sm:$0xff]
      %v4079 = vld [vmem:[#allocation2 + $0x20] sm:$0xff]
      %v4080 = vld [vmem:[#allocation2 + $0x28] sm:$0xff]
      %v4081 = vld [vmem:[#allocation2 + $0x30] sm:$0xff]
      %v4082 = vld [vmem:[#allocation2 + $0x38] sm:$0xff]
      %v4083 = vld [vmem:[#allocation2 + $0x40] sm:$0xff]
      %v4084 = vld [vmem:[#allocation2 + $0x48] sm:$0xff]
      %v4085 = vld [vmem:[#allocation2 + $0x50] sm:$0xff]
      %v4086 = vld [vmem:[#allocation2 + $0x58] sm:$0xff]
      %v4087 = vld [vmem:[#allocation2 + $0x60] sm:$0xff]
      %v4088 = vld [vmem:[#allocation2 + $0x68] sm:$0xff]
      %v4089 = vld [vmem:[#allocation2 + $0x70] sm:$0xff]
      %v4090 = vld [vmem:[#allocation2 + $0x78] sm:$0xff]
      %v4091 = vld [vmem:[#allocation2 + $0x80] sm:$0xff]
      %v4092 = vld [vmem:[#allocation2 + $0x88] sm:$0xff]
      %v4093 = vld [vmem:[#allocation2 + $0x90] sm:$0xff]
      %v4094 = vld [vmem:[#allocation2 + $0x98] sm:$0xff]
      %v4095 = vld [vmem:[#allocation2 + $0xa0] sm:$0xff]
      %v4096 = vld [vmem:[#allocation2 + $0xa8] sm:$0xff]
      %v4097 = vld [vmem:[#allocation2 + $0xb0] sm:$0xff]
      %v4098 = vld [vmem:[#allocation2 + $0xb8] sm:$0xff]
      %v4099 = vld [vmem:[#allocation2 + $0xc0] sm:$0xff]
      %v4100 = vld [vmem:[#allocation2 + $0xc8] sm:$0xff]
      %v4101 = vld [vmem:[#allocation2 + $0xd0] sm:$0xff]
      %v4102 = vld [vmem:[#allocation2 + $0xd8] sm:$0xff]
      %v4103 = vld [vmem:[#allocation2 + $0xe0] sm:$0xff]
      %v4104 = vld [vmem:[#allocation2 + $0xe8] sm:$0xff]
      %v4105 = vld [vmem:[#allocation2 + $0xf0] sm:$0xff]
      %v4106 = vld [vmem:[#allocation2 + $0xf8] sm:$0xff]
      %v4107 = vpack.c.bf16 %v4076, %v4075
      %v4108 = vpack.c.bf16 %v4078, %v4077
      %v4109 = vpack.c.bf16 %v4080, %v4079
      %v4110 = vpack.c.bf16 %v4082, %v4081
      %v4111 = vpack.c.bf16 %v4084, %v4083
      %v4112 = vpack.c.bf16 %v4086, %v4085
      %v4113 = vpack.c.bf16 %v4088, %v4087
      %v4114 = vpack.c.bf16 %v4090, %v4089
      %v4115 = vpack.c.bf16 %v4092, %v4091
      %v4116 = vpack.c.bf16 %v4094, %v4093
      %v4117 = vpack.c.bf16 %v4096, %v4095
      %v4118 = vpack.c.bf16 %v4098, %v4097
      %v4119 = vpack.c.bf16 %v4100, %v4099
      %v4120 = vpack.c.bf16 %v4102, %v4101
      %v4121 = vpack.c.bf16 %v4104, %v4103
      %v4122 = vpack.c.bf16 %v4106, %v4105
      %v4139 = vunpack.c.l.b16 %v4107
      %v4140 = vunpack.c.h.b16 %v4107
      %v4141 = vunpack.c.l.b16 %v4108
      %v4142 = vunpack.c.h.b16 %v4108
      %v4143 = vunpack.c.l.b16 %v4109
      %v4144 = vunpack.c.h.b16 %v4109
      %v4145 = vunpack.c.l.b16 %v4110
      %v4146 = vunpack.c.h.b16 %v4110
      %v4147 = vunpack.c.l.b16 %v4111
      %v4148 = vunpack.c.h.b16 %v4111
      %v4149 = vunpack.c.l.b16 %v4112
      %v4150 = vunpack.c.h.b16 %v4112
      %v4151 = vunpack.c.l.b16 %v4113
      %v4152 = vunpack.c.h.b16 %v4113
      %v4153 = vunpack.c.l.b16 %v4114
      %v4154 = vunpack.c.h.b16 %v4114
      %v4155 = vunpack.c.l.b16 %v4115
      %v4156 = vunpack.c.h.b16 %v4115
      %v4157 = vunpack.c.l.b16 %v4116
      %v4158 = vunpack.c.h.b16 %v4116
      %v4159 = vunpack.c.l.b16 %v4117
      %v4160 = vunpack.c.h.b16 %v4117
      %v4161 = vunpack.c.l.b16 %v4118
      %v4162 = vunpack.c.h.b16 %v4118
      %v4163 = vunpack.c.l.b16 %v4119
      %v4164 = vunpack.c.h.b16 %v4119
      %v4165 = vunpack.c.l.b16 %v4120
      %v4166 = vunpack.c.h.b16 %v4120
      %v4167 = vunpack.c.l.b16 %v4121
      %v4168 = vunpack.c.h.b16 %v4121
      %v4169 = vunpack.c.l.b16 %v4122
      %v4170 = vunpack.c.h.b16 %v4122
      %v4171 = vpack.c.b16 %v4139, %v4139
      %v4172 = vpack.c.b16 %v4140, %v4140
      %v4173 = vpack.c.b16 %v4141, %v4141
      %v4174 = vpack.c.b16 %v4142, %v4142
      %v4175 = vpack.c.b16 %v4143, %v4143
      %v4176 = vpack.c.b16 %v4144, %v4144
      %v4177 = vpack.c.b16 %v4145, %v4145
      %v4178 = vpack.c.b16 %v4146, %v4146
      %v4179 = vpack.c.b16 %v4147, %v4147
      %v4180 = vpack.c.b16 %v4148, %v4148
      %v4181 = vpack.c.b16 %v4149, %v4149
      %v4182 = vpack.c.b16 %v4150, %v4150
      %v4183 = vpack.c.b16 %v4151, %v4151
      %v4184 = vpack.c.b16 %v4152, %v4152
      %v4185 = vpack.c.b16 %v4153, %v4153
      %v4186 = vpack.c.b16 %v4154, %v4154
      %v4187 = vpack.c.b16 %v4155, %v4155
      %v4188 = vpack.c.b16 %v4156, %v4156
      %v4189 = vpack.c.b16 %v4157, %v4157
      %v4190 = vpack.c.b16 %v4158, %v4158
      %v4191 = vpack.c.b16 %v4159, %v4159
      %v4192 = vpack.c.b16 %v4160, %v4160
      %v4193 = vpack.c.b16 %v4161, %v4161
      %v4194 = vpack.c.b16 %v4162, %v4162
      %v4195 = vpack.c.b16 %v4163, %v4163
      %v4196 = vpack.c.b16 %v4164, %v4164
      %v4197 = vpack.c.b16 %v4165, %v4165
      %v4198 = vpack.c.b16 %v4166, %v4166
      %v4199 = vpack.c.b16 %v4167, %v4167
      %v4200 = vpack.c.b16 %v4168, %v4168
      %v4201 = vpack.c.b16 %v4169, %v4169
      %v4202 = vpack.c.b16 %v4170, %v4170
      %vm4235 = vcmask 519168
      %4236 = vst.msk [vmem:[%s204] sm:$0xf] %vm4235, %v4171
      %4237 = vst.msk [vmem:[%s204 + $0x4] sm:$0xf] %vm4235, %v4172
      %4238 = vst.msk [vmem:[%s204 + $0x8] sm:$0xf] %vm4235, %v4173
      %4239 = vst.msk [vmem:[%s204 + $0xc] sm:$0xf] %vm4235, %v4174
      %4240 = vst.msk [vmem:[%s204 + $0x10] sm:$0xf] %vm4235, %v4175
      %4241 = vst.msk [vmem:[%s204 + $0x14] sm:$0xf] %vm4235, %v4176
      %4242 = vst.msk [vmem:[%s204 + $0x18] sm:$0xf] %vm4235, %v4177
      %4243 = vst.msk [vmem:[%s204 + $0x1c] sm:$0xf] %vm4235, %v4178
      %4244 = vst.msk [vmem:[%s204 + $0x20] sm:$0xf] %vm4235, %v4179
      %4245 = vst.msk [vmem:[%s204 + $0x24] sm:$0xf] %vm4235, %v4180
      %4246 = vst.msk [vmem:[%s204 + $0x28] sm:$0xf] %vm4235, %v4181
      %4247 = vst.msk [vmem:[%s204 + $0x2c] sm:$0xf] %vm4235, %v4182
      %4248 = vst.msk [vmem:[%s204 + $0x30] sm:$0xf] %vm4235, %v4183
      %4249 = vst.msk [vmem:[%s204 + $0x34] sm:$0xf] %vm4235, %v4184
      %4250 = vst.msk [vmem:[%s204 + $0x38] sm:$0xf] %vm4235, %v4185
      %4251 = vst.msk [vmem:[%s204 + $0x3c] sm:$0xf] %vm4235, %v4186
      %4252 = vst.msk [vmem:[%s204 + $0x40] sm:$0xf] %vm4235, %v4187
      %4253 = vst.msk [vmem:[%s204 + $0x44] sm:$0xf] %vm4235, %v4188
      %4254 = vst.msk [vmem:[%s204 + $0x48] sm:$0xf] %vm4235, %v4189
      %4255 = vst.msk [vmem:[%s204 + $0x4c] sm:$0xf] %vm4235, %v4190
      %4256 = vst.msk [vmem:[%s204 + $0x50] sm:$0xf] %vm4235, %v4191
      %4257 = vst.msk [vmem:[%s204 + $0x54] sm:$0xf] %vm4235, %v4192
      %4258 = vst.msk [vmem:[%s204 + $0x58] sm:$0xf] %vm4235, %v4193
      %4259 = vst.msk [vmem:[%s204 + $0x5c] sm:$0xf] %vm4235, %v4194
      %4260 = vst.msk [vmem:[%s204 + $0x60] sm:$0xf] %vm4235, %v4195
      %4261 = vst.msk [vmem:[%s204 + $0x64] sm:$0xf] %vm4235, %v4196
      %4262 = vst.msk [vmem:[%s204 + $0x68] sm:$0xf] %vm4235, %v4197
      %4263 = vst.msk [vmem:[%s204 + $0x6c] sm:$0xf] %vm4235, %v4198
      %4264 = vst.msk [vmem:[%s204 + $0x70] sm:$0xf] %vm4235, %v4199
      %4265 = vst.msk [vmem:[%s204 + $0x74] sm:$0xf] %vm4235, %v4200
      %4266 = vst.msk [vmem:[%s204 + $0x78] sm:$0xf] %vm4235, %v4201
      %4267 = vst.msk [vmem:[%s204 + $0x7c] sm:$0xf] %vm4235, %v4202
      %v4268 = vsel %vm485, %v4075, 0.0
      %v4269 = vsel %vm485, %v4076, 0.0
      %v4270 = vadd.f32 %v4268, %v4269
      %v4271 = vsel %vm485, %v4077, 0.0
      %v4272 = vadd.f32 %v4270, %v4271
      %v4273 = vsel %vm485, %v4078, 0.0
      %v4274 = vadd.f32 %v4272, %v4273
      %v4275 = vsel %vm485, %v4079, 0.0
      %v4276 = vadd.f32 %v4274, %v4275
      %v4277 = vsel %vm485, %v4080, 0.0
      %v4278 = vadd.f32 %v4276, %v4277
      %v4279 = vsel %vm485, %v4081, 0.0
      %v4280 = vadd.f32 %v4278, %v4279
      %v4281 = vsel %vm485, %v4082, 0.0
      %v4282 = vadd.f32 %v4280, %v4281
      %v4283 = vsel %vm485, %v4083, 0.0
      %v4284 = vadd.f32 %v4282, %v4283
      %v4285 = vsel %vm485, %v4084, 0.0
      %v4286 = vadd.f32 %v4284, %v4285
      %v4287 = vsel %vm485, %v4085, 0.0
      %v4288 = vadd.f32 %v4286, %v4287
      %v4289 = vsel %vm485, %v4086, 0.0
      %v4290 = vadd.f32 %v4288, %v4289
      %v4291 = vsel %vm485, %v4087, 0.0
      %v4292 = vadd.f32 %v4290, %v4291
      %v4293 = vsel %vm485, %v4088, 0.0
      %v4294 = vadd.f32 %v4292, %v4293
      %v4295 = vsel %vm485, %v4089, 0.0
      %v4296 = vadd.f32 %v4294, %v4295
      %v4297 = vsel %vm485, %v4090, 0.0
      %v4298 = vadd.f32 %v4296, %v4297
      %v4299 = vsel %vm485, %v4091, 0.0
      %v4300 = vadd.f32 %v4298, %v4299
      %v4301 = vsel %vm485, %v4092, 0.0
      %v4302 = vadd.f32 %v4300, %v4301
      %v4303 = vsel %vm485, %v4093, 0.0
      %v4304 = vadd.f32 %v4302, %v4303
      %v4305 = vsel %vm485, %v4094, 0.0
      %v4306 = vadd.f32 %v4304, %v4305
      %v4307 = vsel %vm485, %v4095, 0.0
      %v4308 = vadd.f32 %v4306, %v4307
      %v4309 = vsel %vm485, %v4096, 0.0
      %v4310 = vadd.f32 %v4308, %v4309
      %v4311 = vsel %vm485, %v4097, 0.0
      %v4312 = vadd.f32 %v4310, %v4311
      %v4313 = vsel %vm485, %v4098, 0.0
      %v4314 = vadd.f32 %v4312, %v4313
      %v4315 = vsel %vm485, %v4099, 0.0
      %v4316 = vadd.f32 %v4314, %v4315
      %v4317 = vsel %vm485, %v4100, 0.0
      %v4318 = vadd.f32 %v4316, %v4317
      %v4319 = vsel %vm485, %v4101, 0.0
      %v4320 = vadd.f32 %v4318, %v4319
      %v4321 = vsel %vm485, %v4102, 0.0
      %v4322 = vadd.f32 %v4320, %v4321
      %v4323 = vsel %vm485, %v4103, 0.0
      %v4324 = vadd.f32 %v4322, %v4323
      %v4325 = vsel %vm485, %v4104, 0.0
      %v4326 = vadd.f32 %v4324, %v4325
      %v4327 = vsel %vm485, %v4105, 0.0
      %v4328 = vadd.f32 %v4326, %v4327
      %v4329 = vsel %vm485, %v4106, 0.0
      %v4330 = vadd.f32 %v4328, %v4329
      %v4331 = vrot.slane %v4330, 4
      %v4332 = vadd.f32 %v4330, %v4331
      %v4333 = vrot.slane %v4332, 2
      %v4334 = vadd.f32 %v4332, %v4333
      %v4335 = vrot.slane %v4334, 1
      %v4336 = vadd.f32 %v4334, %v4335
      %v4337 = vmul.f32 %v4075, %v4075
      %v4338 = vmul.f32 %v4076, %v4076
      %v4339 = vmul.f32 %v4077, %v4077
      %v4340 = vmul.f32 %v4078, %v4078
      %v4341 = vmul.f32 %v4079, %v4079
      %v4342 = vmul.f32 %v4080, %v4080
      %v4343 = vmul.f32 %v4081, %v4081
      %v4344 = vmul.f32 %v4082, %v4082
      %v4345 = vmul.f32 %v4083, %v4083
      %v4346 = vmul.f32 %v4084, %v4084
      %v4347 = vmul.f32 %v4085, %v4085
      %v4348 = vmul.f32 %v4086, %v4086
      %v4349 = vmul.f32 %v4087, %v4087
      %v4350 = vmul.f32 %v4088, %v4088
      %v4351 = vmul.f32 %v4089, %v4089
      %v4352 = vmul.f32 %v4090, %v4090
      %v4353 = vmul.f32 %v4091, %v4091
      %v4354 = vmul.f32 %v4092, %v4092
      %v4355 = vmul.f32 %v4093, %v4093
      %v4356 = vmul.f32 %v4094, %v4094
      %v4357 = vmul.f32 %v4095, %v4095
      %v4358 = vmul.f32 %v4096, %v4096
      %v4359 = vmul.f32 %v4097, %v4097
      %v4360 = vmul.f32 %v4098, %v4098
      %v4361 = vmul.f32 %v4099, %v4099
      %v4362 = vmul.f32 %v4100, %v4100
      %v4363 = vmul.f32 %v4101, %v4101
      %v4364 = vmul.f32 %v4102, %v4102
      %v4365 = vmul.f32 %v4103, %v4103
      %v4366 = vmul.f32 %v4104, %v4104
      %v4367 = vmul.f32 %v4105, %v4105
      %v4368 = vmul.f32 %v4106, %v4106
      %v4369 = vsel %vm485, %v4337, 0.0
      %v4370 = vsel %vm485, %v4338, 0.0
      %v4371 = vadd.f32 %v4369, %v4370
      %v4372 = vsel %vm485, %v4339, 0.0
      %v4373 = vadd.f32 %v4371, %v4372
      %v4374 = vsel %vm485, %v4340, 0.0
      %v4375 = vadd.f32 %v4373, %v4374
      %v4376 = vsel %vm485, %v4341, 0.0
      %v4377 = vadd.f32 %v4375, %v4376
      %v4378 = vsel %vm485, %v4342, 0.0
      %v4379 = vadd.f32 %v4377, %v4378
      %v4380 = vsel %vm485, %v4343, 0.0
      %v4381 = vadd.f32 %v4379, %v4380
      %v4382 = vsel %vm485, %v4344, 0.0
      %v4383 = vadd.f32 %v4381, %v4382
      %v4384 = vsel %vm485, %v4345, 0.0
      %v4385 = vadd.f32 %v4383, %v4384
      %v4386 = vsel %vm485, %v4346, 0.0
      %v4387 = vadd.f32 %v4385, %v4386
      %v4388 = vsel %vm485, %v4347, 0.0
      %v4389 = vadd.f32 %v4387, %v4388
      %v4390 = vsel %vm485, %v4348, 0.0
      %v4391 = vadd.f32 %v4389, %v4390
      %v4392 = vsel %vm485, %v4349, 0.0
      %v4393 = vadd.f32 %v4391, %v4392
      %v4394 = vsel %vm485, %v4350, 0.0
      %v4395 = vadd.f32 %v4393, %v4394
      %v4396 = vsel %vm485, %v4351, 0.0
      %v4397 = vadd.f32 %v4395, %v4396
      %v4398 = vsel %vm485, %v4352, 0.0
      %v4399 = vadd.f32 %v4397, %v4398
      %v4400 = vsel %vm485, %v4353, 0.0
      %v4401 = vadd.f32 %v4399, %v4400
      %v4402 = vsel %vm485, %v4354, 0.0
      %v4403 = vadd.f32 %v4401, %v4402
      %v4404 = vsel %vm485, %v4355, 0.0
      %v4405 = vadd.f32 %v4403, %v4404
      %v4406 = vsel %vm485, %v4356, 0.0
      %v4407 = vadd.f32 %v4405, %v4406
      %v4408 = vsel %vm485, %v4357, 0.0
      %v4409 = vadd.f32 %v4407, %v4408
      %v4410 = vsel %vm485, %v4358, 0.0
      %v4411 = vadd.f32 %v4409, %v4410
      %v4412 = vsel %vm485, %v4359, 0.0
      %v4413 = vadd.f32 %v4411, %v4412
      %v4414 = vsel %vm485, %v4360, 0.0
      %v4415 = vadd.f32 %v4413, %v4414
      %v4416 = vsel %vm485, %v4361, 0.0
      %v4417 = vadd.f32 %v4415, %v4416
      %v4418 = vsel %vm485, %v4362, 0.0
      %v4419 = vadd.f32 %v4417, %v4418
      %v4420 = vsel %vm485, %v4363, 0.0
      %v4421 = vadd.f32 %v4419, %v4420
      %v4422 = vsel %vm485, %v4364, 0.0
      %v4423 = vadd.f32 %v4421, %v4422
      %v4424 = vsel %vm485, %v4365, 0.0
      %v4425 = vadd.f32 %v4423, %v4424
      %v4426 = vsel %vm485, %v4366, 0.0
      %v4427 = vadd.f32 %v4425, %v4426
      %v4428 = vsel %vm485, %v4367, 0.0
      %v4429 = vadd.f32 %v4427, %v4428
      %v4430 = vsel %vm485, %v4368, 0.0
      %v4431 = vadd.f32 %v4429, %v4430
      %v4432 = vrot.slane %v4431, 4
      %v4433 = vadd.f32 %v4431, %v4432
      %v4434 = vrot.slane %v4433, 2
      %v4435 = vadd.f32 %v4433, %v4434
      %v4436 = vrot.slane %v4435, 1
      %v4437 = vadd.f32 %v4435, %v4436
      %vm4438 = vcmask 1040384
      %v4439 = vsel %vm4438, %v4336, %v4437
      %vm4440 = vcmask 517120
      %4441 = vst.msk [vmem:[%s208] sm:$0x3] %vm4440, %v4439
      %p4442 = scmp.lt.s32.totalorder %s16, 1
      %s4443 = scalar_select %p4442, %s16, 1
      %s4444 = smul.addr %s4443, 32
      %s4445 = smul.addr %s4444, 4
      %s4446 = scalar_lea.vmem %s3, %s4445
      %p4447 = scmp.lt.s32.totalorder %s16, 1
      %s4448 = scalar_select %p4447, %s16, 1
      %s4449 = smul.addr %s4448, 2
      %s4450 = scalar_lea.vmem %s4, %s4449
      // Predicated region
      $region33: #{basic_block.3} parent=31 // pred_check
        %p4451 = pneg %p102
      $region34: #{basic_block.3} parent=31 // pred_check_branch
        %4453 = sbr.rel (%p4451) target = $region36
      $region35: #{basic_block.3} parent=31 // pred_region
        _
      $region36: #{basic_block.3} parent=31 // pred_fallthru
        _
      // Predicated region
      $region37: #{basic_block.3} parent=31 // pred_check
        %p4454 = pneg %p128
      $region38: #{basic_block.3} parent=31 // pred_check_branch
        %4456 = sbr.rel (%p4454) target = $region40
      $region39: #{basic_block.3} parent=31 // pred_region
        _
      $region40: #{basic_block.3} parent=31 // pred_fallthru
        _
    $region32: #{basic_block.3} parent=5 // pred_fallthru
      _
    %p4457 = scmp.le.s32.totalorder 2, %s11
    // Predicated region
    $region41: #{basic_block.3} parent=5 // pred_check
      %p4458 = pneg %p4457
    $region42: #{basic_block.3} parent=5 // pred_check_branch
      %4460 = sbr.rel (%p4458) target = $region44
    $region43: #{basic_block.3} parent=5 // pred_region
      %s4461 = ssub.s32 %s11, 2
      // Predicated region
      $region45: #{basic_block.3} parent=43 // pred_check
        %p4462 = pneg %p108
      $region46: #{basic_block.3} parent=43 // pred_check_branch
        %4464 = sbr.rel (%p4462) target = $region48
      $region47: #{basic_block.3} parent=43 // pred_region
        %p4465 = scmp.lt.s32.totalorder %s17, 1
        %s4466 = scalar_select %p4465, %s17, 1
        %s4467 = smul.addr %s4466, 32
        %s4468 = smul.addr %s4467, 4
        %s4469 = scalar_lea.vmem %s3, %s4468
      $region48: #{basic_block.3} parent=43 // pred_fallthru
        _
      // Predicated region
      $region49: #{basic_block.3} parent=43 // pred_check
        %p4470 = pneg %p134
      $region50: #{basic_block.3} parent=43 // pred_check_branch
        %4472 = sbr.rel (%p4470) target = $region52
      $region51: #{basic_block.3} parent=43 // pred_region
        %p4473 = scmp.lt.s32.totalorder %s17, 1
        %s4474 = scalar_select %p4473, %s17, 1
        %s4475 = smul.addr %s4474, 2
        %s4476 = scalar_lea.vmem %s4, %s4475
      $region52: #{basic_block.3} parent=43 // pred_fallthru
        _
    $region44: #{basic_block.3} parent=5 // pred_fallthru
      _
  $region6: #{basic_block.3} parent=0 // loop_footer
    %s15 = sadd.s32 1, %s11
  $region7: #{basic_block.3} parent=0 // loop_footer_branch
    %10 = sbr.rel target = $region3
  $region8: #{basic_block.3} parent=0 // loop_exit
    _

</llo_original>
